<compile_context>
chip_gen: v5e
topology: v5e:2x2
jax: 0.10.0
libtpu: 0.0.40
codegen_flags: <defaults>
</compile_context>

<pallas_src>
import functools

import numpy as np
import jax
import jax.numpy as jnp
from jax.experimental import pallas as pl
from jax.experimental.pallas import tpu as pltpu

ALPHA = 0.1
EPS = 1e-5

_BF16_SUBLANES = 16          # bf16 sublane pack -> full-tile store granularity (rows)
_MAX_BATCH_BLOCK = 8         # cap on samples folded per grid step (keeps the trace small)
_VMEM_BUDGET = 24 * 2**20    # conservative per-step working-set budget (v7x: 64 MiB / TC)

# 27 conv taps in (kd, kh, kw) order, kw fastest -- must match the weight reshape below.
_TAPS = tuple((kd, kh, kw) for kd in range(3) for kh in range(3) for kw in range(3))

_GROUPED_STORES_OK = True    # flipped off once if the grouped col-store variant fails to lower


def _resblock_kernel(x_ref, w_ref, b_ref, m_ref, o_ref, col_ref, *,
                     alpha, eps, C, S, S_pad, NB, offsets, group, n_tap_pad):
    """One grid step: NB samples, each a (C, S_pad) slab (S = D*H*W, row-major d,h,w).

    x_ref : (NB*C, S_pad) f32          w_ref : (C, n_tap_pad*C) bf16    b_ref: (C, 1) f32
    m_ref : (28, S_pad)   bf16 {0,1}   rows 0..26 = tap validity (incl. lane<S), row 27 = lane<S
    o_ref : (NB*C, S_pad) f32          col_ref: (n_tap_pad*C, NB*S_pad) bf16 im2col scratch
    """
    inv_S = 1.0 / S

    def inorm_lrelu(y):
        # InstanceNorm3d (affine=False, biased variance) + LeakyReLU(alpha), f32 math.
        # One-pass E[y^2] - E[y]^2 so zeroed pad lanes drop out of both sums.
        # TODO(synk): two-pass variance if tolerances tighten (cancellation when |mean| >> std).
        s1 = jnp.sum(y, axis=1, keepdims=True) * inv_S
        s2 = jnp.sum(y * y, axis=1, keepdims=True) * inv_S
        yn = (y - s1) * jax.lax.rsqrt(s2 - s1 * s1 + eps)
        return jnp.where(yn >= 0, yn, alpha * yn)

    # ---- pass 1: per-sample norm + LeakyReLU, bf16 im2col build -------------------------
    for n in range(NB):
        x_n = x_ref[n * C:(n + 1) * C, :]                       # (C, S_pad) f32
        # Cast to bf16 once: all rolls, mask multiplies, stores and the GEMM read bf16.
        a = inorm_lrelu(x_n).astype(jnp.bfloat16)

        for g in range(n_tap_pad // group):
            parts = []
            for j in range(group):
                t = g * group + j
                if t >= 27:
                    # Dummy tap padding 27 -> n_tap_pad; the matching weight columns are zero.
                    parts.append(jnp.zeros((C, S_pad), jnp.bfloat16))
                    continue
                off = offsets[t]
                # Static lane roll: out[:, s] = a[:, (s + off) % S_pad].  jnp.roll with a
                # static shift lowers to two static lane slices + a lane concat (no gather);
                # the precomputed masks zero every wrapped / out-of-volume / pad-lane value.
                shifted = a if off == 0 else jnp.roll(a, -off, axis=1)
                parts.append(shifted * m_ref[t:t + 1, :])
            blk = parts[0] if group == 1 else jnp.concatenate(parts, axis=0)
            col_ref[g * group * C:(g + 1) * group * C, n * S_pad:(n + 1) * S_pad] = blk

    # ---- single fused MXU GEMM over all taps and all NB samples -------------------------
    conv = jnp.dot(w_ref[...], col_ref[...], preferred_element_type=jnp.float32)  # (C, NB*S_pad)

    # ---- pass 2: bias + residual, second InstanceNorm + LeakyReLU -----------------------
    for n in range(NB):
        x_n = x_ref[n * C:(n + 1) * C, :]
        res = conv[:, n * S_pad:(n + 1) * S_pad] + b_ref[...] + x_n
        if S_pad != S:
            # conv/x are already zero on pad lanes; this removes the broadcast bias there so
            # the second norm's sums only see real voxels.
            res = res * m_ref[27:28, :].astype(jnp.float32)
        o_ref[n * C:(n + 1) * C, :] = inorm_lrelu(res)


def resblock_forward(x, w, b, alpha=ALPHA, eps=EPS, batch_block=None):
    """x: (N, C, D, H, W) f32; w: (C, C, 3, 3, 3); b: (C,)."""
    global _GROUPED_STORES_OK
    N, C, D, H, W = x.shape
    S = D * H * W
    S_pad = -(-S // 128) * 128
    HW = H * W
    offsets = tuple((kd - 1) * HW + (kh - 1) * W + (kw - 1) for kd, kh, kw in _TAPS)

    # ---- host-side constants (hoisted out of the kernel) --------------------------------
    lane = np.arange(S_pad)
    d_i, h_i, w_i = lane // HW, (lane // W) % H, lane % W
    lane_valid = lane < S
    mask_rows = []
    for kd, kh, kw in _TAPS:
        mask_rows.append(lane_valid
                         & (d_i + kd - 1 >= 0) & (d_i + kd - 1 < D)
                         & (h_i + kh - 1 >= 0) & (h_i + kh - 1 < H)
                         & (w_i + kw - 1 >= 0) & (w_i + kw - 1 < W))
    mask_rows.append(lane_valid)                                    # row 27: pad-lane zeroing
    masks = jnp.asarray(np.stack(mask_rows), dtype=jnp.bfloat16)    # (28, S_pad), exact {0, 1}

    # PyTorch (O, I, kd, kh, kw) -> (O, 27*I); column block t*C:(t+1)*C is tap t.
    w27 = jnp.transpose(w, (0, 2, 3, 4, 1)).reshape(C, 27 * C)
    b_col = b.reshape(C, 1).astype(jnp.float32)

    x_flat = x.reshape(N, C, S).astype(jnp.float32)
    if S_pad != S:
        # NOTE: this pad (and the output slice) costs one extra HBM pass each; shapes with
        # D*H*W % 128 == 0 (like the primary test) take the zero-copy path.
        x_flat = jnp.pad(x_flat, ((0, 0), (0, 0), (0, S_pad - S)))
    x2d = x_flat.reshape(N * C, S_pad)

    def run(group):
        # Pad the tap count so every col store covers whole bf16 sublane tiles (16 rows).
        n_tap_pad = -(-27 // group) * group
        K = n_tap_pad * C
        w2d = w27
        if n_tap_pad != 27:
            w2d = jnp.pad(w27, ((0, 0), (0, (n_tap_pad - 27) * C)))  # zero cols for dummy taps
        w2d = w2d.astype(jnp.bfloat16)

        # Samples folded per grid step: amortizes per-step overhead and feeds the MXU
        # NB*S_pad columns per weight load; bounded by a conservative VMEM budget.
        def vmem_bytes(nb):
            io = 4 * nb * C * S_pad * 4                 # 2x double-buffered in + out slabs
            col = K * nb * S_pad * 2                    # im2col scratch
            const = C * K * 2 + 32 * S_pad * 2 + 1024   # weights + masks + bias (resident)
            live = 4 * nb * C * S_pad * 4               # headroom for in-flight temporaries
            return io + col + const + live

        nb = batch_block
        if nb is None:
            nb = 1
            for cand in range(min(N, _MAX_BATCH_BLOCK), 0, -1):
                if (N % cand == 0 and ((cand * C) % 8 == 0 or cand == N)
                        and vmem_bytes(cand) <= _VMEM_BUDGET):
                    nb = cand
                    break
            if (nb * C) % 8 != 0 and nb != N:
                nb = N                                   # full-extent block is always legal
        assert N % nb == 0, "batch_block must divide N"
        vmem_limit = int(min(64 * 2**20, max(32 * 2**20, 2 * vmem_bytes(nb))))

        kernel = functools.partial(
            _resblock_kernel, alpha=alpha, eps=eps, C=C, S=S, S_pad=S_pad,
            NB=nb, offsets=offsets, group=group, n_tap_pad=n_tap_pad)

        return pl.pallas_call(
            kernel,
            out_shape=jax.ShapeDtypeStruct((N * C, S_pad), jnp.float32),
            grid_spec=pltpu.PrefetchScalarGridSpec(
                num_scalar_prefetch=0,
                grid=(N // nb,),
                in_specs=[
                    pl.BlockSpec((nb * C, S_pad), lambda i: (i, 0)),
                    pl.BlockSpec((C, K), lambda i: (0, 0)),        # resident weights
                    pl.BlockSpec((C, 1), lambda i: (0, 0)),        # resident bias
                    pl.BlockSpec((28, S_pad), lambda i: (0, 0)),   # resident tap masks
                ],
                out_specs=pl.BlockSpec((nb * C, S_pad), lambda i: (i, 0)),
                scratch_shapes=[pltpu.VMEM((K, nb * S_pad), jnp.bfloat16)],
            ),
            compiler_params=pltpu.CompilerParams(
                dimension_semantics=("parallel",),
                vmem_limit_bytes=vmem_limit,
            ),
        )(x2d, w2d, b_col, masks)

    want_group = (_BF16_SUBLANES // C
                  if (C < _BF16_SUBLANES and _BF16_SUBLANES % C == 0) else 1)
    out2d = None
    if want_group > 1 and _GROUPED_STORES_OK:
        try:
            out2d = jax.block_until_ready(run(want_group))
        except Exception:
            # Grouped (full-sublane-tile) col stores failed to lower on this toolchain;
            # fall back to the previously validated per-tap store layout.
            _GROUPED_STORES_OK = False
            out2d = None
    if out2d is None:
        out2d = run(1)

    return out2d.reshape(N, C, S_pad)[:, :, :S].reshape(N, C, D, H, W)


def ref_resblock(x, w, b, alpha=ALPHA, eps=EPS):
    """Pure-JAX f32 reference of the PyTorch ResBlock forward."""
    def inorm_lrelu(y):
        mean = jnp.mean(y, axis=(2, 3, 4), keepdims=True)
        var = jnp.mean((y - mean) ** 2, axis=(2, 3, 4), keepdims=True)
        yn = (y - mean) / jnp.sqrt(var + eps)
        return jnp.where(yn >= 0, yn, alpha * yn)

    a = inorm_lrelu(x)
    conv = jax.lax.conv_general_dilated(
        a, w, window_strides=(1, 1, 1),
        padding=((1, 1), (1, 1), (1, 1)),
        dimension_numbers=("NCDHW", "OIDHW", "NCDHW"),
        precision=jax.lax.Precision.HIGHEST)
    conv = conv + b.reshape(1, -1, 1, 1, 1)
    return inorm_lrelu(conv + x)


if __name__ == "__main__":
    key = jax.random.PRNGKey(0)
    kx, kw_, kb = jax.random.split(key, 3)

    N, C, D, H, W = 2, 4, 8, 8, 8
    x = jax.random.normal(kx, (N, C, D, H, W), jnp.float32)
    w = jax.random.normal(kw_, (C, C, 3, 3, 3), jnp.float32) * 0.1
    b = jax.random.normal(kb, (C,), jnp.float32) * 0.1

    out = jax.block_until_ready(resblock_forward(x, w, b))
    ref = jax.block_until_ready(ref_resblock(x, w, b))
    # Tolerance accounts for bf16 MXU inputs (kernel) vs full-f32 HIGHEST reference.
    if not jnp.allclose(out, ref, atol=2e-2, rtol=2e-2):
        max_err = float(jnp.max(jnp.abs(out - ref)))
        raise AssertionError(f"Pallas ResBlock mismatch (aligned case), max abs err = {max_err}")

    # Ragged-tail case (S % 128 != 0) exercises the pad-lane masking path.
    x2 = jax.random.normal(kx, (N, C, 6, 8, 7), jnp.float32)
    out2 = jax.block_until_ready(resblock_forward(x2, w, b))
    ref2 = jax.block_until_ready(ref_resblock(x2, w, b))
    if not jnp.allclose(out2, ref2, atol=2e-2, rtol=2e-2):
        max_err = float(jnp.max(jnp.abs(out2 - ref2)))
        raise AssertionError(f"Pallas ResBlock mismatch (ragged case), max abs err = {max_err}")

    print("KERNEL_OK")
</pallas_src>

<mosaic_0001>
module attributes {stable_mosaic.version = 11 : i64} {
  func.func @_resblock_kernel(%arg0: i32, %arg1: memref<8x512xf32, #tpu.memory_space<vmem>>, %arg2: memref<4x112xbf16, #tpu.memory_space<vmem>>, %arg3: memref<4x1xf32, #tpu.memory_space<vmem>>, %arg4: memref<28x512xbf16, #tpu.memory_space<vmem>>, %arg5: memref<8x512xf32, #tpu.memory_space<vmem>>, %arg6: memref<112x1024xbf16, #tpu.memory_space<vmem>>) attributes {dimension_semantics = [#tpu.dimension_semantics<parallel>], iteration_bounds = array<i64: 1>, scalar_prefetch = 0 : i64, scratch_operands = 1 : i64, tpu.core_type = #tpu.core_type<tc>, window_params = [{transform_indices = @transform_0, window_bounds = array<i64: 8, 512>}, {pipeline_mode = #tpu.pipeline_mode<synchronous>, transform_indices = @transform_1, window_bounds = array<i64: 4, 112>}, {pipeline_mode = #tpu.pipeline_mode<synchronous>, transform_indices = @transform_2, window_bounds = array<i64: 4, 1>}, {pipeline_mode = #tpu.pipeline_mode<synchronous>, transform_indices = @transform_3, window_bounds = array<i64: 28, 512>}, {transform_indices = @transform_4, window_bounds = array<i64: 8, 512>}]} {
    %c0 = arith.constant 0 : index
    %c0_0 = arith.constant 0 : index
    %0 = vector.load %arg1[%c0, %c0_0] : memref<8x512xf32, #tpu.memory_space<vmem>>, vector<4x512xf32>
    %cst = arith.constant dense<0.000000e+00> : vector<4xf32>
    %1 = vector.multi_reduction <add>, %0, %cst [1] : vector<4x512xf32> to vector<4xf32>
    %2 = vector.shape_cast %1 : vector<4xf32> to vector<4x1xf32>
    %cst_1 = arith.constant 0.001953125 : f32
    %3 = vector.broadcast %cst_1 : f32 to vector<4x1xf32>
    %4 = arith.mulf %2, %3 : vector<4x1xf32>
    %5 = arith.mulf %0, %0 : vector<4x512xf32>
    %cst_2 = arith.constant dense<0.000000e+00> : vector<4xf32>
    %6 = vector.multi_reduction <add>, %5, %cst_2 [1] : vector<4x512xf32> to vector<4xf32>
    %7 = vector.shape_cast %6 : vector<4xf32> to vector<4x1xf32>
    %cst_3 = arith.constant 0.001953125 : f32
    %8 = vector.broadcast %cst_3 : f32 to vector<4x1xf32>
    %9 = arith.mulf %7, %8 : vector<4x1xf32>
    %10 = vector.broadcast %4 : vector<4x1xf32> to vector<4x512xf32>
    %11 = arith.subf %0, %10 : vector<4x512xf32>
    %12 = arith.mulf %4, %4 : vector<4x1xf32>
    %13 = arith.subf %9, %12 : vector<4x1xf32>
    %cst_4 = arith.constant 9.99999974E-6 : f32
    %14 = vector.broadcast %cst_4 : f32 to vector<4x1xf32>
    %15 = arith.addf %13, %14 : vector<4x1xf32>
    %16 = math.rsqrt %15 : vector<4x1xf32>
    %17 = vector.broadcast %16 : vector<4x1xf32> to vector<4x512xf32>
    %18 = arith.mulf %11, %17 : vector<4x512xf32>
    %cst_5 = arith.constant 0.000000e+00 : f32
    %19 = vector.broadcast %cst_5 : f32 to vector<4x512xf32>
    %20 = arith.cmpf oge, %18, %19 : vector<4x512xf32>
    %cst_6 = arith.constant 1.000000e-01 : f32
    %21 = vector.broadcast %cst_6 : f32 to vector<4x512xf32>
    %22 = arith.mulf %21, %18 : vector<4x512xf32>
    %23 = arith.select %20, %18, %22 : vector<4x512xi1>, vector<4x512xf32>
    %24 = arith.truncf %23 : vector<4x512xf32> to vector<4x512xbf16>
    %25 = vector.extract_strided_slice %24 {offsets = [0, 439], sizes = [4, 73], strides = [1, 1]} : vector<4x512xbf16> to vector<4x73xbf16>
    %26 = vector.extract_strided_slice %24 {offsets = [0, 0], sizes = [4, 439], strides = [1, 1]} : vector<4x512xbf16> to vector<4x439xbf16>
    %27 = tpu.concatenate %25, %26 in 1 : vector<4x73xbf16>, vector<4x439xbf16> -> vector<4x512xbf16>
    %c0_7 = arith.constant 0 : index
    %c0_8 = arith.constant 0 : index
    %28 = vector.load %arg4[%c0_7, %c0_8] : memref<28x512xbf16, #tpu.memory_space<vmem>>, vector<1x512xbf16>
    %29 = vector.broadcast %28 : vector<1x512xbf16> to vector<4x512xbf16>
    %30 = arith.mulf %27, %29 : vector<4x512xbf16>
    %31 = vector.extract_strided_slice %24 {offsets = [0, 440], sizes = [4, 72], strides = [1, 1]} : vector<4x512xbf16> to vector<4x72xbf16>
    %32 = vector.extract_strided_slice %24 {offsets = [0, 0], sizes = [4, 440], strides = [1, 1]} : vector<4x512xbf16> to vector<4x440xbf16>
    %33 = tpu.concatenate %31, %32 in 1 : vector<4x72xbf16>, vector<4x440xbf16> -> vector<4x512xbf16>
    %c1 = arith.constant 1 : index
    %c0_9 = arith.constant 0 : index
    %34 = vector.load %arg4[%c1, %c0_9] : memref<28x512xbf16, #tpu.memory_space<vmem>>, vector<1x512xbf16>
    %35 = vector.broadcast %34 : vector<1x512xbf16> to vector<4x512xbf16>
    %36 = arith.mulf %33, %35 : vector<4x512xbf16>
    %37 = vector.extract_strided_slice %24 {offsets = [0, 441], sizes = [4, 71], strides = [1, 1]} : vector<4x512xbf16> to vector<4x71xbf16>
    %38 = vector.extract_strided_slice %24 {offsets = [0, 0], sizes = [4, 441], strides = [1, 1]} : vector<4x512xbf16> to vector<4x441xbf16>
    %39 = tpu.concatenate %37, %38 in 1 : vector<4x71xbf16>, vector<4x441xbf16> -> vector<4x512xbf16>
    %c2 = arith.constant 2 : index
    %c0_10 = arith.constant 0 : index
    %40 = vector.load %arg4[%c2, %c0_10] : memref<28x512xbf16, #tpu.memory_space<vmem>>, vector<1x512xbf16>
    %41 = vector.broadcast %40 : vector<1x512xbf16> to vector<4x512xbf16>
    %42 = arith.mulf %39, %41 : vector<4x512xbf16>
    %43 = vector.extract_strided_slice %24 {offsets = [0, 447], sizes = [4, 65], strides = [1, 1]} : vector<4x512xbf16> to vector<4x65xbf16>
    %44 = vector.extract_strided_slice %24 {offsets = [0, 0], sizes = [4, 447], strides = [1, 1]} : vector<4x512xbf16> to vector<4x447xbf16>
    %45 = tpu.concatenate %43, %44 in 1 : vector<4x65xbf16>, vector<4x447xbf16> -> vector<4x512xbf16>
    %c3 = arith.constant 3 : index
    %c0_11 = arith.constant 0 : index
    %46 = vector.load %arg4[%c3, %c0_11] : memref<28x512xbf16, #tpu.memory_space<vmem>>, vector<1x512xbf16>
    %47 = vector.broadcast %46 : vector<1x512xbf16> to vector<4x512xbf16>
    %48 = arith.mulf %45, %47 : vector<4x512xbf16>
    %49 = tpu.concatenate %30, %36, %42, %48 in 0 : vector<4x512xbf16>, vector<4x512xbf16>, vector<4x512xbf16>, vector<4x512xbf16> -> vector<16x512xbf16>
    %c0_12 = arith.constant 0 : index
    %c0_13 = arith.constant 0 : index
    %50 = vector.load %arg6[%c0_12, %c0_13] : memref<112x1024xbf16, #tpu.memory_space<vmem>>, vector<16x512xbf16>
    tpu.vector_store %arg6[%c0_12, %c0_13], %49 {strides = array<i32>} : memref<112x1024xbf16, #tpu.memory_space<vmem>>, vector<16x512xbf16>,
    %51 = vector.extract_strided_slice %24 {offsets = [0, 448], sizes = [4, 64], strides = [1, 1]} : vector<4x512xbf16> to vector<4x64xbf16>
    %52 = vector.extract_strided_slice %24 {offsets = [0, 0], sizes = [4, 448], strides = [1, 1]} : vector<4x512xbf16> to vector<4x448xbf16>
    %53 = tpu.concatenate %51, %52 in 1 : vector<4x64xbf16>, vector<4x448xbf16> -> vector<4x512xbf16>
    %c4 = arith.constant 4 : index
    %c0_14 = arith.constant 0 : index
    %54 = vector.load %arg4[%c4, %c0_14] : memref<28x512xbf16, #tpu.memory_space<vmem>>, vector<1x512xbf16>
    %55 = vector.broadcast %54 : vector<1x512xbf16> to vector<4x512xbf16>
    %56 = arith.mulf %53, %55 : vector<4x512xbf16>
    %57 = vector.extract_strided_slice %24 {offsets = [0, 449], sizes = [4, 63], strides = [1, 1]} : vector<4x512xbf16> to vector<4x63xbf16>
    %58 = vector.extract_strided_slice %24 {offsets = [0, 0], sizes = [4, 449], strides = [1, 1]} : vector<4x512xbf16> to vector<4x449xbf16>
    %59 = tpu.concatenate %57, %58 in 1 : vector<4x63xbf16>, vector<4x449xbf16> -> vector<4x512xbf16>
    %c5 = arith.constant 5 : index
    %c0_15 = arith.constant 0 : index
    %60 = vector.load %arg4[%c5, %c0_15] : memref<28x512xbf16, #tpu.memory_space<vmem>>, vector<1x512xbf16>
    %61 = vector.broadcast %60 : vector<1x512xbf16> to vector<4x512xbf16>
    %62 = arith.mulf %59, %61 : vector<4x512xbf16>
    %63 = vector.extract_strided_slice %24 {offsets = [0, 455], sizes = [4, 57], strides = [1, 1]} : vector<4x512xbf16> to vector<4x57xbf16>
    %64 = vector.extract_strided_slice %24 {offsets = [0, 0], sizes = [4, 455], strides = [1, 1]} : vector<4x512xbf16> to vector<4x455xbf16>
    %65 = tpu.concatenate %63, %64 in 1 : vector<4x57xbf16>, vector<4x455xbf16> -> vector<4x512xbf16>
    %c6 = arith.constant 6 : index
    %c0_16 = arith.constant 0 : index
    %66 = vector.load %arg4[%c6, %c0_16] : memref<28x512xbf16, #tpu.memory_space<vmem>>, vector<1x512xbf16>
    %67 = vector.broadcast %66 : vector<1x512xbf16> to vector<4x512xbf16>
    %68 = arith.mulf %65, %67 : vector<4x512xbf16>
    %69 = vector.extract_strided_slice %24 {offsets = [0, 456], sizes = [4, 56], strides = [1, 1]} : vector<4x512xbf16> to vector<4x56xbf16>
    %70 = vector.extract_strided_slice %24 {offsets = [0, 0], sizes = [4, 456], strides = [1, 1]} : vector<4x512xbf16> to vector<4x456xbf16>
    %71 = tpu.concatenate %69, %70 in 1 : vector<4x56xbf16>, vector<4x456xbf16> -> vector<4x512xbf16>
    %c7 = arith.constant 7 : index
    %c0_17 = arith.constant 0 : index
    %72 = vector.load %arg4[%c7, %c0_17] : memref<28x512xbf16, #tpu.memory_space<vmem>>, vector<1x512xbf16>
    %73 = vector.broadcast %72 : vector<1x512xbf16> to vector<4x512xbf16>
    %74 = arith.mulf %71, %73 : vector<4x512xbf16>
    %75 = tpu.concatenate %56, %62, %68, %74 in 0 : vector<4x512xbf16>, vector<4x512xbf16>, vector<4x512xbf16>, vector<4x512xbf16> -> vector<16x512xbf16>
    %c16 = arith.constant 16 : index
    %c0_18 = arith.constant 0 : index
    %76 = vector.load %arg6[%c16, %c0_18] : memref<112x1024xbf16, #tpu.memory_space<vmem>>, vector<16x512xbf16>
    tpu.vector_store %arg6[%c16, %c0_18], %75 {strides = array<i32>} : memref<112x1024xbf16, #tpu.memory_space<vmem>>, vector<16x512xbf16>,
    %77 = vector.extract_strided_slice %24 {offsets = [0, 457], sizes = [4, 55], strides = [1, 1]} : vector<4x512xbf16> to vector<4x55xbf16>
    %78 = vector.extract_strided_slice %24 {offsets = [0, 0], sizes = [4, 457], strides = [1, 1]} : vector<4x512xbf16> to vector<4x457xbf16>
    %79 = tpu.concatenate %77, %78 in 1 : vector<4x55xbf16>, vector<4x457xbf16> -> vector<4x512xbf16>
    %c8 = arith.constant 8 : index
    %c0_19 = arith.constant 0 : index
    %80 = vector.load %arg4[%c8, %c0_19] : memref<28x512xbf16, #tpu.memory_space<vmem>>, vector<1x512xbf16>
    %81 = vector.broadcast %80 : vector<1x512xbf16> to vector<4x512xbf16>
    %82 = arith.mulf %79, %81 : vector<4x512xbf16>
    %83 = vector.extract_strided_slice %24 {offsets = [0, 503], sizes = [4, 9], strides = [1, 1]} : vector<4x512xbf16> to vector<4x9xbf16>
    %84 = vector.extract_strided_slice %24 {offsets = [0, 0], sizes = [4, 503], strides = [1, 1]} : vector<4x512xbf16> to vector<4x503xbf16>
    %85 = tpu.concatenate %83, %84 in 1 : vector<4x9xbf16>, vector<4x503xbf16> -> vector<4x512xbf16>
    %c9 = arith.constant 9 : index
    %c0_20 = arith.constant 0 : index
    %86 = vector.load %arg4[%c9, %c0_20] : memref<28x512xbf16, #tpu.memory_space<vmem>>, vector<1x512xbf16>
    %87 = vector.broadcast %86 : vector<1x512xbf16> to vector<4x512xbf16>
    %88 = arith.mulf %85, %87 : vector<4x512xbf16>
    %89 = vector.extract_strided_slice %24 {offsets = [0, 504], sizes = [4, 8], strides = [1, 1]} : vector<4x512xbf16> to vector<4x8xbf16>
    %90 = vector.extract_strided_slice %24 {offsets = [0, 0], sizes = [4, 504], strides = [1, 1]} : vector<4x512xbf16> to vector<4x504xbf16>
    %91 = tpu.concatenate %89, %90 in 1 : vector<4x8xbf16>, vector<4x504xbf16> -> vector<4x512xbf16>
    %c10 = arith.constant 10 : index
    %c0_21 = arith.constant 0 : index
    %92 = vector.load %arg4[%c10, %c0_21] : memref<28x512xbf16, #tpu.memory_space<vmem>>, vector<1x512xbf16>
    %93 = vector.broadcast %92 : vector<1x512xbf16> to vector<4x512xbf16>
    %94 = arith.mulf %91, %93 : vector<4x512xbf16>
    %95 = vector.extract_strided_slice %24 {offsets = [0, 505], sizes = [4, 7], strides = [1, 1]} : vector<4x512xbf16> to vector<4x7xbf16>
    %96 = vector.extract_strided_slice %24 {offsets = [0, 0], sizes = [4, 505], strides = [1, 1]} : vector<4x512xbf16> to vector<4x505xbf16>
    %97 = tpu.concatenate %95, %96 in 1 : vector<4x7xbf16>, vector<4x505xbf16> -> vector<4x512xbf16>
    %c11 = arith.constant 11 : index
    %c0_22 = arith.constant 0 : index
    %98 = vector.load %arg4[%c11, %c0_22] : memref<28x512xbf16, #tpu.memory_space<vmem>>, vector<1x512xbf16>
    %99 = vector.broadcast %98 : vector<1x512xbf16> to vector<4x512xbf16>
    %100 = arith.mulf %97, %99 : vector<4x512xbf16>
    %101 = tpu.concatenate %82, %88, %94, %100 in 0 : vector<4x512xbf16>, vector<4x512xbf16>, vector<4x512xbf16>, vector<4x512xbf16> -> vector<16x512xbf16>
    %c32 = arith.constant 32 : index
    %c0_23 = arith.constant 0 : index
    %102 = vector.load %arg6[%c32, %c0_23] : memref<112x1024xbf16, #tpu.memory_space<vmem>>, vector<16x512xbf16>
    tpu.vector_store %arg6[%c32, %c0_23], %101 {strides = array<i32>} : memref<112x1024xbf16, #tpu.memory_space<vmem>>, vector<16x512xbf16>,
    %103 = vector.extract_strided_slice %24 {offsets = [0, 511], sizes = [4, 1], strides = [1, 1]} : vector<4x512xbf16> to vector<4x1xbf16>
    %104 = vector.extract_strided_slice %24 {offsets = [0, 0], sizes = [4, 511], strides = [1, 1]} : vector<4x512xbf16> to vector<4x511xbf16>
    %105 = tpu.concatenate %103, %104 in 1 : vector<4x1xbf16>, vector<4x511xbf16> -> vector<4x512xbf16>
    %c12 = arith.constant 12 : index
    %c0_24 = arith.constant 0 : index
    %106 = vector.load %arg4[%c12, %c0_24] : memref<28x512xbf16, #tpu.memory_space<vmem>>, vector<1x512xbf16>
    %107 = vector.broadcast %106 : vector<1x512xbf16> to vector<4x512xbf16>
    %108 = arith.mulf %105, %107 : vector<4x512xbf16>
    %c13 = arith.constant 13 : index
    %c0_25 = arith.constant 0 : index
    %109 = vector.load %arg4[%c13, %c0_25] : memref<28x512xbf16, #tpu.memory_space<vmem>>, vector<1x512xbf16>
    %110 = vector.broadcast %109 : vector<1x512xbf16> to vector<4x512xbf16>
    %111 = arith.mulf %24, %110 : vector<4x512xbf16>
    %112 = vector.extract_strided_slice %24 {offsets = [0, 1], sizes = [4, 511], strides = [1, 1]} : vector<4x512xbf16> to vector<4x511xbf16>
    %113 = vector.extract_strided_slice %24 {offsets = [0, 0], sizes = [4, 1], strides = [1, 1]} : vector<4x512xbf16> to vector<4x1xbf16>
    %114 = tpu.concatenate %112, %113 in 1 : vector<4x511xbf16>, vector<4x1xbf16> -> vector<4x512xbf16>
    %c14 = arith.constant 14 : index
    %c0_26 = arith.constant 0 : index
    %115 = vector.load %arg4[%c14, %c0_26] : memref<28x512xbf16, #tpu.memory_space<vmem>>, vector<1x512xbf16>
    %116 = vector.broadcast %115 : vector<1x512xbf16> to vector<4x512xbf16>
    %117 = arith.mulf %114, %116 : vector<4x512xbf16>
    %118 = vector.extract_strided_slice %24 {offsets = [0, 7], sizes = [4, 505], strides = [1, 1]} : vector<4x512xbf16> to vector<4x505xbf16>
    %119 = vector.extract_strided_slice %24 {offsets = [0, 0], sizes = [4, 7], strides = [1, 1]} : vector<4x512xbf16> to vector<4x7xbf16>
    %120 = tpu.concatenate %118, %119 in 1 : vector<4x505xbf16>, vector<4x7xbf16> -> vector<4x512xbf16>
    %c15 = arith.constant 15 : index
    %c0_27 = arith.constant 0 : index
    %121 = vector.load %arg4[%c15, %c0_27] : memref<28x512xbf16, #tpu.memory_space<vmem>>, vector<1x512xbf16>
    %122 = vector.broadcast %121 : vector<1x512xbf16> to vector<4x512xbf16>
    %123 = arith.mulf %120, %122 : vector<4x512xbf16>
    %124 = tpu.concatenate %108, %111, %117, %123 in 0 : vector<4x512xbf16>, vector<4x512xbf16>, vector<4x512xbf16>, vector<4x512xbf16> -> vector<16x512xbf16>
    %c48 = arith.constant 48 : index
    %c0_28 = arith.constant 0 : index
    %125 = vector.load %arg6[%c48, %c0_28] : memref<112x1024xbf16, #tpu.memory_space<vmem>>, vector<16x512xbf16>
    tpu.vector_store %arg6[%c48, %c0_28], %124 {strides = array<i32>} : memref<112x1024xbf16, #tpu.memory_space<vmem>>, vector<16x512xbf16>,
    %126 = vector.extract_strided_slice %24 {offsets = [0, 8], sizes = [4, 504], strides = [1, 1]} : vector<4x512xbf16> to vector<4x504xbf16>
    %127 = vector.extract_strided_slice %24 {offsets = [0, 0], sizes = [4, 8], strides = [1, 1]} : vector<4x512xbf16> to vector<4x8xbf16>
    %128 = tpu.concatenate %126, %127 in 1 : vector<4x504xbf16>, vector<4x8xbf16> -> vector<4x512xbf16>
    %c16_29 = arith.constant 16 : index
    %c0_30 = arith.constant 0 : index
    %129 = vector.load %arg4[%c16_29, %c0_30] : memref<28x512xbf16, #tpu.memory_space<vmem>>, vector<1x512xbf16>
    %130 = vector.broadcast %129 : vector<1x512xbf16> to vector<4x512xbf16>
    %131 = arith.mulf %128, %130 : vector<4x512xbf16>
    %132 = vector.extract_strided_slice %24 {offsets = [0, 9], sizes = [4, 503], strides = [1, 1]} : vector<4x512xbf16> to vector<4x503xbf16>
    %133 = vector.extract_strided_slice %24 {offsets = [0, 0], sizes = [4, 9], strides = [1, 1]} : vector<4x512xbf16> to vector<4x9xbf16>
    %134 = tpu.concatenate %132, %133 in 1 : vector<4x503xbf16>, vector<4x9xbf16> -> vector<4x512xbf16>
    %c17 = arith.constant 17 : index
    %c0_31 = arith.constant 0 : index
    %135 = vector.load %arg4[%c17, %c0_31] : memref<28x512xbf16, #tpu.memory_space<vmem>>, vector<1x512xbf16>
    %136 = vector.broadcast %135 : vector<1x512xbf16> to vector<4x512xbf16>
    %137 = arith.mulf %134, %136 : vector<4x512xbf16>
    %138 = vector.extract_strided_slice %24 {offsets = [0, 55], sizes = [4, 457], strides = [1, 1]} : vector<4x512xbf16> to vector<4x457xbf16>
    %139 = vector.extract_strided_slice %24 {offsets = [0, 0], sizes = [4, 55], strides = [1, 1]} : vector<4x512xbf16> to vector<4x55xbf16>
    %140 = tpu.concatenate %138, %139 in 1 : vector<4x457xbf16>, vector<4x55xbf16> -> vector<4x512xbf16>
    %c18 = arith.constant 18 : index
    %c0_32 = arith.constant 0 : index
    %141 = vector.load %arg4[%c18, %c0_32] : memref<28x512xbf16, #tpu.memory_space<vmem>>, vector<1x512xbf16>
    %142 = vector.broadcast %141 : vector<1x512xbf16> to vector<4x512xbf16>
    %143 = arith.mulf %140, %142 : vector<4x512xbf16>
    %144 = vector.extract_strided_slice %24 {offsets = [0, 56], sizes = [4, 456], strides = [1, 1]} : vector<4x512xbf16> to vector<4x456xbf16>
    %145 = vector.extract_strided_slice %24 {offsets = [0, 0], sizes = [4, 56], strides = [1, 1]} : vector<4x512xbf16> to vector<4x56xbf16>
    %146 = tpu.concatenate %144, %145 in 1 : vector<4x456xbf16>, vector<4x56xbf16> -> vector<4x512xbf16>
    %c19 = arith.constant 19 : index
    %c0_33 = arith.constant 0 : index
    %147 = vector.load %arg4[%c19, %c0_33] : memref<28x512xbf16, #tpu.memory_space<vmem>>, vector<1x512xbf16>
    %148 = vector.broadcast %147 : vector<1x512xbf16> to vector<4x512xbf16>
    %149 = arith.mulf %146, %148 : vector<4x512xbf16>
    %150 = tpu.concatenate %131, %137, %143, %149 in 0 : vector<4x512xbf16>, vector<4x512xbf16>, vector<4x512xbf16>, vector<4x512xbf16> -> vector<16x512xbf16>
    %c64 = arith.constant 64 : index
    %c0_34 = arith.constant 0 : index
    %151 = vector.load %arg6[%c64, %c0_34] : memref<112x1024xbf16, #tpu.memory_space<vmem>>, vector<16x512xbf16>
    tpu.vector_store %arg6[%c64, %c0_34], %150 {strides = array<i32>} : memref<112x1024xbf16, #tpu.memory_space<vmem>>, vector<16x512xbf16>,
    %152 = vector.extract_strided_slice %24 {offsets = [0, 57], sizes = [4, 455], strides = [1, 1]} : vector<4x512xbf16> to vector<4x455xbf16>
    %153 = vector.extract_strided_slice %24 {offsets = [0, 0], sizes = [4, 57], strides = [1, 1]} : vector<4x512xbf16> to vector<4x57xbf16>
    %154 = tpu.concatenate %152, %153 in 1 : vector<4x455xbf16>, vector<4x57xbf16> -> vector<4x512xbf16>
    %c20 = arith.constant 20 : index
    %c0_35 = arith.constant 0 : index
    %155 = vector.load %arg4[%c20, %c0_35] : memref<28x512xbf16, #tpu.memory_space<vmem>>, vector<1x512xbf16>
    %156 = vector.broadcast %155 : vector<1x512xbf16> to vector<4x512xbf16>
    %157 = arith.mulf %154, %156 : vector<4x512xbf16>
    %158 = vector.extract_strided_slice %24 {offsets = [0, 63], sizes = [4, 449], strides = [1, 1]} : vector<4x512xbf16> to vector<4x449xbf16>
    %159 = vector.extract_strided_slice %24 {offsets = [0, 0], sizes = [4, 63], strides = [1, 1]} : vector<4x512xbf16> to vector<4x63xbf16>
    %160 = tpu.concatenate %158, %159 in 1 : vector<4x449xbf16>, vector<4x63xbf16> -> vector<4x512xbf16>
    %c21 = arith.constant 21 : index
    %c0_36 = arith.constant 0 : index
    %161 = vector.load %arg4[%c21, %c0_36] : memref<28x512xbf16, #tpu.memory_space<vmem>>, vector<1x512xbf16>
    %162 = vector.broadcast %161 : vector<1x512xbf16> to vector<4x512xbf16>
    %163 = arith.mulf %160, %162 : vector<4x512xbf16>
    %164 = vector.extract_strided_slice %24 {offsets = [0, 64], sizes = [4, 448], strides = [1, 1]} : vector<4x512xbf16> to vector<4x448xbf16>
    %165 = vector.extract_strided_slice %24 {offsets = [0, 0], sizes = [4, 64], strides = [1, 1]} : vector<4x512xbf16> to vector<4x64xbf16>
    %166 = tpu.concatenate %164, %165 in 1 : vector<4x448xbf16>, vector<4x64xbf16> -> vector<4x512xbf16>
    %c22 = arith.constant 22 : index
    %c0_37 = arith.constant 0 : index
    %167 = vector.load %arg4[%c22, %c0_37] : memref<28x512xbf16, #tpu.memory_space<vmem>>, vector<1x512xbf16>
    %168 = vector.broadcast %167 : vector<1x512xbf16> to vector<4x512xbf16>
    %169 = arith.mulf %166, %168 : vector<4x512xbf16>
    %170 = vector.extract_strided_slice %24 {offsets = [0, 65], sizes = [4, 447], strides = [1, 1]} : vector<4x512xbf16> to vector<4x447xbf16>
    %171 = vector.extract_strided_slice %24 {offsets = [0, 0], sizes = [4, 65], strides = [1, 1]} : vector<4x512xbf16> to vector<4x65xbf16>
    %172 = tpu.concatenate %170, %171 in 1 : vector<4x447xbf16>, vector<4x65xbf16> -> vector<4x512xbf16>
    %c23 = arith.constant 23 : index
    %c0_38 = arith.constant 0 : index
    %173 = vector.load %arg4[%c23, %c0_38] : memref<28x512xbf16, #tpu.memory_space<vmem>>, vector<1x512xbf16>
    %174 = vector.broadcast %173 : vector<1x512xbf16> to vector<4x512xbf16>
    %175 = arith.mulf %172, %174 : vector<4x512xbf16>
    %176 = tpu.concatenate %157, %163, %169, %175 in 0 : vector<4x512xbf16>, vector<4x512xbf16>, vector<4x512xbf16>, vector<4x512xbf16> -> vector<16x512xbf16>
    %c80 = arith.constant 80 : index
    %c0_39 = arith.constant 0 : index
    %177 = vector.load %arg6[%c80, %c0_39] : memref<112x1024xbf16, #tpu.memory_space<vmem>>, vector<16x512xbf16>
    tpu.vector_store %arg6[%c80, %c0_39], %176 {strides = array<i32>} : memref<112x1024xbf16, #tpu.memory_space<vmem>>, vector<16x512xbf16>,
    %178 = vector.extract_strided_slice %24 {offsets = [0, 71], sizes = [4, 441], strides = [1, 1]} : vector<4x512xbf16> to vector<4x441xbf16>
    %179 = vector.extract_strided_slice %24 {offsets = [0, 0], sizes = [4, 71], strides = [1, 1]} : vector<4x512xbf16> to vector<4x71xbf16>
    %180 = tpu.concatenate %178, %179 in 1 : vector<4x441xbf16>, vector<4x71xbf16> -> vector<4x512xbf16>
    %c24 = arith.constant 24 : index
    %c0_40 = arith.constant 0 : index
    %181 = vector.load %arg4[%c24, %c0_40] : memref<28x512xbf16, #tpu.memory_space<vmem>>, vector<1x512xbf16>
    %182 = vector.broadcast %181 : vector<1x512xbf16> to vector<4x512xbf16>
    %183 = arith.mulf %180, %182 : vector<4x512xbf16>
    %184 = vector.extract_strided_slice %24 {offsets = [0, 72], sizes = [4, 440], strides = [1, 1]} : vector<4x512xbf16> to vector<4x440xbf16>
    %185 = vector.extract_strided_slice %24 {offsets = [0, 0], sizes = [4, 72], strides = [1, 1]} : vector<4x512xbf16> to vector<4x72xbf16>
    %186 = tpu.concatenate %184, %185 in 1 : vector<4x440xbf16>, vector<4x72xbf16> -> vector<4x512xbf16>
    %c25 = arith.constant 25 : index
    %c0_41 = arith.constant 0 : index
    %187 = vector.load %arg4[%c25, %c0_41] : memref<28x512xbf16, #tpu.memory_space<vmem>>, vector<1x512xbf16>
    %188 = vector.broadcast %187 : vector<1x512xbf16> to vector<4x512xbf16>
    %189 = arith.mulf %186, %188 : vector<4x512xbf16>
    %190 = vector.extract_strided_slice %24 {offsets = [0, 73], sizes = [4, 439], strides = [1, 1]} : vector<4x512xbf16> to vector<4x439xbf16>
    %191 = vector.extract_strided_slice %24 {offsets = [0, 0], sizes = [4, 73], strides = [1, 1]} : vector<4x512xbf16> to vector<4x73xbf16>
    %192 = tpu.concatenate %190, %191 in 1 : vector<4x439xbf16>, vector<4x73xbf16> -> vector<4x512xbf16>
    %c26 = arith.constant 26 : index
    %c0_42 = arith.constant 0 : index
    %193 = vector.load %arg4[%c26, %c0_42] : memref<28x512xbf16, #tpu.memory_space<vmem>>, vector<1x512xbf16>
    %194 = vector.broadcast %193 : vector<1x512xbf16> to vector<4x512xbf16>
    %195 = arith.mulf %192, %194 : vector<4x512xbf16>
    %cst_43 = arith.constant 0.000000e+00 : bf16
    %196 = vector.broadcast %cst_43 : bf16 to vector<4x512xbf16>
    %197 = tpu.concatenate %183, %189, %195, %196 in 0 : vector<4x512xbf16>, vector<4x512xbf16>, vector<4x512xbf16>, vector<4x512xbf16> -> vector<16x512xbf16>
    %c96 = arith.constant 96 : index
    %c0_44 = arith.constant 0 : index
    %198 = vector.load %arg6[%c96, %c0_44] : memref<112x1024xbf16, #tpu.memory_space<vmem>>, vector<16x512xbf16>
    tpu.vector_store %arg6[%c96, %c0_44], %197 {strides = array<i32>} : memref<112x1024xbf16, #tpu.memory_space<vmem>>, vector<16x512xbf16>,
    %c4_45 = arith.constant 4 : index
    %c0_46 = arith.constant 0 : index
    %199 = vector.load %arg1[%c4_45, %c0_46] : memref<8x512xf32, #tpu.memory_space<vmem>>, vector<4x512xf32>
    %cst_47 = arith.constant dense<0.000000e+00> : vector<4xf32>
    %200 = vector.multi_reduction <add>, %199, %cst_47 [1] : vector<4x512xf32> to vector<4xf32>
    %201 = vector.shape_cast %200 : vector<4xf32> to vector<4x1xf32>
    %cst_48 = arith.constant 0.001953125 : f32
    %202 = vector.broadcast %cst_48 : f32 to vector<4x1xf32>
    %203 = arith.mulf %201, %202 : vector<4x1xf32>
    %204 = arith.mulf %199, %199 : vector<4x512xf32>
    %cst_49 = arith.constant dense<0.000000e+00> : vector<4xf32>
    %205 = vector.multi_reduction <add>, %204, %cst_49 [1] : vector<4x512xf32> to vector<4xf32>
    %206 = vector.shape_cast %205 : vector<4xf32> to vector<4x1xf32>
    %cst_50 = arith.constant 0.001953125 : f32
    %207 = vector.broadcast %cst_50 : f32 to vector<4x1xf32>
    %208 = arith.mulf %206, %207 : vector<4x1xf32>
    %209 = vector.broadcast %203 : vector<4x1xf32> to vector<4x512xf32>
    %210 = arith.subf %199, %209 : vector<4x512xf32>
    %211 = arith.mulf %203, %203 : vector<4x1xf32>
    %212 = arith.subf %208, %211 : vector<4x1xf32>
    %cst_51 = arith.constant 9.99999974E-6 : f32
    %213 = vector.broadcast %cst_51 : f32 to vector<4x1xf32>
    %214 = arith.addf %212, %213 : vector<4x1xf32>
    %215 = math.rsqrt %214 : vector<4x1xf32>
    %216 = vector.broadcast %215 : vector<4x1xf32> to vector<4x512xf32>
    %217 = arith.mulf %210, %216 : vector<4x512xf32>
    %cst_52 = arith.constant 0.000000e+00 : f32
    %218 = vector.broadcast %cst_52 : f32 to vector<4x512xf32>
    %219 = arith.cmpf oge, %217, %218 : vector<4x512xf32>
    %cst_53 = arith.constant 1.000000e-01 : f32
    %220 = vector.broadcast %cst_53 : f32 to vector<4x512xf32>
    %221 = arith.mulf %220, %217 : vector<4x512xf32>
    %222 = arith.select %219, %217, %221 : vector<4x512xi1>, vector<4x512xf32>
    %223 = arith.truncf %222 : vector<4x512xf32> to vector<4x512xbf16>
    %224 = vector.extract_strided_slice %223 {offsets = [0, 439], sizes = [4, 73], strides = [1, 1]} : vector<4x512xbf16> to vector<4x73xbf16>
    %225 = vector.extract_strided_slice %223 {offsets = [0, 0], sizes = [4, 439], strides = [1, 1]} : vector<4x512xbf16> to vector<4x439xbf16>
    %226 = tpu.concatenate %224, %225 in 1 : vector<4x73xbf16>, vector<4x439xbf16> -> vector<4x512xbf16>
    %c0_54 = arith.constant 0 : index
    %c0_55 = arith.constant 0 : index
    %227 = vector.load %arg4[%c0_54, %c0_55] : memref<28x512xbf16, #tpu.memory_space<vmem>>, vector<1x512xbf16>
    %228 = vector.broadcast %227 : vector<1x512xbf16> to vector<4x512xbf16>
    %229 = arith.mulf %226, %228 : vector<4x512xbf16>
    %230 = vector.extract_strided_slice %223 {offsets = [0, 440], sizes = [4, 72], strides = [1, 1]} : vector<4x512xbf16> to vector<4x72xbf16>
    %231 = vector.extract_strided_slice %223 {offsets = [0, 0], sizes = [4, 440], strides = [1, 1]} : vector<4x512xbf16> to vector<4x440xbf16>
    %232 = tpu.concatenate %230, %231 in 1 : vector<4x72xbf16>, vector<4x440xbf16> -> vector<4x512xbf16>
    %c1_56 = arith.constant 1 : index
    %c0_57 = arith.constant 0 : index
    %233 = vector.load %arg4[%c1_56, %c0_57] : memref<28x512xbf16, #tpu.memory_space<vmem>>, vector<1x512xbf16>
    %234 = vector.broadcast %233 : vector<1x512xbf16> to vector<4x512xbf16>
    %235 = arith.mulf %232, %234 : vector<4x512xbf16>
    %236 = vector.extract_strided_slice %223 {offsets = [0, 441], sizes = [4, 71], strides = [1, 1]} : vector<4x512xbf16> to vector<4x71xbf16>
    %237 = vector.extract_strided_slice %223 {offsets = [0, 0], sizes = [4, 441], strides = [1, 1]} : vector<4x512xbf16> to vector<4x441xbf16>
    %238 = tpu.concatenate %236, %237 in 1 : vector<4x71xbf16>, vector<4x441xbf16> -> vector<4x512xbf16>
    %c2_58 = arith.constant 2 : index
    %c0_59 = arith.constant 0 : index
    %239 = vector.load %arg4[%c2_58, %c0_59] : memref<28x512xbf16, #tpu.memory_space<vmem>>, vector<1x512xbf16>
    %240 = vector.broadcast %239 : vector<1x512xbf16> to vector<4x512xbf16>
    %241 = arith.mulf %238, %240 : vector<4x512xbf16>
    %242 = vector.extract_strided_slice %223 {offsets = [0, 447], sizes = [4, 65], strides = [1, 1]} : vector<4x512xbf16> to vector<4x65xbf16>
    %243 = vector.extract_strided_slice %223 {offsets = [0, 0], sizes = [4, 447], strides = [1, 1]} : vector<4x512xbf16> to vector<4x447xbf16>
    %244 = tpu.concatenate %242, %243 in 1 : vector<4x65xbf16>, vector<4x447xbf16> -> vector<4x512xbf16>
    %c3_60 = arith.constant 3 : index
    %c0_61 = arith.constant 0 : index
    %245 = vector.load %arg4[%c3_60, %c0_61] : memref<28x512xbf16, #tpu.memory_space<vmem>>, vector<1x512xbf16>
    %246 = vector.broadcast %245 : vector<1x512xbf16> to vector<4x512xbf16>
    %247 = arith.mulf %244, %246 : vector<4x512xbf16>
    %248 = tpu.concatenate %229, %235, %241, %247 in 0 : vector<4x512xbf16>, vector<4x512xbf16>, vector<4x512xbf16>, vector<4x512xbf16> -> vector<16x512xbf16>
    %c0_62 = arith.constant 0 : index
    %c512 = arith.constant 512 : index
    %249 = vector.load %arg6[%c0_62, %c512] : memref<112x1024xbf16, #tpu.memory_space<vmem>>, vector<16x512xbf16>
    tpu.vector_store %arg6[%c0_62, %c512], %248 {strides = array<i32>} : memref<112x1024xbf16, #tpu.memory_space<vmem>>, vector<16x512xbf16>,
    %250 = vector.extract_strided_slice %223 {offsets = [0, 448], sizes = [4, 64], strides = [1, 1]} : vector<4x512xbf16> to vector<4x64xbf16>
    %251 = vector.extract_strided_slice %223 {offsets = [0, 0], sizes = [4, 448], strides = [1, 1]} : vector<4x512xbf16> to vector<4x448xbf16>
    %252 = tpu.concatenate %250, %251 in 1 : vector<4x64xbf16>, vector<4x448xbf16> -> vector<4x512xbf16>
    %c4_63 = arith.constant 4 : index
    %c0_64 = arith.constant 0 : index
    %253 = vector.load %arg4[%c4_63, %c0_64] : memref<28x512xbf16, #tpu.memory_space<vmem>>, vector<1x512xbf16>
    %254 = vector.broadcast %253 : vector<1x512xbf16> to vector<4x512xbf16>
    %255 = arith.mulf %252, %254 : vector<4x512xbf16>
    %256 = vector.extract_strided_slice %223 {offsets = [0, 449], sizes = [4, 63], strides = [1, 1]} : vector<4x512xbf16> to vector<4x63xbf16>
    %257 = vector.extract_strided_slice %223 {offsets = [0, 0], sizes = [4, 449], strides = [1, 1]} : vector<4x512xbf16> to vector<4x449xbf16>
    %258 = tpu.concatenate %256, %257 in 1 : vector<4x63xbf16>, vector<4x449xbf16> -> vector<4x512xbf16>
    %c5_65 = arith.constant 5 : index
    %c0_66 = arith.constant 0 : index
    %259 = vector.load %arg4[%c5_65, %c0_66] : memref<28x512xbf16, #tpu.memory_space<vmem>>, vector<1x512xbf16>
    %260 = vector.broadcast %259 : vector<1x512xbf16> to vector<4x512xbf16>
    %261 = arith.mulf %258, %260 : vector<4x512xbf16>
    %262 = vector.extract_strided_slice %223 {offsets = [0, 455], sizes = [4, 57], strides = [1, 1]} : vector<4x512xbf16> to vector<4x57xbf16>
    %263 = vector.extract_strided_slice %223 {offsets = [0, 0], sizes = [4, 455], strides = [1, 1]} : vector<4x512xbf16> to vector<4x455xbf16>
    %264 = tpu.concatenate %262, %263 in 1 : vector<4x57xbf16>, vector<4x455xbf16> -> vector<4x512xbf16>
    %c6_67 = arith.constant 6 : index
    %c0_68 = arith.constant 0 : index
    %265 = vector.load %arg4[%c6_67, %c0_68] : memref<28x512xbf16, #tpu.memory_space<vmem>>, vector<1x512xbf16>
    %266 = vector.broadcast %265 : vector<1x512xbf16> to vector<4x512xbf16>
    %267 = arith.mulf %264, %266 : vector<4x512xbf16>
    %268 = vector.extract_strided_slice %223 {offsets = [0, 456], sizes = [4, 56], strides = [1, 1]} : vector<4x512xbf16> to vector<4x56xbf16>
    %269 = vector.extract_strided_slice %223 {offsets = [0, 0], sizes = [4, 456], strides = [1, 1]} : vector<4x512xbf16> to vector<4x456xbf16>
    %270 = tpu.concatenate %268, %269 in 1 : vector<4x56xbf16>, vector<4x456xbf16> -> vector<4x512xbf16>
    %c7_69 = arith.constant 7 : index
    %c0_70 = arith.constant 0 : index
    %271 = vector.load %arg4[%c7_69, %c0_70] : memref<28x512xbf16, #tpu.memory_space<vmem>>, vector<1x512xbf16>
    %272 = vector.broadcast %271 : vector<1x512xbf16> to vector<4x512xbf16>
    %273 = arith.mulf %270, %272 : vector<4x512xbf16>
    %274 = tpu.concatenate %255, %261, %267, %273 in 0 : vector<4x512xbf16>, vector<4x512xbf16>, vector<4x512xbf16>, vector<4x512xbf16> -> vector<16x512xbf16>
    %c16_71 = arith.constant 16 : index
    %c512_72 = arith.constant 512 : index
    %275 = vector.load %arg6[%c16_71, %c512_72] : memref<112x1024xbf16, #tpu.memory_space<vmem>>, vector<16x512xbf16>
    tpu.vector_store %arg6[%c16_71, %c512_72], %274 {strides = array<i32>} : memref<112x1024xbf16, #tpu.memory_space<vmem>>, vector<16x512xbf16>,
    %276 = vector.extract_strided_slice %223 {offsets = [0, 457], sizes = [4, 55], strides = [1, 1]} : vector<4x512xbf16> to vector<4x55xbf16>
    %277 = vector.extract_strided_slice %223 {offsets = [0, 0], sizes = [4, 457], strides = [1, 1]} : vector<4x512xbf16> to vector<4x457xbf16>
    %278 = tpu.concatenate %276, %277 in 1 : vector<4x55xbf16>, vector<4x457xbf16> -> vector<4x512xbf16>
    %c8_73 = arith.constant 8 : index
    %c0_74 = arith.constant 0 : index
    %279 = vector.load %arg4[%c8_73, %c0_74] : memref<28x512xbf16, #tpu.memory_space<vmem>>, vector<1x512xbf16>
    %280 = vector.broadcast %279 : vector<1x512xbf16> to vector<4x512xbf16>
    %281 = arith.mulf %278, %280 : vector<4x512xbf16>
    %282 = vector.extract_strided_slice %223 {offsets = [0, 503], sizes = [4, 9], strides = [1, 1]} : vector<4x512xbf16> to vector<4x9xbf16>
    %283 = vector.extract_strided_slice %223 {offsets = [0, 0], sizes = [4, 503], strides = [1, 1]} : vector<4x512xbf16> to vector<4x503xbf16>
    %284 = tpu.concatenate %282, %283 in 1 : vector<4x9xbf16>, vector<4x503xbf16> -> vector<4x512xbf16>
    %c9_75 = arith.constant 9 : index
    %c0_76 = arith.constant 0 : index
    %285 = vector.load %arg4[%c9_75, %c0_76] : memref<28x512xbf16, #tpu.memory_space<vmem>>, vector<1x512xbf16>
    %286 = vector.broadcast %285 : vector<1x512xbf16> to vector<4x512xbf16>
    %287 = arith.mulf %284, %286 : vector<4x512xbf16>
    %288 = vector.extract_strided_slice %223 {offsets = [0, 504], sizes = [4, 8], strides = [1, 1]} : vector<4x512xbf16> to vector<4x8xbf16>
    %289 = vector.extract_strided_slice %223 {offsets = [0, 0], sizes = [4, 504], strides = [1, 1]} : vector<4x512xbf16> to vector<4x504xbf16>
    %290 = tpu.concatenate %288, %289 in 1 : vector<4x8xbf16>, vector<4x504xbf16> -> vector<4x512xbf16>
    %c10_77 = arith.constant 10 : index
    %c0_78 = arith.constant 0 : index
    %291 = vector.load %arg4[%c10_77, %c0_78] : memref<28x512xbf16, #tpu.memory_space<vmem>>, vector<1x512xbf16>
    %292 = vector.broadcast %291 : vector<1x512xbf16> to vector<4x512xbf16>
    %293 = arith.mulf %290, %292 : vector<4x512xbf16>
    %294 = vector.extract_strided_slice %223 {offsets = [0, 505], sizes = [4, 7], strides = [1, 1]} : vector<4x512xbf16> to vector<4x7xbf16>
    %295 = vector.extract_strided_slice %223 {offsets = [0, 0], sizes = [4, 505], strides = [1, 1]} : vector<4x512xbf16> to vector<4x505xbf16>
    %296 = tpu.concatenate %294, %295 in 1 : vector<4x7xbf16>, vector<4x505xbf16> -> vector<4x512xbf16>
    %c11_79 = arith.constant 11 : index
    %c0_80 = arith.constant 0 : index
    %297 = vector.load %arg4[%c11_79, %c0_80] : memref<28x512xbf16, #tpu.memory_space<vmem>>, vector<1x512xbf16>
    %298 = vector.broadcast %297 : vector<1x512xbf16> to vector<4x512xbf16>
    %299 = arith.mulf %296, %298 : vector<4x512xbf16>
    %300 = tpu.concatenate %281, %287, %293, %299 in 0 : vector<4x512xbf16>, vector<4x512xbf16>, vector<4x512xbf16>, vector<4x512xbf16> -> vector<16x512xbf16>
    %c32_81 = arith.constant 32 : index
    %c512_82 = arith.constant 512 : index
    %301 = vector.load %arg6[%c32_81, %c512_82] : memref<112x1024xbf16, #tpu.memory_space<vmem>>, vector<16x512xbf16>
    tpu.vector_store %arg6[%c32_81, %c512_82], %300 {strides = array<i32>} : memref<112x1024xbf16, #tpu.memory_space<vmem>>, vector<16x512xbf16>,
    %302 = vector.extract_strided_slice %223 {offsets = [0, 511], sizes = [4, 1], strides = [1, 1]} : vector<4x512xbf16> to vector<4x1xbf16>
    %303 = vector.extract_strided_slice %223 {offsets = [0, 0], sizes = [4, 511], strides = [1, 1]} : vector<4x512xbf16> to vector<4x511xbf16>
    %304 = tpu.concatenate %302, %303 in 1 : vector<4x1xbf16>, vector<4x511xbf16> -> vector<4x512xbf16>
    %c12_83 = arith.constant 12 : index
    %c0_84 = arith.constant 0 : index
    %305 = vector.load %arg4[%c12_83, %c0_84] : memref<28x512xbf16, #tpu.memory_space<vmem>>, vector<1x512xbf16>
    %306 = vector.broadcast %305 : vector<1x512xbf16> to vector<4x512xbf16>
    %307 = arith.mulf %304, %306 : vector<4x512xbf16>
    %c13_85 = arith.constant 13 : index
    %c0_86 = arith.constant 0 : index
    %308 = vector.load %arg4[%c13_85, %c0_86] : memref<28x512xbf16, #tpu.memory_space<vmem>>, vector<1x512xbf16>
    %309 = vector.broadcast %308 : vector<1x512xbf16> to vector<4x512xbf16>
    %310 = arith.mulf %223, %309 : vector<4x512xbf16>
    %311 = vector.extract_strided_slice %223 {offsets = [0, 1], sizes = [4, 511], strides = [1, 1]} : vector<4x512xbf16> to vector<4x511xbf16>
    %312 = vector.extract_strided_slice %223 {offsets = [0, 0], sizes = [4, 1], strides = [1, 1]} : vector<4x512xbf16> to vector<4x1xbf16>
    %313 = tpu.concatenate %311, %312 in 1 : vector<4x511xbf16>, vector<4x1xbf16> -> vector<4x512xbf16>
    %c14_87 = arith.constant 14 : index
    %c0_88 = arith.constant 0 : index
    %314 = vector.load %arg4[%c14_87, %c0_88] : memref<28x512xbf16, #tpu.memory_space<vmem>>, vector<1x512xbf16>
    %315 = vector.broadcast %314 : vector<1x512xbf16> to vector<4x512xbf16>
    %316 = arith.mulf %313, %315 : vector<4x512xbf16>
    %317 = vector.extract_strided_slice %223 {offsets = [0, 7], sizes = [4, 505], strides = [1, 1]} : vector<4x512xbf16> to vector<4x505xbf16>
    %318 = vector.extract_strided_slice %223 {offsets = [0, 0], sizes = [4, 7], strides = [1, 1]} : vector<4x512xbf16> to vector<4x7xbf16>
    %319 = tpu.concatenate %317, %318 in 1 : vector<4x505xbf16>, vector<4x7xbf16> -> vector<4x512xbf16>
    %c15_89 = arith.constant 15 : index
    %c0_90 = arith.constant 0 : index
    %320 = vector.load %arg4[%c15_89, %c0_90] : memref<28x512xbf16, #tpu.memory_space<vmem>>, vector<1x512xbf16>
    %321 = vector.broadcast %320 : vector<1x512xbf16> to vector<4x512xbf16>
    %322 = arith.mulf %319, %321 : vector<4x512xbf16>
    %323 = tpu.concatenate %307, %310, %316, %322 in 0 : vector<4x512xbf16>, vector<4x512xbf16>, vector<4x512xbf16>, vector<4x512xbf16> -> vector<16x512xbf16>
    %c48_91 = arith.constant 48 : index
    %c512_92 = arith.constant 512 : index
    %324 = vector.load %arg6[%c48_91, %c512_92] : memref<112x1024xbf16, #tpu.memory_space<vmem>>, vector<16x512xbf16>
    tpu.vector_store %arg6[%c48_91, %c512_92], %323 {strides = array<i32>} : memref<112x1024xbf16, #tpu.memory_space<vmem>>, vector<16x512xbf16>,
    %325 = vector.extract_strided_slice %223 {offsets = [0, 8], sizes = [4, 504], strides = [1, 1]} : vector<4x512xbf16> to vector<4x504xbf16>
    %326 = vector.extract_strided_slice %223 {offsets = [0, 0], sizes = [4, 8], strides = [1, 1]} : vector<4x512xbf16> to vector<4x8xbf16>
    %327 = tpu.concatenate %325, %326 in 1 : vector<4x504xbf16>, vector<4x8xbf16> -> vector<4x512xbf16>
    %c16_93 = arith.constant 16 : index
    %c0_94 = arith.constant 0 : index
    %328 = vector.load %arg4[%c16_93, %c0_94] : memref<28x512xbf16, #tpu.memory_space<vmem>>, vector<1x512xbf16>
    %329 = vector.broadcast %328 : vector<1x512xbf16> to vector<4x512xbf16>
    %330 = arith.mulf %327, %329 : vector<4x512xbf16>
    %331 = vector.extract_strided_slice %223 {offsets = [0, 9], sizes = [4, 503], strides = [1, 1]} : vector<4x512xbf16> to vector<4x503xbf16>
    %332 = vector.extract_strided_slice %223 {offsets = [0, 0], sizes = [4, 9], strides = [1, 1]} : vector<4x512xbf16> to vector<4x9xbf16>
    %333 = tpu.concatenate %331, %332 in 1 : vector<4x503xbf16>, vector<4x9xbf16> -> vector<4x512xbf16>
    %c17_95 = arith.constant 17 : index
    %c0_96 = arith.constant 0 : index
    %334 = vector.load %arg4[%c17_95, %c0_96] : memref<28x512xbf16, #tpu.memory_space<vmem>>, vector<1x512xbf16>
    %335 = vector.broadcast %334 : vector<1x512xbf16> to vector<4x512xbf16>
    %336 = arith.mulf %333, %335 : vector<4x512xbf16>
    %337 = vector.extract_strided_slice %223 {offsets = [0, 55], sizes = [4, 457], strides = [1, 1]} : vector<4x512xbf16> to vector<4x457xbf16>
    %338 = vector.extract_strided_slice %223 {offsets = [0, 0], sizes = [4, 55], strides = [1, 1]} : vector<4x512xbf16> to vector<4x55xbf16>
    %339 = tpu.concatenate %337, %338 in 1 : vector<4x457xbf16>, vector<4x55xbf16> -> vector<4x512xbf16>
    %c18_97 = arith.constant 18 : index
    %c0_98 = arith.constant 0 : index
    %340 = vector.load %arg4[%c18_97, %c0_98] : memref<28x512xbf16, #tpu.memory_space<vmem>>, vector<1x512xbf16>
    %341 = vector.broadcast %340 : vector<1x512xbf16> to vector<4x512xbf16>
    %342 = arith.mulf %339, %341 : vector<4x512xbf16>
    %343 = vector.extract_strided_slice %223 {offsets = [0, 56], sizes = [4, 456], strides = [1, 1]} : vector<4x512xbf16> to vector<4x456xbf16>
    %344 = vector.extract_strided_slice %223 {offsets = [0, 0], sizes = [4, 56], strides = [1, 1]} : vector<4x512xbf16> to vector<4x56xbf16>
    %345 = tpu.concatenate %343, %344 in 1 : vector<4x456xbf16>, vector<4x56xbf16> -> vector<4x512xbf16>
    %c19_99 = arith.constant 19 : index
    %c0_100 = arith.constant 0 : index
    %346 = vector.load %arg4[%c19_99, %c0_100] : memref<28x512xbf16, #tpu.memory_space<vmem>>, vector<1x512xbf16>
    %347 = vector.broadcast %346 : vector<1x512xbf16> to vector<4x512xbf16>
    %348 = arith.mulf %345, %347 : vector<4x512xbf16>
    %349 = tpu.concatenate %330, %336, %342, %348 in 0 : vector<4x512xbf16>, vector<4x512xbf16>, vector<4x512xbf16>, vector<4x512xbf16> -> vector<16x512xbf16>
    %c64_101 = arith.constant 64 : index
    %c512_102 = arith.constant 512 : index
    %350 = vector.load %arg6[%c64_101, %c512_102] : memref<112x1024xbf16, #tpu.memory_space<vmem>>, vector<16x512xbf16>
    tpu.vector_store %arg6[%c64_101, %c512_102], %349 {strides = array<i32>} : memref<112x1024xbf16, #tpu.memory_space<vmem>>, vector<16x512xbf16>,
    %351 = vector.extract_strided_slice %223 {offsets = [0, 57], sizes = [4, 455], strides = [1, 1]} : vector<4x512xbf16> to vector<4x455xbf16>
    %352 = vector.extract_strided_slice %223 {offsets = [0, 0], sizes = [4, 57], strides = [1, 1]} : vector<4x512xbf16> to vector<4x57xbf16>
    %353 = tpu.concatenate %351, %352 in 1 : vector<4x455xbf16>, vector<4x57xbf16> -> vector<4x512xbf16>
    %c20_103 = arith.constant 20 : index
    %c0_104 = arith.constant 0 : index
    %354 = vector.load %arg4[%c20_103, %c0_104] : memref<28x512xbf16, #tpu.memory_space<vmem>>, vector<1x512xbf16>
    %355 = vector.broadcast %354 : vector<1x512xbf16> to vector<4x512xbf16>
    %356 = arith.mulf %353, %355 : vector<4x512xbf16>
    %357 = vector.extract_strided_slice %223 {offsets = [0, 63], sizes = [4, 449], strides = [1, 1]} : vector<4x512xbf16> to vector<4x449xbf16>
    %358 = vector.extract_strided_slice %223 {offsets = [0, 0], sizes = [4, 63], strides = [1, 1]} : vector<4x512xbf16> to vector<4x63xbf16>
    %359 = tpu.concatenate %357, %358 in 1 : vector<4x449xbf16>, vector<4x63xbf16> -> vector<4x512xbf16>
    %c21_105 = arith.constant 21 : index
    %c0_106 = arith.constant 0 : index
    %360 = vector.load %arg4[%c21_105, %c0_106] : memref<28x512xbf16, #tpu.memory_space<vmem>>, vector<1x512xbf16>
    %361 = vector.broadcast %360 : vector<1x512xbf16> to vector<4x512xbf16>
    %362 = arith.mulf %359, %361 : vector<4x512xbf16>
    %363 = vector.extract_strided_slice %223 {offsets = [0, 64], sizes = [4, 448], strides = [1, 1]} : vector<4x512xbf16> to vector<4x448xbf16>
    %364 = vector.extract_strided_slice %223 {offsets = [0, 0], sizes = [4, 64], strides = [1, 1]} : vector<4x512xbf16> to vector<4x64xbf16>
    %365 = tpu.concatenate %363, %364 in 1 : vector<4x448xbf16>, vector<4x64xbf16> -> vector<4x512xbf16>
    %c22_107 = arith.constant 22 : index
    %c0_108 = arith.constant 0 : index
    %366 = vector.load %arg4[%c22_107, %c0_108] : memref<28x512xbf16, #tpu.memory_space<vmem>>, vector<1x512xbf16>
    %367 = vector.broadcast %366 : vector<1x512xbf16> to vector<4x512xbf16>
    %368 = arith.mulf %365, %367 : vector<4x512xbf16>
    %369 = vector.extract_strided_slice %223 {offsets = [0, 65], sizes = [4, 447], strides = [1, 1]} : vector<4x512xbf16> to vector<4x447xbf16>
    %370 = vector.extract_strided_slice %223 {offsets = [0, 0], sizes = [4, 65], strides = [1, 1]} : vector<4x512xbf16> to vector<4x65xbf16>
    %371 = tpu.concatenate %369, %370 in 1 : vector<4x447xbf16>, vector<4x65xbf16> -> vector<4x512xbf16>
    %c23_109 = arith.constant 23 : index
    %c0_110 = arith.constant 0 : index
    %372 = vector.load %arg4[%c23_109, %c0_110] : memref<28x512xbf16, #tpu.memory_space<vmem>>, vector<1x512xbf16>
    %373 = vector.broadcast %372 : vector<1x512xbf16> to vector<4x512xbf16>
    %374 = arith.mulf %371, %373 : vector<4x512xbf16>
    %375 = tpu.concatenate %356, %362, %368, %374 in 0 : vector<4x512xbf16>, vector<4x512xbf16>, vector<4x512xbf16>, vector<4x512xbf16> -> vector<16x512xbf16>
    %c80_111 = arith.constant 80 : index
    %c512_112 = arith.constant 512 : index
    %376 = vector.load %arg6[%c80_111, %c512_112] : memref<112x1024xbf16, #tpu.memory_space<vmem>>, vector<16x512xbf16>
    tpu.vector_store %arg6[%c80_111, %c512_112], %375 {strides = array<i32>} : memref<112x1024xbf16, #tpu.memory_space<vmem>>, vector<16x512xbf16>,
    %377 = vector.extract_strided_slice %223 {offsets = [0, 71], sizes = [4, 441], strides = [1, 1]} : vector<4x512xbf16> to vector<4x441xbf16>
    %378 = vector.extract_strided_slice %223 {offsets = [0, 0], sizes = [4, 71], strides = [1, 1]} : vector<4x512xbf16> to vector<4x71xbf16>
    %379 = tpu.concatenate %377, %378 in 1 : vector<4x441xbf16>, vector<4x71xbf16> -> vector<4x512xbf16>
    %c24_113 = arith.constant 24 : index
    %c0_114 = arith.constant 0 : index
    %380 = vector.load %arg4[%c24_113, %c0_114] : memref<28x512xbf16, #tpu.memory_space<vmem>>, vector<1x512xbf16>
    %381 = vector.broadcast %380 : vector<1x512xbf16> to vector<4x512xbf16>
    %382 = arith.mulf %379, %381 : vector<4x512xbf16>
    %383 = vector.extract_strided_slice %223 {offsets = [0, 72], sizes = [4, 440], strides = [1, 1]} : vector<4x512xbf16> to vector<4x440xbf16>
    %384 = vector.extract_strided_slice %223 {offsets = [0, 0], sizes = [4, 72], strides = [1, 1]} : vector<4x512xbf16> to vector<4x72xbf16>
    %385 = tpu.concatenate %383, %384 in 1 : vector<4x440xbf16>, vector<4x72xbf16> -> vector<4x512xbf16>
    %c25_115 = arith.constant 25 : index
    %c0_116 = arith.constant 0 : index
    %386 = vector.load %arg4[%c25_115, %c0_116] : memref<28x512xbf16, #tpu.memory_space<vmem>>, vector<1x512xbf16>
    %387 = vector.broadcast %386 : vector<1x512xbf16> to vector<4x512xbf16>
    %388 = arith.mulf %385, %387 : vector<4x512xbf16>
    %389 = vector.extract_strided_slice %223 {offsets = [0, 73], sizes = [4, 439], strides = [1, 1]} : vector<4x512xbf16> to vector<4x439xbf16>
    %390 = vector.extract_strided_slice %223 {offsets = [0, 0], sizes = [4, 73], strides = [1, 1]} : vector<4x512xbf16> to vector<4x73xbf16>
    %391 = tpu.concatenate %389, %390 in 1 : vector<4x439xbf16>, vector<4x73xbf16> -> vector<4x512xbf16>
    %c26_117 = arith.constant 26 : index
    %c0_118 = arith.constant 0 : index
    %392 = vector.load %arg4[%c26_117, %c0_118] : memref<28x512xbf16, #tpu.memory_space<vmem>>, vector<1x512xbf16>
    %393 = vector.broadcast %392 : vector<1x512xbf16> to vector<4x512xbf16>
    %394 = arith.mulf %391, %393 : vector<4x512xbf16>
    %cst_119 = arith.constant 0.000000e+00 : bf16
    %395 = vector.broadcast %cst_119 : bf16 to vector<4x512xbf16>
    %396 = tpu.concatenate %382, %388, %394, %395 in 0 : vector<4x512xbf16>, vector<4x512xbf16>, vector<4x512xbf16>, vector<4x512xbf16> -> vector<16x512xbf16>
    %c96_120 = arith.constant 96 : index
    %c512_121 = arith.constant 512 : index
    %397 = vector.load %arg6[%c96_120, %c512_121] : memref<112x1024xbf16, #tpu.memory_space<vmem>>, vector<16x512xbf16>
    tpu.vector_store %arg6[%c96_120, %c512_121], %396 {strides = array<i32>} : memref<112x1024xbf16, #tpu.memory_space<vmem>>, vector<16x512xbf16>,
    %c0_122 = arith.constant 0 : index
    %c0_123 = arith.constant 0 : index
    %398 = vector.load %arg2[%c0_122, %c0_123] : memref<4x112xbf16, #tpu.memory_space<vmem>>, vector<4x112xbf16>
    %c0_124 = arith.constant 0 : index
    %c0_125 = arith.constant 0 : index
    %399 = vector.load %arg6[%c0_124, %c0_125] : memref<112x1024xbf16, #tpu.memory_space<vmem>>, vector<112x1024xbf16>
    %cst_126 = arith.constant dense<0.000000e+00> : vector<4x1024xf32>
    %400 = tpu.matmul %398, %399, %cst_126 {dimension_numbers = #tpu.dot_dimension_numbers<[1], [0], [0], [1], [0, 0, 1, 1], [], []>} : vector<4x112xbf16>, vector<112x1024xbf16>, vector<4x1024xf32> -> vector<4x1024xf32>
    %c0_127 = arith.constant 0 : index
    %c0_128 = arith.constant 0 : index
    %401 = vector.load %arg1[%c0_127, %c0_128] : memref<8x512xf32, #tpu.memory_space<vmem>>, vector<4x512xf32>
    %402 = vector.extract_strided_slice %400 {offsets = [0, 0], sizes = [4, 512], strides = [1, 1]} : vector<4x1024xf32> to vector<4x512xf32>
    %c0_129 = arith.constant 0 : index
    %c0_130 = arith.constant 0 : index
    %403 = vector.load %arg3[%c0_129, %c0_130] : memref<4x1xf32, #tpu.memory_space<vmem>>, vector<4x1xf32>
    %404 = vector.broadcast %403 : vector<4x1xf32> to vector<4x512xf32>
    %405 = arith.addf %402, %404 : vector<4x512xf32>
    %406 = arith.addf %405, %401 : vector<4x512xf32>
    %cst_131 = arith.constant dense<0.000000e+00> : vector<4xf32>
    %407 = vector.multi_reduction <add>, %406, %cst_131 [1] : vector<4x512xf32> to vector<4xf32>
    %408 = vector.shape_cast %407 : vector<4xf32> to vector<4x1xf32>
    %cst_132 = arith.constant 0.001953125 : f32
    %409 = vector.broadcast %cst_132 : f32 to vector<4x1xf32>
    %410 = arith.mulf %408, %409 : vector<4x1xf32>
    %411 = arith.mulf %406, %406 : vector<4x512xf32>
    %cst_133 = arith.constant dense<0.000000e+00> : vector<4xf32>
    %412 = vector.multi_reduction <add>, %411, %cst_133 [1] : vector<4x512xf32> to vector<4xf32>
    %413 = vector.shape_cast %412 : vector<4xf32> to vector<4x1xf32>
    %cst_134 = arith.constant 0.001953125 : f32
    %414 = vector.broadcast %cst_134 : f32 to vector<4x1xf32>
    %415 = arith.mulf %413, %414 : vector<4x1xf32>
    %416 = vector.broadcast %410 : vector<4x1xf32> to vector<4x512xf32>
    %417 = arith.subf %406, %416 : vector<4x512xf32>
    %418 = arith.mulf %410, %410 : vector<4x1xf32>
    %419 = arith.subf %415, %418 : vector<4x1xf32>
    %cst_135 = arith.constant 9.99999974E-6 : f32
    %420 = vector.broadcast %cst_135 : f32 to vector<4x1xf32>
    %421 = arith.addf %419, %420 : vector<4x1xf32>
    %422 = math.rsqrt %421 : vector<4x1xf32>
    %423 = vector.broadcast %422 : vector<4x1xf32> to vector<4x512xf32>
    %424 = arith.mulf %417, %423 : vector<4x512xf32>
    %cst_136 = arith.constant 0.000000e+00 : f32
    %425 = vector.broadcast %cst_136 : f32 to vector<4x512xf32>
    %426 = arith.cmpf oge, %424, %425 : vector<4x512xf32>
    %cst_137 = arith.constant 1.000000e-01 : f32
    %427 = vector.broadcast %cst_137 : f32 to vector<4x512xf32>
    %428 = arith.mulf %427, %424 : vector<4x512xf32>
    %429 = arith.select %426, %424, %428 : vector<4x512xi1>, vector<4x512xf32>
    %c0_138 = arith.constant 0 : index
    %c0_139 = arith.constant 0 : index
    %430 = vector.load %arg5[%c0_138, %c0_139] : memref<8x512xf32, #tpu.memory_space<vmem>>, vector<4x512xf32>
    tpu.vector_store %arg5[%c0_138, %c0_139], %429 {strides = array<i32>} : memref<8x512xf32, #tpu.memory_space<vmem>>, vector<4x512xf32>,
    %c4_140 = arith.constant 4 : index
    %c0_141 = arith.constant 0 : index
    %431 = vector.load %arg1[%c4_140, %c0_141] : memref<8x512xf32, #tpu.memory_space<vmem>>, vector<4x512xf32>
    %432 = vector.extract_strided_slice %400 {offsets = [0, 512], sizes = [4, 512], strides = [1, 1]} : vector<4x1024xf32> to vector<4x512xf32>
    %c0_142 = arith.constant 0 : index
    %c0_143 = arith.constant 0 : index
    %433 = vector.load %arg3[%c0_142, %c0_143] : memref<4x1xf32, #tpu.memory_space<vmem>>, vector<4x1xf32>
    %434 = vector.broadcast %433 : vector<4x1xf32> to vector<4x512xf32>
    %435 = arith.addf %432, %434 : vector<4x512xf32>
    %436 = arith.addf %435, %431 : vector<4x512xf32>
    %cst_144 = arith.constant dense<0.000000e+00> : vector<4xf32>
    %437 = vector.multi_reduction <add>, %436, %cst_144 [1] : vector<4x512xf32> to vector<4xf32>
    %438 = vector.shape_cast %437 : vector<4xf32> to vector<4x1xf32>
    %cst_145 = arith.constant 0.001953125 : f32
    %439 = vector.broadcast %cst_145 : f32 to vector<4x1xf32>
    %440 = arith.mulf %438, %439 : vector<4x1xf32>
    %441 = arith.mulf %436, %436 : vector<4x512xf32>
    %cst_146 = arith.constant dense<0.000000e+00> : vector<4xf32>
    %442 = vector.multi_reduction <add>, %441, %cst_146 [1] : vector<4x512xf32> to vector<4xf32>
    %443 = vector.shape_cast %442 : vector<4xf32> to vector<4x1xf32>
    %cst_147 = arith.constant 0.001953125 : f32
    %444 = vector.broadcast %cst_147 : f32 to vector<4x1xf32>
    %445 = arith.mulf %443, %444 : vector<4x1xf32>
    %446 = vector.broadcast %440 : vector<4x1xf32> to vector<4x512xf32>
    %447 = arith.subf %436, %446 : vector<4x512xf32>
    %448 = arith.mulf %440, %440 : vector<4x1xf32>
    %449 = arith.subf %445, %448 : vector<4x1xf32>
    %cst_148 = arith.constant 9.99999974E-6 : f32
    %450 = vector.broadcast %cst_148 : f32 to vector<4x1xf32>
    %451 = arith.addf %449, %450 : vector<4x1xf32>
    %452 = math.rsqrt %451 : vector<4x1xf32>
    %453 = vector.broadcast %452 : vector<4x1xf32> to vector<4x512xf32>
    %454 = arith.mulf %447, %453 : vector<4x512xf32>
    %cst_149 = arith.constant 0.000000e+00 : f32
    %455 = vector.broadcast %cst_149 : f32 to vector<4x512xf32>
    %456 = arith.cmpf oge, %454, %455 : vector<4x512xf32>
    %cst_150 = arith.constant 1.000000e-01 : f32
    %457 = vector.broadcast %cst_150 : f32 to vector<4x512xf32>
    %458 = arith.mulf %457, %454 : vector<4x512xf32>
    %459 = arith.select %456, %454, %458 : vector<4x512xi1>, vector<4x512xf32>
    %c4_151 = arith.constant 4 : index
    %c0_152 = arith.constant 0 : index
    %460 = vector.load %arg5[%c4_151, %c0_152] : memref<8x512xf32, #tpu.memory_space<vmem>>, vector<4x512xf32>
    tpu.vector_store %arg5[%c4_151, %c0_152], %459 {strides = array<i32>} : memref<8x512xf32, #tpu.memory_space<vmem>>, vector<4x512xf32>,
    return
  }
  func.func @transform_0(%arg0: i32) -> (i32, i32) {
    %c0_i32 = arith.constant 0 : i32
    %c0_i32_0 = arith.constant 0 : i32
    return %arg0, %c0_i32 : i32, i32
  }
  func.func @transform_1(%arg0: i32) -> (i32, i32) {
    %c0_i32 = arith.constant 0 : i32
    %c0_i32_0 = arith.constant 0 : i32
    %c0_i32_1 = arith.constant 0 : i32
    return %c0_i32, %c0_i32_0 : i32, i32
  }
  func.func @transform_2(%arg0: i32) -> (i32, i32) {
    %c0_i32 = arith.constant 0 : i32
    %c0_i32_0 = arith.constant 0 : i32
    %c0_i32_1 = arith.constant 0 : i32
    return %c0_i32, %c0_i32_0 : i32, i32
  }
  func.func @transform_3(%arg0: i32) -> (i32, i32) {
    %c0_i32 = arith.constant 0 : i32
    %c0_i32_0 = arith.constant 0 : i32
    %c0_i32_1 = arith.constant 0 : i32
    return %c0_i32, %c0_i32_0 : i32, i32
  }
  func.func @transform_4(%arg0: i32) -> (i32, i32) {
    %c0_i32 = arith.constant 0 : i32
    %c0_i32_0 = arith.constant 0 : i32
    return %arg0, %c0_i32 : i32, i32
  }
}

module attributes {stable_mosaic.version = 11 : i64} {
  func.func @_resblock_kernel(%arg0: i32, %arg1: memref<8x512xf32, #tpu.memory_space<vmem>>, %arg2: memref<4x108xbf16, #tpu.memory_space<vmem>>, %arg3: memref<4x1xf32, #tpu.memory_space<vmem>>, %arg4: memref<28x512xbf16, #tpu.memory_space<vmem>>, %arg5: memref<8x512xf32, #tpu.memory_space<vmem>>, %arg6: memref<108x1024xbf16, #tpu.memory_space<vmem>>) attributes {dimension_semantics = [#tpu.dimension_semantics<parallel>], iteration_bounds = array<i64: 1>, scalar_prefetch = 0 : i64, scratch_operands = 1 : i64, tpu.core_type = #tpu.core_type<tc>, window_params = [{transform_indices = @transform_0, window_bounds = array<i64: 8, 512>}, {pipeline_mode = #tpu.pipeline_mode<synchronous>, transform_indices = @transform_1, window_bounds = array<i64: 4, 108>}, {pipeline_mode = #tpu.pipeline_mode<synchronous>, transform_indices = @transform_2, window_bounds = array<i64: 4, 1>}, {pipeline_mode = #tpu.pipeline_mode<synchronous>, transform_indices = @transform_3, window_bounds = array<i64: 28, 512>}, {transform_indices = @transform_4, window_bounds = array<i64: 8, 512>}]} {
    %c0 = arith.constant 0 : index
    %c0_0 = arith.constant 0 : index
    %0 = vector.load %arg1[%c0, %c0_0] : memref<8x512xf32, #tpu.memory_space<vmem>>, vector<4x512xf32>
    %cst = arith.constant dense<0.000000e+00> : vector<4xf32>
    %1 = vector.multi_reduction <add>, %0, %cst [1] : vector<4x512xf32> to vector<4xf32>
    %2 = vector.shape_cast %1 : vector<4xf32> to vector<4x1xf32>
    %cst_1 = arith.constant 0.001953125 : f32
    %3 = vector.broadcast %cst_1 : f32 to vector<4x1xf32>
    %4 = arith.mulf %2, %3 : vector<4x1xf32>
    %5 = arith.mulf %0, %0 : vector<4x512xf32>
    %cst_2 = arith.constant dense<0.000000e+00> : vector<4xf32>
    %6 = vector.multi_reduction <add>, %5, %cst_2 [1] : vector<4x512xf32> to vector<4xf32>
    %7 = vector.shape_cast %6 : vector<4xf32> to vector<4x1xf32>
    %cst_3 = arith.constant 0.001953125 : f32
    %8 = vector.broadcast %cst_3 : f32 to vector<4x1xf32>
    %9 = arith.mulf %7, %8 : vector<4x1xf32>
    %10 = vector.broadcast %4 : vector<4x1xf32> to vector<4x512xf32>
    %11 = arith.subf %0, %10 : vector<4x512xf32>
    %12 = arith.mulf %4, %4 : vector<4x1xf32>
    %13 = arith.subf %9, %12 : vector<4x1xf32>
    %cst_4 = arith.constant 9.99999974E-6 : f32
    %14 = vector.broadcast %cst_4 : f32 to vector<4x1xf32>
    %15 = arith.addf %13, %14 : vector<4x1xf32>
    %16 = math.rsqrt %15 : vector<4x1xf32>
    %17 = vector.broadcast %16 : vector<4x1xf32> to vector<4x512xf32>
    %18 = arith.mulf %11, %17 : vector<4x512xf32>
    %cst_5 = arith.constant 0.000000e+00 : f32
    %19 = vector.broadcast %cst_5 : f32 to vector<4x512xf32>
    %20 = arith.cmpf oge, %18, %19 : vector<4x512xf32>
    %cst_6 = arith.constant 1.000000e-01 : f32
    %21 = vector.broadcast %cst_6 : f32 to vector<4x512xf32>
    %22 = arith.mulf %21, %18 : vector<4x512xf32>
    %23 = arith.select %20, %18, %22 : vector<4x512xi1>, vector<4x512xf32>
    %24 = arith.truncf %23 : vector<4x512xf32> to vector<4x512xbf16>
    %25 = vector.extract_strided_slice %24 {offsets = [0, 439], sizes = [4, 73], strides = [1, 1]} : vector<4x512xbf16> to vector<4x73xbf16>
    %26 = vector.extract_strided_slice %24 {offsets = [0, 0], sizes = [4, 439], strides = [1, 1]} : vector<4x512xbf16> to vector<4x439xbf16>
    %27 = tpu.concatenate %25, %26 in 1 : vector<4x73xbf16>, vector<4x439xbf16> -> vector<4x512xbf16>
    %c0_7 = arith.constant 0 : index
    %c0_8 = arith.constant 0 : index
    %28 = vector.load %arg4[%c0_7, %c0_8] : memref<28x512xbf16, #tpu.memory_space<vmem>>, vector<1x512xbf16>
    %29 = vector.broadcast %28 : vector<1x512xbf16> to vector<4x512xbf16>
    %30 = arith.mulf %27, %29 : vector<4x512xbf16>
    %c0_9 = arith.constant 0 : index
    %c0_10 = arith.constant 0 : index
    %31 = vector.load %arg6[%c0_9, %c0_10] : memref<108x1024xbf16, #tpu.memory_space<vmem>>, vector<4x512xbf16>
    tpu.vector_store %arg6[%c0_9, %c0_10], %30 {strides = array<i32>} : memref<108x1024xbf16, #tpu.memory_space<vmem>>, vector<4x512xbf16>,
    %32 = vector.extract_strided_slice %24 {offsets = [0, 440], sizes = [4, 72], strides = [1, 1]} : vector<4x512xbf16> to vector<4x72xbf16>
    %33 = vector.extract_strided_slice %24 {offsets = [0, 0], sizes = [4, 440], strides = [1, 1]} : vector<4x512xbf16> to vector<4x440xbf16>
    %34 = tpu.concatenate %32, %33 in 1 : vector<4x72xbf16>, vector<4x440xbf16> -> vector<4x512xbf16>
    %c1 = arith.constant 1 : index
    %c0_11 = arith.constant 0 : index
    %35 = vector.load %arg4[%c1, %c0_11] : memref<28x512xbf16, #tpu.memory_space<vmem>>, vector<1x512xbf16>
    %36 = vector.broadcast %35 : vector<1x512xbf16> to vector<4x512xbf16>
    %37 = arith.mulf %34, %36 : vector<4x512xbf16>
    %c4 = arith.constant 4 : index
    %c0_12 = arith.constant 0 : index
    %38 = vector.load %arg6[%c4, %c0_12] : memref<108x1024xbf16, #tpu.memory_space<vmem>>, vector<4x512xbf16>
    tpu.vector_store %arg6[%c4, %c0_12], %37 {strides = array<i32>} : memref<108x1024xbf16, #tpu.memory_space<vmem>>, vector<4x512xbf16>,
    %39 = vector.extract_strided_slice %24 {offsets = [0, 441], sizes = [4, 71], strides = [1, 1]} : vector<4x512xbf16> to vector<4x71xbf16>
    %40 = vector.extract_strided_slice %24 {offsets = [0, 0], sizes = [4, 441], strides = [1, 1]} : vector<4x512xbf16> to vector<4x441xbf16>
    %41 = tpu.concatenate %39, %40 in 1 : vector<4x71xbf16>, vector<4x441xbf16> -> vector<4x512xbf16>
    %c2 = arith.constant 2 : index
    %c0_13 = arith.constant 0 : index
    %42 = vector.load %arg4[%c2, %c0_13] : memref<28x512xbf16, #tpu.memory_space<vmem>>, vector<1x512xbf16>
    %43 = vector.broadcast %42 : vector<1x512xbf16> to vector<4x512xbf16>
    %44 = arith.mulf %41, %43 : vector<4x512xbf16>
    %c8 = arith.constant 8 : index
    %c0_14 = arith.constant 0 : index
    %45 = vector.load %arg6[%c8, %c0_14] : memref<108x1024xbf16, #tpu.memory_space<vmem>>, vector<4x512xbf16>
    tpu.vector_store %arg6[%c8, %c0_14], %44 {strides = array<i32>} : memref<108x1024xbf16, #tpu.memory_space<vmem>>, vector<4x512xbf16>,
    %46 = vector.extract_strided_slice %24 {offsets = [0, 447], sizes = [4, 65], strides = [1, 1]} : vector<4x512xbf16> to vector<4x65xbf16>
    %47 = vector.extract_strided_slice %24 {offsets = [0, 0], sizes = [4, 447], strides = [1, 1]} : vector<4x512xbf16> to vector<4x447xbf16>
    %48 = tpu.concatenate %46, %47 in 1 : vector<4x65xbf16>, vector<4x447xbf16> -> vector<4x512xbf16>
    %c3 = arith.constant 3 : index
    %c0_15 = arith.constant 0 : index
    %49 = vector.load %arg4[%c3, %c0_15] : memref<28x512xbf16, #tpu.memory_space<vmem>>, vector<1x512xbf16>
    %50 = vector.broadcast %49 : vector<1x512xbf16> to vector<4x512xbf16>
    %51 = arith.mulf %48, %50 : vector<4x512xbf16>
    %c12 = arith.constant 12 : index
    %c0_16 = arith.constant 0 : index
    %52 = vector.load %arg6[%c12, %c0_16] : memref<108x1024xbf16, #tpu.memory_space<vmem>>, vector<4x512xbf16>
    tpu.vector_store %arg6[%c12, %c0_16], %51 {strides = array<i32>} : memref<108x1024xbf16, #tpu.memory_space<vmem>>, vector<4x512xbf16>,
    %53 = vector.extract_strided_slice %24 {offsets = [0, 448], sizes = [4, 64], strides = [1, 1]} : vector<4x512xbf16> to vector<4x64xbf16>
    %54 = vector.extract_strided_slice %24 {offsets = [0, 0], sizes = [4, 448], strides = [1, 1]} : vector<4x512xbf16> to vector<4x448xbf16>
    %55 = tpu.concatenate %53, %54 in 1 : vector<4x64xbf16>, vector<4x448xbf16> -> vector<4x512xbf16>
    %c4_17 = arith.constant 4 : index
    %c0_18 = arith.constant 0 : index
    %56 = vector.load %arg4[%c4_17, %c0_18] : memref<28x512xbf16, #tpu.memory_space<vmem>>, vector<1x512xbf16>
    %57 = vector.broadcast %56 : vector<1x512xbf16> to vector<4x512xbf16>
    %58 = arith.mulf %55, %57 : vector<4x512xbf16>
    %c16 = arith.constant 16 : index
    %c0_19 = arith.constant 0 : index
    %59 = vector.load %arg6[%c16, %c0_19] : memref<108x1024xbf16, #tpu.memory_space<vmem>>, vector<4x512xbf16>
    tpu.vector_store %arg6[%c16, %c0_19], %58 {strides = array<i32>} : memref<108x1024xbf16, #tpu.memory_space<vmem>>, vector<4x512xbf16>,
    %60 = vector.extract_strided_slice %24 {offsets = [0, 449], sizes = [4, 63], strides = [1, 1]} : vector<4x512xbf16> to vector<4x63xbf16>
    %61 = vector.extract_strided_slice %24 {offsets = [0, 0], sizes = [4, 449], strides = [1, 1]} : vector<4x512xbf16> to vector<4x449xbf16>
    %62 = tpu.concatenate %60, %61 in 1 : vector<4x63xbf16>, vector<4x449xbf16> -> vector<4x512xbf16>
    %c5 = arith.constant 5 : index
    %c0_20 = arith.constant 0 : index
    %63 = vector.load %arg4[%c5, %c0_20] : memref<28x512xbf16, #tpu.memory_space<vmem>>, vector<1x512xbf16>
    %64 = vector.broadcast %63 : vector<1x512xbf16> to vector<4x512xbf16>
    %65 = arith.mulf %62, %64 : vector<4x512xbf16>
    %c20 = arith.constant 20 : index
    %c0_21 = arith.constant 0 : index
    %66 = vector.load %arg6[%c20, %c0_21] : memref<108x1024xbf16, #tpu.memory_space<vmem>>, vector<4x512xbf16>
    tpu.vector_store %arg6[%c20, %c0_21], %65 {strides = array<i32>} : memref<108x1024xbf16, #tpu.memory_space<vmem>>, vector<4x512xbf16>,
    %67 = vector.extract_strided_slice %24 {offsets = [0, 455], sizes = [4, 57], strides = [1, 1]} : vector<4x512xbf16> to vector<4x57xbf16>
    %68 = vector.extract_strided_slice %24 {offsets = [0, 0], sizes = [4, 455], strides = [1, 1]} : vector<4x512xbf16> to vector<4x455xbf16>
    %69 = tpu.concatenate %67, %68 in 1 : vector<4x57xbf16>, vector<4x455xbf16> -> vector<4x512xbf16>
    %c6 = arith.constant 6 : index
    %c0_22 = arith.constant 0 : index
    %70 = vector.load %arg4[%c6, %c0_22] : memref<28x512xbf16, #tpu.memory_space<vmem>>, vector<1x512xbf16>
    %71 = vector.broadcast %70 : vector<1x512xbf16> to vector<4x512xbf16>
    %72 = arith.mulf %69, %71 : vector<4x512xbf16>
    %c24 = arith.constant 24 : index
    %c0_23 = arith.constant 0 : index
    %73 = vector.load %arg6[%c24, %c0_23] : memref<108x1024xbf16, #tpu.memory_space<vmem>>, vector<4x512xbf16>
    tpu.vector_store %arg6[%c24, %c0_23], %72 {strides = array<i32>} : memref<108x1024xbf16, #tpu.memory_space<vmem>>, vector<4x512xbf16>,
    %74 = vector.extract_strided_slice %24 {offsets = [0, 456], sizes = [4, 56], strides = [1, 1]} : vector<4x512xbf16> to vector<4x56xbf16>
    %75 = vector.extract_strided_slice %24 {offsets = [0, 0], sizes = [4, 456], strides = [1, 1]} : vector<4x512xbf16> to vector<4x456xbf16>
    %76 = tpu.concatenate %74, %75 in 1 : vector<4x56xbf16>, vector<4x456xbf16> -> vector<4x512xbf16>
    %c7 = arith.constant 7 : index
    %c0_24 = arith.constant 0 : index
    %77 = vector.load %arg4[%c7, %c0_24] : memref<28x512xbf16, #tpu.memory_space<vmem>>, vector<1x512xbf16>
    %78 = vector.broadcast %77 : vector<1x512xbf16> to vector<4x512xbf16>
    %79 = arith.mulf %76, %78 : vector<4x512xbf16>
    %c28 = arith.constant 28 : index
    %c0_25 = arith.constant 0 : index
    %80 = vector.load %arg6[%c28, %c0_25] : memref<108x1024xbf16, #tpu.memory_space<vmem>>, vector<4x512xbf16>
    tpu.vector_store %arg6[%c28, %c0_25], %79 {strides = array<i32>} : memref<108x1024xbf16, #tpu.memory_space<vmem>>, vector<4x512xbf16>,
    %81 = vector.extract_strided_slice %24 {offsets = [0, 457], sizes = [4, 55], strides = [1, 1]} : vector<4x512xbf16> to vector<4x55xbf16>
    %82 = vector.extract_strided_slice %24 {offsets = [0, 0], sizes = [4, 457], strides = [1, 1]} : vector<4x512xbf16> to vector<4x457xbf16>
    %83 = tpu.concatenate %81, %82 in 1 : vector<4x55xbf16>, vector<4x457xbf16> -> vector<4x512xbf16>
    %c8_26 = arith.constant 8 : index
    %c0_27 = arith.constant 0 : index
    %84 = vector.load %arg4[%c8_26, %c0_27] : memref<28x512xbf16, #tpu.memory_space<vmem>>, vector<1x512xbf16>
    %85 = vector.broadcast %84 : vector<1x512xbf16> to vector<4x512xbf16>
    %86 = arith.mulf %83, %85 : vector<4x512xbf16>
    %c32 = arith.constant 32 : index
    %c0_28 = arith.constant 0 : index
    %87 = vector.load %arg6[%c32, %c0_28] : memref<108x1024xbf16, #tpu.memory_space<vmem>>, vector<4x512xbf16>
    tpu.vector_store %arg6[%c32, %c0_28], %86 {strides = array<i32>} : memref<108x1024xbf16, #tpu.memory_space<vmem>>, vector<4x512xbf16>,
    %88 = vector.extract_strided_slice %24 {offsets = [0, 503], sizes = [4, 9], strides = [1, 1]} : vector<4x512xbf16> to vector<4x9xbf16>
    %89 = vector.extract_strided_slice %24 {offsets = [0, 0], sizes = [4, 503], strides = [1, 1]} : vector<4x512xbf16> to vector<4x503xbf16>
    %90 = tpu.concatenate %88, %89 in 1 : vector<4x9xbf16>, vector<4x503xbf16> -> vector<4x512xbf16>
    %c9 = arith.constant 9 : index
    %c0_29 = arith.constant 0 : index
    %91 = vector.load %arg4[%c9, %c0_29] : memref<28x512xbf16, #tpu.memory_space<vmem>>, vector<1x512xbf16>
    %92 = vector.broadcast %91 : vector<1x512xbf16> to vector<4x512xbf16>
    %93 = arith.mulf %90, %92 : vector<4x512xbf16>
    %c36 = arith.constant 36 : index
    %c0_30 = arith.constant 0 : index
    %94 = vector.load %arg6[%c36, %c0_30] : memref<108x1024xbf16, #tpu.memory_space<vmem>>, vector<4x512xbf16>
    tpu.vector_store %arg6[%c36, %c0_30], %93 {strides = array<i32>} : memref<108x1024xbf16, #tpu.memory_space<vmem>>, vector<4x512xbf16>,
    %95 = vector.extract_strided_slice %24 {offsets = [0, 504], sizes = [4, 8], strides = [1, 1]} : vector<4x512xbf16> to vector<4x8xbf16>
    %96 = vector.extract_strided_slice %24 {offsets = [0, 0], sizes = [4, 504], strides = [1, 1]} : vector<4x512xbf16> to vector<4x504xbf16>
    %97 = tpu.concatenate %95, %96 in 1 : vector<4x8xbf16>, vector<4x504xbf16> -> vector<4x512xbf16>
    %c10 = arith.constant 10 : index
    %c0_31 = arith.constant 0 : index
    %98 = vector.load %arg4[%c10, %c0_31] : memref<28x512xbf16, #tpu.memory_space<vmem>>, vector<1x512xbf16>
    %99 = vector.broadcast %98 : vector<1x512xbf16> to vector<4x512xbf16>
    %100 = arith.mulf %97, %99 : vector<4x512xbf16>
    %c40 = arith.constant 40 : index
    %c0_32 = arith.constant 0 : index
    %101 = vector.load %arg6[%c40, %c0_32] : memref<108x1024xbf16, #tpu.memory_space<vmem>>, vector<4x512xbf16>
    tpu.vector_store %arg6[%c40, %c0_32], %100 {strides = array<i32>} : memref<108x1024xbf16, #tpu.memory_space<vmem>>, vector<4x512xbf16>,
    %102 = vector.extract_strided_slice %24 {offsets = [0, 505], sizes = [4, 7], strides = [1, 1]} : vector<4x512xbf16> to vector<4x7xbf16>
    %103 = vector.extract_strided_slice %24 {offsets = [0, 0], sizes = [4, 505], strides = [1, 1]} : vector<4x512xbf16> to vector<4x505xbf16>
    %104 = tpu.concatenate %102, %103 in 1 : vector<4x7xbf16>, vector<4x505xbf16> -> vector<4x512xbf16>
    %c11 = arith.constant 11 : index
    %c0_33 = arith.constant 0 : index
    %105 = vector.load %arg4[%c11, %c0_33] : memref<28x512xbf16, #tpu.memory_space<vmem>>, vector<1x512xbf16>
    %106 = vector.broadcast %105 : vector<1x512xbf16> to vector<4x512xbf16>
    %107 = arith.mulf %104, %106 : vector<4x512xbf16>
    %c44 = arith.constant 44 : index
    %c0_34 = arith.constant 0 : index
    %108 = vector.load %arg6[%c44, %c0_34] : memref<108x1024xbf16, #tpu.memory_space<vmem>>, vector<4x512xbf16>
    tpu.vector_store %arg6[%c44, %c0_34], %107 {strides = array<i32>} : memref<108x1024xbf16, #tpu.memory_space<vmem>>, vector<4x512xbf16>,
    %109 = vector.extract_strided_slice %24 {offsets = [0, 511], sizes = [4, 1], strides = [1, 1]} : vector<4x512xbf16> to vector<4x1xbf16>
    %110 = vector.extract_strided_slice %24 {offsets = [0, 0], sizes = [4, 511], strides = [1, 1]} : vector<4x512xbf16> to vector<4x511xbf16>
    %111 = tpu.concatenate %109, %110 in 1 : vector<4x1xbf16>, vector<4x511xbf16> -> vector<4x512xbf16>
    %c12_35 = arith.constant 12 : index
    %c0_36 = arith.constant 0 : index
    %112 = vector.load %arg4[%c12_35, %c0_36] : memref<28x512xbf16, #tpu.memory_space<vmem>>, vector<1x512xbf16>
    %113 = vector.broadcast %112 : vector<1x512xbf16> to vector<4x512xbf16>
    %114 = arith.mulf %111, %113 : vector<4x512xbf16>
    %c48 = arith.constant 48 : index
    %c0_37 = arith.constant 0 : index
    %115 = vector.load %arg6[%c48, %c0_37] : memref<108x1024xbf16, #tpu.memory_space<vmem>>, vector<4x512xbf16>
    tpu.vector_store %arg6[%c48, %c0_37], %114 {strides = array<i32>} : memref<108x1024xbf16, #tpu.memory_space<vmem>>, vector<4x512xbf16>,
    %c13 = arith.constant 13 : index
    %c0_38 = arith.constant 0 : index
    %116 = vector.load %arg4[%c13, %c0_38] : memref<28x512xbf16, #tpu.memory_space<vmem>>, vector<1x512xbf16>
    %117 = vector.broadcast %116 : vector<1x512xbf16> to vector<4x512xbf16>
    %118 = arith.mulf %24, %117 : vector<4x512xbf16>
    %c52 = arith.constant 52 : index
    %c0_39 = arith.constant 0 : index
    %119 = vector.load %arg6[%c52, %c0_39] : memref<108x1024xbf16, #tpu.memory_space<vmem>>, vector<4x512xbf16>
    tpu.vector_store %arg6[%c52, %c0_39], %118 {strides = array<i32>} : memref<108x1024xbf16, #tpu.memory_space<vmem>>, vector<4x512xbf16>,
    %120 = vector.extract_strided_slice %24 {offsets = [0, 1], sizes = [4, 511], strides = [1, 1]} : vector<4x512xbf16> to vector<4x511xbf16>
    %121 = vector.extract_strided_slice %24 {offsets = [0, 0], sizes = [4, 1], strides = [1, 1]} : vector<4x512xbf16> to vector<4x1xbf16>
    %122 = tpu.concatenate %120, %121 in 1 : vector<4x511xbf16>, vector<4x1xbf16> -> vector<4x512xbf16>
    %c14 = arith.constant 14 : index
    %c0_40 = arith.constant 0 : index
    %123 = vector.load %arg4[%c14, %c0_40] : memref<28x512xbf16, #tpu.memory_space<vmem>>, vector<1x512xbf16>
    %124 = vector.broadcast %123 : vector<1x512xbf16> to vector<4x512xbf16>
    %125 = arith.mulf %122, %124 : vector<4x512xbf16>
    %c56 = arith.constant 56 : index
    %c0_41 = arith.constant 0 : index
    %126 = vector.load %arg6[%c56, %c0_41] : memref<108x1024xbf16, #tpu.memory_space<vmem>>, vector<4x512xbf16>
    tpu.vector_store %arg6[%c56, %c0_41], %125 {strides = array<i32>} : memref<108x1024xbf16, #tpu.memory_space<vmem>>, vector<4x512xbf16>,
    %127 = vector.extract_strided_slice %24 {offsets = [0, 7], sizes = [4, 505], strides = [1, 1]} : vector<4x512xbf16> to vector<4x505xbf16>
    %128 = vector.extract_strided_slice %24 {offsets = [0, 0], sizes = [4, 7], strides = [1, 1]} : vector<4x512xbf16> to vector<4x7xbf16>
    %129 = tpu.concatenate %127, %128 in 1 : vector<4x505xbf16>, vector<4x7xbf16> -> vector<4x512xbf16>
    %c15 = arith.constant 15 : index
    %c0_42 = arith.constant 0 : index
    %130 = vector.load %arg4[%c15, %c0_42] : memref<28x512xbf16, #tpu.memory_space<vmem>>, vector<1x512xbf16>
    %131 = vector.broadcast %130 : vector<1x512xbf16> to vector<4x512xbf16>
    %132 = arith.mulf %129, %131 : vector<4x512xbf16>
    %c60 = arith.constant 60 : index
    %c0_43 = arith.constant 0 : index
    %133 = vector.load %arg6[%c60, %c0_43] : memref<108x1024xbf16, #tpu.memory_space<vmem>>, vector<4x512xbf16>
    tpu.vector_store %arg6[%c60, %c0_43], %132 {strides = array<i32>} : memref<108x1024xbf16, #tpu.memory_space<vmem>>, vector<4x512xbf16>,
    %134 = vector.extract_strided_slice %24 {offsets = [0, 8], sizes = [4, 504], strides = [1, 1]} : vector<4x512xbf16> to vector<4x504xbf16>
    %135 = vector.extract_strided_slice %24 {offsets = [0, 0], sizes = [4, 8], strides = [1, 1]} : vector<4x512xbf16> to vector<4x8xbf16>
    %136 = tpu.concatenate %134, %135 in 1 : vector<4x504xbf16>, vector<4x8xbf16> -> vector<4x512xbf16>
    %c16_44 = arith.constant 16 : index
    %c0_45 = arith.constant 0 : index
    %137 = vector.load %arg4[%c16_44, %c0_45] : memref<28x512xbf16, #tpu.memory_space<vmem>>, vector<1x512xbf16>
    %138 = vector.broadcast %137 : vector<1x512xbf16> to vector<4x512xbf16>
    %139 = arith.mulf %136, %138 : vector<4x512xbf16>
    %c64 = arith.constant 64 : index
    %c0_46 = arith.constant 0 : index
    %140 = vector.load %arg6[%c64, %c0_46] : memref<108x1024xbf16, #tpu.memory_space<vmem>>, vector<4x512xbf16>
    tpu.vector_store %arg6[%c64, %c0_46], %139 {strides = array<i32>} : memref<108x1024xbf16, #tpu.memory_space<vmem>>, vector<4x512xbf16>,
    %141 = vector.extract_strided_slice %24 {offsets = [0, 9], sizes = [4, 503], strides = [1, 1]} : vector<4x512xbf16> to vector<4x503xbf16>
    %142 = vector.extract_strided_slice %24 {offsets = [0, 0], sizes = [4, 9], strides = [1, 1]} : vector<4x512xbf16> to vector<4x9xbf16>
    %143 = tpu.concatenate %141, %142 in 1 : vector<4x503xbf16>, vector<4x9xbf16> -> vector<4x512xbf16>
    %c17 = arith.constant 17 : index
    %c0_47 = arith.constant 0 : index
    %144 = vector.load %arg4[%c17, %c0_47] : memref<28x512xbf16, #tpu.memory_space<vmem>>, vector<1x512xbf16>
    %145 = vector.broadcast %144 : vector<1x512xbf16> to vector<4x512xbf16>
    %146 = arith.mulf %143, %145 : vector<4x512xbf16>
    %c68 = arith.constant 68 : index
    %c0_48 = arith.constant 0 : index
    %147 = vector.load %arg6[%c68, %c0_48] : memref<108x1024xbf16, #tpu.memory_space<vmem>>, vector<4x512xbf16>
    tpu.vector_store %arg6[%c68, %c0_48], %146 {strides = array<i32>} : memref<108x1024xbf16, #tpu.memory_space<vmem>>, vector<4x512xbf16>,
    %148 = vector.extract_strided_slice %24 {offsets = [0, 55], sizes = [4, 457], strides = [1, 1]} : vector<4x512xbf16> to vector<4x457xbf16>
    %149 = vector.extract_strided_slice %24 {offsets = [0, 0], sizes = [4, 55], strides = [1, 1]} : vector<4x512xbf16> to vector<4x55xbf16>
    %150 = tpu.concatenate %148, %149 in 1 : vector<4x457xbf16>, vector<4x55xbf16> -> vector<4x512xbf16>
    %c18 = arith.constant 18 : index
    %c0_49 = arith.constant 0 : index
    %151 = vector.load %arg4[%c18, %c0_49] : memref<28x512xbf16, #tpu.memory_space<vmem>>, vector<1x512xbf16>
    %152 = vector.broadcast %151 : vector<1x512xbf16> to vector<4x512xbf16>
    %153 = arith.mulf %150, %152 : vector<4x512xbf16>
    %c72 = arith.constant 72 : index
    %c0_50 = arith.constant 0 : index
    %154 = vector.load %arg6[%c72, %c0_50] : memref<108x1024xbf16, #tpu.memory_space<vmem>>, vector<4x512xbf16>
    tpu.vector_store %arg6[%c72, %c0_50], %153 {strides = array<i32>} : memref<108x1024xbf16, #tpu.memory_space<vmem>>, vector<4x512xbf16>,
    %155 = vector.extract_strided_slice %24 {offsets = [0, 56], sizes = [4, 456], strides = [1, 1]} : vector<4x512xbf16> to vector<4x456xbf16>
    %156 = vector.extract_strided_slice %24 {offsets = [0, 0], sizes = [4, 56], strides = [1, 1]} : vector<4x512xbf16> to vector<4x56xbf16>
    %157 = tpu.concatenate %155, %156 in 1 : vector<4x456xbf16>, vector<4x56xbf16> -> vector<4x512xbf16>
    %c19 = arith.constant 19 : index
    %c0_51 = arith.constant 0 : index
    %158 = vector.load %arg4[%c19, %c0_51] : memref<28x512xbf16, #tpu.memory_space<vmem>>, vector<1x512xbf16>
    %159 = vector.broadcast %158 : vector<1x512xbf16> to vector<4x512xbf16>
    %160 = arith.mulf %157, %159 : vector<4x512xbf16>
    %c76 = arith.constant 76 : index
    %c0_52 = arith.constant 0 : index
    %161 = vector.load %arg6[%c76, %c0_52] : memref<108x1024xbf16, #tpu.memory_space<vmem>>, vector<4x512xbf16>
    tpu.vector_store %arg6[%c76, %c0_52], %160 {strides = array<i32>} : memref<108x1024xbf16, #tpu.memory_space<vmem>>, vector<4x512xbf16>,
    %162 = vector.extract_strided_slice %24 {offsets = [0, 57], sizes = [4, 455], strides = [1, 1]} : vector<4x512xbf16> to vector<4x455xbf16>
    %163 = vector.extract_strided_slice %24 {offsets = [0, 0], sizes = [4, 57], strides = [1, 1]} : vector<4x512xbf16> to vector<4x57xbf16>
    %164 = tpu.concatenate %162, %163 in 1 : vector<4x455xbf16>, vector<4x57xbf16> -> vector<4x512xbf16>
    %c20_53 = arith.constant 20 : index
    %c0_54 = arith.constant 0 : index
    %165 = vector.load %arg4[%c20_53, %c0_54] : memref<28x512xbf16, #tpu.memory_space<vmem>>, vector<1x512xbf16>
    %166 = vector.broadcast %165 : vector<1x512xbf16> to vector<4x512xbf16>
    %167 = arith.mulf %164, %166 : vector<4x512xbf16>
    %c80 = arith.constant 80 : index
    %c0_55 = arith.constant 0 : index
    %168 = vector.load %arg6[%c80, %c0_55] : memref<108x1024xbf16, #tpu.memory_space<vmem>>, vector<4x512xbf16>
    tpu.vector_store %arg6[%c80, %c0_55], %167 {strides = array<i32>} : memref<108x1024xbf16, #tpu.memory_space<vmem>>, vector<4x512xbf16>,
    %169 = vector.extract_strided_slice %24 {offsets = [0, 63], sizes = [4, 449], strides = [1, 1]} : vector<4x512xbf16> to vector<4x449xbf16>
    %170 = vector.extract_strided_slice %24 {offsets = [0, 0], sizes = [4, 63], strides = [1, 1]} : vector<4x512xbf16> to vector<4x63xbf16>
    %171 = tpu.concatenate %169, %170 in 1 : vector<4x449xbf16>, vector<4x63xbf16> -> vector<4x512xbf16>
    %c21 = arith.constant 21 : index
    %c0_56 = arith.constant 0 : index
    %172 = vector.load %arg4[%c21, %c0_56] : memref<28x512xbf16, #tpu.memory_space<vmem>>, vector<1x512xbf16>
    %173 = vector.broadcast %172 : vector<1x512xbf16> to vector<4x512xbf16>
    %174 = arith.mulf %171, %173 : vector<4x512xbf16>
    %c84 = arith.constant 84 : index
    %c0_57 = arith.constant 0 : index
    %175 = vector.load %arg6[%c84, %c0_57] : memref<108x1024xbf16, #tpu.memory_space<vmem>>, vector<4x512xbf16>
    tpu.vector_store %arg6[%c84, %c0_57], %174 {strides = array<i32>} : memref<108x1024xbf16, #tpu.memory_space<vmem>>, vector<4x512xbf16>,
    %176 = vector.extract_strided_slice %24 {offsets = [0, 64], sizes = [4, 448], strides = [1, 1]} : vector<4x512xbf16> to vector<4x448xbf16>
    %177 = vector.extract_strided_slice %24 {offsets = [0, 0], sizes = [4, 64], strides = [1, 1]} : vector<4x512xbf16> to vector<4x64xbf16>
    %178 = tpu.concatenate %176, %177 in 1 : vector<4x448xbf16>, vector<4x64xbf16> -> vector<4x512xbf16>
    %c22 = arith.constant 22 : index
    %c0_58 = arith.constant 0 : index
    %179 = vector.load %arg4[%c22, %c0_58] : memref<28x512xbf16, #tpu.memory_space<vmem>>, vector<1x512xbf16>
    %180 = vector.broadcast %179 : vector<1x512xbf16> to vector<4x512xbf16>
    %181 = arith.mulf %178, %180 : vector<4x512xbf16>
    %c88 = arith.constant 88 : index
    %c0_59 = arith.constant 0 : index
    %182 = vector.load %arg6[%c88, %c0_59] : memref<108x1024xbf16, #tpu.memory_space<vmem>>, vector<4x512xbf16>
    tpu.vector_store %arg6[%c88, %c0_59], %181 {strides = array<i32>} : memref<108x1024xbf16, #tpu.memory_space<vmem>>, vector<4x512xbf16>,
    %183 = vector.extract_strided_slice %24 {offsets = [0, 65], sizes = [4, 447], strides = [1, 1]} : vector<4x512xbf16> to vector<4x447xbf16>
    %184 = vector.extract_strided_slice %24 {offsets = [0, 0], sizes = [4, 65], strides = [1, 1]} : vector<4x512xbf16> to vector<4x65xbf16>
    %185 = tpu.concatenate %183, %184 in 1 : vector<4x447xbf16>, vector<4x65xbf16> -> vector<4x512xbf16>
    %c23 = arith.constant 23 : index
    %c0_60 = arith.constant 0 : index
    %186 = vector.load %arg4[%c23, %c0_60] : memref<28x512xbf16, #tpu.memory_space<vmem>>, vector<1x512xbf16>
    %187 = vector.broadcast %186 : vector<1x512xbf16> to vector<4x512xbf16>
    %188 = arith.mulf %185, %187 : vector<4x512xbf16>
    %c92 = arith.constant 92 : index
    %c0_61 = arith.constant 0 : index
    %189 = vector.load %arg6[%c92, %c0_61] : memref<108x1024xbf16, #tpu.memory_space<vmem>>, vector<4x512xbf16>
    tpu.vector_store %arg6[%c92, %c0_61], %188 {strides = array<i32>} : memref<108x1024xbf16, #tpu.memory_space<vmem>>, vector<4x512xbf16>,
    %190 = vector.extract_strided_slice %24 {offsets = [0, 71], sizes = [4, 441], strides = [1, 1]} : vector<4x512xbf16> to vector<4x441xbf16>
    %191 = vector.extract_strided_slice %24 {offsets = [0, 0], sizes = [4, 71], strides = [1, 1]} : vector<4x512xbf16> to vector<4x71xbf16>
    %192 = tpu.concatenate %190, %191 in 1 : vector<4x441xbf16>, vector<4x71xbf16> -> vector<4x512xbf16>
    %c24_62 = arith.constant 24 : index
    %c0_63 = arith.constant 0 : index
    %193 = vector.load %arg4[%c24_62, %c0_63] : memref<28x512xbf16, #tpu.memory_space<vmem>>, vector<1x512xbf16>
    %194 = vector.broadcast %193 : vector<1x512xbf16> to vector<4x512xbf16>
    %195 = arith.mulf %192, %194 : vector<4x512xbf16>
    %c96 = arith.constant 96 : index
    %c0_64 = arith.constant 0 : index
    %196 = vector.load %arg6[%c96, %c0_64] : memref<108x1024xbf16, #tpu.memory_space<vmem>>, vector<4x512xbf16>
    tpu.vector_store %arg6[%c96, %c0_64], %195 {strides = array<i32>} : memref<108x1024xbf16, #tpu.memory_space<vmem>>, vector<4x512xbf16>,
    %197 = vector.extract_strided_slice %24 {offsets = [0, 72], sizes = [4, 440], strides = [1, 1]} : vector<4x512xbf16> to vector<4x440xbf16>
    %198 = vector.extract_strided_slice %24 {offsets = [0, 0], sizes = [4, 72], strides = [1, 1]} : vector<4x512xbf16> to vector<4x72xbf16>
    %199 = tpu.concatenate %197, %198 in 1 : vector<4x440xbf16>, vector<4x72xbf16> -> vector<4x512xbf16>
    %c25 = arith.constant 25 : index
    %c0_65 = arith.constant 0 : index
    %200 = vector.load %arg4[%c25, %c0_65] : memref<28x512xbf16, #tpu.memory_space<vmem>>, vector<1x512xbf16>
    %201 = vector.broadcast %200 : vector<1x512xbf16> to vector<4x512xbf16>
    %202 = arith.mulf %199, %201 : vector<4x512xbf16>
    %c100 = arith.constant 100 : index
    %c0_66 = arith.constant 0 : index
    %203 = vector.load %arg6[%c100, %c0_66] : memref<108x1024xbf16, #tpu.memory_space<vmem>>, vector<4x512xbf16>
    tpu.vector_store %arg6[%c100, %c0_66], %202 {strides = array<i32>} : memref<108x1024xbf16, #tpu.memory_space<vmem>>, vector<4x512xbf16>,
    %204 = vector.extract_strided_slice %24 {offsets = [0, 73], sizes = [4, 439], strides = [1, 1]} : vector<4x512xbf16> to vector<4x439xbf16>
    %205 = vector.extract_strided_slice %24 {offsets = [0, 0], sizes = [4, 73], strides = [1, 1]} : vector<4x512xbf16> to vector<4x73xbf16>
    %206 = tpu.concatenate %204, %205 in 1 : vector<4x439xbf16>, vector<4x73xbf16> -> vector<4x512xbf16>
    %c26 = arith.constant 26 : index
    %c0_67 = arith.constant 0 : index
    %207 = vector.load %arg4[%c26, %c0_67] : memref<28x512xbf16, #tpu.memory_space<vmem>>, vector<1x512xbf16>
    %208 = vector.broadcast %207 : vector<1x512xbf16> to vector<4x512xbf16>
    %209 = arith.mulf %206, %208 : vector<4x512xbf16>
    %c104 = arith.constant 104 : index
    %c0_68 = arith.constant 0 : index
    %210 = vector.load %arg6[%c104, %c0_68] : memref<108x1024xbf16, #tpu.memory_space<vmem>>, vector<4x512xbf16>
    tpu.vector_store %arg6[%c104, %c0_68], %209 {strides = array<i32>} : memref<108x1024xbf16, #tpu.memory_space<vmem>>, vector<4x512xbf16>,
    %c4_69 = arith.constant 4 : index
    %c0_70 = arith.constant 0 : index
    %211 = vector.load %arg1[%c4_69, %c0_70] : memref<8x512xf32, #tpu.memory_space<vmem>>, vector<4x512xf32>
    %cst_71 = arith.constant dense<0.000000e+00> : vector<4xf32>
    %212 = vector.multi_reduction <add>, %211, %cst_71 [1] : vector<4x512xf32> to vector<4xf32>
    %213 = vector.shape_cast %212 : vector<4xf32> to vector<4x1xf32>
    %cst_72 = arith.constant 0.001953125 : f32
    %214 = vector.broadcast %cst_72 : f32 to vector<4x1xf32>
    %215 = arith.mulf %213, %214 : vector<4x1xf32>
    %216 = arith.mulf %211, %211 : vector<4x512xf32>
    %cst_73 = arith.constant dense<0.000000e+00> : vector<4xf32>
    %217 = vector.multi_reduction <add>, %216, %cst_73 [1] : vector<4x512xf32> to vector<4xf32>
    %218 = vector.shape_cast %217 : vector<4xf32> to vector<4x1xf32>
    %cst_74 = arith.constant 0.001953125 : f32
    %219 = vector.broadcast %cst_74 : f32 to vector<4x1xf32>
    %220 = arith.mulf %218, %219 : vector<4x1xf32>
    %221 = vector.broadcast %215 : vector<4x1xf32> to vector<4x512xf32>
    %222 = arith.subf %211, %221 : vector<4x512xf32>
    %223 = arith.mulf %215, %215 : vector<4x1xf32>
    %224 = arith.subf %220, %223 : vector<4x1xf32>
    %cst_75 = arith.constant 9.99999974E-6 : f32
    %225 = vector.broadcast %cst_75 : f32 to vector<4x1xf32>
    %226 = arith.addf %224, %225 : vector<4x1xf32>
    %227 = math.rsqrt %226 : vector<4x1xf32>
    %228 = vector.broadcast %227 : vector<4x1xf32> to vector<4x512xf32>
    %229 = arith.mulf %222, %228 : vector<4x512xf32>
    %cst_76 = arith.constant 0.000000e+00 : f32
    %230 = vector.broadcast %cst_76 : f32 to vector<4x512xf32>
    %231 = arith.cmpf oge, %229, %230 : vector<4x512xf32>
    %cst_77 = arith.constant 1.000000e-01 : f32
    %232 = vector.broadcast %cst_77 : f32 to vector<4x512xf32>
    %233 = arith.mulf %232, %229 : vector<4x512xf32>
    %234 = arith.select %231, %229, %233 : vector<4x512xi1>, vector<4x512xf32>
    %235 = arith.truncf %234 : vector<4x512xf32> to vector<4x512xbf16>
    %236 = vector.extract_strided_slice %235 {offsets = [0, 439], sizes = [4, 73], strides = [1, 1]} : vector<4x512xbf16> to vector<4x73xbf16>
    %237 = vector.extract_strided_slice %235 {offsets = [0, 0], sizes = [4, 439], strides = [1, 1]} : vector<4x512xbf16> to vector<4x439xbf16>
    %238 = tpu.concatenate %236, %237 in 1 : vector<4x73xbf16>, vector<4x439xbf16> -> vector<4x512xbf16>
    %c0_78 = arith.constant 0 : index
    %c0_79 = arith.constant 0 : index
    %239 = vector.load %arg4[%c0_78, %c0_79] : memref<28x512xbf16, #tpu.memory_space<vmem>>, vector<1x512xbf16>
    %240 = vector.broadcast %239 : vector<1x512xbf16> to vector<4x512xbf16>
    %241 = arith.mulf %238, %240 : vector<4x512xbf16>
    %c0_80 = arith.constant 0 : index
    %c512 = arith.constant 512 : index
    %242 = vector.load %arg6[%c0_80, %c512] : memref<108x1024xbf16, #tpu.memory_space<vmem>>, vector<4x512xbf16>
    tpu.vector_store %arg6[%c0_80, %c512], %241 {strides = array<i32>} : memref<108x1024xbf16, #tpu.memory_space<vmem>>, vector<4x512xbf16>,
    %243 = vector.extract_strided_slice %235 {offsets = [0, 440], sizes = [4, 72], strides = [1, 1]} : vector<4x512xbf16> to vector<4x72xbf16>
    %244 = vector.extract_strided_slice %235 {offsets = [0, 0], sizes = [4, 440], strides = [1, 1]} : vector<4x512xbf16> to vector<4x440xbf16>
    %245 = tpu.concatenate %243, %244 in 1 : vector<4x72xbf16>, vector<4x440xbf16> -> vector<4x512xbf16>
    %c1_81 = arith.constant 1 : index
    %c0_82 = arith.constant 0 : index
    %246 = vector.load %arg4[%c1_81, %c0_82] : memref<28x512xbf16, #tpu.memory_space<vmem>>, vector<1x512xbf16>
    %247 = vector.broadcast %246 : vector<1x512xbf16> to vector<4x512xbf16>
    %248 = arith.mulf %245, %247 : vector<4x512xbf16>
    %c4_83 = arith.constant 4 : index
    %c512_84 = arith.constant 512 : index
    %249 = vector.load %arg6[%c4_83, %c512_84] : memref<108x1024xbf16, #tpu.memory_space<vmem>>, vector<4x512xbf16>
    tpu.vector_store %arg6[%c4_83, %c512_84], %248 {strides = array<i32>} : memref<108x1024xbf16, #tpu.memory_space<vmem>>, vector<4x512xbf16>,
    %250 = vector.extract_strided_slice %235 {offsets = [0, 441], sizes = [4, 71], strides = [1, 1]} : vector<4x512xbf16> to vector<4x71xbf16>
    %251 = vector.extract_strided_slice %235 {offsets = [0, 0], sizes = [4, 441], strides = [1, 1]} : vector<4x512xbf16> to vector<4x441xbf16>
    %252 = tpu.concatenate %250, %251 in 1 : vector<4x71xbf16>, vector<4x441xbf16> -> vector<4x512xbf16>
    %c2_85 = arith.constant 2 : index
    %c0_86 = arith.constant 0 : index
    %253 = vector.load %arg4[%c2_85, %c0_86] : memref<28x512xbf16, #tpu.memory_space<vmem>>, vector<1x512xbf16>
    %254 = vector.broadcast %253 : vector<1x512xbf16> to vector<4x512xbf16>
    %255 = arith.mulf %252, %254 : vector<4x512xbf16>
    %c8_87 = arith.constant 8 : index
    %c512_88 = arith.constant 512 : index
    %256 = vector.load %arg6[%c8_87, %c512_88] : memref<108x1024xbf16, #tpu.memory_space<vmem>>, vector<4x512xbf16>
    tpu.vector_store %arg6[%c8_87, %c512_88], %255 {strides = array<i32>} : memref<108x1024xbf16, #tpu.memory_space<vmem>>, vector<4x512xbf16>,
    %257 = vector.extract_strided_slice %235 {offsets = [0, 447], sizes = [4, 65], strides = [1, 1]} : vector<4x512xbf16> to vector<4x65xbf16>
    %258 = vector.extract_strided_slice %235 {offsets = [0, 0], sizes = [4, 447], strides = [1, 1]} : vector<4x512xbf16> to vector<4x447xbf16>
    %259 = tpu.concatenate %257, %258 in 1 : vector<4x65xbf16>, vector<4x447xbf16> -> vector<4x512xbf16>
    %c3_89 = arith.constant 3 : index
    %c0_90 = arith.constant 0 : index
    %260 = vector.load %arg4[%c3_89, %c0_90] : memref<28x512xbf16, #tpu.memory_space<vmem>>, vector<1x512xbf16>
    %261 = vector.broadcast %260 : vector<1x512xbf16> to vector<4x512xbf16>
    %262 = arith.mulf %259, %261 : vector<4x512xbf16>
    %c12_91 = arith.constant 12 : index
    %c512_92 = arith.constant 512 : index
    %263 = vector.load %arg6[%c12_91, %c512_92] : memref<108x1024xbf16, #tpu.memory_space<vmem>>, vector<4x512xbf16>
    tpu.vector_store %arg6[%c12_91, %c512_92], %262 {strides = array<i32>} : memref<108x1024xbf16, #tpu.memory_space<vmem>>, vector<4x512xbf16>,
    %264 = vector.extract_strided_slice %235 {offsets = [0, 448], sizes = [4, 64], strides = [1, 1]} : vector<4x512xbf16> to vector<4x64xbf16>
    %265 = vector.extract_strided_slice %235 {offsets = [0, 0], sizes = [4, 448], strides = [1, 1]} : vector<4x512xbf16> to vector<4x448xbf16>
    %266 = tpu.concatenate %264, %265 in 1 : vector<4x64xbf16>, vector<4x448xbf16> -> vector<4x512xbf16>
    %c4_93 = arith.constant 4 : index
    %c0_94 = arith.constant 0 : index
    %267 = vector.load %arg4[%c4_93, %c0_94] : memref<28x512xbf16, #tpu.memory_space<vmem>>, vector<1x512xbf16>
    %268 = vector.broadcast %267 : vector<1x512xbf16> to vector<4x512xbf16>
    %269 = arith.mulf %266, %268 : vector<4x512xbf16>
    %c16_95 = arith.constant 16 : index
    %c512_96 = arith.constant 512 : index
    %270 = vector.load %arg6[%c16_95, %c512_96] : memref<108x1024xbf16, #tpu.memory_space<vmem>>, vector<4x512xbf16>
    tpu.vector_store %arg6[%c16_95, %c512_96], %269 {strides = array<i32>} : memref<108x1024xbf16, #tpu.memory_space<vmem>>, vector<4x512xbf16>,
    %271 = vector.extract_strided_slice %235 {offsets = [0, 449], sizes = [4, 63], strides = [1, 1]} : vector<4x512xbf16> to vector<4x63xbf16>
    %272 = vector.extract_strided_slice %235 {offsets = [0, 0], sizes = [4, 449], strides = [1, 1]} : vector<4x512xbf16> to vector<4x449xbf16>
    %273 = tpu.concatenate %271, %272 in 1 : vector<4x63xbf16>, vector<4x449xbf16> -> vector<4x512xbf16>
    %c5_97 = arith.constant 5 : index
    %c0_98 = arith.constant 0 : index
    %274 = vector.load %arg4[%c5_97, %c0_98] : memref<28x512xbf16, #tpu.memory_space<vmem>>, vector<1x512xbf16>
    %275 = vector.broadcast %274 : vector<1x512xbf16> to vector<4x512xbf16>
    %276 = arith.mulf %273, %275 : vector<4x512xbf16>
    %c20_99 = arith.constant 20 : index
    %c512_100 = arith.constant 512 : index
    %277 = vector.load %arg6[%c20_99, %c512_100] : memref<108x1024xbf16, #tpu.memory_space<vmem>>, vector<4x512xbf16>
    tpu.vector_store %arg6[%c20_99, %c512_100], %276 {strides = array<i32>} : memref<108x1024xbf16, #tpu.memory_space<vmem>>, vector<4x512xbf16>,
    %278 = vector.extract_strided_slice %235 {offsets = [0, 455], sizes = [4, 57], strides = [1, 1]} : vector<4x512xbf16> to vector<4x57xbf16>
    %279 = vector.extract_strided_slice %235 {offsets = [0, 0], sizes = [4, 455], strides = [1, 1]} : vector<4x512xbf16> to vector<4x455xbf16>
    %280 = tpu.concatenate %278, %279 in 1 : vector<4x57xbf16>, vector<4x455xbf16> -> vector<4x512xbf16>
    %c6_101 = arith.constant 6 : index
    %c0_102 = arith.constant 0 : index
    %281 = vector.load %arg4[%c6_101, %c0_102] : memref<28x512xbf16, #tpu.memory_space<vmem>>, vector<1x512xbf16>
    %282 = vector.broadcast %281 : vector<1x512xbf16> to vector<4x512xbf16>
    %283 = arith.mulf %280, %282 : vector<4x512xbf16>
    %c24_103 = arith.constant 24 : index
    %c512_104 = arith.constant 512 : index
    %284 = vector.load %arg6[%c24_103, %c512_104] : memref<108x1024xbf16, #tpu.memory_space<vmem>>, vector<4x512xbf16>
    tpu.vector_store %arg6[%c24_103, %c512_104], %283 {strides = array<i32>} : memref<108x1024xbf16, #tpu.memory_space<vmem>>, vector<4x512xbf16>,
    %285 = vector.extract_strided_slice %235 {offsets = [0, 456], sizes = [4, 56], strides = [1, 1]} : vector<4x512xbf16> to vector<4x56xbf16>
    %286 = vector.extract_strided_slice %235 {offsets = [0, 0], sizes = [4, 456], strides = [1, 1]} : vector<4x512xbf16> to vector<4x456xbf16>
    %287 = tpu.concatenate %285, %286 in 1 : vector<4x56xbf16>, vector<4x456xbf16> -> vector<4x512xbf16>
    %c7_105 = arith.constant 7 : index
    %c0_106 = arith.constant 0 : index
    %288 = vector.load %arg4[%c7_105, %c0_106] : memref<28x512xbf16, #tpu.memory_space<vmem>>, vector<1x512xbf16>
    %289 = vector.broadcast %288 : vector<1x512xbf16> to vector<4x512xbf16>
    %290 = arith.mulf %287, %289 : vector<4x512xbf16>
    %c28_107 = arith.constant 28 : index
    %c512_108 = arith.constant 512 : index
    %291 = vector.load %arg6[%c28_107, %c512_108] : memref<108x1024xbf16, #tpu.memory_space<vmem>>, vector<4x512xbf16>
    tpu.vector_store %arg6[%c28_107, %c512_108], %290 {strides = array<i32>} : memref<108x1024xbf16, #tpu.memory_space<vmem>>, vector<4x512xbf16>,
    %292 = vector.extract_strided_slice %235 {offsets = [0, 457], sizes = [4, 55], strides = [1, 1]} : vector<4x512xbf16> to vector<4x55xbf16>
    %293 = vector.extract_strided_slice %235 {offsets = [0, 0], sizes = [4, 457], strides = [1, 1]} : vector<4x512xbf16> to vector<4x457xbf16>
    %294 = tpu.concatenate %292, %293 in 1 : vector<4x55xbf16>, vector<4x457xbf16> -> vector<4x512xbf16>
    %c8_109 = arith.constant 8 : index
    %c0_110 = arith.constant 0 : index
    %295 = vector.load %arg4[%c8_109, %c0_110] : memref<28x512xbf16, #tpu.memory_space<vmem>>, vector<1x512xbf16>
    %296 = vector.broadcast %295 : vector<1x512xbf16> to vector<4x512xbf16>
    %297 = arith.mulf %294, %296 : vector<4x512xbf16>
    %c32_111 = arith.constant 32 : index
    %c512_112 = arith.constant 512 : index
    %298 = vector.load %arg6[%c32_111, %c512_112] : memref<108x1024xbf16, #tpu.memory_space<vmem>>, vector<4x512xbf16>
    tpu.vector_store %arg6[%c32_111, %c512_112], %297 {strides = array<i32>} : memref<108x1024xbf16, #tpu.memory_space<vmem>>, vector<4x512xbf16>,
    %299 = vector.extract_strided_slice %235 {offsets = [0, 503], sizes = [4, 9], strides = [1, 1]} : vector<4x512xbf16> to vector<4x9xbf16>
    %300 = vector.extract_strided_slice %235 {offsets = [0, 0], sizes = [4, 503], strides = [1, 1]} : vector<4x512xbf16> to vector<4x503xbf16>
    %301 = tpu.concatenate %299, %300 in 1 : vector<4x9xbf16>, vector<4x503xbf16> -> vector<4x512xbf16>
    %c9_113 = arith.constant 9 : index
    %c0_114 = arith.constant 0 : index
    %302 = vector.load %arg4[%c9_113, %c0_114] : memref<28x512xbf16, #tpu.memory_space<vmem>>, vector<1x512xbf16>
    %303 = vector.broadcast %302 : vector<1x512xbf16> to vector<4x512xbf16>
    %304 = arith.mulf %301, %303 : vector<4x512xbf16>
    %c36_115 = arith.constant 36 : index
    %c512_116 = arith.constant 512 : index
    %305 = vector.load %arg6[%c36_115, %c512_116] : memref<108x1024xbf16, #tpu.memory_space<vmem>>, vector<4x512xbf16>
    tpu.vector_store %arg6[%c36_115, %c512_116], %304 {strides = array<i32>} : memref<108x1024xbf16, #tpu.memory_space<vmem>>, vector<4x512xbf16>,
    %306 = vector.extract_strided_slice %235 {offsets = [0, 504], sizes = [4, 8], strides = [1, 1]} : vector<4x512xbf16> to vector<4x8xbf16>
    %307 = vector.extract_strided_slice %235 {offsets = [0, 0], sizes = [4, 504], strides = [1, 1]} : vector<4x512xbf16> to vector<4x504xbf16>
    %308 = tpu.concatenate %306, %307 in 1 : vector<4x8xbf16>, vector<4x504xbf16> -> vector<4x512xbf16>
    %c10_117 = arith.constant 10 : index
    %c0_118 = arith.constant 0 : index
    %309 = vector.load %arg4[%c10_117, %c0_118] : memref<28x512xbf16, #tpu.memory_space<vmem>>, vector<1x512xbf16>
    %310 = vector.broadcast %309 : vector<1x512xbf16> to vector<4x512xbf16>
    %311 = arith.mulf %308, %310 : vector<4x512xbf16>
    %c40_119 = arith.constant 40 : index
    %c512_120 = arith.constant 512 : index
    %312 = vector.load %arg6[%c40_119, %c512_120] : memref<108x1024xbf16, #tpu.memory_space<vmem>>, vector<4x512xbf16>
    tpu.vector_store %arg6[%c40_119, %c512_120], %311 {strides = array<i32>} : memref<108x1024xbf16, #tpu.memory_space<vmem>>, vector<4x512xbf16>,
    %313 = vector.extract_strided_slice %235 {offsets = [0, 505], sizes = [4, 7], strides = [1, 1]} : vector<4x512xbf16> to vector<4x7xbf16>
    %314 = vector.extract_strided_slice %235 {offsets = [0, 0], sizes = [4, 505], strides = [1, 1]} : vector<4x512xbf16> to vector<4x505xbf16>
    %315 = tpu.concatenate %313, %314 in 1 : vector<4x7xbf16>, vector<4x505xbf16> -> vector<4x512xbf16>
    %c11_121 = arith.constant 11 : index
    %c0_122 = arith.constant 0 : index
    %316 = vector.load %arg4[%c11_121, %c0_122] : memref<28x512xbf16, #tpu.memory_space<vmem>>, vector<1x512xbf16>
    %317 = vector.broadcast %316 : vector<1x512xbf16> to vector<4x512xbf16>
    %318 = arith.mulf %315, %317 : vector<4x512xbf16>
    %c44_123 = arith.constant 44 : index
    %c512_124 = arith.constant 512 : index
    %319 = vector.load %arg6[%c44_123, %c512_124] : memref<108x1024xbf16, #tpu.memory_space<vmem>>, vector<4x512xbf16>
    tpu.vector_store %arg6[%c44_123, %c512_124], %318 {strides = array<i32>} : memref<108x1024xbf16, #tpu.memory_space<vmem>>, vector<4x512xbf16>,
    %320 = vector.extract_strided_slice %235 {offsets = [0, 511], sizes = [4, 1], strides = [1, 1]} : vector<4x512xbf16> to vector<4x1xbf16>
    %321 = vector.extract_strided_slice %235 {offsets = [0, 0], sizes = [4, 511], strides = [1, 1]} : vector<4x512xbf16> to vector<4x511xbf16>
    %322 = tpu.concatenate %320, %321 in 1 : vector<4x1xbf16>, vector<4x511xbf16> -> vector<4x512xbf16>
    %c12_125 = arith.constant 12 : index
    %c0_126 = arith.constant 0 : index
    %323 = vector.load %arg4[%c12_125, %c0_126] : memref<28x512xbf16, #tpu.memory_space<vmem>>, vector<1x512xbf16>
    %324 = vector.broadcast %323 : vector<1x512xbf16> to vector<4x512xbf16>
    %325 = arith.mulf %322, %324 : vector<4x512xbf16>
    %c48_127 = arith.constant 48 : index
    %c512_128 = arith.constant 512 : index
    %326 = vector.load %arg6[%c48_127, %c512_128] : memref<108x1024xbf16, #tpu.memory_space<vmem>>, vector<4x512xbf16>
    tpu.vector_store %arg6[%c48_127, %c512_128], %325 {strides = array<i32>} : memref<108x1024xbf16, #tpu.memory_space<vmem>>, vector<4x512xbf16>,
    %c13_129 = arith.constant 13 : index
    %c0_130 = arith.constant 0 : index
    %327 = vector.load %arg4[%c13_129, %c0_130] : memref<28x512xbf16, #tpu.memory_space<vmem>>, vector<1x512xbf16>
    %328 = vector.broadcast %327 : vector<1x512xbf16> to vector<4x512xbf16>
    %329 = arith.mulf %235, %328 : vector<4x512xbf16>
    %c52_131 = arith.constant 52 : index
    %c512_132 = arith.constant 512 : index
    %330 = vector.load %arg6[%c52_131, %c512_132] : memref<108x1024xbf16, #tpu.memory_space<vmem>>, vector<4x512xbf16>
    tpu.vector_store %arg6[%c52_131, %c512_132], %329 {strides = array<i32>} : memref<108x1024xbf16, #tpu.memory_space<vmem>>, vector<4x512xbf16>,
    %331 = vector.extract_strided_slice %235 {offsets = [0, 1], sizes = [4, 511], strides = [1, 1]} : vector<4x512xbf16> to vector<4x511xbf16>
    %332 = vector.extract_strided_slice %235 {offsets = [0, 0], sizes = [4, 1], strides = [1, 1]} : vector<4x512xbf16> to vector<4x1xbf16>
    %333 = tpu.concatenate %331, %332 in 1 : vector<4x511xbf16>, vector<4x1xbf16> -> vector<4x512xbf16>
    %c14_133 = arith.constant 14 : index
    %c0_134 = arith.constant 0 : index
    %334 = vector.load %arg4[%c14_133, %c0_134] : memref<28x512xbf16, #tpu.memory_space<vmem>>, vector<1x512xbf16>
    %335 = vector.broadcast %334 : vector<1x512xbf16> to vector<4x512xbf16>
    %336 = arith.mulf %333, %335 : vector<4x512xbf16>
    %c56_135 = arith.constant 56 : index
    %c512_136 = arith.constant 512 : index
    %337 = vector.load %arg6[%c56_135, %c512_136] : memref<108x1024xbf16, #tpu.memory_space<vmem>>, vector<4x512xbf16>
    tpu.vector_store %arg6[%c56_135, %c512_136], %336 {strides = array<i32>} : memref<108x1024xbf16, #tpu.memory_space<vmem>>, vector<4x512xbf16>,
    %338 = vector.extract_strided_slice %235 {offsets = [0, 7], sizes = [4, 505], strides = [1, 1]} : vector<4x512xbf16> to vector<4x505xbf16>
    %339 = vector.extract_strided_slice %235 {offsets = [0, 0], sizes = [4, 7], strides = [1, 1]} : vector<4x512xbf16> to vector<4x7xbf16>
    %340 = tpu.concatenate %338, %339 in 1 : vector<4x505xbf16>, vector<4x7xbf16> -> vector<4x512xbf16>
    %c15_137 = arith.constant 15 : index
    %c0_138 = arith.constant 0 : index
    %341 = vector.load %arg4[%c15_137, %c0_138] : memref<28x512xbf16, #tpu.memory_space<vmem>>, vector<1x512xbf16>
    %342 = vector.broadcast %341 : vector<1x512xbf16> to vector<4x512xbf16>
    %343 = arith.mulf %340, %342 : vector<4x512xbf16>
    %c60_139 = arith.constant 60 : index
    %c512_140 = arith.constant 512 : index
    %344 = vector.load %arg6[%c60_139, %c512_140] : memref<108x1024xbf16, #tpu.memory_space<vmem>>, vector<4x512xbf16>
    tpu.vector_store %arg6[%c60_139, %c512_140], %343 {strides = array<i32>} : memref<108x1024xbf16, #tpu.memory_space<vmem>>, vector<4x512xbf16>,
    %345 = vector.extract_strided_slice %235 {offsets = [0, 8], sizes = [4, 504], strides = [1, 1]} : vector<4x512xbf16> to vector<4x504xbf16>
    %346 = vector.extract_strided_slice %235 {offsets = [0, 0], sizes = [4, 8], strides = [1, 1]} : vector<4x512xbf16> to vector<4x8xbf16>
    %347 = tpu.concatenate %345, %346 in 1 : vector<4x504xbf16>, vector<4x8xbf16> -> vector<4x512xbf16>
    %c16_141 = arith.constant 16 : index
    %c0_142 = arith.constant 0 : index
    %348 = vector.load %arg4[%c16_141, %c0_142] : memref<28x512xbf16, #tpu.memory_space<vmem>>, vector<1x512xbf16>
    %349 = vector.broadcast %348 : vector<1x512xbf16> to vector<4x512xbf16>
    %350 = arith.mulf %347, %349 : vector<4x512xbf16>
    %c64_143 = arith.constant 64 : index
    %c512_144 = arith.constant 512 : index
    %351 = vector.load %arg6[%c64_143, %c512_144] : memref<108x1024xbf16, #tpu.memory_space<vmem>>, vector<4x512xbf16>
    tpu.vector_store %arg6[%c64_143, %c512_144], %350 {strides = array<i32>} : memref<108x1024xbf16, #tpu.memory_space<vmem>>, vector<4x512xbf16>,
    %352 = vector.extract_strided_slice %235 {offsets = [0, 9], sizes = [4, 503], strides = [1, 1]} : vector<4x512xbf16> to vector<4x503xbf16>
    %353 = vector.extract_strided_slice %235 {offsets = [0, 0], sizes = [4, 9], strides = [1, 1]} : vector<4x512xbf16> to vector<4x9xbf16>
    %354 = tpu.concatenate %352, %353 in 1 : vector<4x503xbf16>, vector<4x9xbf16> -> vector<4x512xbf16>
    %c17_145 = arith.constant 17 : index
    %c0_146 = arith.constant 0 : index
    %355 = vector.load %arg4[%c17_145, %c0_146] : memref<28x512xbf16, #tpu.memory_space<vmem>>, vector<1x512xbf16>
    %356 = vector.broadcast %355 : vector<1x512xbf16> to vector<4x512xbf16>
    %357 = arith.mulf %354, %356 : vector<4x512xbf16>
    %c68_147 = arith.constant 68 : index
    %c512_148 = arith.constant 512 : index
    %358 = vector.load %arg6[%c68_147, %c512_148] : memref<108x1024xbf16, #tpu.memory_space<vmem>>, vector<4x512xbf16>
    tpu.vector_store %arg6[%c68_147, %c512_148], %357 {strides = array<i32>} : memref<108x1024xbf16, #tpu.memory_space<vmem>>, vector<4x512xbf16>,
    %359 = vector.extract_strided_slice %235 {offsets = [0, 55], sizes = [4, 457], strides = [1, 1]} : vector<4x512xbf16> to vector<4x457xbf16>
    %360 = vector.extract_strided_slice %235 {offsets = [0, 0], sizes = [4, 55], strides = [1, 1]} : vector<4x512xbf16> to vector<4x55xbf16>
    %361 = tpu.concatenate %359, %360 in 1 : vector<4x457xbf16>, vector<4x55xbf16> -> vector<4x512xbf16>
    %c18_149 = arith.constant 18 : index
    %c0_150 = arith.constant 0 : index
    %362 = vector.load %arg4[%c18_149, %c0_150] : memref<28x512xbf16, #tpu.memory_space<vmem>>, vector<1x512xbf16>
    %363 = vector.broadcast %362 : vector<1x512xbf16> to vector<4x512xbf16>
    %364 = arith.mulf %361, %363 : vector<4x512xbf16>
    %c72_151 = arith.constant 72 : index
    %c512_152 = arith.constant 512 : index
    %365 = vector.load %arg6[%c72_151, %c512_152] : memref<108x1024xbf16, #tpu.memory_space<vmem>>, vector<4x512xbf16>
    tpu.vector_store %arg6[%c72_151, %c512_152], %364 {strides = array<i32>} : memref<108x1024xbf16, #tpu.memory_space<vmem>>, vector<4x512xbf16>,
    %366 = vector.extract_strided_slice %235 {offsets = [0, 56], sizes = [4, 456], strides = [1, 1]} : vector<4x512xbf16> to vector<4x456xbf16>
    %367 = vector.extract_strided_slice %235 {offsets = [0, 0], sizes = [4, 56], strides = [1, 1]} : vector<4x512xbf16> to vector<4x56xbf16>
    %368 = tpu.concatenate %366, %367 in 1 : vector<4x456xbf16>, vector<4x56xbf16> -> vector<4x512xbf16>
    %c19_153 = arith.constant 19 : index
    %c0_154 = arith.constant 0 : index
    %369 = vector.load %arg4[%c19_153, %c0_154] : memref<28x512xbf16, #tpu.memory_space<vmem>>, vector<1x512xbf16>
    %370 = vector.broadcast %369 : vector<1x512xbf16> to vector<4x512xbf16>
    %371 = arith.mulf %368, %370 : vector<4x512xbf16>
    %c76_155 = arith.constant 76 : index
    %c512_156 = arith.constant 512 : index
    %372 = vector.load %arg6[%c76_155, %c512_156] : memref<108x1024xbf16, #tpu.memory_space<vmem>>, vector<4x512xbf16>
    tpu.vector_store %arg6[%c76_155, %c512_156], %371 {strides = array<i32>} : memref<108x1024xbf16, #tpu.memory_space<vmem>>, vector<4x512xbf16>,
    %373 = vector.extract_strided_slice %235 {offsets = [0, 57], sizes = [4, 455], strides = [1, 1]} : vector<4x512xbf16> to vector<4x455xbf16>
    %374 = vector.extract_strided_slice %235 {offsets = [0, 0], sizes = [4, 57], strides = [1, 1]} : vector<4x512xbf16> to vector<4x57xbf16>
    %375 = tpu.concatenate %373, %374 in 1 : vector<4x455xbf16>, vector<4x57xbf16> -> vector<4x512xbf16>
    %c20_157 = arith.constant 20 : index
    %c0_158 = arith.constant 0 : index
    %376 = vector.load %arg4[%c20_157, %c0_158] : memref<28x512xbf16, #tpu.memory_space<vmem>>, vector<1x512xbf16>
    %377 = vector.broadcast %376 : vector<1x512xbf16> to vector<4x512xbf16>
    %378 = arith.mulf %375, %377 : vector<4x512xbf16>
    %c80_159 = arith.constant 80 : index
    %c512_160 = arith.constant 512 : index
    %379 = vector.load %arg6[%c80_159, %c512_160] : memref<108x1024xbf16, #tpu.memory_space<vmem>>, vector<4x512xbf16>
    tpu.vector_store %arg6[%c80_159, %c512_160], %378 {strides = array<i32>} : memref<108x1024xbf16, #tpu.memory_space<vmem>>, vector<4x512xbf16>,
    %380 = vector.extract_strided_slice %235 {offsets = [0, 63], sizes = [4, 449], strides = [1, 1]} : vector<4x512xbf16> to vector<4x449xbf16>
    %381 = vector.extract_strided_slice %235 {offsets = [0, 0], sizes = [4, 63], strides = [1, 1]} : vector<4x512xbf16> to vector<4x63xbf16>
    %382 = tpu.concatenate %380, %381 in 1 : vector<4x449xbf16>, vector<4x63xbf16> -> vector<4x512xbf16>
    %c21_161 = arith.constant 21 : index
    %c0_162 = arith.constant 0 : index
    %383 = vector.load %arg4[%c21_161, %c0_162] : memref<28x512xbf16, #tpu.memory_space<vmem>>, vector<1x512xbf16>
    %384 = vector.broadcast %383 : vector<1x512xbf16> to vector<4x512xbf16>
    %385 = arith.mulf %382, %384 : vector<4x512xbf16>
    %c84_163 = arith.constant 84 : index
    %c512_164 = arith.constant 512 : index
    %386 = vector.load %arg6[%c84_163, %c512_164] : memref<108x1024xbf16, #tpu.memory_space<vmem>>, vector<4x512xbf16>
    tpu.vector_store %arg6[%c84_163, %c512_164], %385 {strides = array<i32>} : memref<108x1024xbf16, #tpu.memory_space<vmem>>, vector<4x512xbf16>,
    %387 = vector.extract_strided_slice %235 {offsets = [0, 64], sizes = [4, 448], strides = [1, 1]} : vector<4x512xbf16> to vector<4x448xbf16>
    %388 = vector.extract_strided_slice %235 {offsets = [0, 0], sizes = [4, 64], strides = [1, 1]} : vector<4x512xbf16> to vector<4x64xbf16>
    %389 = tpu.concatenate %387, %388 in 1 : vector<4x448xbf16>, vector<4x64xbf16> -> vector<4x512xbf16>
    %c22_165 = arith.constant 22 : index
    %c0_166 = arith.constant 0 : index
    %390 = vector.load %arg4[%c22_165, %c0_166] : memref<28x512xbf16, #tpu.memory_space<vmem>>, vector<1x512xbf16>
    %391 = vector.broadcast %390 : vector<1x512xbf16> to vector<4x512xbf16>
    %392 = arith.mulf %389, %391 : vector<4x512xbf16>
    %c88_167 = arith.constant 88 : index
    %c512_168 = arith.constant 512 : index
    %393 = vector.load %arg6[%c88_167, %c512_168] : memref<108x1024xbf16, #tpu.memory_space<vmem>>, vector<4x512xbf16>
    tpu.vector_store %arg6[%c88_167, %c512_168], %392 {strides = array<i32>} : memref<108x1024xbf16, #tpu.memory_space<vmem>>, vector<4x512xbf16>,
    %394 = vector.extract_strided_slice %235 {offsets = [0, 65], sizes = [4, 447], strides = [1, 1]} : vector<4x512xbf16> to vector<4x447xbf16>
    %395 = vector.extract_strided_slice %235 {offsets = [0, 0], sizes = [4, 65], strides = [1, 1]} : vector<4x512xbf16> to vector<4x65xbf16>
    %396 = tpu.concatenate %394, %395 in 1 : vector<4x447xbf16>, vector<4x65xbf16> -> vector<4x512xbf16>
    %c23_169 = arith.constant 23 : index
    %c0_170 = arith.constant 0 : index
    %397 = vector.load %arg4[%c23_169, %c0_170] : memref<28x512xbf16, #tpu.memory_space<vmem>>, vector<1x512xbf16>
    %398 = vector.broadcast %397 : vector<1x512xbf16> to vector<4x512xbf16>
    %399 = arith.mulf %396, %398 : vector<4x512xbf16>
    %c92_171 = arith.constant 92 : index
    %c512_172 = arith.constant 512 : index
    %400 = vector.load %arg6[%c92_171, %c512_172] : memref<108x1024xbf16, #tpu.memory_space<vmem>>, vector<4x512xbf16>
    tpu.vector_store %arg6[%c92_171, %c512_172], %399 {strides = array<i32>} : memref<108x1024xbf16, #tpu.memory_space<vmem>>, vector<4x512xbf16>,
    %401 = vector.extract_strided_slice %235 {offsets = [0, 71], sizes = [4, 441], strides = [1, 1]} : vector<4x512xbf16> to vector<4x441xbf16>
    %402 = vector.extract_strided_slice %235 {offsets = [0, 0], sizes = [4, 71], strides = [1, 1]} : vector<4x512xbf16> to vector<4x71xbf16>
    %403 = tpu.concatenate %401, %402 in 1 : vector<4x441xbf16>, vector<4x71xbf16> -> vector<4x512xbf16>
    %c24_173 = arith.constant 24 : index
    %c0_174 = arith.constant 0 : index
    %404 = vector.load %arg4[%c24_173, %c0_174] : memref<28x512xbf16, #tpu.memory_space<vmem>>, vector<1x512xbf16>
    %405 = vector.broadcast %404 : vector<1x512xbf16> to vector<4x512xbf16>
    %406 = arith.mulf %403, %405 : vector<4x512xbf16>
    %c96_175 = arith.constant 96 : index
    %c512_176 = arith.constant 512 : index
    %407 = vector.load %arg6[%c96_175, %c512_176] : memref<108x1024xbf16, #tpu.memory_space<vmem>>, vector<4x512xbf16>
    tpu.vector_store %arg6[%c96_175, %c512_176], %406 {strides = array<i32>} : memref<108x1024xbf16, #tpu.memory_space<vmem>>, vector<4x512xbf16>,
    %408 = vector.extract_strided_slice %235 {offsets = [0, 72], sizes = [4, 440], strides = [1, 1]} : vector<4x512xbf16> to vector<4x440xbf16>
    %409 = vector.extract_strided_slice %235 {offsets = [0, 0], sizes = [4, 72], strides = [1, 1]} : vector<4x512xbf16> to vector<4x72xbf16>
    %410 = tpu.concatenate %408, %409 in 1 : vector<4x440xbf16>, vector<4x72xbf16> -> vector<4x512xbf16>
    %c25_177 = arith.constant 25 : index
    %c0_178 = arith.constant 0 : index
    %411 = vector.load %arg4[%c25_177, %c0_178] : memref<28x512xbf16, #tpu.memory_space<vmem>>, vector<1x512xbf16>
    %412 = vector.broadcast %411 : vector<1x512xbf16> to vector<4x512xbf16>
    %413 = arith.mulf %410, %412 : vector<4x512xbf16>
    %c100_179 = arith.constant 100 : index
    %c512_180 = arith.constant 512 : index
    %414 = vector.load %arg6[%c100_179, %c512_180] : memref<108x1024xbf16, #tpu.memory_space<vmem>>, vector<4x512xbf16>
    tpu.vector_store %arg6[%c100_179, %c512_180], %413 {strides = array<i32>} : memref<108x1024xbf16, #tpu.memory_space<vmem>>, vector<4x512xbf16>,
    %415 = vector.extract_strided_slice %235 {offsets = [0, 73], sizes = [4, 439], strides = [1, 1]} : vector<4x512xbf16> to vector<4x439xbf16>
    %416 = vector.extract_strided_slice %235 {offsets = [0, 0], sizes = [4, 73], strides = [1, 1]} : vector<4x512xbf16> to vector<4x73xbf16>
    %417 = tpu.concatenate %415, %416 in 1 : vector<4x439xbf16>, vector<4x73xbf16> -> vector<4x512xbf16>
    %c26_181 = arith.constant 26 : index
    %c0_182 = arith.constant 0 : index
    %418 = vector.load %arg4[%c26_181, %c0_182] : memref<28x512xbf16, #tpu.memory_space<vmem>>, vector<1x512xbf16>
    %419 = vector.broadcast %418 : vector<1x512xbf16> to vector<4x512xbf16>
    %420 = arith.mulf %417, %419 : vector<4x512xbf16>
    %c104_183 = arith.constant 104 : index
    %c512_184 = arith.constant 512 : index
    %421 = vector.load %arg6[%c104_183, %c512_184] : memref<108x1024xbf16, #tpu.memory_space<vmem>>, vector<4x512xbf16>
    tpu.vector_store %arg6[%c104_183, %c512_184], %420 {strides = array<i32>} : memref<108x1024xbf16, #tpu.memory_space<vmem>>, vector<4x512xbf16>,
    %c0_185 = arith.constant 0 : index
    %c0_186 = arith.constant 0 : index
    %422 = vector.load %arg2[%c0_185, %c0_186] : memref<4x108xbf16, #tpu.memory_space<vmem>>, vector<4x108xbf16>
    %c0_187 = arith.constant 0 : index
    %c0_188 = arith.constant 0 : index
    %423 = vector.load %arg6[%c0_187, %c0_188] : memref<108x1024xbf16, #tpu.memory_space<vmem>>, vector<108x1024xbf16>
    %cst_189 = arith.constant dense<0.000000e+00> : vector<4x1024xf32>
    %424 = tpu.matmul %422, %423, %cst_189 {dimension_numbers = #tpu.dot_dimension_numbers<[1], [0], [0], [1], [0, 0, 1, 1], [], []>} : vector<4x108xbf16>, vector<108x1024xbf16>, vector<4x1024xf32> -> vector<4x1024xf32>
    %c0_190 = arith.constant 0 : index
    %c0_191 = arith.constant 0 : index
    %425 = vector.load %arg1[%c0_190, %c0_191] : memref<8x512xf32, #tpu.memory_space<vmem>>, vector<4x512xf32>
    %426 = vector.extract_strided_slice %424 {offsets = [0, 0], sizes = [4, 512], strides = [1, 1]} : vector<4x1024xf32> to vector<4x512xf32>
    %c0_192 = arith.constant 0 : index
    %c0_193 = arith.constant 0 : index
    %427 = vector.load %arg3[%c0_192, %c0_193] : memref<4x1xf32, #tpu.memory_space<vmem>>, vector<4x1xf32>
    %428 = vector.broadcast %427 : vector<4x1xf32> to vector<4x512xf32>
    %429 = arith.addf %426, %428 : vector<4x512xf32>
    %430 = arith.addf %429, %425 : vector<4x512xf32>
    %cst_194 = arith.constant dense<0.000000e+00> : vector<4xf32>
    %431 = vector.multi_reduction <add>, %430, %cst_194 [1] : vector<4x512xf32> to vector<4xf32>
    %432 = vector.shape_cast %431 : vector<4xf32> to vector<4x1xf32>
    %cst_195 = arith.constant 0.001953125 : f32
    %433 = vector.broadcast %cst_195 : f32 to vector<4x1xf32>
    %434 = arith.mulf %432, %433 : vector<4x1xf32>
    %435 = arith.mulf %430, %430 : vector<4x512xf32>
    %cst_196 = arith.constant dense<0.000000e+00> : vector<4xf32>
    %436 = vector.multi_reduction <add>, %435, %cst_196 [1] : vector<4x512xf32> to vector<4xf32>
    %437 = vector.shape_cast %436 : vector<4xf32> to vector<4x1xf32>
    %cst_197 = arith.constant 0.001953125 : f32
    %438 = vector.broadcast %cst_197 : f32 to vector<4x1xf32>
    %439 = arith.mulf %437, %438 : vector<4x1xf32>
    %440 = vector.broadcast %434 : vector<4x1xf32> to vector<4x512xf32>
    %441 = arith.subf %430, %440 : vector<4x512xf32>
    %442 = arith.mulf %434, %434 : vector<4x1xf32>
    %443 = arith.subf %439, %442 : vector<4x1xf32>
    %cst_198 = arith.constant 9.99999974E-6 : f32
    %444 = vector.broadcast %cst_198 : f32 to vector<4x1xf32>
    %445 = arith.addf %443, %444 : vector<4x1xf32>
    %446 = math.rsqrt %445 : vector<4x1xf32>
    %447 = vector.broadcast %446 : vector<4x1xf32> to vector<4x512xf32>
    %448 = arith.mulf %441, %447 : vector<4x512xf32>
    %cst_199 = arith.constant 0.000000e+00 : f32
    %449 = vector.broadcast %cst_199 : f32 to vector<4x512xf32>
    %450 = arith.cmpf oge, %448, %449 : vector<4x512xf32>
    %cst_200 = arith.constant 1.000000e-01 : f32
    %451 = vector.broadcast %cst_200 : f32 to vector<4x512xf32>
    %452 = arith.mulf %451, %448 : vector<4x512xf32>
    %453 = arith.select %450, %448, %452 : vector<4x512xi1>, vector<4x512xf32>
    %c0_201 = arith.constant 0 : index
    %c0_202 = arith.constant 0 : index
    %454 = vector.load %arg5[%c0_201, %c0_202] : memref<8x512xf32, #tpu.memory_space<vmem>>, vector<4x512xf32>
    tpu.vector_store %arg5[%c0_201, %c0_202], %453 {strides = array<i32>} : memref<8x512xf32, #tpu.memory_space<vmem>>, vector<4x512xf32>,
    %c4_203 = arith.constant 4 : index
    %c0_204 = arith.constant 0 : index
    %455 = vector.load %arg1[%c4_203, %c0_204] : memref<8x512xf32, #tpu.memory_space<vmem>>, vector<4x512xf32>
    %456 = vector.extract_strided_slice %424 {offsets = [0, 512], sizes = [4, 512], strides = [1, 1]} : vector<4x1024xf32> to vector<4x512xf32>
    %c0_205 = arith.constant 0 : index
    %c0_206 = arith.constant 0 : index
    %457 = vector.load %arg3[%c0_205, %c0_206] : memref<4x1xf32, #tpu.memory_space<vmem>>, vector<4x1xf32>
    %458 = vector.broadcast %457 : vector<4x1xf32> to vector<4x512xf32>
    %459 = arith.addf %456, %458 : vector<4x512xf32>
    %460 = arith.addf %459, %455 : vector<4x512xf32>
    %cst_207 = arith.constant dense<0.000000e+00> : vector<4xf32>
    %461 = vector.multi_reduction <add>, %460, %cst_207 [1] : vector<4x512xf32> to vector<4xf32>
    %462 = vector.shape_cast %461 : vector<4xf32> to vector<4x1xf32>
    %cst_208 = arith.constant 0.001953125 : f32
    %463 = vector.broadcast %cst_208 : f32 to vector<4x1xf32>
    %464 = arith.mulf %462, %463 : vector<4x1xf32>
    %465 = arith.mulf %460, %460 : vector<4x512xf32>
    %cst_209 = arith.constant dense<0.000000e+00> : vector<4xf32>
    %466 = vector.multi_reduction <add>, %465, %cst_209 [1] : vector<4x512xf32> to vector<4xf32>
    %467 = vector.shape_cast %466 : vector<4xf32> to vector<4x1xf32>
    %cst_210 = arith.constant 0.001953125 : f32
    %468 = vector.broadcast %cst_210 : f32 to vector<4x1xf32>
    %469 = arith.mulf %467, %468 : vector<4x1xf32>
    %470 = vector.broadcast %464 : vector<4x1xf32> to vector<4x512xf32>
    %471 = arith.subf %460, %470 : vector<4x512xf32>
    %472 = arith.mulf %464, %464 : vector<4x1xf32>
    %473 = arith.subf %469, %472 : vector<4x1xf32>
    %cst_211 = arith.constant 9.99999974E-6 : f32
    %474 = vector.broadcast %cst_211 : f32 to vector<4x1xf32>
    %475 = arith.addf %473, %474 : vector<4x1xf32>
    %476 = math.rsqrt %475 : vector<4x1xf32>
    %477 = vector.broadcast %476 : vector<4x1xf32> to vector<4x512xf32>
    %478 = arith.mulf %471, %477 : vector<4x512xf32>
    %cst_212 = arith.constant 0.000000e+00 : f32
    %479 = vector.broadcast %cst_212 : f32 to vector<4x512xf32>
    %480 = arith.cmpf oge, %478, %479 : vector<4x512xf32>
    %cst_213 = arith.constant 1.000000e-01 : f32
    %481 = vector.broadcast %cst_213 : f32 to vector<4x512xf32>
    %482 = arith.mulf %481, %478 : vector<4x512xf32>
    %483 = arith.select %480, %478, %482 : vector<4x512xi1>, vector<4x512xf32>
    %c4_214 = arith.constant 4 : index
    %c0_215 = arith.constant 0 : index
    %484 = vector.load %arg5[%c4_214, %c0_215] : memref<8x512xf32, #tpu.memory_space<vmem>>, vector<4x512xf32>
    tpu.vector_store %arg5[%c4_214, %c0_215], %483 {strides = array<i32>} : memref<8x512xf32, #tpu.memory_space<vmem>>, vector<4x512xf32>,
    return
  }
  func.func @transform_0(%arg0: i32) -> (i32, i32) {
    %c0_i32 = arith.constant 0 : i32
    %c0_i32_0 = arith.constant 0 : i32
    return %arg0, %c0_i32 : i32, i32
  }
  func.func @transform_1(%arg0: i32) -> (i32, i32) {
    %c0_i32 = arith.constant 0 : i32
    %c0_i32_0 = arith.constant 0 : i32
    %c0_i32_1 = arith.constant 0 : i32
    return %c0_i32, %c0_i32_0 : i32, i32
  }
  func.func @transform_2(%arg0: i32) -> (i32, i32) {
    %c0_i32 = arith.constant 0 : i32
    %c0_i32_0 = arith.constant 0 : i32
    %c0_i32_1 = arith.constant 0 : i32
    return %c0_i32, %c0_i32_0 : i32, i32
  }
  func.func @transform_3(%arg0: i32) -> (i32, i32) {
    %c0_i32 = arith.constant 0 : i32
    %c0_i32_0 = arith.constant 0 : i32
    %c0_i32_1 = arith.constant 0 : i32
    return %c0_i32, %c0_i32_0 : i32, i32
  }
  func.func @transform_4(%arg0: i32) -> (i32, i32) {
    %c0_i32 = arith.constant 0 : i32
    %c0_i32_0 = arith.constant 0 : i32
    return %arg0, %c0_i32 : i32, i32
  }
}

</mosaic_0001>

<llo_original>
// kernel: tpu_custom_call.1
$region0: #{tpu_custom_call.1}
  #allocation0 [shape = 'u32[]', space=smem, size = 0x4, offset = 0x4, fixed_abs, tag = 'smem constant byte address 0x4 - core index']
  #allocation1 [shape = 'u32[72,128]{1,0:T(1,128)}', space=vmem, size = 0x9000, scoped, tag = 'internal scratch']
  #allocation2 [shape = 'bf16[112,1024]{1,0:T(8,128)(2,1)}', space=vmem, size = 0x38000, scoped, tag = 'scratch operand']
  %s0 = inlined_call_operand.hbm [shape: f32[8,512], index: 0, kind: input, shape index: {}]
  %s1 = inlined_call_operand.vmem [shape: bf16[4,112], index: 1, kind: input, shape index: {}]
  %s2 = inlined_call_operand.vmem [shape: f32[4,1], index: 2, kind: input, shape index: {}]
  %s3 = inlined_call_operand.hbm [shape: bf16[28,512], index: 3, kind: input, shape index: {}]
  %s4 = inlined_call_operand.hbm [shape: f32[8,512], index: 4, kind: output, shape index: {}]
  %s5 = sld [smem:[#allocation0]]
  $region34: #{tpu_custom_call.1} parent=0
    _
  %s7 = ssub.s32 1, %s5
  %s8 = scalar_select 0, %s7, %s5
  $region1: #{tpu_custom_call.1} parent=0
    #allocation3 [shape = 'u8[16384]{0}', space=vmem, size = 0x4000, scoped, tag = 'input window, operand 0, single buffered']
    #allocation4 [shape = 's32[1]{0}', space=sflag, size = 0x4, scoped, tag = 'scoped memory for tpu_custom_call.1']
    #allocation5 [shape = 's32[1]{0}', space=sflag, size = 0x4, scoped, tag = 'scoped memory for tpu_custom_call.1']
    #allocation6 [shape = 'u8[32768]{0}', space=vmem, size = 0x8000, scoped, tag = 'input window, operand 3, single buffered']
    #allocation7 [shape = 's32[1]{0}', space=sflag, size = 0x4, scoped, tag = 'scoped memory for tpu_custom_call.1']
    #allocation8 [shape = 'u8[16384]{0}', space=vmem, size = 0x4000, scoped, tag = 'output window, operand 0, single buffered']
    %9 = vsyncpa [#allocation4], 0
    %10 = vsyncpa [#allocation7], 0
    %11 = vsyncpa [#allocation5], 0
    // Predicated region
    $region2: #{tpu_custom_call.1} parent=1 // pred_check
      _
    $region3: #{tpu_custom_call.1} parent=1 // pred_check_branch
      %13 = sbr.rel (0) target = $region5
    $region4: #{tpu_custom_call.1} parent=1 // pred_region
      %15 = vsyncadd [#allocation4], 0
      %s17 = sshll.u32 %s0, 4
      %s18 = int_to_ptr.hbm [resolvable:$true] %s17
      %s19 = sshll.u32 [#allocation3], 4
      %s20 = int_to_ptr.vmem [resolvable:$true] %s19
      %22 = dma.hbm_to_vmem [thread:$0]  %s18, 512, %s20, [#allocation4]
    $region5: #{tpu_custom_call.1} parent=1 // pred_fallthru
      _
    // Predicated region
    $region6: #{tpu_custom_call.1} parent=1 // pred_check
      _
    $region7: #{tpu_custom_call.1} parent=1 // pred_check_branch
      %24 = sbr.rel (0) target = $region9
    $region8: #{tpu_custom_call.1} parent=1 // pred_region
      _
    $region9: #{tpu_custom_call.1} parent=1 // pred_fallthru
      _
    // Predicated region
    $region10: #{tpu_custom_call.1} parent=1 // pred_check
      _
    $region11: #{tpu_custom_call.1} parent=1 // pred_check_branch
      %26 = sbr.rel (0) target = $region13
    $region12: #{tpu_custom_call.1} parent=1 // pred_region
      _
    $region13: #{tpu_custom_call.1} parent=1 // pred_fallthru
      _
    // Predicated region
    $region14: #{tpu_custom_call.1} parent=1 // pred_check
      _
    $region15: #{tpu_custom_call.1} parent=1 // pred_check_branch
      %28 = sbr.rel (0) target = $region17
    $region16: #{tpu_custom_call.1} parent=1 // pred_region
      %30 = vsyncadd [#allocation7], 0
      %s31 = sshll.u32 %s3, 4
      %s32 = int_to_ptr.hbm [resolvable:$true] %s31
      %s33 = sshll.u32 [#allocation6], 4
      %s34 = int_to_ptr.vmem [resolvable:$true] %s33
      %39 = dma.hbm_to_vmem [thread:$0]  %s32, 1024, %s34, [#allocation7], 256, 256, 16
    $region17: #{tpu_custom_call.1} parent=1 // pred_fallthru
      _
    // Predicated region
    $region18: #{tpu_custom_call.1} parent=1 // pred_check
      _
    $region19: #{tpu_custom_call.1} parent=1 // pred_check_branch
      %41 = sbr.rel (0) target = $region21
    $region20: #{tpu_custom_call.1} parent=1 // pred_region
      %43 = dma.done [#allocation4], 512
    $region21: #{tpu_custom_call.1} parent=1 // pred_fallthru
      _
    // Predicated region
    $region22: #{tpu_custom_call.1} parent=1 // pred_check
      _
    $region23: #{tpu_custom_call.1} parent=1 // pred_check_branch
      %45 = sbr.rel (0) target = $region25
    $region24: #{tpu_custom_call.1} parent=1 // pred_region
      %47 = dma.done [#allocation7], 1024
    $region25: #{tpu_custom_call.1} parent=1 // pred_fallthru
      _
    %v49 = vld [vmem:[#allocation3] sm:$0xf]
    %v50 = vld [vmem:[#allocation3 + $0x8] sm:$0xf]
    %v51 = vld [vmem:[#allocation3 + $0x10] sm:$0xf]
    %v52 = vld [vmem:[#allocation3 + $0x18] sm:$0xf]
    %vm53 = vcmask 1043456
    %v54 = vsel %vm53, %v49, 0.0
    %v55 = vsel %vm53, %v50, 0.0
    %v56 = vadd.f32 %v54, %v55
    %v57 = vsel %vm53, %v51, 0.0
    %v58 = vadd.f32 %v56, %v57
    %v59 = vsel %vm53, %v52, 0.0
    %v60 = vadd.f32 %v58, %v59
    %61 = vadd.xlane.f32.xlu0 %v60
    %v62 = vpop.xlane.xlu0 %61
    %v63 = vmul.f32 %v62, 0.001953125
    %v64 = vmul.f32 %v49, %v49
    %v65 = vmul.f32 %v50, %v50
    %v66 = vmul.f32 %v51, %v51
    %v67 = vmul.f32 %v52, %v52
    %v68 = vsel %vm53, %v64, 0.0
    %v69 = vsel %vm53, %v65, 0.0
    %v70 = vadd.f32 %v68, %v69
    %v71 = vsel %vm53, %v66, 0.0
    %v72 = vadd.f32 %v70, %v71
    %v73 = vsel %vm53, %v67, 0.0
    %v74 = vadd.f32 %v72, %v73
    %75 = vadd.xlane.f32.xlu0 %v74
    %v76 = vpop.xlane.xlu0 %75
    %v77 = vmul.f32 %v76, 0.001953125
    %v78 = vsub.f32 %v49, %v63
    %v79 = vsub.f32 %v50, %v63
    %v80 = vsub.f32 %v51, %v63
    %v81 = vsub.f32 %v52, %v63
    %v82 = vmul.f32 %v63, %v63
    %v83 = vsub.f32 %v77, %v82
    %v84 = vadd.f32 %v83, 1e-05
    %v85 = vrsqrt.pop %v84
    %v86 = vmul.f32 %v85, %v84
    %v87 = vmul.f32 %v86, %v85
    %v88 = vmul.f32 0.5, %v87
    %v89 = vsub.f32 1.5, %v88
    %v90 = vmul.f32 %v85, %v89
    %vm91 = vweird.f32 %v84
    %vm92 = vweird.f32 %v85
    %vm93 = vmor %vm91, %vm92
    %v94 = vsel %vm93, %v85, %v90
    %v95 = vmul.f32 %v78, %v94
    %v96 = vmul.f32 %v79, %v94
    %v97 = vmul.f32 %v80, %v94
    %v98 = vmul.f32 %v81, %v94
    %vm99 = vcmp.ge.f32.partialorder %v95, 0.0
    %vm100 = vcmp.ge.f32.partialorder %v96, 0.0
    %vm101 = vcmp.ge.f32.partialorder %v97, 0.0
    %vm102 = vcmp.ge.f32.partialorder %v98, 0.0
    %v103 = vmul.f32 %v95, 0.1
    %v104 = vmul.f32 %v96, 0.1
    %v105 = vmul.f32 %v97, 0.1
    %v106 = vmul.f32 %v98, 0.1
    %v107 = vsel %vm99, %v95, %v103
    %v108 = vsel %vm100, %v96, %v104
    %v109 = vsel %vm101, %v97, %v105
    %v110 = vsel %vm102, %v98, %v106
    %v111 = vpack.c.bf16 %v108, %v107
    %v112 = vpack.c.bf16 %v110, %v109
    %v114 = vunpack.c.h.b16 %v112
    %v115 = vpack.c.b16 %v114, %v114
    %116 = vrot.lane.b32.xlu0 %v115, 73
    %v117 = vpop.permute.xlu0 %116
    %v119 = vunpack.c.l.b16 %v111
    %v120 = vunpack.c.h.b16 %v111
    %v121 = vunpack.c.l.b16 %v112
    %v122 = vpack.c.b16 %v119, %v119
    %v123 = vpack.c.b16 %v120, %v120
    %v124 = vpack.c.b16 %v121, %v121
    %125 = vrot.lane.b32.xlu0 %v122, 73
    %v126 = vpop.permute.xlu0 %125
    %127 = vrot.lane.b32.xlu0 %v123, 73
    %v128 = vpop.permute.xlu0 %127
    %129 = vrot.lane.b32.xlu0 %v124, 73
    %v130 = vpop.permute.xlu0 %129
    %vm131 = vcmask 596992
    %v132 = vsel %vm131, %v126, %v128
    %v133 = vsel %vm131, %v128, %v130
    %v134 = vsel %vm131, %v130, %v117
    %vm138 = vcmask 596992
    %v141 = vsel %vm138, %v117, %v126
    %v143 = vld [vmem:[#allocation6] sm:$0x11]
    %v144 = vld [vmem:[#allocation6 + $0x8] sm:$0x11]
    %v147 = vunpack.c.l.b16 %v143
    %v148 = vunpack.c.h.b16 %v143
    %v149 = vunpack.c.l.b16 %v144
    %v150 = vunpack.c.h.b16 %v144
    %v151 = vpack.c.b16 %v147, %v147
    %v152 = vpack.c.b16 %v148, %v148
    %v153 = vpack.c.b16 %v149, %v149
    %v154 = vpack.c.b16 %v150, %v150
    %v156 = vpack.i.b16 %v151, %v151
    %v158 = vperm.slane %v156, 0
    %v160 = vpack.i.b16 %v152, %v152
    %v162 = vperm.slane %v160, 0
    %v164 = vpack.i.b16 %v153, %v153
    %v166 = vperm.slane %v164, 0
    %v168 = vpack.i.b16 %v154, %v154
    %v170 = vperm.slane %v168, 0
    %v171 = vunpack.c.l.bf16 %v141
    %v172 = vunpack.c.l.bf16 %v132
    %v173 = vunpack.c.l.bf16 %v133
    %v174 = vunpack.c.l.bf16 %v134
    %v175 = vunpack.c.l.bf16 %v158
    %v176 = vunpack.c.l.bf16 %v162
    %v177 = vunpack.c.l.bf16 %v166
    %v178 = vunpack.c.l.bf16 %v170
    %v179 = vmul.f32 %v171, %v175
    %v180 = vmul.f32 %v172, %v176
    %v181 = vmul.f32 %v173, %v177
    %v182 = vmul.f32 %v174, %v178
    %v183 = vpack.c.bf16 %v180, %v179
    %v184 = vpack.c.bf16 %v182, %v181
    %185 = vrot.lane.b32.xlu0 %v115, 72
    %v186 = vpop.permute.xlu0 %185
    %187 = vrot.lane.b32.xlu0 %v122, 72
    %v188 = vpop.permute.xlu0 %187
    %189 = vrot.lane.b32.xlu0 %v123, 72
    %v190 = vpop.permute.xlu0 %189
    %191 = vrot.lane.b32.xlu0 %v124, 72
    %v192 = vpop.permute.xlu0 %191
    %vm193 = vcmask 588800
    %v194 = vsel %vm193, %v188, %v190
    %v195 = vsel %vm193, %v190, %v192
    %v196 = vsel %vm193, %v192, %v186
    %vm200 = vcmask 588800
    %v203 = vsel %vm200, %v186, %v188
    %v205 = vshrl.u32 %v151, 16
    %v206 = vpack.i.b16 %v205, %v205
    %v208 = vperm.slane %v206, 0
    %v209 = vshrl.u32 %v152, 16
    %v210 = vpack.i.b16 %v209, %v209
    %v212 = vperm.slane %v210, 0
    %v213 = vshrl.u32 %v153, 16
    %v214 = vpack.i.b16 %v213, %v213
    %v216 = vperm.slane %v214, 0
    %v217 = vshrl.u32 %v154, 16
    %v218 = vpack.i.b16 %v217, %v217
    %v220 = vperm.slane %v218, 0
    %v221 = vunpack.c.l.bf16 %v203
    %v222 = vunpack.c.l.bf16 %v194
    %v223 = vunpack.c.l.bf16 %v195
    %v224 = vunpack.c.l.bf16 %v196
    %v225 = vunpack.c.l.bf16 %v208
    %v226 = vunpack.c.l.bf16 %v212
    %v227 = vunpack.c.l.bf16 %v216
    %v228 = vunpack.c.l.bf16 %v220
    %v229 = vmul.f32 %v221, %v225
    %v230 = vmul.f32 %v222, %v226
    %v231 = vmul.f32 %v223, %v227
    %v232 = vmul.f32 %v224, %v228
    %v233 = vpack.c.bf16 %v230, %v229
    %v234 = vpack.c.bf16 %v232, %v231
    %235 = vrot.lane.b32.xlu0 %v115, 71
    %v236 = vpop.permute.xlu0 %235
    %237 = vrot.lane.b32.xlu0 %v122, 71
    %v238 = vpop.permute.xlu0 %237
    %239 = vrot.lane.b32.xlu0 %v123, 71
    %v240 = vpop.permute.xlu0 %239
    %241 = vrot.lane.b32.xlu0 %v124, 71
    %v242 = vpop.permute.xlu0 %241
    %vm243 = vcmask 580608
    %v244 = vsel %vm243, %v238, %v240
    %v245 = vsel %vm243, %v240, %v242
    %v246 = vsel %vm243, %v242, %v236
    %vm250 = vcmask 580608
    %v253 = vsel %vm250, %v236, %v238
    %v255 = vld [vmem:[#allocation6] sm:$0x22]
    %v256 = vld [vmem:[#allocation6 + $0x8] sm:$0x22]
    %v259 = vunpack.c.l.b16 %v255
    %v260 = vunpack.c.h.b16 %v255
    %v261 = vunpack.c.l.b16 %v256
    %v262 = vunpack.c.h.b16 %v256
    %v263 = vpack.c.b16 %v259, %v259
    %v264 = vpack.c.b16 %v260, %v260
    %v265 = vpack.c.b16 %v261, %v261
    %v266 = vpack.c.b16 %v262, %v262
    %v268 = vpack.i.b16 %v263, %v263
    %v270 = vperm.slane %v268, 1
    %v272 = vpack.i.b16 %v264, %v264
    %v274 = vperm.slane %v272, 1
    %v276 = vpack.i.b16 %v265, %v265
    %v278 = vperm.slane %v276, 1
    %v280 = vpack.i.b16 %v266, %v266
    %v282 = vperm.slane %v280, 1
    %v283 = vunpack.c.l.bf16 %v253
    %v284 = vunpack.c.l.bf16 %v244
    %v285 = vunpack.c.l.bf16 %v245
    %v286 = vunpack.c.l.bf16 %v246
    %v287 = vunpack.c.l.bf16 %v270
    %v288 = vunpack.c.l.bf16 %v274
    %v289 = vunpack.c.l.bf16 %v278
    %v290 = vunpack.c.l.bf16 %v282
    %v291 = vmul.f32 %v283, %v287
    %v292 = vmul.f32 %v284, %v288
    %v293 = vmul.f32 %v285, %v289
    %v294 = vmul.f32 %v286, %v290
    %v295 = vpack.c.bf16 %v292, %v291
    %v296 = vpack.c.bf16 %v294, %v293
    %297 = vrot.lane.b32.xlu0 %v115, 65
    %v298 = vpop.permute.xlu0 %297
    %299 = vrot.lane.b32.xlu0 %v122, 65
    %v300 = vpop.permute.xlu0 %299
    %301 = vrot.lane.b32.xlu0 %v123, 65
    %v302 = vpop.permute.xlu0 %301
    %303 = vrot.lane.b32.xlu0 %v124, 65
    %v304 = vpop.permute.xlu0 %303
    %vm305 = vcmask 531456
    %v306 = vsel %vm305, %v300, %v302
    %v307 = vsel %vm305, %v302, %v304
    %v308 = vsel %vm305, %v304, %v298
    %vm312 = vcmask 531456
    %v315 = vsel %vm312, %v298, %v300
    %v317 = vshrl.u32 %v263, 16
    %v318 = vpack.i.b16 %v317, %v317
    %v320 = vperm.slane %v318, 1
    %v321 = vshrl.u32 %v264, 16
    %v322 = vpack.i.b16 %v321, %v321
    %v324 = vperm.slane %v322, 1
    %v325 = vshrl.u32 %v265, 16
    %v326 = vpack.i.b16 %v325, %v325
    %v328 = vperm.slane %v326, 1
    %v329 = vshrl.u32 %v266, 16
    %v330 = vpack.i.b16 %v329, %v329
    %v332 = vperm.slane %v330, 1
    %v333 = vunpack.c.l.bf16 %v315
    %v334 = vunpack.c.l.bf16 %v306
    %v335 = vunpack.c.l.bf16 %v307
    %v336 = vunpack.c.l.bf16 %v308
    %v337 = vunpack.c.l.bf16 %v320
    %v338 = vunpack.c.l.bf16 %v324
    %v339 = vunpack.c.l.bf16 %v328
    %v340 = vunpack.c.l.bf16 %v332
    %v341 = vmul.f32 %v333, %v337
    %v342 = vmul.f32 %v334, %v338
    %v343 = vmul.f32 %v335, %v339
    %v344 = vmul.f32 %v336, %v340
    %v345 = vpack.c.bf16 %v342, %v341
    %v346 = vpack.c.bf16 %v344, %v343
    %v349 = vunpack.c.l.b16 %v183
    %v350 = vunpack.c.h.b16 %v183
    %v351 = vunpack.c.l.b16 %v184
    %v352 = vunpack.c.h.b16 %v184
    %v353 = vpack.c.b16 %v349, %v349
    %v354 = vpack.c.b16 %v350, %v350
    %v355 = vpack.c.b16 %v351, %v351
    %v356 = vpack.c.b16 %v352, %v352
    %v359 = vunpack.c.l.b16 %v233
    %v360 = vunpack.c.h.b16 %v233
    %v361 = vunpack.c.l.b16 %v234
    %v362 = vunpack.c.h.b16 %v234
    %v363 = vpack.c.b16 %v359, %v359
    %v364 = vpack.c.b16 %v360, %v360
    %v365 = vpack.c.b16 %v361, %v361
    %v366 = vpack.c.b16 %v362, %v362
    %v367 = vrot.slane %v363, 6
    %v368 = vrot.slane %v364, 6
    %v369 = vrot.slane %v365, 6
    %v370 = vrot.slane %v366, 6
    %v373 = vunpack.c.l.b16 %v295
    %v374 = vunpack.c.h.b16 %v295
    %v375 = vunpack.c.l.b16 %v296
    %v376 = vunpack.c.h.b16 %v296
    %v377 = vpack.c.b16 %v373, %v373
    %v378 = vpack.c.b16 %v374, %v374
    %v379 = vpack.c.b16 %v375, %v375
    %v380 = vpack.c.b16 %v376, %v376
    %v383 = vunpack.c.l.b16 %v345
    %v384 = vunpack.c.h.b16 %v345
    %v385 = vunpack.c.l.b16 %v346
    %v386 = vunpack.c.h.b16 %v346
    %v387 = vpack.c.b16 %v383, %v383
    %v388 = vpack.c.b16 %v384, %v384
    %v389 = vpack.c.b16 %v385, %v385
    %v390 = vpack.c.b16 %v386, %v386
    %v391 = vrot.slane %v387, 2
    %v392 = vrot.slane %v388, 2
    %v393 = vrot.slane %v389, 2
    %v394 = vrot.slane %v390, 2
    %vm395 = vcmask 1041408
    %v398 = vsel %vm395, %v353, %v367
    %v401 = vsel %vm395, %v354, %v368
    %v404 = vsel %vm395, %v355, %v369
    %v407 = vsel %vm395, %v356, %v370
    %v409 = vsel %vm53, %v398, %v377
    %v411 = vsel %vm53, %v401, %v378
    %v413 = vsel %vm53, %v404, %v379
    %v415 = vsel %vm53, %v407, %v380
    %vm416 = vcmask 1045504
    %v418 = vsel %vm416, %v409, %v391
    %v420 = vsel %vm416, %v411, %v392
    %v422 = vsel %vm416, %v413, %v393
    %v424 = vsel %vm416, %v415, %v394
    %v429 = vunpack.c.l.b16 %v418
    %v430 = vunpack.c.l.b16 %v420
    %v431 = vunpack.c.l.b16 %v422
    %v432 = vunpack.c.l.b16 %v424
    %v433 = vunpack.c.h.b16 %v418
    %v434 = vunpack.c.h.b16 %v420
    %v435 = vunpack.c.h.b16 %v422
    %v436 = vunpack.c.h.b16 %v424
    %v437 = vpack.c.b16 %v430, %v429
    %v438 = vpack.c.b16 %v432, %v431
    %v439 = vpack.c.b16 %v434, %v433
    %v440 = vpack.c.b16 %v436, %v435
    %445 = vst [vmem:[#allocation2] sm:$0xff] %v437
    %446 = vst [vmem:[#allocation2 + $0x8] sm:$0xff] %v438
    %447 = vst [vmem:[#allocation2 + $0x20] sm:$0xff] %v439
    %448 = vst [vmem:[#allocation2 + $0x28] sm:$0xff] %v440
    %449 = vrot.lane.b32.xlu0 %v115, 64
    %v450 = vpop.permute.xlu0 %449
    %451 = vrot.lane.b32.xlu0 %v122, 64
    %v452 = vpop.permute.xlu0 %451
    %453 = vrot.lane.b32.xlu0 %v123, 64
    %v454 = vpop.permute.xlu0 %453
    %455 = vrot.lane.b32.xlu0 %v124, 64
    %v456 = vpop.permute.xlu0 %455
    %vm457 = vcmask 523264
    %v458 = vsel %vm457, %v452, %v454
    %v459 = vsel %vm457, %v454, %v456
    %v460 = vsel %vm457, %v456, %v450
    %vm464 = vcmask 523264
    %v467 = vsel %vm464, %v450, %v452
    %v469 = vld [vmem:[#allocation6] sm:$0x44]
    %v470 = vld [vmem:[#allocation6 + $0x8] sm:$0x44]
    %v473 = vunpack.c.l.b16 %v469
    %v474 = vunpack.c.h.b16 %v469
    %v475 = vunpack.c.l.b16 %v470
    %v476 = vunpack.c.h.b16 %v470
    %v477 = vpack.c.b16 %v473, %v473
    %v478 = vpack.c.b16 %v474, %v474
    %v479 = vpack.c.b16 %v475, %v475
    %v480 = vpack.c.b16 %v476, %v476
    %v482 = vpack.i.b16 %v477, %v477
    %v484 = vperm.slane %v482, 2
    %v486 = vpack.i.b16 %v478, %v478
    %v488 = vperm.slane %v486, 2
    %v490 = vpack.i.b16 %v479, %v479
    %v492 = vperm.slane %v490, 2
    %v494 = vpack.i.b16 %v480, %v480
    %v496 = vperm.slane %v494, 2
    %v497 = vunpack.c.l.bf16 %v467
    %v498 = vunpack.c.l.bf16 %v458
    %v499 = vunpack.c.l.bf16 %v459
    %v500 = vunpack.c.l.bf16 %v460
    %v501 = vunpack.c.l.bf16 %v484
    %v502 = vunpack.c.l.bf16 %v488
    %v503 = vunpack.c.l.bf16 %v492
    %v504 = vunpack.c.l.bf16 %v496
    %v505 = vmul.f32 %v497, %v501
    %v506 = vmul.f32 %v498, %v502
    %v507 = vmul.f32 %v499, %v503
    %v508 = vmul.f32 %v500, %v504
    %v509 = vpack.c.bf16 %v506, %v505
    %v510 = vpack.c.bf16 %v508, %v507
    %511 = vrot.lane.b32.xlu0 %v115, 63
    %v512 = vpop.permute.xlu0 %511
    %513 = vrot.lane.b32.xlu0 %v122, 63
    %v514 = vpop.permute.xlu0 %513
    %515 = vrot.lane.b32.xlu0 %v123, 63
    %v516 = vpop.permute.xlu0 %515
    %517 = vrot.lane.b32.xlu0 %v124, 63
    %v518 = vpop.permute.xlu0 %517
    %vm519 = vcmask 515072
    %v520 = vsel %vm519, %v514, %v516
    %v521 = vsel %vm519, %v516, %v518
    %v522 = vsel %vm519, %v518, %v512
    %vm526 = vcmask 515072
    %v529 = vsel %vm526, %v512, %v514
    %v531 = vshrl.u32 %v477, 16
    %v532 = vpack.i.b16 %v531, %v531
    %v534 = vperm.slane %v532, 2
    %v535 = vshrl.u32 %v478, 16
    %v536 = vpack.i.b16 %v535, %v535
    %v538 = vperm.slane %v536, 2
    %v539 = vshrl.u32 %v479, 16
    %v540 = vpack.i.b16 %v539, %v539
    %v542 = vperm.slane %v540, 2
    %v543 = vshrl.u32 %v480, 16
    %v544 = vpack.i.b16 %v543, %v543
    %v546 = vperm.slane %v544, 2
    %v547 = vunpack.c.l.bf16 %v529
    %v548 = vunpack.c.l.bf16 %v520
    %v549 = vunpack.c.l.bf16 %v521
    %v550 = vunpack.c.l.bf16 %v522
    %v551 = vunpack.c.l.bf16 %v534
    %v552 = vunpack.c.l.bf16 %v538
    %v553 = vunpack.c.l.bf16 %v542
    %v554 = vunpack.c.l.bf16 %v546
    %v555 = vmul.f32 %v547, %v551
    %v556 = vmul.f32 %v548, %v552
    %v557 = vmul.f32 %v549, %v553
    %v558 = vmul.f32 %v550, %v554
    %v559 = vpack.c.bf16 %v556, %v555
    %v560 = vpack.c.bf16 %v558, %v557
    %561 = vrot.lane.b32.xlu0 %v115, 57
    %v562 = vpop.permute.xlu0 %561
    %563 = vrot.lane.b32.xlu0 %v122, 57
    %v564 = vpop.permute.xlu0 %563
    %565 = vrot.lane.b32.xlu0 %v123, 57
    %v566 = vpop.permute.xlu0 %565
    %567 = vrot.lane.b32.xlu0 %v124, 57
    %v568 = vpop.permute.xlu0 %567
    %vm569 = vcmask 465920
    %v570 = vsel %vm569, %v564, %v566
    %v571 = vsel %vm569, %v566, %v568
    %v572 = vsel %vm569, %v568, %v562
    %vm576 = vcmask 465920
    %v579 = vsel %vm576, %v562, %v564
    %v581 = vld [vmem:[#allocation6] sm:$0x88]
    %v582 = vld [vmem:[#allocation6 + $0x8] sm:$0x88]
    %v585 = vunpack.c.l.b16 %v581
    %v586 = vunpack.c.h.b16 %v581
    %v587 = vunpack.c.l.b16 %v582
    %v588 = vunpack.c.h.b16 %v582
    %v589 = vpack.c.b16 %v585, %v585
    %v590 = vpack.c.b16 %v586, %v586
    %v591 = vpack.c.b16 %v587, %v587
    %v592 = vpack.c.b16 %v588, %v588
    %v594 = vpack.i.b16 %v589, %v589
    %v596 = vperm.slane %v594, 3
    %v598 = vpack.i.b16 %v590, %v590
    %v600 = vperm.slane %v598, 3
    %v602 = vpack.i.b16 %v591, %v591
    %v604 = vperm.slane %v602, 3
    %v606 = vpack.i.b16 %v592, %v592
    %v608 = vperm.slane %v606, 3
    %v609 = vunpack.c.l.bf16 %v579
    %v610 = vunpack.c.l.bf16 %v570
    %v611 = vunpack.c.l.bf16 %v571
    %v612 = vunpack.c.l.bf16 %v572
    %v613 = vunpack.c.l.bf16 %v596
    %v614 = vunpack.c.l.bf16 %v600
    %v615 = vunpack.c.l.bf16 %v604
    %v616 = vunpack.c.l.bf16 %v608
    %v617 = vmul.f32 %v609, %v613
    %v618 = vmul.f32 %v610, %v614
    %v619 = vmul.f32 %v611, %v615
    %v620 = vmul.f32 %v612, %v616
    %v621 = vpack.c.bf16 %v618, %v617
    %v622 = vpack.c.bf16 %v620, %v619
    %623 = vrot.lane.b32.xlu0 %v115, 56
    %v624 = vpop.permute.xlu0 %623
    %625 = vrot.lane.b32.xlu0 %v122, 56
    %v626 = vpop.permute.xlu0 %625
    %627 = vrot.lane.b32.xlu0 %v123, 56
    %v628 = vpop.permute.xlu0 %627
    %629 = vrot.lane.b32.xlu0 %v124, 56
    %v630 = vpop.permute.xlu0 %629
    %vm631 = vcmask 457728
    %v632 = vsel %vm631, %v626, %v628
    %v633 = vsel %vm631, %v628, %v630
    %v634 = vsel %vm631, %v630, %v624
    %vm638 = vcmask 457728
    %v641 = vsel %vm638, %v624, %v626
    %v643 = vshrl.u32 %v589, 16
    %v644 = vpack.i.b16 %v643, %v643
    %v646 = vperm.slane %v644, 3
    %v647 = vshrl.u32 %v590, 16
    %v648 = vpack.i.b16 %v647, %v647
    %v650 = vperm.slane %v648, 3
    %v651 = vshrl.u32 %v591, 16
    %v652 = vpack.i.b16 %v651, %v651
    %v654 = vperm.slane %v652, 3
    %v655 = vshrl.u32 %v592, 16
    %v656 = vpack.i.b16 %v655, %v655
    %v658 = vperm.slane %v656, 3
    %v659 = vunpack.c.l.bf16 %v641
    %v660 = vunpack.c.l.bf16 %v632
    %v661 = vunpack.c.l.bf16 %v633
    %v662 = vunpack.c.l.bf16 %v634
    %v663 = vunpack.c.l.bf16 %v646
    %v664 = vunpack.c.l.bf16 %v650
    %v665 = vunpack.c.l.bf16 %v654
    %v666 = vunpack.c.l.bf16 %v658
    %v667 = vmul.f32 %v659, %v663
    %v668 = vmul.f32 %v660, %v664
    %v669 = vmul.f32 %v661, %v665
    %v670 = vmul.f32 %v662, %v666
    %v671 = vpack.c.bf16 %v668, %v667
    %v672 = vpack.c.bf16 %v670, %v669
    %v675 = vunpack.c.l.b16 %v509
    %v676 = vunpack.c.h.b16 %v509
    %v677 = vunpack.c.l.b16 %v510
    %v678 = vunpack.c.h.b16 %v510
    %v679 = vpack.c.b16 %v675, %v675
    %v680 = vpack.c.b16 %v676, %v676
    %v681 = vpack.c.b16 %v677, %v677
    %v682 = vpack.c.b16 %v678, %v678
    %v685 = vunpack.c.l.b16 %v559
    %v686 = vunpack.c.h.b16 %v559
    %v687 = vunpack.c.l.b16 %v560
    %v688 = vunpack.c.h.b16 %v560
    %v689 = vpack.c.b16 %v685, %v685
    %v690 = vpack.c.b16 %v686, %v686
    %v691 = vpack.c.b16 %v687, %v687
    %v692 = vpack.c.b16 %v688, %v688
    %v693 = vrot.slane %v689, 6
    %v694 = vrot.slane %v690, 6
    %v695 = vrot.slane %v691, 6
    %v696 = vrot.slane %v692, 6
    %v699 = vunpack.c.l.b16 %v621
    %v700 = vunpack.c.h.b16 %v621
    %v701 = vunpack.c.l.b16 %v622
    %v702 = vunpack.c.h.b16 %v622
    %v703 = vpack.c.b16 %v699, %v699
    %v704 = vpack.c.b16 %v700, %v700
    %v705 = vpack.c.b16 %v701, %v701
    %v706 = vpack.c.b16 %v702, %v702
    %v709 = vunpack.c.l.b16 %v671
    %v710 = vunpack.c.h.b16 %v671
    %v711 = vunpack.c.l.b16 %v672
    %v712 = vunpack.c.h.b16 %v672
    %v713 = vpack.c.b16 %v709, %v709
    %v714 = vpack.c.b16 %v710, %v710
    %v715 = vpack.c.b16 %v711, %v711
    %v716 = vpack.c.b16 %v712, %v712
    %v717 = vrot.slane %v713, 2
    %v718 = vrot.slane %v714, 2
    %v719 = vrot.slane %v715, 2
    %v720 = vrot.slane %v716, 2
    %v723 = vsel %vm395, %v679, %v693
    %v726 = vsel %vm395, %v680, %v694
    %v729 = vsel %vm395, %v681, %v695
    %v732 = vsel %vm395, %v682, %v696
    %v734 = vsel %vm53, %v723, %v703
    %v736 = vsel %vm53, %v726, %v704
    %v738 = vsel %vm53, %v729, %v705
    %v740 = vsel %vm53, %v732, %v706
    %v742 = vsel %vm416, %v734, %v717
    %v744 = vsel %vm416, %v736, %v718
    %v746 = vsel %vm416, %v738, %v719
    %v748 = vsel %vm416, %v740, %v720
    %v753 = vunpack.c.l.b16 %v742
    %v754 = vunpack.c.l.b16 %v744
    %v755 = vunpack.c.l.b16 %v746
    %v756 = vunpack.c.l.b16 %v748
    %v757 = vunpack.c.h.b16 %v742
    %v758 = vunpack.c.h.b16 %v744
    %v759 = vunpack.c.h.b16 %v746
    %v760 = vunpack.c.h.b16 %v748
    %v761 = vpack.c.b16 %v754, %v753
    %v762 = vpack.c.b16 %v756, %v755
    %v763 = vpack.c.b16 %v758, %v757
    %v764 = vpack.c.b16 %v760, %v759
    %769 = vst [vmem:[#allocation2 + $0x40] sm:$0xff] %v761
    %770 = vst [vmem:[#allocation2 + $0x48] sm:$0xff] %v762
    %771 = vst [vmem:[#allocation2 + $0x60] sm:$0xff] %v763
    %772 = vst [vmem:[#allocation2 + $0x68] sm:$0xff] %v764
    %773 = vrot.lane.b32.xlu0 %v115, 55
    %v774 = vpop.permute.xlu0 %773
    %775 = vrot.lane.b32.xlu0 %v122, 55
    %v776 = vpop.permute.xlu0 %775
    %777 = vrot.lane.b32.xlu0 %v123, 55
    %v778 = vpop.permute.xlu0 %777
    %779 = vrot.lane.b32.xlu0 %v124, 55
    %v780 = vpop.permute.xlu0 %779
    %vm781 = vcmask 449536
    %v782 = vsel %vm781, %v776, %v778
    %v783 = vsel %vm781, %v778, %v780
    %v784 = vsel %vm781, %v780, %v774
    %vm788 = vcmask 449536
    %v791 = vsel %vm788, %v774, %v776
    %v793 = vld [vmem:[#allocation6 + $0x10] sm:$0x11]
    %v794 = vld [vmem:[#allocation6 + $0x18] sm:$0x11]
    %v797 = vunpack.c.l.b16 %v793
    %v798 = vunpack.c.h.b16 %v793
    %v799 = vunpack.c.l.b16 %v794
    %v800 = vunpack.c.h.b16 %v794
    %v801 = vpack.c.b16 %v797, %v797
    %v802 = vpack.c.b16 %v798, %v798
    %v803 = vpack.c.b16 %v799, %v799
    %v804 = vpack.c.b16 %v800, %v800
    %v806 = vpack.i.b16 %v801, %v801
    %v808 = vperm.slane %v806, 0
    %v810 = vpack.i.b16 %v802, %v802
    %v812 = vperm.slane %v810, 0
    %v814 = vpack.i.b16 %v803, %v803
    %v816 = vperm.slane %v814, 0
    %v818 = vpack.i.b16 %v804, %v804
    %v820 = vperm.slane %v818, 0
    %v821 = vunpack.c.l.bf16 %v791
    %v822 = vunpack.c.l.bf16 %v782
    %v823 = vunpack.c.l.bf16 %v783
    %v824 = vunpack.c.l.bf16 %v784
    %v825 = vunpack.c.l.bf16 %v808
    %v826 = vunpack.c.l.bf16 %v812
    %v827 = vunpack.c.l.bf16 %v816
    %v828 = vunpack.c.l.bf16 %v820
    %v829 = vmul.f32 %v821, %v825
    %v830 = vmul.f32 %v822, %v826
    %v831 = vmul.f32 %v823, %v827
    %v832 = vmul.f32 %v824, %v828
    %v833 = vpack.c.bf16 %v830, %v829
    %v834 = vpack.c.bf16 %v832, %v831
    %835 = vrot.lane.b32.xlu0 %v115, 9
    %v836 = vpop.permute.xlu0 %835
    %837 = vrot.lane.b32.xlu0 %v122, 9
    %v838 = vpop.permute.xlu0 %837
    %839 = vrot.lane.b32.xlu0 %v123, 9
    %v840 = vpop.permute.xlu0 %839
    %841 = vrot.lane.b32.xlu0 %v124, 9
    %v842 = vpop.permute.xlu0 %841
    %vm843 = vcmask 72704
    %v844 = vsel %vm843, %v838, %v840
    %v845 = vsel %vm843, %v840, %v842
    %v846 = vsel %vm843, %v842, %v836
    %vm850 = vcmask 72704
    %v853 = vsel %vm850, %v836, %v838
    %v855 = vshrl.u32 %v801, 16
    %v856 = vpack.i.b16 %v855, %v855
    %v858 = vperm.slane %v856, 0
    %v859 = vshrl.u32 %v802, 16
    %v860 = vpack.i.b16 %v859, %v859
    %v862 = vperm.slane %v860, 0
    %v863 = vshrl.u32 %v803, 16
    %v864 = vpack.i.b16 %v863, %v863
    %v866 = vperm.slane %v864, 0
    %v867 = vshrl.u32 %v804, 16
    %v868 = vpack.i.b16 %v867, %v867
    %v870 = vperm.slane %v868, 0
    %v871 = vunpack.c.l.bf16 %v853
    %v872 = vunpack.c.l.bf16 %v844
    %v873 = vunpack.c.l.bf16 %v845
    %v874 = vunpack.c.l.bf16 %v846
    %v875 = vunpack.c.l.bf16 %v858
    %v876 = vunpack.c.l.bf16 %v862
    %v877 = vunpack.c.l.bf16 %v866
    %v878 = vunpack.c.l.bf16 %v870
    %v879 = vmul.f32 %v871, %v875
    %v880 = vmul.f32 %v872, %v876
    %v881 = vmul.f32 %v873, %v877
    %v882 = vmul.f32 %v874, %v878
    %v883 = vpack.c.bf16 %v880, %v879
    %v884 = vpack.c.bf16 %v882, %v881
    %885 = vrot.lane.b32.xlu0 %v115, 8
    %v886 = vpop.permute.xlu0 %885
    %887 = vrot.lane.b32.xlu0 %v122, 8
    %v888 = vpop.permute.xlu0 %887
    %889 = vrot.lane.b32.xlu0 %v123, 8
    %v890 = vpop.permute.xlu0 %889
    %891 = vrot.lane.b32.xlu0 %v124, 8
    %v892 = vpop.permute.xlu0 %891
    %vm893 = vcmask 64512
    %v894 = vsel %vm893, %v888, %v890
    %v895 = vsel %vm893, %v890, %v892
    %v896 = vsel %vm893, %v892, %v886
    %vm900 = vcmask 64512
    %v903 = vsel %vm900, %v886, %v888
    %v905 = vld [vmem:[#allocation6 + $0x10] sm:$0x22]
    %v906 = vld [vmem:[#allocation6 + $0x18] sm:$0x22]
    %v909 = vunpack.c.l.b16 %v905
    %v910 = vunpack.c.h.b16 %v905
    %v911 = vunpack.c.l.b16 %v906
    %v912 = vunpack.c.h.b16 %v906
    %v913 = vpack.c.b16 %v909, %v909
    %v914 = vpack.c.b16 %v910, %v910
    %v915 = vpack.c.b16 %v911, %v911
    %v916 = vpack.c.b16 %v912, %v912
    %v918 = vpack.i.b16 %v913, %v913
    %v920 = vperm.slane %v918, 1
    %v922 = vpack.i.b16 %v914, %v914
    %v924 = vperm.slane %v922, 1
    %v926 = vpack.i.b16 %v915, %v915
    %v928 = vperm.slane %v926, 1
    %v930 = vpack.i.b16 %v916, %v916
    %v932 = vperm.slane %v930, 1
    %v933 = vunpack.c.l.bf16 %v903
    %v934 = vunpack.c.l.bf16 %v894
    %v935 = vunpack.c.l.bf16 %v895
    %v936 = vunpack.c.l.bf16 %v896
    %v937 = vunpack.c.l.bf16 %v920
    %v938 = vunpack.c.l.bf16 %v924
    %v939 = vunpack.c.l.bf16 %v928
    %v940 = vunpack.c.l.bf16 %v932
    %v941 = vmul.f32 %v933, %v937
    %v942 = vmul.f32 %v934, %v938
    %v943 = vmul.f32 %v935, %v939
    %v944 = vmul.f32 %v936, %v940
    %v945 = vpack.c.bf16 %v942, %v941
    %v946 = vpack.c.bf16 %v944, %v943
    %947 = vrot.lane.b32.xlu0 %v115, 7
    %v948 = vpop.permute.xlu0 %947
    %949 = vrot.lane.b32.xlu0 %v122, 7
    %v950 = vpop.permute.xlu0 %949
    %951 = vrot.lane.b32.xlu0 %v123, 7
    %v952 = vpop.permute.xlu0 %951
    %953 = vrot.lane.b32.xlu0 %v124, 7
    %v954 = vpop.permute.xlu0 %953
    %vm955 = vcmask 56320
    %v956 = vsel %vm955, %v950, %v952
    %v957 = vsel %vm955, %v952, %v954
    %v958 = vsel %vm955, %v954, %v948
    %vm962 = vcmask 56320
    %v965 = vsel %vm962, %v948, %v950
    %v967 = vshrl.u32 %v913, 16
    %v968 = vpack.i.b16 %v967, %v967
    %v970 = vperm.slane %v968, 1
    %v971 = vshrl.u32 %v914, 16
    %v972 = vpack.i.b16 %v971, %v971
    %v974 = vperm.slane %v972, 1
    %v975 = vshrl.u32 %v915, 16
    %v976 = vpack.i.b16 %v975, %v975
    %v978 = vperm.slane %v976, 1
    %v979 = vshrl.u32 %v916, 16
    %v980 = vpack.i.b16 %v979, %v979
    %v982 = vperm.slane %v980, 1
    %v983 = vunpack.c.l.bf16 %v965
    %v984 = vunpack.c.l.bf16 %v956
    %v985 = vunpack.c.l.bf16 %v957
    %v986 = vunpack.c.l.bf16 %v958
    %v987 = vunpack.c.l.bf16 %v970
    %v988 = vunpack.c.l.bf16 %v974
    %v989 = vunpack.c.l.bf16 %v978
    %v990 = vunpack.c.l.bf16 %v982
    %v991 = vmul.f32 %v983, %v987
    %v992 = vmul.f32 %v984, %v988
    %v993 = vmul.f32 %v985, %v989
    %v994 = vmul.f32 %v986, %v990
    %v995 = vpack.c.bf16 %v992, %v991
    %v996 = vpack.c.bf16 %v994, %v993
    %v999 = vunpack.c.l.b16 %v833
    %v1000 = vunpack.c.h.b16 %v833
    %v1001 = vunpack.c.l.b16 %v834
    %v1002 = vunpack.c.h.b16 %v834
    %v1003 = vpack.c.b16 %v999, %v999
    %v1004 = vpack.c.b16 %v1000, %v1000
    %v1005 = vpack.c.b16 %v1001, %v1001
    %v1006 = vpack.c.b16 %v1002, %v1002
    %v1009 = vunpack.c.l.b16 %v883
    %v1010 = vunpack.c.h.b16 %v883
    %v1011 = vunpack.c.l.b16 %v884
    %v1012 = vunpack.c.h.b16 %v884
    %v1013 = vpack.c.b16 %v1009, %v1009
    %v1014 = vpack.c.b16 %v1010, %v1010
    %v1015 = vpack.c.b16 %v1011, %v1011
    %v1016 = vpack.c.b16 %v1012, %v1012
    %v1017 = vrot.slane %v1013, 6
    %v1018 = vrot.slane %v1014, 6
    %v1019 = vrot.slane %v1015, 6
    %v1020 = vrot.slane %v1016, 6
    %v1023 = vunpack.c.l.b16 %v945
    %v1024 = vunpack.c.h.b16 %v945
    %v1025 = vunpack.c.l.b16 %v946
    %v1026 = vunpack.c.h.b16 %v946
    %v1027 = vpack.c.b16 %v1023, %v1023
    %v1028 = vpack.c.b16 %v1024, %v1024
    %v1029 = vpack.c.b16 %v1025, %v1025
    %v1030 = vpack.c.b16 %v1026, %v1026
    %v1033 = vunpack.c.l.b16 %v995
    %v1034 = vunpack.c.h.b16 %v995
    %v1035 = vunpack.c.l.b16 %v996
    %v1036 = vunpack.c.h.b16 %v996
    %v1037 = vpack.c.b16 %v1033, %v1033
    %v1038 = vpack.c.b16 %v1034, %v1034
    %v1039 = vpack.c.b16 %v1035, %v1035
    %v1040 = vpack.c.b16 %v1036, %v1036
    %v1041 = vrot.slane %v1037, 2
    %v1042 = vrot.slane %v1038, 2
    %v1043 = vrot.slane %v1039, 2
    %v1044 = vrot.slane %v1040, 2
    %v1047 = vsel %vm395, %v1003, %v1017
    %v1050 = vsel %vm395, %v1004, %v1018
    %v1053 = vsel %vm395, %v1005, %v1019
    %v1056 = vsel %vm395, %v1006, %v1020
    %v1058 = vsel %vm53, %v1047, %v1027
    %v1060 = vsel %vm53, %v1050, %v1028
    %v1062 = vsel %vm53, %v1053, %v1029
    %v1064 = vsel %vm53, %v1056, %v1030
    %v1066 = vsel %vm416, %v1058, %v1041
    %v1068 = vsel %vm416, %v1060, %v1042
    %v1070 = vsel %vm416, %v1062, %v1043
    %v1072 = vsel %vm416, %v1064, %v1044
    %v1077 = vunpack.c.l.b16 %v1066
    %v1078 = vunpack.c.l.b16 %v1068
    %v1079 = vunpack.c.l.b16 %v1070
    %v1080 = vunpack.c.l.b16 %v1072
    %v1081 = vunpack.c.h.b16 %v1066
    %v1082 = vunpack.c.h.b16 %v1068
    %v1083 = vunpack.c.h.b16 %v1070
    %v1084 = vunpack.c.h.b16 %v1072
    %v1085 = vpack.c.b16 %v1078, %v1077
    %v1086 = vpack.c.b16 %v1080, %v1079
    %v1087 = vpack.c.b16 %v1082, %v1081
    %v1088 = vpack.c.b16 %v1084, %v1083
    %1093 = vst [vmem:[#allocation2 + $0x80] sm:$0xff] %v1085
    %1094 = vst [vmem:[#allocation2 + $0x88] sm:$0xff] %v1086
    %1095 = vst [vmem:[#allocation2 + $0xa0] sm:$0xff] %v1087
    %1096 = vst [vmem:[#allocation2 + $0xa8] sm:$0xff] %v1088
    %1097 = vrot.lane.b32.xlu0 %v115, 1
    %v1098 = vpop.permute.xlu0 %1097
    %1099 = vrot.lane.b32.xlu0 %v122, 1
    %v1100 = vpop.permute.xlu0 %1099
    %1101 = vrot.lane.b32.xlu0 %v123, 1
    %v1102 = vpop.permute.xlu0 %1101
    %1103 = vrot.lane.b32.xlu0 %v124, 1
    %v1104 = vpop.permute.xlu0 %1103
    %vm1105 = vcmask 7168
    %v1106 = vsel %vm1105, %v1100, %v1102
    %v1107 = vsel %vm1105, %v1102, %v1104
    %v1108 = vsel %vm1105, %v1104, %v1098
    %vm1112 = vcmask 7168
    %v1115 = vsel %vm1112, %v1098, %v1100
    %v1117 = vld [vmem:[#allocation6 + $0x10] sm:$0x44]
    %v1118 = vld [vmem:[#allocation6 + $0x18] sm:$0x44]
    %v1121 = vunpack.c.l.b16 %v1117
    %v1122 = vunpack.c.h.b16 %v1117
    %v1123 = vunpack.c.l.b16 %v1118
    %v1124 = vunpack.c.h.b16 %v1118
    %v1125 = vpack.c.b16 %v1121, %v1121
    %v1126 = vpack.c.b16 %v1122, %v1122
    %v1127 = vpack.c.b16 %v1123, %v1123
    %v1128 = vpack.c.b16 %v1124, %v1124
    %v1130 = vpack.i.b16 %v1125, %v1125
    %v1132 = vperm.slane %v1130, 2
    %v1134 = vpack.i.b16 %v1126, %v1126
    %v1136 = vperm.slane %v1134, 2
    %v1138 = vpack.i.b16 %v1127, %v1127
    %v1140 = vperm.slane %v1138, 2
    %v1142 = vpack.i.b16 %v1128, %v1128
    %v1144 = vperm.slane %v1142, 2
    %v1145 = vunpack.c.l.bf16 %v1115
    %v1146 = vunpack.c.l.bf16 %v1106
    %v1147 = vunpack.c.l.bf16 %v1107
    %v1148 = vunpack.c.l.bf16 %v1108
    %v1149 = vunpack.c.l.bf16 %v1132
    %v1150 = vunpack.c.l.bf16 %v1136
    %v1151 = vunpack.c.l.bf16 %v1140
    %v1152 = vunpack.c.l.bf16 %v1144
    %v1153 = vmul.f32 %v1145, %v1149
    %v1154 = vmul.f32 %v1146, %v1150
    %v1155 = vmul.f32 %v1147, %v1151
    %v1156 = vmul.f32 %v1148, %v1152
    %v1157 = vpack.c.bf16 %v1154, %v1153
    %v1158 = vpack.c.bf16 %v1156, %v1155
    %v1159 = vshrl.u32 %v1125, 16
    %v1160 = vpack.i.b16 %v1159, %v1159
    %v1162 = vperm.slane %v1160, 2
    %v1163 = vshrl.u32 %v1126, 16
    %v1164 = vpack.i.b16 %v1163, %v1163
    %v1166 = vperm.slane %v1164, 2
    %v1167 = vshrl.u32 %v1127, 16
    %v1168 = vpack.i.b16 %v1167, %v1167
    %v1170 = vperm.slane %v1168, 2
    %v1171 = vshrl.u32 %v1128, 16
    %v1172 = vpack.i.b16 %v1171, %v1171
    %v1174 = vperm.slane %v1172, 2
    %v1175 = vunpack.c.l.bf16 %v111
    %v1176 = vunpack.c.h.bf16 %v111
    %v1177 = vunpack.c.l.bf16 %v112
    %v1178 = vunpack.c.h.bf16 %v112
    %v1179 = vunpack.c.l.bf16 %v1162
    %v1180 = vunpack.c.l.bf16 %v1166
    %v1181 = vunpack.c.l.bf16 %v1170
    %v1182 = vunpack.c.l.bf16 %v1174
    %v1183 = vmul.f32 %v1175, %v1179
    %v1184 = vmul.f32 %v1176, %v1180
    %v1185 = vmul.f32 %v1177, %v1181
    %v1186 = vmul.f32 %v1178, %v1182
    %v1187 = vpack.c.bf16 %v1184, %v1183
    %v1188 = vpack.c.bf16 %v1186, %v1185
    %1189 = vrot.lane.b32.xlu0 %v122, 127
    %v1190 = vpop.permute.xlu0 %1189
    %1191 = vrot.lane.b32.xlu0 %v123, 127
    %v1192 = vpop.permute.xlu0 %1191
    %1193 = vrot.lane.b32.xlu0 %v124, 127
    %v1194 = vpop.permute.xlu0 %1193
    %1195 = vrot.lane.b32.xlu0 %v115, 127
    %v1196 = vpop.permute.xlu0 %1195
    %vm1197 = vcmask 1039360
    %v1198 = vsel %vm1197, %v1190, %v1192
    %v1199 = vsel %vm1197, %v1192, %v1194
    %v1200 = vsel %vm1197, %v1194, %v1196
    %vm1204 = vcmask 1039360
    %v1207 = vsel %vm1204, %v1196, %v1190
    %v1209 = vld [vmem:[#allocation6 + $0x10] sm:$0x88]
    %v1210 = vld [vmem:[#allocation6 + $0x18] sm:$0x88]
    %v1213 = vunpack.c.l.b16 %v1209
    %v1214 = vunpack.c.h.b16 %v1209
    %v1215 = vunpack.c.l.b16 %v1210
    %v1216 = vunpack.c.h.b16 %v1210
    %v1217 = vpack.c.b16 %v1213, %v1213
    %v1218 = vpack.c.b16 %v1214, %v1214
    %v1219 = vpack.c.b16 %v1215, %v1215
    %v1220 = vpack.c.b16 %v1216, %v1216
    %v1222 = vpack.i.b16 %v1217, %v1217
    %v1224 = vperm.slane %v1222, 3
    %v1226 = vpack.i.b16 %v1218, %v1218
    %v1228 = vperm.slane %v1226, 3
    %v1230 = vpack.i.b16 %v1219, %v1219
    %v1232 = vperm.slane %v1230, 3
    %v1234 = vpack.i.b16 %v1220, %v1220
    %v1236 = vperm.slane %v1234, 3
    %v1237 = vunpack.c.l.bf16 %v1198
    %v1238 = vunpack.c.l.bf16 %v1199
    %v1239 = vunpack.c.l.bf16 %v1200
    %v1240 = vunpack.c.l.bf16 %v1207
    %v1241 = vunpack.c.l.bf16 %v1224
    %v1242 = vunpack.c.l.bf16 %v1228
    %v1243 = vunpack.c.l.bf16 %v1232
    %v1244 = vunpack.c.l.bf16 %v1236
    %v1245 = vmul.f32 %v1237, %v1241
    %v1246 = vmul.f32 %v1238, %v1242
    %v1247 = vmul.f32 %v1239, %v1243
    %v1248 = vmul.f32 %v1240, %v1244
    %v1249 = vpack.c.bf16 %v1246, %v1245
    %v1250 = vpack.c.bf16 %v1248, %v1247
    %1251 = vrot.lane.b32.xlu0 %v122, 121
    %v1252 = vpop.permute.xlu0 %1251
    %1253 = vrot.lane.b32.xlu0 %v123, 121
    %v1254 = vpop.permute.xlu0 %1253
    %1255 = vrot.lane.b32.xlu0 %v124, 121
    %v1256 = vpop.permute.xlu0 %1255
    %1257 = vrot.lane.b32.xlu0 %v115, 121
    %v1258 = vpop.permute.xlu0 %1257
    %vm1259 = vcmask 990208
    %v1260 = vsel %vm1259, %v1252, %v1254
    %v1261 = vsel %vm1259, %v1254, %v1256
    %v1262 = vsel %vm1259, %v1256, %v1258
    %vm1266 = vcmask 990208
    %v1269 = vsel %vm1266, %v1258, %v1252
    %v1271 = vshrl.u32 %v1217, 16
    %v1272 = vpack.i.b16 %v1271, %v1271
    %v1274 = vperm.slane %v1272, 3
    %v1275 = vshrl.u32 %v1218, 16
    %v1276 = vpack.i.b16 %v1275, %v1275
    %v1278 = vperm.slane %v1276, 3
    %v1279 = vshrl.u32 %v1219, 16
    %v1280 = vpack.i.b16 %v1279, %v1279
    %v1282 = vperm.slane %v1280, 3
    %v1283 = vshrl.u32 %v1220, 16
    %v1284 = vpack.i.b16 %v1283, %v1283
    %v1286 = vperm.slane %v1284, 3
    %v1287 = vunpack.c.l.bf16 %v1260
    %v1288 = vunpack.c.l.bf16 %v1261
    %v1289 = vunpack.c.l.bf16 %v1262
    %v1290 = vunpack.c.l.bf16 %v1269
    %v1291 = vunpack.c.l.bf16 %v1274
    %v1292 = vunpack.c.l.bf16 %v1278
    %v1293 = vunpack.c.l.bf16 %v1282
    %v1294 = vunpack.c.l.bf16 %v1286
    %v1295 = vmul.f32 %v1287, %v1291
    %v1296 = vmul.f32 %v1288, %v1292
    %v1297 = vmul.f32 %v1289, %v1293
    %v1298 = vmul.f32 %v1290, %v1294
    %v1299 = vpack.c.bf16 %v1296, %v1295
    %v1300 = vpack.c.bf16 %v1298, %v1297
    %v1303 = vunpack.c.l.b16 %v1157
    %v1304 = vunpack.c.h.b16 %v1157
    %v1305 = vunpack.c.l.b16 %v1158
    %v1306 = vunpack.c.h.b16 %v1158
    %v1307 = vpack.c.b16 %v1303, %v1303
    %v1308 = vpack.c.b16 %v1304, %v1304
    %v1309 = vpack.c.b16 %v1305, %v1305
    %v1310 = vpack.c.b16 %v1306, %v1306
    %v1313 = vunpack.c.l.b16 %v1187
    %v1314 = vunpack.c.h.b16 %v1187
    %v1315 = vunpack.c.l.b16 %v1188
    %v1316 = vunpack.c.h.b16 %v1188
    %v1317 = vpack.c.b16 %v1313, %v1313
    %v1318 = vpack.c.b16 %v1314, %v1314
    %v1319 = vpack.c.b16 %v1315, %v1315
    %v1320 = vpack.c.b16 %v1316, %v1316
    %v1321 = vrot.slane %v1317, 6
    %v1322 = vrot.slane %v1318, 6
    %v1323 = vrot.slane %v1319, 6
    %v1324 = vrot.slane %v1320, 6
    %v1327 = vunpack.c.l.b16 %v1249
    %v1328 = vunpack.c.h.b16 %v1249
    %v1329 = vunpack.c.l.b16 %v1250
    %v1330 = vunpack.c.h.b16 %v1250
    %v1331 = vpack.c.b16 %v1327, %v1327
    %v1332 = vpack.c.b16 %v1328, %v1328
    %v1333 = vpack.c.b16 %v1329, %v1329
    %v1334 = vpack.c.b16 %v1330, %v1330
    %v1337 = vunpack.c.l.b16 %v1299
    %v1338 = vunpack.c.h.b16 %v1299
    %v1339 = vunpack.c.l.b16 %v1300
    %v1340 = vunpack.c.h.b16 %v1300
    %v1341 = vpack.c.b16 %v1337, %v1337
    %v1342 = vpack.c.b16 %v1338, %v1338
    %v1343 = vpack.c.b16 %v1339, %v1339
    %v1344 = vpack.c.b16 %v1340, %v1340
    %v1345 = vrot.slane %v1341, 2
    %v1346 = vrot.slane %v1342, 2
    %v1347 = vrot.slane %v1343, 2
    %v1348 = vrot.slane %v1344, 2
    %v1351 = vsel %vm395, %v1307, %v1321
    %v1354 = vsel %vm395, %v1308, %v1322
    %v1357 = vsel %vm395, %v1309, %v1323
    %v1360 = vsel %vm395, %v1310, %v1324
    %v1362 = vsel %vm53, %v1351, %v1331
    %v1364 = vsel %vm53, %v1354, %v1332
    %v1366 = vsel %vm53, %v1357, %v1333
    %v1368 = vsel %vm53, %v1360, %v1334
    %v1370 = vsel %vm416, %v1362, %v1345
    %v1372 = vsel %vm416, %v1364, %v1346
    %v1374 = vsel %vm416, %v1366, %v1347
    %v1376 = vsel %vm416, %v1368, %v1348
    %v1381 = vunpack.c.l.b16 %v1370
    %v1382 = vunpack.c.l.b16 %v1372
    %v1383 = vunpack.c.l.b16 %v1374
    %v1384 = vunpack.c.l.b16 %v1376
    %v1385 = vunpack.c.h.b16 %v1370
    %v1386 = vunpack.c.h.b16 %v1372
    %v1387 = vunpack.c.h.b16 %v1374
    %v1388 = vunpack.c.h.b16 %v1376
    %v1389 = vpack.c.b16 %v1382, %v1381
    %v1390 = vpack.c.b16 %v1384, %v1383
    %v1391 = vpack.c.b16 %v1386, %v1385
    %v1392 = vpack.c.b16 %v1388, %v1387
    %1397 = vst [vmem:[#allocation2 + $0xc0] sm:$0xff] %v1389
    %1398 = vst [vmem:[#allocation2 + $0xc8] sm:$0xff] %v1390
    %1399 = vst [vmem:[#allocation2 + $0xe0] sm:$0xff] %v1391
    %1400 = vst [vmem:[#allocation2 + $0xe8] sm:$0xff] %v1392
    %1401 = vrot.lane.b32.xlu0 %v122, 120
    %v1402 = vpop.permute.xlu0 %1401
    %1403 = vrot.lane.b32.xlu0 %v123, 120
    %v1404 = vpop.permute.xlu0 %1403
    %1405 = vrot.lane.b32.xlu0 %v124, 120
    %v1406 = vpop.permute.xlu0 %1405
    %1407 = vrot.lane.b32.xlu0 %v115, 120
    %v1408 = vpop.permute.xlu0 %1407
    %vm1409 = vcmask 982016
    %v1410 = vsel %vm1409, %v1402, %v1404
    %v1411 = vsel %vm1409, %v1404, %v1406
    %v1412 = vsel %vm1409, %v1406, %v1408
    %vm1416 = vcmask 982016
    %v1419 = vsel %vm1416, %v1408, %v1402
    %v1421 = vld [vmem:[#allocation6 + $0x20] sm:$0x11]
    %v1422 = vld [vmem:[#allocation6 + $0x28] sm:$0x11]
    %v1425 = vunpack.c.l.b16 %v1421
    %v1426 = vunpack.c.h.b16 %v1421
    %v1427 = vunpack.c.l.b16 %v1422
    %v1428 = vunpack.c.h.b16 %v1422
    %v1429 = vpack.c.b16 %v1425, %v1425
    %v1430 = vpack.c.b16 %v1426, %v1426
    %v1431 = vpack.c.b16 %v1427, %v1427
    %v1432 = vpack.c.b16 %v1428, %v1428
    %v1434 = vpack.i.b16 %v1429, %v1429
    %v1436 = vperm.slane %v1434, 0
    %v1438 = vpack.i.b16 %v1430, %v1430
    %v1440 = vperm.slane %v1438, 0
    %v1442 = vpack.i.b16 %v1431, %v1431
    %v1444 = vperm.slane %v1442, 0
    %v1446 = vpack.i.b16 %v1432, %v1432
    %v1448 = vperm.slane %v1446, 0
    %v1449 = vunpack.c.l.bf16 %v1410
    %v1450 = vunpack.c.l.bf16 %v1411
    %v1451 = vunpack.c.l.bf16 %v1412
    %v1452 = vunpack.c.l.bf16 %v1419
    %v1453 = vunpack.c.l.bf16 %v1436
    %v1454 = vunpack.c.l.bf16 %v1440
    %v1455 = vunpack.c.l.bf16 %v1444
    %v1456 = vunpack.c.l.bf16 %v1448
    %v1457 = vmul.f32 %v1449, %v1453
    %v1458 = vmul.f32 %v1450, %v1454
    %v1459 = vmul.f32 %v1451, %v1455
    %v1460 = vmul.f32 %v1452, %v1456
    %v1461 = vpack.c.bf16 %v1458, %v1457
    %v1462 = vpack.c.bf16 %v1460, %v1459
    %1463 = vrot.lane.b32.xlu0 %v122, 119
    %v1464 = vpop.permute.xlu0 %1463
    %1465 = vrot.lane.b32.xlu0 %v123, 119
    %v1466 = vpop.permute.xlu0 %1465
    %1467 = vrot.lane.b32.xlu0 %v124, 119
    %v1468 = vpop.permute.xlu0 %1467
    %1469 = vrot.lane.b32.xlu0 %v115, 119
    %v1470 = vpop.permute.xlu0 %1469
    %vm1471 = vcmask 973824
    %v1472 = vsel %vm1471, %v1464, %v1466
    %v1473 = vsel %vm1471, %v1466, %v1468
    %v1474 = vsel %vm1471, %v1468, %v1470
    %vm1478 = vcmask 973824
    %v1481 = vsel %vm1478, %v1470, %v1464
    %v1483 = vshrl.u32 %v1429, 16
    %v1484 = vpack.i.b16 %v1483, %v1483
    %v1486 = vperm.slane %v1484, 0
    %v1487 = vshrl.u32 %v1430, 16
    %v1488 = vpack.i.b16 %v1487, %v1487
    %v1490 = vperm.slane %v1488, 0
    %v1491 = vshrl.u32 %v1431, 16
    %v1492 = vpack.i.b16 %v1491, %v1491
    %v1494 = vperm.slane %v1492, 0
    %v1495 = vshrl.u32 %v1432, 16
    %v1496 = vpack.i.b16 %v1495, %v1495
    %v1498 = vperm.slane %v1496, 0
    %v1499 = vunpack.c.l.bf16 %v1472
    %v1500 = vunpack.c.l.bf16 %v1473
    %v1501 = vunpack.c.l.bf16 %v1474
    %v1502 = vunpack.c.l.bf16 %v1481
    %v1503 = vunpack.c.l.bf16 %v1486
    %v1504 = vunpack.c.l.bf16 %v1490
    %v1505 = vunpack.c.l.bf16 %v1494
    %v1506 = vunpack.c.l.bf16 %v1498
    %v1507 = vmul.f32 %v1499, %v1503
    %v1508 = vmul.f32 %v1500, %v1504
    %v1509 = vmul.f32 %v1501, %v1505
    %v1510 = vmul.f32 %v1502, %v1506
    %v1511 = vpack.c.bf16 %v1508, %v1507
    %v1512 = vpack.c.bf16 %v1510, %v1509
    %v1513 = vld [vmem:[#allocation6 + $0x20] sm:$0x22]
    %v1514 = vld [vmem:[#allocation6 + $0x28] sm:$0x22]
    %v1517 = vunpack.c.l.b16 %v1513
    %v1518 = vunpack.c.h.b16 %v1513
    %v1519 = vunpack.c.l.b16 %v1514
    %v1520 = vunpack.c.h.b16 %v1514
    %v1521 = vpack.c.b16 %v1517, %v1517
    %v1522 = vpack.c.b16 %v1518, %v1518
    %v1523 = vpack.c.b16 %v1519, %v1519
    %v1524 = vpack.c.b16 %v1520, %v1520
    %v1526 = vpack.i.b16 %v1521, %v1521
    %v1528 = vperm.slane %v1526, 1
    %v1530 = vpack.i.b16 %v1522, %v1522
    %v1532 = vperm.slane %v1530, 1
    %v1534 = vpack.i.b16 %v1523, %v1523
    %v1536 = vperm.slane %v1534, 1
    %v1538 = vpack.i.b16 %v1524, %v1524
    %v1540 = vperm.slane %v1538, 1
    %v1541 = vunpack.c.l.bf16 %v1528
    %v1542 = vunpack.c.l.bf16 %v1532
    %v1543 = vunpack.c.l.bf16 %v1536
    %v1544 = vunpack.c.l.bf16 %v1540
    %v1545 = vmul.f32 %v172, %v1541
    %v1546 = vmul.f32 %v173, %v1542
    %v1547 = vmul.f32 %v174, %v1543
    %v1548 = vmul.f32 %v171, %v1544
    %v1549 = vpack.c.bf16 %v1546, %v1545
    %v1550 = vpack.c.bf16 %v1548, %v1547
    %v1551 = vshrl.u32 %v1521, 16
    %v1552 = vpack.i.b16 %v1551, %v1551
    %v1554 = vperm.slane %v1552, 1
    %v1555 = vshrl.u32 %v1522, 16
    %v1556 = vpack.i.b16 %v1555, %v1555
    %v1558 = vperm.slane %v1556, 1
    %v1559 = vshrl.u32 %v1523, 16
    %v1560 = vpack.i.b16 %v1559, %v1559
    %v1562 = vperm.slane %v1560, 1
    %v1563 = vshrl.u32 %v1524, 16
    %v1564 = vpack.i.b16 %v1563, %v1563
    %v1566 = vperm.slane %v1564, 1
    %v1567 = vunpack.c.l.bf16 %v1554
    %v1568 = vunpack.c.l.bf16 %v1558
    %v1569 = vunpack.c.l.bf16 %v1562
    %v1570 = vunpack.c.l.bf16 %v1566
    %v1571 = vmul.f32 %v222, %v1567
    %v1572 = vmul.f32 %v223, %v1568
    %v1573 = vmul.f32 %v224, %v1569
    %v1574 = vmul.f32 %v221, %v1570
    %v1575 = vpack.c.bf16 %v1572, %v1571
    %v1576 = vpack.c.bf16 %v1574, %v1573
    %v1579 = vunpack.c.l.b16 %v1461
    %v1580 = vunpack.c.h.b16 %v1461
    %v1581 = vunpack.c.l.b16 %v1462
    %v1582 = vunpack.c.h.b16 %v1462
    %v1583 = vpack.c.b16 %v1579, %v1579
    %v1584 = vpack.c.b16 %v1580, %v1580
    %v1585 = vpack.c.b16 %v1581, %v1581
    %v1586 = vpack.c.b16 %v1582, %v1582
    %v1589 = vunpack.c.l.b16 %v1511
    %v1590 = vunpack.c.h.b16 %v1511
    %v1591 = vunpack.c.l.b16 %v1512
    %v1592 = vunpack.c.h.b16 %v1512
    %v1593 = vpack.c.b16 %v1589, %v1589
    %v1594 = vpack.c.b16 %v1590, %v1590
    %v1595 = vpack.c.b16 %v1591, %v1591
    %v1596 = vpack.c.b16 %v1592, %v1592
    %v1597 = vrot.slane %v1593, 6
    %v1598 = vrot.slane %v1594, 6
    %v1599 = vrot.slane %v1595, 6
    %v1600 = vrot.slane %v1596, 6
    %v1603 = vunpack.c.l.b16 %v1549
    %v1604 = vunpack.c.h.b16 %v1549
    %v1605 = vunpack.c.l.b16 %v1550
    %v1606 = vunpack.c.h.b16 %v1550
    %v1607 = vpack.c.b16 %v1603, %v1603
    %v1608 = vpack.c.b16 %v1604, %v1604
    %v1609 = vpack.c.b16 %v1605, %v1605
    %v1610 = vpack.c.b16 %v1606, %v1606
    %v1613 = vunpack.c.l.b16 %v1575
    %v1614 = vunpack.c.h.b16 %v1575
    %v1615 = vunpack.c.l.b16 %v1576
    %v1616 = vunpack.c.h.b16 %v1576
    %v1617 = vpack.c.b16 %v1613, %v1613
    %v1618 = vpack.c.b16 %v1614, %v1614
    %v1619 = vpack.c.b16 %v1615, %v1615
    %v1620 = vpack.c.b16 %v1616, %v1616
    %v1621 = vrot.slane %v1617, 2
    %v1622 = vrot.slane %v1618, 2
    %v1623 = vrot.slane %v1619, 2
    %v1624 = vrot.slane %v1620, 2
    %v1627 = vsel %vm395, %v1583, %v1597
    %v1630 = vsel %vm395, %v1584, %v1598
    %v1633 = vsel %vm395, %v1585, %v1599
    %v1636 = vsel %vm395, %v1586, %v1600
    %v1638 = vsel %vm53, %v1627, %v1607
    %v1640 = vsel %vm53, %v1630, %v1608
    %v1642 = vsel %vm53, %v1633, %v1609
    %v1644 = vsel %vm53, %v1636, %v1610
    %v1646 = vsel %vm416, %v1638, %v1621
    %v1648 = vsel %vm416, %v1640, %v1622
    %v1650 = vsel %vm416, %v1642, %v1623
    %v1652 = vsel %vm416, %v1644, %v1624
    %v1657 = vunpack.c.l.b16 %v1646
    %v1658 = vunpack.c.l.b16 %v1648
    %v1659 = vunpack.c.l.b16 %v1650
    %v1660 = vunpack.c.l.b16 %v1652
    %v1661 = vunpack.c.h.b16 %v1646
    %v1662 = vunpack.c.h.b16 %v1648
    %v1663 = vunpack.c.h.b16 %v1650
    %v1664 = vunpack.c.h.b16 %v1652
    %v1665 = vpack.c.b16 %v1658, %v1657
    %v1666 = vpack.c.b16 %v1660, %v1659
    %v1667 = vpack.c.b16 %v1662, %v1661
    %v1668 = vpack.c.b16 %v1664, %v1663
    %1673 = vst [vmem:[#allocation2 + $0x100] sm:$0xff] %v1665
    %1674 = vst [vmem:[#allocation2 + $0x108] sm:$0xff] %v1666
    %1675 = vst [vmem:[#allocation2 + $0x120] sm:$0xff] %v1667
    %1676 = vst [vmem:[#allocation2 + $0x128] sm:$0xff] %v1668
    %v1677 = vld [vmem:[#allocation6 + $0x20] sm:$0x44]
    %v1678 = vld [vmem:[#allocation6 + $0x28] sm:$0x44]
    %v1681 = vunpack.c.l.b16 %v1677
    %v1682 = vunpack.c.h.b16 %v1677
    %v1683 = vunpack.c.l.b16 %v1678
    %v1684 = vunpack.c.h.b16 %v1678
    %v1685 = vpack.c.b16 %v1681, %v1681
    %v1686 = vpack.c.b16 %v1682, %v1682
    %v1687 = vpack.c.b16 %v1683, %v1683
    %v1688 = vpack.c.b16 %v1684, %v1684
    %v1690 = vpack.i.b16 %v1685, %v1685
    %v1692 = vperm.slane %v1690, 2
    %v1694 = vpack.i.b16 %v1686, %v1686
    %v1696 = vperm.slane %v1694, 2
    %v1698 = vpack.i.b16 %v1687, %v1687
    %v1700 = vperm.slane %v1698, 2
    %v1702 = vpack.i.b16 %v1688, %v1688
    %v1704 = vperm.slane %v1702, 2
    %v1705 = vunpack.c.l.bf16 %v1692
    %v1706 = vunpack.c.l.bf16 %v1696
    %v1707 = vunpack.c.l.bf16 %v1700
    %v1708 = vunpack.c.l.bf16 %v1704
    %v1709 = vmul.f32 %v284, %v1705
    %v1710 = vmul.f32 %v285, %v1706
    %v1711 = vmul.f32 %v286, %v1707
    %v1712 = vmul.f32 %v283, %v1708
    %v1713 = vpack.c.bf16 %v1710, %v1709
    %v1714 = vpack.c.bf16 %v1712, %v1711
    %v1715 = vshrl.u32 %v1685, 16
    %v1716 = vpack.i.b16 %v1715, %v1715
    %v1718 = vperm.slane %v1716, 2
    %v1719 = vshrl.u32 %v1686, 16
    %v1720 = vpack.i.b16 %v1719, %v1719
    %v1722 = vperm.slane %v1720, 2
    %v1723 = vshrl.u32 %v1687, 16
    %v1724 = vpack.i.b16 %v1723, %v1723
    %v1726 = vperm.slane %v1724, 2
    %v1727 = vshrl.u32 %v1688, 16
    %v1728 = vpack.i.b16 %v1727, %v1727
    %v1730 = vperm.slane %v1728, 2
    %v1731 = vunpack.c.l.bf16 %v1718
    %v1732 = vunpack.c.l.bf16 %v1722
    %v1733 = vunpack.c.l.bf16 %v1726
    %v1734 = vunpack.c.l.bf16 %v1730
    %v1735 = vmul.f32 %v334, %v1731
    %v1736 = vmul.f32 %v335, %v1732
    %v1737 = vmul.f32 %v336, %v1733
    %v1738 = vmul.f32 %v333, %v1734
    %v1739 = vpack.c.bf16 %v1736, %v1735
    %v1740 = vpack.c.bf16 %v1738, %v1737
    %v1741 = vld [vmem:[#allocation6 + $0x20] sm:$0x88]
    %v1742 = vld [vmem:[#allocation6 + $0x28] sm:$0x88]
    %v1745 = vunpack.c.l.b16 %v1741
    %v1746 = vunpack.c.h.b16 %v1741
    %v1747 = vunpack.c.l.b16 %v1742
    %v1748 = vunpack.c.h.b16 %v1742
    %v1749 = vpack.c.b16 %v1745, %v1745
    %v1750 = vpack.c.b16 %v1746, %v1746
    %v1751 = vpack.c.b16 %v1747, %v1747
    %v1752 = vpack.c.b16 %v1748, %v1748
    %v1754 = vpack.i.b16 %v1749, %v1749
    %v1756 = vperm.slane %v1754, 3
    %v1758 = vpack.i.b16 %v1750, %v1750
    %v1760 = vperm.slane %v1758, 3
    %v1762 = vpack.i.b16 %v1751, %v1751
    %v1764 = vperm.slane %v1762, 3
    %v1766 = vpack.i.b16 %v1752, %v1752
    %v1768 = vperm.slane %v1766, 3
    %v1769 = vunpack.c.l.bf16 %v1756
    %v1770 = vunpack.c.l.bf16 %v1760
    %v1771 = vunpack.c.l.bf16 %v1764
    %v1772 = vunpack.c.l.bf16 %v1768
    %v1773 = vmul.f32 %v498, %v1769
    %v1774 = vmul.f32 %v499, %v1770
    %v1775 = vmul.f32 %v500, %v1771
    %v1776 = vmul.f32 %v497, %v1772
    %v1777 = vpack.c.bf16 %v1774, %v1773
    %v1778 = vpack.c.bf16 %v1776, %v1775
    %v1779 = vshrl.u32 %v1749, 16
    %v1780 = vpack.i.b16 %v1779, %v1779
    %v1782 = vperm.slane %v1780, 3
    %v1783 = vshrl.u32 %v1750, 16
    %v1784 = vpack.i.b16 %v1783, %v1783
    %v1786 = vperm.slane %v1784, 3
    %v1787 = vshrl.u32 %v1751, 16
    %v1788 = vpack.i.b16 %v1787, %v1787
    %v1790 = vperm.slane %v1788, 3
    %v1791 = vshrl.u32 %v1752, 16
    %v1792 = vpack.i.b16 %v1791, %v1791
    %v1794 = vperm.slane %v1792, 3
    %v1795 = vunpack.c.l.bf16 %v1782
    %v1796 = vunpack.c.l.bf16 %v1786
    %v1797 = vunpack.c.l.bf16 %v1790
    %v1798 = vunpack.c.l.bf16 %v1794
    %v1799 = vmul.f32 %v548, %v1795
    %v1800 = vmul.f32 %v549, %v1796
    %v1801 = vmul.f32 %v550, %v1797
    %v1802 = vmul.f32 %v547, %v1798
    %v1803 = vpack.c.bf16 %v1800, %v1799
    %v1804 = vpack.c.bf16 %v1802, %v1801
    %v1807 = vunpack.c.l.b16 %v1713
    %v1808 = vunpack.c.h.b16 %v1713
    %v1809 = vunpack.c.l.b16 %v1714
    %v1810 = vunpack.c.h.b16 %v1714
    %v1811 = vpack.c.b16 %v1807, %v1807
    %v1812 = vpack.c.b16 %v1808, %v1808
    %v1813 = vpack.c.b16 %v1809, %v1809
    %v1814 = vpack.c.b16 %v1810, %v1810
    %v1817 = vunpack.c.l.b16 %v1739
    %v1818 = vunpack.c.h.b16 %v1739
    %v1819 = vunpack.c.l.b16 %v1740
    %v1820 = vunpack.c.h.b16 %v1740
    %v1821 = vpack.c.b16 %v1817, %v1817
    %v1822 = vpack.c.b16 %v1818, %v1818
    %v1823 = vpack.c.b16 %v1819, %v1819
    %v1824 = vpack.c.b16 %v1820, %v1820
    %v1825 = vrot.slane %v1821, 6
    %v1826 = vrot.slane %v1822, 6
    %v1827 = vrot.slane %v1823, 6
    %v1828 = vrot.slane %v1824, 6
    %v1831 = vunpack.c.l.b16 %v1777
    %v1832 = vunpack.c.h.b16 %v1777
    %v1833 = vunpack.c.l.b16 %v1778
    %v1834 = vunpack.c.h.b16 %v1778
    %v1835 = vpack.c.b16 %v1831, %v1831
    %v1836 = vpack.c.b16 %v1832, %v1832
    %v1837 = vpack.c.b16 %v1833, %v1833
    %v1838 = vpack.c.b16 %v1834, %v1834
    %v1841 = vunpack.c.l.b16 %v1803
    %v1842 = vunpack.c.h.b16 %v1803
    %v1843 = vunpack.c.l.b16 %v1804
    %v1844 = vunpack.c.h.b16 %v1804
    %v1845 = vpack.c.b16 %v1841, %v1841
    %v1846 = vpack.c.b16 %v1842, %v1842
    %v1847 = vpack.c.b16 %v1843, %v1843
    %v1848 = vpack.c.b16 %v1844, %v1844
    %v1849 = vrot.slane %v1845, 2
    %v1850 = vrot.slane %v1846, 2
    %v1851 = vrot.slane %v1847, 2
    %v1852 = vrot.slane %v1848, 2
    %v1855 = vsel %vm395, %v1811, %v1825
    %v1858 = vsel %vm395, %v1812, %v1826
    %v1861 = vsel %vm395, %v1813, %v1827
    %v1864 = vsel %vm395, %v1814, %v1828
    %v1866 = vsel %vm53, %v1855, %v1835
    %v1868 = vsel %vm53, %v1858, %v1836
    %v1870 = vsel %vm53, %v1861, %v1837
    %v1872 = vsel %vm53, %v1864, %v1838
    %v1874 = vsel %vm416, %v1866, %v1849
    %v1876 = vsel %vm416, %v1868, %v1850
    %v1878 = vsel %vm416, %v1870, %v1851
    %v1880 = vsel %vm416, %v1872, %v1852
    %v1885 = vunpack.c.l.b16 %v1874
    %v1886 = vunpack.c.l.b16 %v1876
    %v1887 = vunpack.c.l.b16 %v1878
    %v1888 = vunpack.c.l.b16 %v1880
    %v1889 = vunpack.c.h.b16 %v1874
    %v1890 = vunpack.c.h.b16 %v1876
    %v1891 = vunpack.c.h.b16 %v1878
    %v1892 = vunpack.c.h.b16 %v1880
    %v1893 = vpack.c.b16 %v1886, %v1885
    %v1894 = vpack.c.b16 %v1888, %v1887
    %v1895 = vpack.c.b16 %v1890, %v1889
    %v1896 = vpack.c.b16 %v1892, %v1891
    %1901 = vst [vmem:[#allocation2 + $0x140] sm:$0xff] %v1893
    %1902 = vst [vmem:[#allocation2 + $0x148] sm:$0xff] %v1894
    %1903 = vst [vmem:[#allocation2 + $0x160] sm:$0xff] %v1895
    %1904 = vst [vmem:[#allocation2 + $0x168] sm:$0xff] %v1896
    %v1905 = vld [vmem:[#allocation6 + $0x30] sm:$0x11]
    %v1906 = vld [vmem:[#allocation6 + $0x38] sm:$0x11]
    %v1909 = vunpack.c.l.b16 %v1905
    %v1910 = vunpack.c.h.b16 %v1905
    %v1911 = vunpack.c.l.b16 %v1906
    %v1912 = vunpack.c.h.b16 %v1906
    %v1913 = vpack.c.b16 %v1909, %v1909
    %v1914 = vpack.c.b16 %v1910, %v1910
    %v1915 = vpack.c.b16 %v1911, %v1911
    %v1916 = vpack.c.b16 %v1912, %v1912
    %v1918 = vpack.i.b16 %v1913, %v1913
    %v1920 = vperm.slane %v1918, 0
    %v1922 = vpack.i.b16 %v1914, %v1914
    %v1924 = vperm.slane %v1922, 0
    %v1926 = vpack.i.b16 %v1915, %v1915
    %v1928 = vperm.slane %v1926, 0
    %v1930 = vpack.i.b16 %v1916, %v1916
    %v1932 = vperm.slane %v1930, 0
    %v1933 = vunpack.c.l.bf16 %v1920
    %v1934 = vunpack.c.l.bf16 %v1924
    %v1935 = vunpack.c.l.bf16 %v1928
    %v1936 = vunpack.c.l.bf16 %v1932
    %v1937 = vmul.f32 %v610, %v1933
    %v1938 = vmul.f32 %v611, %v1934
    %v1939 = vmul.f32 %v612, %v1935
    %v1940 = vmul.f32 %v609, %v1936
    %v1941 = vpack.c.bf16 %v1938, %v1937
    %v1942 = vpack.c.bf16 %v1940, %v1939
    %v1943 = vshrl.u32 %v1913, 16
    %v1944 = vpack.i.b16 %v1943, %v1943
    %v1946 = vperm.slane %v1944, 0
    %v1947 = vshrl.u32 %v1914, 16
    %v1948 = vpack.i.b16 %v1947, %v1947
    %v1950 = vperm.slane %v1948, 0
    %v1951 = vshrl.u32 %v1915, 16
    %v1952 = vpack.i.b16 %v1951, %v1951
    %v1954 = vperm.slane %v1952, 0
    %v1955 = vshrl.u32 %v1916, 16
    %v1956 = vpack.i.b16 %v1955, %v1955
    %v1958 = vperm.slane %v1956, 0
    %v1959 = vunpack.c.l.bf16 %v1946
    %v1960 = vunpack.c.l.bf16 %v1950
    %v1961 = vunpack.c.l.bf16 %v1954
    %v1962 = vunpack.c.l.bf16 %v1958
    %v1963 = vmul.f32 %v660, %v1959
    %v1964 = vmul.f32 %v661, %v1960
    %v1965 = vmul.f32 %v662, %v1961
    %v1966 = vmul.f32 %v659, %v1962
    %v1967 = vpack.c.bf16 %v1964, %v1963
    %v1968 = vpack.c.bf16 %v1966, %v1965
    %v1969 = vld [vmem:[#allocation6 + $0x30] sm:$0x22]
    %v1970 = vld [vmem:[#allocation6 + $0x38] sm:$0x22]
    %v1973 = vunpack.c.l.b16 %v1969
    %v1974 = vunpack.c.h.b16 %v1969
    %v1975 = vunpack.c.l.b16 %v1970
    %v1976 = vunpack.c.h.b16 %v1970
    %v1977 = vpack.c.b16 %v1973, %v1973
    %v1978 = vpack.c.b16 %v1974, %v1974
    %v1979 = vpack.c.b16 %v1975, %v1975
    %v1980 = vpack.c.b16 %v1976, %v1976
    %v1982 = vpack.i.b16 %v1977, %v1977
    %v1984 = vperm.slane %v1982, 1
    %v1986 = vpack.i.b16 %v1978, %v1978
    %v1988 = vperm.slane %v1986, 1
    %v1990 = vpack.i.b16 %v1979, %v1979
    %v1992 = vperm.slane %v1990, 1
    %v1994 = vpack.i.b16 %v1980, %v1980
    %v1996 = vperm.slane %v1994, 1
    %v1997 = vunpack.c.l.bf16 %v1984
    %v1998 = vunpack.c.l.bf16 %v1988
    %v1999 = vunpack.c.l.bf16 %v1992
    %v2000 = vunpack.c.l.bf16 %v1996
    %v2001 = vmul.f32 %v822, %v1997
    %v2002 = vmul.f32 %v823, %v1998
    %v2003 = vmul.f32 %v824, %v1999
    %v2004 = vmul.f32 %v821, %v2000
    %v2005 = vpack.c.bf16 %v2002, %v2001
    %v2006 = vpack.c.bf16 %v2004, %v2003
    %v2009 = vunpack.c.l.b16 %v1941
    %v2010 = vunpack.c.h.b16 %v1941
    %v2011 = vunpack.c.l.b16 %v1942
    %v2012 = vunpack.c.h.b16 %v1942
    %v2013 = vpack.c.b16 %v2009, %v2009
    %v2014 = vpack.c.b16 %v2010, %v2010
    %v2015 = vpack.c.b16 %v2011, %v2011
    %v2016 = vpack.c.b16 %v2012, %v2012
    %v2019 = vunpack.c.l.b16 %v1967
    %v2020 = vunpack.c.h.b16 %v1967
    %v2021 = vunpack.c.l.b16 %v1968
    %v2022 = vunpack.c.h.b16 %v1968
    %v2023 = vpack.c.b16 %v2019, %v2019
    %v2024 = vpack.c.b16 %v2020, %v2020
    %v2025 = vpack.c.b16 %v2021, %v2021
    %v2026 = vpack.c.b16 %v2022, %v2022
    %v2027 = vrot.slane %v2023, 6
    %v2028 = vrot.slane %v2024, 6
    %v2029 = vrot.slane %v2025, 6
    %v2030 = vrot.slane %v2026, 6
    %v2033 = vunpack.c.l.b16 %v2005
    %v2034 = vunpack.c.h.b16 %v2005
    %v2035 = vunpack.c.l.b16 %v2006
    %v2036 = vunpack.c.h.b16 %v2006
    %v2037 = vpack.c.b16 %v2033, %v2033
    %v2038 = vpack.c.b16 %v2034, %v2034
    %v2039 = vpack.c.b16 %v2035, %v2035
    %v2040 = vpack.c.b16 %v2036, %v2036
    %v2043 = vsel %vm395, %v2013, %v2027
    %v2046 = vsel %vm395, %v2014, %v2028
    %v2049 = vsel %vm395, %v2015, %v2029
    %v2052 = vsel %vm395, %v2016, %v2030
    %v2054 = vsel %vm53, %v2043, %v2037
    %v2056 = vsel %vm53, %v2046, %v2038
    %v2058 = vsel %vm53, %v2049, %v2039
    %v2060 = vsel %vm53, %v2052, %v2040
    %v2062 = vsel %vm416, %v2054, 0
    %v2063 = vsel %vm416, %v2056, 0
    %v2064 = vsel %vm416, %v2058, 0
    %v2065 = vsel %vm416, %v2060, 0
    %v2070 = vunpack.c.l.b16 %v2062
    %v2071 = vunpack.c.l.b16 %v2063
    %v2072 = vunpack.c.l.b16 %v2064
    %v2073 = vunpack.c.l.b16 %v2065
    %v2074 = vunpack.c.h.b16 %v2062
    %v2075 = vunpack.c.h.b16 %v2063
    %v2076 = vunpack.c.h.b16 %v2064
    %v2077 = vunpack.c.h.b16 %v2065
    %v2078 = vpack.c.b16 %v2071, %v2070
    %v2079 = vpack.c.b16 %v2073, %v2072
    %v2080 = vpack.c.b16 %v2075, %v2074
    %v2081 = vpack.c.b16 %v2077, %v2076
    %2086 = vst [vmem:[#allocation2 + $0x180] sm:$0xff] %v2078
    %2087 = vst [vmem:[#allocation2 + $0x188] sm:$0xff] %v2079
    %2088 = vst [vmem:[#allocation2 + $0x1a0] sm:$0xff] %v2080
    %2089 = vst [vmem:[#allocation2 + $0x1a8] sm:$0xff] %v2081
    %v2090 = vld [vmem:[#allocation3] sm:$0xf0]
    %v2091 = vld [vmem:[#allocation3 + $0x8] sm:$0xf0]
    %v2092 = vld [vmem:[#allocation3 + $0x10] sm:$0xf0]
    %v2093 = vld [vmem:[#allocation3 + $0x18] sm:$0xf0]
    %vm2094 = vcmask 1047556
    %v2095 = vsel %vm2094, %v2090, 0.0
    %v2096 = vsel %vm2094, %v2091, 0.0
    %v2097 = vadd.f32 %v2095, %v2096
    %v2098 = vsel %vm2094, %v2092, 0.0
    %v2099 = vadd.f32 %v2097, %v2098
    %v2100 = vsel %vm2094, %v2093, 0.0
    %v2101 = vadd.f32 %v2099, %v2100
    %2102 = vadd.xlane.f32.xlu0 %v2101
    %v2103 = vpop.xlane.xlu0 %2102
    %v2104 = vmul.f32 %v2103, 0.001953125
    %v2105 = vmul.f32 %v2090, %v2090
    %v2106 = vmul.f32 %v2091, %v2091
    %v2107 = vmul.f32 %v2092, %v2092
    %v2108 = vmul.f32 %v2093, %v2093
    %v2109 = vsel %vm2094, %v2105, 0.0
    %v2110 = vsel %vm2094, %v2106, 0.0
    %v2111 = vadd.f32 %v2109, %v2110
    %v2112 = vsel %vm2094, %v2107, 0.0
    %v2113 = vadd.f32 %v2111, %v2112
    %v2114 = vsel %vm2094, %v2108, 0.0
    %v2115 = vadd.f32 %v2113, %v2114
    %2116 = vadd.xlane.f32.xlu0 %v2115
    %v2117 = vpop.xlane.xlu0 %2116
    %v2118 = vmul.f32 %v2117, 0.001953125
    %v2119 = vsub.f32 %v2090, %v2104
    %v2120 = vsub.f32 %v2091, %v2104
    %v2121 = vsub.f32 %v2092, %v2104
    %v2122 = vsub.f32 %v2093, %v2104
    %v2123 = vmul.f32 %v2104, %v2104
    %v2124 = vsub.f32 %v2118, %v2123
    %v2125 = vadd.f32 %v2124, 1e-05
    %v2126 = vrsqrt.pop %v2125
    %v2127 = vmul.f32 %v2126, %v2125
    %v2128 = vmul.f32 %v2127, %v2126
    %v2129 = vmul.f32 0.5, %v2128
    %v2130 = vsub.f32 1.5, %v2129
    %v2131 = vmul.f32 %v2126, %v2130
    %vm2132 = vweird.f32 %v2125
    %vm2133 = vweird.f32 %v2126
    %vm2134 = vmor %vm2132, %vm2133
    %v2135 = vsel %vm2134, %v2126, %v2131
    %v2136 = vmul.f32 %v2119, %v2135
    %v2137 = vmul.f32 %v2120, %v2135
    %v2138 = vmul.f32 %v2121, %v2135
    %v2139 = vmul.f32 %v2122, %v2135
    %vm2140 = vcmp.ge.f32.partialorder %v2136, 0.0
    %vm2141 = vcmp.ge.f32.partialorder %v2137, 0.0
    %vm2142 = vcmp.ge.f32.partialorder %v2138, 0.0
    %vm2143 = vcmp.ge.f32.partialorder %v2139, 0.0
    %v2144 = vmul.f32 %v2136, 0.1
    %v2145 = vmul.f32 %v2137, 0.1
    %v2146 = vmul.f32 %v2138, 0.1
    %v2147 = vmul.f32 %v2139, 0.1
    %v2148 = vsel %vm2140, %v2136, %v2144
    %v2149 = vsel %vm2141, %v2137, %v2145
    %v2150 = vsel %vm2142, %v2138, %v2146
    %v2151 = vsel %vm2143, %v2139, %v2147
    %v2152 = vpack.c.bf16 %v2149, %v2148
    %v2153 = vpack.c.bf16 %v2151, %v2150
    %v2155 = vunpack.c.h.b16 %v2153
    %v2156 = vpack.c.b16 %v2155, %v2155
    %2157 = vrot.lane.b32.xlu0 %v2156, 73
    %v2158 = vpop.permute.xlu0 %2157
    %v2160 = vunpack.c.l.b16 %v2152
    %v2161 = vunpack.c.h.b16 %v2152
    %v2162 = vunpack.c.l.b16 %v2153
    %v2163 = vpack.c.b16 %v2160, %v2160
    %v2164 = vpack.c.b16 %v2161, %v2161
    %v2165 = vpack.c.b16 %v2162, %v2162
    %2166 = vrot.lane.b32.xlu0 %v2163, 73
    %v2167 = vpop.permute.xlu0 %2166
    %2168 = vrot.lane.b32.xlu0 %v2164, 73
    %v2169 = vpop.permute.xlu0 %2168
    %2170 = vrot.lane.b32.xlu0 %v2165, 73
    %v2171 = vpop.permute.xlu0 %2170
    %v2172 = vsel %vm131, %v2167, %v2169
    %v2173 = vsel %vm131, %v2169, %v2171
    %v2174 = vsel %vm131, %v2171, %v2158
    %v2180 = vsel %vm138, %v2158, %v2167
    %v2182 = vld [vmem:[#allocation6] sm:$0x11]
    %v2183 = vld [vmem:[#allocation6 + $0x8] sm:$0x11]
    %v2186 = vunpack.c.l.b16 %v2182
    %v2187 = vunpack.c.h.b16 %v2182
    %v2188 = vunpack.c.l.b16 %v2183
    %v2189 = vunpack.c.h.b16 %v2183
    %v2190 = vpack.c.b16 %v2186, %v2186
    %v2191 = vpack.c.b16 %v2187, %v2187
    %v2192 = vpack.c.b16 %v2188, %v2188
    %v2193 = vpack.c.b16 %v2189, %v2189
    %v2195 = vpack.i.b16 %v2190, %v2190
    %v2197 = vperm.slane %v2195, 0
    %v2199 = vpack.i.b16 %v2191, %v2191
    %v2201 = vperm.slane %v2199, 0
    %v2203 = vpack.i.b16 %v2192, %v2192
    %v2205 = vperm.slane %v2203, 0
    %v2207 = vpack.i.b16 %v2193, %v2193
    %v2209 = vperm.slane %v2207, 0
    %v2210 = vunpack.c.l.bf16 %v2180
    %v2211 = vunpack.c.l.bf16 %v2172
    %v2212 = vunpack.c.l.bf16 %v2173
    %v2213 = vunpack.c.l.bf16 %v2174
    %v2214 = vunpack.c.l.bf16 %v2197
    %v2215 = vunpack.c.l.bf16 %v2201
    %v2216 = vunpack.c.l.bf16 %v2205
    %v2217 = vunpack.c.l.bf16 %v2209
    %v2218 = vmul.f32 %v2210, %v2214
    %v2219 = vmul.f32 %v2211, %v2215
    %v2220 = vmul.f32 %v2212, %v2216
    %v2221 = vmul.f32 %v2213, %v2217
    %v2222 = vpack.c.bf16 %v2219, %v2218
    %v2223 = vpack.c.bf16 %v2221, %v2220
    %2224 = vrot.lane.b32.xlu0 %v2156, 72
    %v2225 = vpop.permute.xlu0 %2224
    %2226 = vrot.lane.b32.xlu0 %v2163, 72
    %v2227 = vpop.permute.xlu0 %2226
    %2228 = vrot.lane.b32.xlu0 %v2164, 72
    %v2229 = vpop.permute.xlu0 %2228
    %2230 = vrot.lane.b32.xlu0 %v2165, 72
    %v2231 = vpop.permute.xlu0 %2230
    %v2232 = vsel %vm193, %v2227, %v2229
    %v2233 = vsel %vm193, %v2229, %v2231
    %v2234 = vsel %vm193, %v2231, %v2225
    %v2240 = vsel %vm200, %v2225, %v2227
    %v2242 = vshrl.u32 %v2190, 16
    %v2243 = vpack.i.b16 %v2242, %v2242
    %v2245 = vperm.slane %v2243, 0
    %v2246 = vshrl.u32 %v2191, 16
    %v2247 = vpack.i.b16 %v2246, %v2246
    %v2249 = vperm.slane %v2247, 0
    %v2250 = vshrl.u32 %v2192, 16
    %v2251 = vpack.i.b16 %v2250, %v2250
    %v2253 = vperm.slane %v2251, 0
    %v2254 = vshrl.u32 %v2193, 16
    %v2255 = vpack.i.b16 %v2254, %v2254
    %v2257 = vperm.slane %v2255, 0
    %v2258 = vunpack.c.l.bf16 %v2240
    %v2259 = vunpack.c.l.bf16 %v2232
    %v2260 = vunpack.c.l.bf16 %v2233
    %v2261 = vunpack.c.l.bf16 %v2234
    %v2262 = vunpack.c.l.bf16 %v2245
    %v2263 = vunpack.c.l.bf16 %v2249
    %v2264 = vunpack.c.l.bf16 %v2253
    %v2265 = vunpack.c.l.bf16 %v2257
    %v2266 = vmul.f32 %v2258, %v2262
    %v2267 = vmul.f32 %v2259, %v2263
    %v2268 = vmul.f32 %v2260, %v2264
    %v2269 = vmul.f32 %v2261, %v2265
    %v2270 = vpack.c.bf16 %v2267, %v2266
    %v2271 = vpack.c.bf16 %v2269, %v2268
    %2272 = vrot.lane.b32.xlu0 %v2156, 71
    %v2273 = vpop.permute.xlu0 %2272
    %2274 = vrot.lane.b32.xlu0 %v2163, 71
    %v2275 = vpop.permute.xlu0 %2274
    %2276 = vrot.lane.b32.xlu0 %v2164, 71
    %v2277 = vpop.permute.xlu0 %2276
    %2278 = vrot.lane.b32.xlu0 %v2165, 71
    %v2279 = vpop.permute.xlu0 %2278
    %v2280 = vsel %vm243, %v2275, %v2277
    %v2281 = vsel %vm243, %v2277, %v2279
    %v2282 = vsel %vm243, %v2279, %v2273
    %v2288 = vsel %vm250, %v2273, %v2275
    %v2290 = vld [vmem:[#allocation6] sm:$0x22]
    %v2291 = vld [vmem:[#allocation6 + $0x8] sm:$0x22]
    %v2294 = vunpack.c.l.b16 %v2290
    %v2295 = vunpack.c.h.b16 %v2290
    %v2296 = vunpack.c.l.b16 %v2291
    %v2297 = vunpack.c.h.b16 %v2291
    %v2298 = vpack.c.b16 %v2294, %v2294
    %v2299 = vpack.c.b16 %v2295, %v2295
    %v2300 = vpack.c.b16 %v2296, %v2296
    %v2301 = vpack.c.b16 %v2297, %v2297
    %v2303 = vpack.i.b16 %v2298, %v2298
    %v2305 = vperm.slane %v2303, 1
    %v2307 = vpack.i.b16 %v2299, %v2299
    %v2309 = vperm.slane %v2307, 1
    %v2311 = vpack.i.b16 %v2300, %v2300
    %v2313 = vperm.slane %v2311, 1
    %v2315 = vpack.i.b16 %v2301, %v2301
    %v2317 = vperm.slane %v2315, 1
    %v2318 = vunpack.c.l.bf16 %v2288
    %v2319 = vunpack.c.l.bf16 %v2280
    %v2320 = vunpack.c.l.bf16 %v2281
    %v2321 = vunpack.c.l.bf16 %v2282
    %v2322 = vunpack.c.l.bf16 %v2305
    %v2323 = vunpack.c.l.bf16 %v2309
    %v2324 = vunpack.c.l.bf16 %v2313
    %v2325 = vunpack.c.l.bf16 %v2317
    %v2326 = vmul.f32 %v2318, %v2322
    %v2327 = vmul.f32 %v2319, %v2323
    %v2328 = vmul.f32 %v2320, %v2324
    %v2329 = vmul.f32 %v2321, %v2325
    %v2330 = vpack.c.bf16 %v2327, %v2326
    %v2331 = vpack.c.bf16 %v2329, %v2328
    %2332 = vrot.lane.b32.xlu0 %v2156, 65
    %v2333 = vpop.permute.xlu0 %2332
    %2334 = vrot.lane.b32.xlu0 %v2163, 65
    %v2335 = vpop.permute.xlu0 %2334
    %2336 = vrot.lane.b32.xlu0 %v2164, 65
    %v2337 = vpop.permute.xlu0 %2336
    %2338 = vrot.lane.b32.xlu0 %v2165, 65
    %v2339 = vpop.permute.xlu0 %2338
    %v2340 = vsel %vm305, %v2335, %v2337
    %v2341 = vsel %vm305, %v2337, %v2339
    %v2342 = vsel %vm305, %v2339, %v2333
    %v2348 = vsel %vm312, %v2333, %v2335
    %v2350 = vshrl.u32 %v2298, 16
    %v2351 = vpack.i.b16 %v2350, %v2350
    %v2353 = vperm.slane %v2351, 1
    %v2354 = vshrl.u32 %v2299, 16
    %v2355 = vpack.i.b16 %v2354, %v2354
    %v2357 = vperm.slane %v2355, 1
    %v2358 = vshrl.u32 %v2300, 16
    %v2359 = vpack.i.b16 %v2358, %v2358
    %v2361 = vperm.slane %v2359, 1
    %v2362 = vshrl.u32 %v2301, 16
    %v2363 = vpack.i.b16 %v2362, %v2362
    %v2365 = vperm.slane %v2363, 1
    %v2366 = vunpack.c.l.bf16 %v2348
    %v2367 = vunpack.c.l.bf16 %v2340
    %v2368 = vunpack.c.l.bf16 %v2341
    %v2369 = vunpack.c.l.bf16 %v2342
    %v2370 = vunpack.c.l.bf16 %v2353
    %v2371 = vunpack.c.l.bf16 %v2357
    %v2372 = vunpack.c.l.bf16 %v2361
    %v2373 = vunpack.c.l.bf16 %v2365
    %v2374 = vmul.f32 %v2366, %v2370
    %v2375 = vmul.f32 %v2367, %v2371
    %v2376 = vmul.f32 %v2368, %v2372
    %v2377 = vmul.f32 %v2369, %v2373
    %v2378 = vpack.c.bf16 %v2375, %v2374
    %v2379 = vpack.c.bf16 %v2377, %v2376
    %v2382 = vunpack.c.l.b16 %v2222
    %v2383 = vunpack.c.h.b16 %v2222
    %v2384 = vunpack.c.l.b16 %v2223
    %v2385 = vunpack.c.h.b16 %v2223
    %v2386 = vpack.c.b16 %v2382, %v2382
    %v2387 = vpack.c.b16 %v2383, %v2383
    %v2388 = vpack.c.b16 %v2384, %v2384
    %v2389 = vpack.c.b16 %v2385, %v2385
    %v2390 = vrot.slane %v2386, 2
    %v2391 = vrot.slane %v2387, 2
    %v2392 = vrot.slane %v2388, 2
    %v2393 = vrot.slane %v2389, 2
    %v2396 = vunpack.c.l.b16 %v2270
    %v2397 = vunpack.c.h.b16 %v2270
    %v2398 = vunpack.c.l.b16 %v2271
    %v2399 = vunpack.c.h.b16 %v2271
    %v2400 = vpack.c.b16 %v2396, %v2396
    %v2401 = vpack.c.b16 %v2397, %v2397
    %v2402 = vpack.c.b16 %v2398, %v2398
    %v2403 = vpack.c.b16 %v2399, %v2399
    %v2406 = vunpack.c.l.b16 %v2330
    %v2407 = vunpack.c.h.b16 %v2330
    %v2408 = vunpack.c.l.b16 %v2331
    %v2409 = vunpack.c.h.b16 %v2331
    %v2410 = vpack.c.b16 %v2406, %v2406
    %v2411 = vpack.c.b16 %v2407, %v2407
    %v2412 = vpack.c.b16 %v2408, %v2408
    %v2413 = vpack.c.b16 %v2409, %v2409
    %v2414 = vrot.slane %v2410, 6
    %v2415 = vrot.slane %v2411, 6
    %v2416 = vrot.slane %v2412, 6
    %v2417 = vrot.slane %v2413, 6
    %v2420 = vunpack.c.l.b16 %v2378
    %v2421 = vunpack.c.h.b16 %v2378
    %v2422 = vunpack.c.l.b16 %v2379
    %v2423 = vunpack.c.h.b16 %v2379
    %v2424 = vpack.c.b16 %v2420, %v2420
    %v2425 = vpack.c.b16 %v2421, %v2421
    %v2426 = vpack.c.b16 %v2422, %v2422
    %v2427 = vpack.c.b16 %v2423, %v2423
    %v2430 = vsel %vm395, %v2390, %v2400
    %v2433 = vsel %vm395, %v2391, %v2401
    %v2436 = vsel %vm395, %v2392, %v2402
    %v2439 = vsel %vm395, %v2393, %v2403
    %v2441 = vsel %vm53, %v2430, %v2414
    %v2443 = vsel %vm53, %v2433, %v2415
    %v2445 = vsel %vm53, %v2436, %v2416
    %v2447 = vsel %vm53, %v2439, %v2417
    %v2449 = vsel %vm416, %v2441, %v2424
    %v2451 = vsel %vm416, %v2443, %v2425
    %v2453 = vsel %vm416, %v2445, %v2426
    %v2455 = vsel %vm416, %v2447, %v2427
    %v2460 = vunpack.c.l.b16 %v2449
    %v2461 = vunpack.c.l.b16 %v2451
    %v2462 = vunpack.c.l.b16 %v2453
    %v2463 = vunpack.c.l.b16 %v2455
    %v2464 = vunpack.c.h.b16 %v2449
    %v2465 = vunpack.c.h.b16 %v2451
    %v2466 = vunpack.c.h.b16 %v2453
    %v2467 = vunpack.c.h.b16 %v2455
    %v2468 = vpack.c.b16 %v2461, %v2460
    %v2469 = vpack.c.b16 %v2463, %v2462
    %v2470 = vpack.c.b16 %v2465, %v2464
    %v2471 = vpack.c.b16 %v2467, %v2466
    %2476 = vst [vmem:[#allocation2 + $0x10] sm:$0xff] %v2468
    %2477 = vst [vmem:[#allocation2 + $0x18] sm:$0xff] %v2469
    %2478 = vst [vmem:[#allocation2 + $0x30] sm:$0xff] %v2470
    %2479 = vst [vmem:[#allocation2 + $0x38] sm:$0xff] %v2471
    %2480 = vrot.lane.b32.xlu0 %v2156, 64
    %v2481 = vpop.permute.xlu0 %2480
    %2482 = vrot.lane.b32.xlu0 %v2163, 64
    %v2483 = vpop.permute.xlu0 %2482
    %2484 = vrot.lane.b32.xlu0 %v2164, 64
    %v2485 = vpop.permute.xlu0 %2484
    %2486 = vrot.lane.b32.xlu0 %v2165, 64
    %v2487 = vpop.permute.xlu0 %2486
    %v2488 = vsel %vm457, %v2483, %v2485
    %v2489 = vsel %vm457, %v2485, %v2487
    %v2490 = vsel %vm457, %v2487, %v2481
    %v2496 = vsel %vm464, %v2481, %v2483
    %v2498 = vld [vmem:[#allocation6] sm:$0x44]
    %v2499 = vld [vmem:[#allocation6 + $0x8] sm:$0x44]
    %v2502 = vunpack.c.l.b16 %v2498
    %v2503 = vunpack.c.h.b16 %v2498
    %v2504 = vunpack.c.l.b16 %v2499
    %v2505 = vunpack.c.h.b16 %v2499
    %v2506 = vpack.c.b16 %v2502, %v2502
    %v2507 = vpack.c.b16 %v2503, %v2503
    %v2508 = vpack.c.b16 %v2504, %v2504
    %v2509 = vpack.c.b16 %v2505, %v2505
    %v2511 = vpack.i.b16 %v2506, %v2506
    %v2513 = vperm.slane %v2511, 2
    %v2515 = vpack.i.b16 %v2507, %v2507
    %v2517 = vperm.slane %v2515, 2
    %v2519 = vpack.i.b16 %v2508, %v2508
    %v2521 = vperm.slane %v2519, 2
    %v2523 = vpack.i.b16 %v2509, %v2509
    %v2525 = vperm.slane %v2523, 2
    %v2526 = vunpack.c.l.bf16 %v2496
    %v2527 = vunpack.c.l.bf16 %v2488
    %v2528 = vunpack.c.l.bf16 %v2489
    %v2529 = vunpack.c.l.bf16 %v2490
    %v2530 = vunpack.c.l.bf16 %v2513
    %v2531 = vunpack.c.l.bf16 %v2517
    %v2532 = vunpack.c.l.bf16 %v2521
    %v2533 = vunpack.c.l.bf16 %v2525
    %v2534 = vmul.f32 %v2526, %v2530
    %v2535 = vmul.f32 %v2527, %v2531
    %v2536 = vmul.f32 %v2528, %v2532
    %v2537 = vmul.f32 %v2529, %v2533
    %v2538 = vpack.c.bf16 %v2535, %v2534
    %v2539 = vpack.c.bf16 %v2537, %v2536
    %2540 = vrot.lane.b32.xlu0 %v2156, 63
    %v2541 = vpop.permute.xlu0 %2540
    %2542 = vrot.lane.b32.xlu0 %v2163, 63
    %v2543 = vpop.permute.xlu0 %2542
    %2544 = vrot.lane.b32.xlu0 %v2164, 63
    %v2545 = vpop.permute.xlu0 %2544
    %2546 = vrot.lane.b32.xlu0 %v2165, 63
    %v2547 = vpop.permute.xlu0 %2546
    %v2548 = vsel %vm519, %v2543, %v2545
    %v2549 = vsel %vm519, %v2545, %v2547
    %v2550 = vsel %vm519, %v2547, %v2541
    %v2556 = vsel %vm526, %v2541, %v2543
    %v2558 = vshrl.u32 %v2506, 16
    %v2559 = vpack.i.b16 %v2558, %v2558
    %v2561 = vperm.slane %v2559, 2
    %v2562 = vshrl.u32 %v2507, 16
    %v2563 = vpack.i.b16 %v2562, %v2562
    %v2565 = vperm.slane %v2563, 2
    %v2566 = vshrl.u32 %v2508, 16
    %v2567 = vpack.i.b16 %v2566, %v2566
    %v2569 = vperm.slane %v2567, 2
    %v2570 = vshrl.u32 %v2509, 16
    %v2571 = vpack.i.b16 %v2570, %v2570
    %v2573 = vperm.slane %v2571, 2
    %v2574 = vunpack.c.l.bf16 %v2556
    %v2575 = vunpack.c.l.bf16 %v2548
    %v2576 = vunpack.c.l.bf16 %v2549
    %v2577 = vunpack.c.l.bf16 %v2550
    %v2578 = vunpack.c.l.bf16 %v2561
    %v2579 = vunpack.c.l.bf16 %v2565
    %v2580 = vunpack.c.l.bf16 %v2569
    %v2581 = vunpack.c.l.bf16 %v2573
    %v2582 = vmul.f32 %v2574, %v2578
    %v2583 = vmul.f32 %v2575, %v2579
    %v2584 = vmul.f32 %v2576, %v2580
    %v2585 = vmul.f32 %v2577, %v2581
    %v2586 = vpack.c.bf16 %v2583, %v2582
    %v2587 = vpack.c.bf16 %v2585, %v2584
    %2588 = vrot.lane.b32.xlu0 %v2156, 57
    %v2589 = vpop.permute.xlu0 %2588
    %2590 = vrot.lane.b32.xlu0 %v2163, 57
    %v2591 = vpop.permute.xlu0 %2590
    %2592 = vrot.lane.b32.xlu0 %v2164, 57
    %v2593 = vpop.permute.xlu0 %2592
    %2594 = vrot.lane.b32.xlu0 %v2165, 57
    %v2595 = vpop.permute.xlu0 %2594
    %v2596 = vsel %vm569, %v2591, %v2593
    %v2597 = vsel %vm569, %v2593, %v2595
    %v2598 = vsel %vm569, %v2595, %v2589
    %v2604 = vsel %vm576, %v2589, %v2591
    %v2606 = vld [vmem:[#allocation6] sm:$0x88]
    %v2607 = vld [vmem:[#allocation6 + $0x8] sm:$0x88]
    %v2610 = vunpack.c.l.b16 %v2606
    %v2611 = vunpack.c.h.b16 %v2606
    %v2612 = vunpack.c.l.b16 %v2607
    %v2613 = vunpack.c.h.b16 %v2607
    %v2614 = vpack.c.b16 %v2610, %v2610
    %v2615 = vpack.c.b16 %v2611, %v2611
    %v2616 = vpack.c.b16 %v2612, %v2612
    %v2617 = vpack.c.b16 %v2613, %v2613
    %v2619 = vpack.i.b16 %v2614, %v2614
    %v2621 = vperm.slane %v2619, 3
    %v2623 = vpack.i.b16 %v2615, %v2615
    %v2625 = vperm.slane %v2623, 3
    %v2627 = vpack.i.b16 %v2616, %v2616
    %v2629 = vperm.slane %v2627, 3
    %v2631 = vpack.i.b16 %v2617, %v2617
    %v2633 = vperm.slane %v2631, 3
    %v2634 = vunpack.c.l.bf16 %v2604
    %v2635 = vunpack.c.l.bf16 %v2596
    %v2636 = vunpack.c.l.bf16 %v2597
    %v2637 = vunpack.c.l.bf16 %v2598
    %v2638 = vunpack.c.l.bf16 %v2621
    %v2639 = vunpack.c.l.bf16 %v2625
    %v2640 = vunpack.c.l.bf16 %v2629
    %v2641 = vunpack.c.l.bf16 %v2633
    %v2642 = vmul.f32 %v2634, %v2638
    %v2643 = vmul.f32 %v2635, %v2639
    %v2644 = vmul.f32 %v2636, %v2640
    %v2645 = vmul.f32 %v2637, %v2641
    %v2646 = vpack.c.bf16 %v2643, %v2642
    %v2647 = vpack.c.bf16 %v2645, %v2644
    %2648 = vrot.lane.b32.xlu0 %v2156, 56
    %v2649 = vpop.permute.xlu0 %2648
    %2650 = vrot.lane.b32.xlu0 %v2163, 56
    %v2651 = vpop.permute.xlu0 %2650
    %2652 = vrot.lane.b32.xlu0 %v2164, 56
    %v2653 = vpop.permute.xlu0 %2652
    %2654 = vrot.lane.b32.xlu0 %v2165, 56
    %v2655 = vpop.permute.xlu0 %2654
    %v2656 = vsel %vm631, %v2651, %v2653
    %v2657 = vsel %vm631, %v2653, %v2655
    %v2658 = vsel %vm631, %v2655, %v2649
    %v2664 = vsel %vm638, %v2649, %v2651
    %v2666 = vshrl.u32 %v2614, 16
    %v2667 = vpack.i.b16 %v2666, %v2666
    %v2669 = vperm.slane %v2667, 3
    %v2670 = vshrl.u32 %v2615, 16
    %v2671 = vpack.i.b16 %v2670, %v2670
    %v2673 = vperm.slane %v2671, 3
    %v2674 = vshrl.u32 %v2616, 16
    %v2675 = vpack.i.b16 %v2674, %v2674
    %v2677 = vperm.slane %v2675, 3
    %v2678 = vshrl.u32 %v2617, 16
    %v2679 = vpack.i.b16 %v2678, %v2678
    %v2681 = vperm.slane %v2679, 3
    %v2682 = vunpack.c.l.bf16 %v2664
    %v2683 = vunpack.c.l.bf16 %v2656
    %v2684 = vunpack.c.l.bf16 %v2657
    %v2685 = vunpack.c.l.bf16 %v2658
    %v2686 = vunpack.c.l.bf16 %v2669
    %v2687 = vunpack.c.l.bf16 %v2673
    %v2688 = vunpack.c.l.bf16 %v2677
    %v2689 = vunpack.c.l.bf16 %v2681
    %v2690 = vmul.f32 %v2682, %v2686
    %v2691 = vmul.f32 %v2683, %v2687
    %v2692 = vmul.f32 %v2684, %v2688
    %v2693 = vmul.f32 %v2685, %v2689
    %v2694 = vpack.c.bf16 %v2691, %v2690
    %v2695 = vpack.c.bf16 %v2693, %v2692
    %v2698 = vunpack.c.l.b16 %v2538
    %v2699 = vunpack.c.h.b16 %v2538
    %v2700 = vunpack.c.l.b16 %v2539
    %v2701 = vunpack.c.h.b16 %v2539
    %v2702 = vpack.c.b16 %v2698, %v2698
    %v2703 = vpack.c.b16 %v2699, %v2699
    %v2704 = vpack.c.b16 %v2700, %v2700
    %v2705 = vpack.c.b16 %v2701, %v2701
    %v2706 = vrot.slane %v2702, 2
    %v2707 = vrot.slane %v2703, 2
    %v2708 = vrot.slane %v2704, 2
    %v2709 = vrot.slane %v2705, 2
    %v2712 = vunpack.c.l.b16 %v2586
    %v2713 = vunpack.c.h.b16 %v2586
    %v2714 = vunpack.c.l.b16 %v2587
    %v2715 = vunpack.c.h.b16 %v2587
    %v2716 = vpack.c.b16 %v2712, %v2712
    %v2717 = vpack.c.b16 %v2713, %v2713
    %v2718 = vpack.c.b16 %v2714, %v2714
    %v2719 = vpack.c.b16 %v2715, %v2715
    %v2722 = vunpack.c.l.b16 %v2646
    %v2723 = vunpack.c.h.b16 %v2646
    %v2724 = vunpack.c.l.b16 %v2647
    %v2725 = vunpack.c.h.b16 %v2647
    %v2726 = vpack.c.b16 %v2722, %v2722
    %v2727 = vpack.c.b16 %v2723, %v2723
    %v2728 = vpack.c.b16 %v2724, %v2724
    %v2729 = vpack.c.b16 %v2725, %v2725
    %v2730 = vrot.slane %v2726, 6
    %v2731 = vrot.slane %v2727, 6
    %v2732 = vrot.slane %v2728, 6
    %v2733 = vrot.slane %v2729, 6
    %v2736 = vunpack.c.l.b16 %v2694
    %v2737 = vunpack.c.h.b16 %v2694
    %v2738 = vunpack.c.l.b16 %v2695
    %v2739 = vunpack.c.h.b16 %v2695
    %v2740 = vpack.c.b16 %v2736, %v2736
    %v2741 = vpack.c.b16 %v2737, %v2737
    %v2742 = vpack.c.b16 %v2738, %v2738
    %v2743 = vpack.c.b16 %v2739, %v2739
    %v2746 = vsel %vm395, %v2706, %v2716
    %v2749 = vsel %vm395, %v2707, %v2717
    %v2752 = vsel %vm395, %v2708, %v2718
    %v2755 = vsel %vm395, %v2709, %v2719
    %v2757 = vsel %vm53, %v2746, %v2730
    %v2759 = vsel %vm53, %v2749, %v2731
    %v2761 = vsel %vm53, %v2752, %v2732
    %v2763 = vsel %vm53, %v2755, %v2733
    %v2765 = vsel %vm416, %v2757, %v2740
    %v2767 = vsel %vm416, %v2759, %v2741
    %v2769 = vsel %vm416, %v2761, %v2742
    %v2771 = vsel %vm416, %v2763, %v2743
    %v2776 = vunpack.c.l.b16 %v2765
    %v2777 = vunpack.c.l.b16 %v2767
    %v2778 = vunpack.c.l.b16 %v2769
    %v2779 = vunpack.c.l.b16 %v2771
    %v2780 = vunpack.c.h.b16 %v2765
    %v2781 = vunpack.c.h.b16 %v2767
    %v2782 = vunpack.c.h.b16 %v2769
    %v2783 = vunpack.c.h.b16 %v2771
    %v2784 = vpack.c.b16 %v2777, %v2776
    %v2785 = vpack.c.b16 %v2779, %v2778
    %v2786 = vpack.c.b16 %v2781, %v2780
    %v2787 = vpack.c.b16 %v2783, %v2782
    %2792 = vst [vmem:[#allocation2 + $0x50] sm:$0xff] %v2784
    %2793 = vst [vmem:[#allocation2 + $0x58] sm:$0xff] %v2785
    %2794 = vst [vmem:[#allocation2 + $0x70] sm:$0xff] %v2786
    %2795 = vst [vmem:[#allocation2 + $0x78] sm:$0xff] %v2787
    %2796 = vrot.lane.b32.xlu0 %v2156, 55
    %v2797 = vpop.permute.xlu0 %2796
    %2798 = vrot.lane.b32.xlu0 %v2163, 55
    %v2799 = vpop.permute.xlu0 %2798
    %2800 = vrot.lane.b32.xlu0 %v2164, 55
    %v2801 = vpop.permute.xlu0 %2800
    %2802 = vrot.lane.b32.xlu0 %v2165, 55
    %v2803 = vpop.permute.xlu0 %2802
    %v2804 = vsel %vm781, %v2799, %v2801
    %v2805 = vsel %vm781, %v2801, %v2803
    %v2806 = vsel %vm781, %v2803, %v2797
    %v2812 = vsel %vm788, %v2797, %v2799
    %v2814 = vld [vmem:[#allocation6 + $0x10] sm:$0x11]
    %v2815 = vld [vmem:[#allocation6 + $0x18] sm:$0x11]
    %v2818 = vunpack.c.l.b16 %v2814
    %v2819 = vunpack.c.h.b16 %v2814
    %v2820 = vunpack.c.l.b16 %v2815
    %v2821 = vunpack.c.h.b16 %v2815
    %v2822 = vpack.c.b16 %v2818, %v2818
    %v2823 = vpack.c.b16 %v2819, %v2819
    %v2824 = vpack.c.b16 %v2820, %v2820
    %v2825 = vpack.c.b16 %v2821, %v2821
    %v2827 = vpack.i.b16 %v2822, %v2822
    %v2829 = vperm.slane %v2827, 0
    %v2831 = vpack.i.b16 %v2823, %v2823
    %v2833 = vperm.slane %v2831, 0
    %v2835 = vpack.i.b16 %v2824, %v2824
    %v2837 = vperm.slane %v2835, 0
    %v2839 = vpack.i.b16 %v2825, %v2825
    %v2841 = vperm.slane %v2839, 0
    %v2842 = vunpack.c.l.bf16 %v2812
    %v2843 = vunpack.c.l.bf16 %v2804
    %v2844 = vunpack.c.l.bf16 %v2805
    %v2845 = vunpack.c.l.bf16 %v2806
    %v2846 = vunpack.c.l.bf16 %v2829
    %v2847 = vunpack.c.l.bf16 %v2833
    %v2848 = vunpack.c.l.bf16 %v2837
    %v2849 = vunpack.c.l.bf16 %v2841
    %v2850 = vmul.f32 %v2842, %v2846
    %v2851 = vmul.f32 %v2843, %v2847
    %v2852 = vmul.f32 %v2844, %v2848
    %v2853 = vmul.f32 %v2845, %v2849
    %v2854 = vpack.c.bf16 %v2851, %v2850
    %v2855 = vpack.c.bf16 %v2853, %v2852
    %2856 = vrot.lane.b32.xlu0 %v2156, 9
    %v2857 = vpop.permute.xlu0 %2856
    %2858 = vrot.lane.b32.xlu0 %v2163, 9
    %v2859 = vpop.permute.xlu0 %2858
    %2860 = vrot.lane.b32.xlu0 %v2164, 9
    %v2861 = vpop.permute.xlu0 %2860
    %2862 = vrot.lane.b32.xlu0 %v2165, 9
    %v2863 = vpop.permute.xlu0 %2862
    %v2864 = vsel %vm843, %v2859, %v2861
    %v2865 = vsel %vm843, %v2861, %v2863
    %v2866 = vsel %vm843, %v2863, %v2857
    %v2872 = vsel %vm850, %v2857, %v2859
    %v2874 = vshrl.u32 %v2822, 16
    %v2875 = vpack.i.b16 %v2874, %v2874
    %v2877 = vperm.slane %v2875, 0
    %v2878 = vshrl.u32 %v2823, 16
    %v2879 = vpack.i.b16 %v2878, %v2878
    %v2881 = vperm.slane %v2879, 0
    %v2882 = vshrl.u32 %v2824, 16
    %v2883 = vpack.i.b16 %v2882, %v2882
    %v2885 = vperm.slane %v2883, 0
    %v2886 = vshrl.u32 %v2825, 16
    %v2887 = vpack.i.b16 %v2886, %v2886
    %v2889 = vperm.slane %v2887, 0
    %v2890 = vunpack.c.l.bf16 %v2872
    %v2891 = vunpack.c.l.bf16 %v2864
    %v2892 = vunpack.c.l.bf16 %v2865
    %v2893 = vunpack.c.l.bf16 %v2866
    %v2894 = vunpack.c.l.bf16 %v2877
    %v2895 = vunpack.c.l.bf16 %v2881
    %v2896 = vunpack.c.l.bf16 %v2885
    %v2897 = vunpack.c.l.bf16 %v2889
    %v2898 = vmul.f32 %v2890, %v2894
    %v2899 = vmul.f32 %v2891, %v2895
    %v2900 = vmul.f32 %v2892, %v2896
    %v2901 = vmul.f32 %v2893, %v2897
    %v2902 = vpack.c.bf16 %v2899, %v2898
    %v2903 = vpack.c.bf16 %v2901, %v2900
    %2904 = vrot.lane.b32.xlu0 %v2156, 8
    %v2905 = vpop.permute.xlu0 %2904
    %2906 = vrot.lane.b32.xlu0 %v2163, 8
    %v2907 = vpop.permute.xlu0 %2906
    %2908 = vrot.lane.b32.xlu0 %v2164, 8
    %v2909 = vpop.permute.xlu0 %2908
    %2910 = vrot.lane.b32.xlu0 %v2165, 8
    %v2911 = vpop.permute.xlu0 %2910
    %v2912 = vsel %vm893, %v2907, %v2909
    %v2913 = vsel %vm893, %v2909, %v2911
    %v2914 = vsel %vm893, %v2911, %v2905
    %v2920 = vsel %vm900, %v2905, %v2907
    %v2922 = vld [vmem:[#allocation6 + $0x10] sm:$0x22]
    %v2923 = vld [vmem:[#allocation6 + $0x18] sm:$0x22]
    %v2926 = vunpack.c.l.b16 %v2922
    %v2927 = vunpack.c.h.b16 %v2922
    %v2928 = vunpack.c.l.b16 %v2923
    %v2929 = vunpack.c.h.b16 %v2923
    %v2930 = vpack.c.b16 %v2926, %v2926
    %v2931 = vpack.c.b16 %v2927, %v2927
    %v2932 = vpack.c.b16 %v2928, %v2928
    %v2933 = vpack.c.b16 %v2929, %v2929
    %v2935 = vpack.i.b16 %v2930, %v2930
    %v2937 = vperm.slane %v2935, 1
    %v2939 = vpack.i.b16 %v2931, %v2931
    %v2941 = vperm.slane %v2939, 1
    %v2943 = vpack.i.b16 %v2932, %v2932
    %v2945 = vperm.slane %v2943, 1
    %v2947 = vpack.i.b16 %v2933, %v2933
    %v2949 = vperm.slane %v2947, 1
    %v2950 = vunpack.c.l.bf16 %v2920
    %v2951 = vunpack.c.l.bf16 %v2912
    %v2952 = vunpack.c.l.bf16 %v2913
    %v2953 = vunpack.c.l.bf16 %v2914
    %v2954 = vunpack.c.l.bf16 %v2937
    %v2955 = vunpack.c.l.bf16 %v2941
    %v2956 = vunpack.c.l.bf16 %v2945
    %v2957 = vunpack.c.l.bf16 %v2949
    %v2958 = vmul.f32 %v2950, %v2954
    %v2959 = vmul.f32 %v2951, %v2955
    %v2960 = vmul.f32 %v2952, %v2956
    %v2961 = vmul.f32 %v2953, %v2957
    %v2962 = vpack.c.bf16 %v2959, %v2958
    %v2963 = vpack.c.bf16 %v2961, %v2960
    %2964 = vrot.lane.b32.xlu0 %v2156, 7
    %v2965 = vpop.permute.xlu0 %2964
    %2966 = vrot.lane.b32.xlu0 %v2163, 7
    %v2967 = vpop.permute.xlu0 %2966
    %2968 = vrot.lane.b32.xlu0 %v2164, 7
    %v2969 = vpop.permute.xlu0 %2968
    %2970 = vrot.lane.b32.xlu0 %v2165, 7
    %v2971 = vpop.permute.xlu0 %2970
    %v2972 = vsel %vm955, %v2967, %v2969
    %v2973 = vsel %vm955, %v2969, %v2971
    %v2974 = vsel %vm955, %v2971, %v2965
    %v2980 = vsel %vm962, %v2965, %v2967
    %v2982 = vshrl.u32 %v2930, 16
    %v2983 = vpack.i.b16 %v2982, %v2982
    %v2985 = vperm.slane %v2983, 1
    %v2986 = vshrl.u32 %v2931, 16
    %v2987 = vpack.i.b16 %v2986, %v2986
    %v2989 = vperm.slane %v2987, 1
    %v2990 = vshrl.u32 %v2932, 16
    %v2991 = vpack.i.b16 %v2990, %v2990
    %v2993 = vperm.slane %v2991, 1
    %v2994 = vshrl.u32 %v2933, 16
    %v2995 = vpack.i.b16 %v2994, %v2994
    %v2997 = vperm.slane %v2995, 1
    %v2998 = vunpack.c.l.bf16 %v2980
    %v2999 = vunpack.c.l.bf16 %v2972
    %v3000 = vunpack.c.l.bf16 %v2973
    %v3001 = vunpack.c.l.bf16 %v2974
    %v3002 = vunpack.c.l.bf16 %v2985
    %v3003 = vunpack.c.l.bf16 %v2989
    %v3004 = vunpack.c.l.bf16 %v2993
    %v3005 = vunpack.c.l.bf16 %v2997
    %v3006 = vmul.f32 %v2998, %v3002
    %v3007 = vmul.f32 %v2999, %v3003
    %v3008 = vmul.f32 %v3000, %v3004
    %v3009 = vmul.f32 %v3001, %v3005
    %v3010 = vpack.c.bf16 %v3007, %v3006
    %v3011 = vpack.c.bf16 %v3009, %v3008
    %v3014 = vunpack.c.l.b16 %v2854
    %v3015 = vunpack.c.h.b16 %v2854
    %v3016 = vunpack.c.l.b16 %v2855
    %v3017 = vunpack.c.h.b16 %v2855
    %v3018 = vpack.c.b16 %v3014, %v3014
    %v3019 = vpack.c.b16 %v3015, %v3015
    %v3020 = vpack.c.b16 %v3016, %v3016
    %v3021 = vpack.c.b16 %v3017, %v3017
    %v3022 = vrot.slane %v3018, 2
    %v3023 = vrot.slane %v3019, 2
    %v3024 = vrot.slane %v3020, 2
    %v3025 = vrot.slane %v3021, 2
    %v3028 = vunpack.c.l.b16 %v2902
    %v3029 = vunpack.c.h.b16 %v2902
    %v3030 = vunpack.c.l.b16 %v2903
    %v3031 = vunpack.c.h.b16 %v2903
    %v3032 = vpack.c.b16 %v3028, %v3028
    %v3033 = vpack.c.b16 %v3029, %v3029
    %v3034 = vpack.c.b16 %v3030, %v3030
    %v3035 = vpack.c.b16 %v3031, %v3031
    %v3038 = vunpack.c.l.b16 %v2962
    %v3039 = vunpack.c.h.b16 %v2962
    %v3040 = vunpack.c.l.b16 %v2963
    %v3041 = vunpack.c.h.b16 %v2963
    %v3042 = vpack.c.b16 %v3038, %v3038
    %v3043 = vpack.c.b16 %v3039, %v3039
    %v3044 = vpack.c.b16 %v3040, %v3040
    %v3045 = vpack.c.b16 %v3041, %v3041
    %v3046 = vrot.slane %v3042, 6
    %v3047 = vrot.slane %v3043, 6
    %v3048 = vrot.slane %v3044, 6
    %v3049 = vrot.slane %v3045, 6
    %v3052 = vunpack.c.l.b16 %v3010
    %v3053 = vunpack.c.h.b16 %v3010
    %v3054 = vunpack.c.l.b16 %v3011
    %v3055 = vunpack.c.h.b16 %v3011
    %v3056 = vpack.c.b16 %v3052, %v3052
    %v3057 = vpack.c.b16 %v3053, %v3053
    %v3058 = vpack.c.b16 %v3054, %v3054
    %v3059 = vpack.c.b16 %v3055, %v3055
    %v3062 = vsel %vm395, %v3022, %v3032
    %v3065 = vsel %vm395, %v3023, %v3033
    %v3068 = vsel %vm395, %v3024, %v3034
    %v3071 = vsel %vm395, %v3025, %v3035
    %v3073 = vsel %vm53, %v3062, %v3046
    %v3075 = vsel %vm53, %v3065, %v3047
    %v3077 = vsel %vm53, %v3068, %v3048
    %v3079 = vsel %vm53, %v3071, %v3049
    %v3081 = vsel %vm416, %v3073, %v3056
    %v3083 = vsel %vm416, %v3075, %v3057
    %v3085 = vsel %vm416, %v3077, %v3058
    %v3087 = vsel %vm416, %v3079, %v3059
    %v3092 = vunpack.c.l.b16 %v3081
    %v3093 = vunpack.c.l.b16 %v3083
    %v3094 = vunpack.c.l.b16 %v3085
    %v3095 = vunpack.c.l.b16 %v3087
    %v3096 = vunpack.c.h.b16 %v3081
    %v3097 = vunpack.c.h.b16 %v3083
    %v3098 = vunpack.c.h.b16 %v3085
    %v3099 = vunpack.c.h.b16 %v3087
    %v3100 = vpack.c.b16 %v3093, %v3092
    %v3101 = vpack.c.b16 %v3095, %v3094
    %v3102 = vpack.c.b16 %v3097, %v3096
    %v3103 = vpack.c.b16 %v3099, %v3098
    %3108 = vst [vmem:[#allocation2 + $0x90] sm:$0xff] %v3100
    %3109 = vst [vmem:[#allocation2 + $0x98] sm:$0xff] %v3101
    %3110 = vst [vmem:[#allocation2 + $0xb0] sm:$0xff] %v3102
    %3111 = vst [vmem:[#allocation2 + $0xb8] sm:$0xff] %v3103
    %3112 = vrot.lane.b32.xlu0 %v2156, 1
    %v3113 = vpop.permute.xlu0 %3112
    %3114 = vrot.lane.b32.xlu0 %v2163, 1
    %v3115 = vpop.permute.xlu0 %3114
    %3116 = vrot.lane.b32.xlu0 %v2164, 1
    %v3117 = vpop.permute.xlu0 %3116
    %3118 = vrot.lane.b32.xlu0 %v2165, 1
    %v3119 = vpop.permute.xlu0 %3118
    %v3120 = vsel %vm1105, %v3115, %v3117
    %v3121 = vsel %vm1105, %v3117, %v3119
    %v3122 = vsel %vm1105, %v3119, %v3113
    %v3128 = vsel %vm1112, %v3113, %v3115
    %v3130 = vld [vmem:[#allocation6 + $0x10] sm:$0x44]
    %v3131 = vld [vmem:[#allocation6 + $0x18] sm:$0x44]
    %v3134 = vunpack.c.l.b16 %v3130
    %v3135 = vunpack.c.h.b16 %v3130
    %v3136 = vunpack.c.l.b16 %v3131
    %v3137 = vunpack.c.h.b16 %v3131
    %v3138 = vpack.c.b16 %v3134, %v3134
    %v3139 = vpack.c.b16 %v3135, %v3135
    %v3140 = vpack.c.b16 %v3136, %v3136
    %v3141 = vpack.c.b16 %v3137, %v3137
    %v3143 = vpack.i.b16 %v3138, %v3138
    %v3145 = vperm.slane %v3143, 2
    %v3147 = vpack.i.b16 %v3139, %v3139
    %v3149 = vperm.slane %v3147, 2
    %v3151 = vpack.i.b16 %v3140, %v3140
    %v3153 = vperm.slane %v3151, 2
    %v3155 = vpack.i.b16 %v3141, %v3141
    %v3157 = vperm.slane %v3155, 2
    %v3158 = vunpack.c.l.bf16 %v3128
    %v3159 = vunpack.c.l.bf16 %v3120
    %v3160 = vunpack.c.l.bf16 %v3121
    %v3161 = vunpack.c.l.bf16 %v3122
    %v3162 = vunpack.c.l.bf16 %v3145
    %v3163 = vunpack.c.l.bf16 %v3149
    %v3164 = vunpack.c.l.bf16 %v3153
    %v3165 = vunpack.c.l.bf16 %v3157
    %v3166 = vmul.f32 %v3158, %v3162
    %v3167 = vmul.f32 %v3159, %v3163
    %v3168 = vmul.f32 %v3160, %v3164
    %v3169 = vmul.f32 %v3161, %v3165
    %v3170 = vpack.c.bf16 %v3167, %v3166
    %v3171 = vpack.c.bf16 %v3169, %v3168
    %v3172 = vshrl.u32 %v3138, 16
    %v3173 = vpack.i.b16 %v3172, %v3172
    %v3175 = vperm.slane %v3173, 2
    %v3176 = vshrl.u32 %v3139, 16
    %v3177 = vpack.i.b16 %v3176, %v3176
    %v3179 = vperm.slane %v3177, 2
    %v3180 = vshrl.u32 %v3140, 16
    %v3181 = vpack.i.b16 %v3180, %v3180
    %v3183 = vperm.slane %v3181, 2
    %v3184 = vshrl.u32 %v3141, 16
    %v3185 = vpack.i.b16 %v3184, %v3184
    %v3187 = vperm.slane %v3185, 2
    %v3188 = vunpack.c.l.bf16 %v2152
    %v3189 = vunpack.c.h.bf16 %v2152
    %v3190 = vunpack.c.l.bf16 %v2153
    %v3191 = vunpack.c.h.bf16 %v2153
    %v3192 = vunpack.c.l.bf16 %v3175
    %v3193 = vunpack.c.l.bf16 %v3179
    %v3194 = vunpack.c.l.bf16 %v3183
    %v3195 = vunpack.c.l.bf16 %v3187
    %v3196 = vmul.f32 %v3188, %v3192
    %v3197 = vmul.f32 %v3189, %v3193
    %v3198 = vmul.f32 %v3190, %v3194
    %v3199 = vmul.f32 %v3191, %v3195
    %v3200 = vpack.c.bf16 %v3197, %v3196
    %v3201 = vpack.c.bf16 %v3199, %v3198
    %3202 = vrot.lane.b32.xlu0 %v2163, 127
    %v3203 = vpop.permute.xlu0 %3202
    %3204 = vrot.lane.b32.xlu0 %v2164, 127
    %v3205 = vpop.permute.xlu0 %3204
    %3206 = vrot.lane.b32.xlu0 %v2165, 127
    %v3207 = vpop.permute.xlu0 %3206
    %3208 = vrot.lane.b32.xlu0 %v2156, 127
    %v3209 = vpop.permute.xlu0 %3208
    %v3210 = vsel %vm1197, %v3203, %v3205
    %v3211 = vsel %vm1197, %v3205, %v3207
    %v3212 = vsel %vm1197, %v3207, %v3209
    %v3218 = vsel %vm1204, %v3209, %v3203
    %v3220 = vld [vmem:[#allocation6 + $0x10] sm:$0x88]
    %v3221 = vld [vmem:[#allocation6 + $0x18] sm:$0x88]
    %v3224 = vunpack.c.l.b16 %v3220
    %v3225 = vunpack.c.h.b16 %v3220
    %v3226 = vunpack.c.l.b16 %v3221
    %v3227 = vunpack.c.h.b16 %v3221
    %v3228 = vpack.c.b16 %v3224, %v3224
    %v3229 = vpack.c.b16 %v3225, %v3225
    %v3230 = vpack.c.b16 %v3226, %v3226
    %v3231 = vpack.c.b16 %v3227, %v3227
    %v3233 = vpack.i.b16 %v3228, %v3228
    %v3235 = vperm.slane %v3233, 3
    %v3237 = vpack.i.b16 %v3229, %v3229
    %v3239 = vperm.slane %v3237, 3
    %v3241 = vpack.i.b16 %v3230, %v3230
    %v3243 = vperm.slane %v3241, 3
    %v3245 = vpack.i.b16 %v3231, %v3231
    %v3247 = vperm.slane %v3245, 3
    %v3248 = vunpack.c.l.bf16 %v3210
    %v3249 = vunpack.c.l.bf16 %v3211
    %v3250 = vunpack.c.l.bf16 %v3212
    %v3251 = vunpack.c.l.bf16 %v3218
    %v3252 = vunpack.c.l.bf16 %v3235
    %v3253 = vunpack.c.l.bf16 %v3239
    %v3254 = vunpack.c.l.bf16 %v3243
    %v3255 = vunpack.c.l.bf16 %v3247
    %v3256 = vmul.f32 %v3248, %v3252
    %v3257 = vmul.f32 %v3249, %v3253
    %v3258 = vmul.f32 %v3250, %v3254
    %v3259 = vmul.f32 %v3251, %v3255
    %v3260 = vpack.c.bf16 %v3257, %v3256
    %v3261 = vpack.c.bf16 %v3259, %v3258
    %3262 = vrot.lane.b32.xlu0 %v2163, 121
    %v3263 = vpop.permute.xlu0 %3262
    %3264 = vrot.lane.b32.xlu0 %v2164, 121
    %v3265 = vpop.permute.xlu0 %3264
    %3266 = vrot.lane.b32.xlu0 %v2165, 121
    %v3267 = vpop.permute.xlu0 %3266
    %3268 = vrot.lane.b32.xlu0 %v2156, 121
    %v3269 = vpop.permute.xlu0 %3268
    %v3270 = vsel %vm1259, %v3263, %v3265
    %v3271 = vsel %vm1259, %v3265, %v3267
    %v3272 = vsel %vm1259, %v3267, %v3269
    %v3278 = vsel %vm1266, %v3269, %v3263
    %v3280 = vshrl.u32 %v3228, 16
    %v3281 = vpack.i.b16 %v3280, %v3280
    %v3283 = vperm.slane %v3281, 3
    %v3284 = vshrl.u32 %v3229, 16
    %v3285 = vpack.i.b16 %v3284, %v3284
    %v3287 = vperm.slane %v3285, 3
    %v3288 = vshrl.u32 %v3230, 16
    %v3289 = vpack.i.b16 %v3288, %v3288
    %v3291 = vperm.slane %v3289, 3
    %v3292 = vshrl.u32 %v3231, 16
    %v3293 = vpack.i.b16 %v3292, %v3292
    %v3295 = vperm.slane %v3293, 3
    %v3296 = vunpack.c.l.bf16 %v3270
    %v3297 = vunpack.c.l.bf16 %v3271
    %v3298 = vunpack.c.l.bf16 %v3272
    %v3299 = vunpack.c.l.bf16 %v3278
    %v3300 = vunpack.c.l.bf16 %v3283
    %v3301 = vunpack.c.l.bf16 %v3287
    %v3302 = vunpack.c.l.bf16 %v3291
    %v3303 = vunpack.c.l.bf16 %v3295
    %v3304 = vmul.f32 %v3296, %v3300
    %v3305 = vmul.f32 %v3297, %v3301
    %v3306 = vmul.f32 %v3298, %v3302
    %v3307 = vmul.f32 %v3299, %v3303
    %v3308 = vpack.c.bf16 %v3305, %v3304
    %v3309 = vpack.c.bf16 %v3307, %v3306
    %v3312 = vunpack.c.l.b16 %v3170
    %v3313 = vunpack.c.h.b16 %v3170
    %v3314 = vunpack.c.l.b16 %v3171
    %v3315 = vunpack.c.h.b16 %v3171
    %v3316 = vpack.c.b16 %v3312, %v3312
    %v3317 = vpack.c.b16 %v3313, %v3313
    %v3318 = vpack.c.b16 %v3314, %v3314
    %v3319 = vpack.c.b16 %v3315, %v3315
    %v3320 = vrot.slane %v3316, 2
    %v3321 = vrot.slane %v3317, 2
    %v3322 = vrot.slane %v3318, 2
    %v3323 = vrot.slane %v3319, 2
    %v3326 = vunpack.c.l.b16 %v3200
    %v3327 = vunpack.c.h.b16 %v3200
    %v3328 = vunpack.c.l.b16 %v3201
    %v3329 = vunpack.c.h.b16 %v3201
    %v3330 = vpack.c.b16 %v3326, %v3326
    %v3331 = vpack.c.b16 %v3327, %v3327
    %v3332 = vpack.c.b16 %v3328, %v3328
    %v3333 = vpack.c.b16 %v3329, %v3329
    %v3336 = vunpack.c.l.b16 %v3260
    %v3337 = vunpack.c.h.b16 %v3260
    %v3338 = vunpack.c.l.b16 %v3261
    %v3339 = vunpack.c.h.b16 %v3261
    %v3340 = vpack.c.b16 %v3336, %v3336
    %v3341 = vpack.c.b16 %v3337, %v3337
    %v3342 = vpack.c.b16 %v3338, %v3338
    %v3343 = vpack.c.b16 %v3339, %v3339
    %v3344 = vrot.slane %v3340, 6
    %v3345 = vrot.slane %v3341, 6
    %v3346 = vrot.slane %v3342, 6
    %v3347 = vrot.slane %v3343, 6
    %v3350 = vunpack.c.l.b16 %v3308
    %v3351 = vunpack.c.h.b16 %v3308
    %v3352 = vunpack.c.l.b16 %v3309
    %v3353 = vunpack.c.h.b16 %v3309
    %v3354 = vpack.c.b16 %v3350, %v3350
    %v3355 = vpack.c.b16 %v3351, %v3351
    %v3356 = vpack.c.b16 %v3352, %v3352
    %v3357 = vpack.c.b16 %v3353, %v3353
    %v3360 = vsel %vm395, %v3320, %v3330
    %v3363 = vsel %vm395, %v3321, %v3331
    %v3366 = vsel %vm395, %v3322, %v3332
    %v3369 = vsel %vm395, %v3323, %v3333
    %v3371 = vsel %vm53, %v3360, %v3344
    %v3373 = vsel %vm53, %v3363, %v3345
    %v3375 = vsel %vm53, %v3366, %v3346
    %v3377 = vsel %vm53, %v3369, %v3347
    %v3379 = vsel %vm416, %v3371, %v3354
    %v3381 = vsel %vm416, %v3373, %v3355
    %v3383 = vsel %vm416, %v3375, %v3356
    %v3385 = vsel %vm416, %v3377, %v3357
    %v3390 = vunpack.c.l.b16 %v3379
    %v3391 = vunpack.c.l.b16 %v3381
    %v3392 = vunpack.c.l.b16 %v3383
    %v3393 = vunpack.c.l.b16 %v3385
    %v3394 = vunpack.c.h.b16 %v3379
    %v3395 = vunpack.c.h.b16 %v3381
    %v3396 = vunpack.c.h.b16 %v3383
    %v3397 = vunpack.c.h.b16 %v3385
    %v3398 = vpack.c.b16 %v3391, %v3390
    %v3399 = vpack.c.b16 %v3393, %v3392
    %v3400 = vpack.c.b16 %v3395, %v3394
    %v3401 = vpack.c.b16 %v3397, %v3396
    %3406 = vst [vmem:[#allocation2 + $0xd0] sm:$0xff] %v3398
    %3407 = vst [vmem:[#allocation2 + $0xd8] sm:$0xff] %v3399
    %3408 = vst [vmem:[#allocation2 + $0xf0] sm:$0xff] %v3400
    %3409 = vst [vmem:[#allocation2 + $0xf8] sm:$0xff] %v3401
    %3410 = vrot.lane.b32.xlu0 %v2163, 120
    %v3411 = vpop.permute.xlu0 %3410
    %3412 = vrot.lane.b32.xlu0 %v2164, 120
    %v3413 = vpop.permute.xlu0 %3412
    %3414 = vrot.lane.b32.xlu0 %v2165, 120
    %v3415 = vpop.permute.xlu0 %3414
    %3416 = vrot.lane.b32.xlu0 %v2156, 120
    %v3417 = vpop.permute.xlu0 %3416
    %v3418 = vsel %vm1409, %v3411, %v3413
    %v3419 = vsel %vm1409, %v3413, %v3415
    %v3420 = vsel %vm1409, %v3415, %v3417
    %v3426 = vsel %vm1416, %v3417, %v3411
    %v3428 = vld [vmem:[#allocation6 + $0x20] sm:$0x11]
    %v3429 = vld [vmem:[#allocation6 + $0x28] sm:$0x11]
    %v3432 = vunpack.c.l.b16 %v3428
    %v3433 = vunpack.c.h.b16 %v3428
    %v3434 = vunpack.c.l.b16 %v3429
    %v3435 = vunpack.c.h.b16 %v3429
    %v3436 = vpack.c.b16 %v3432, %v3432
    %v3437 = vpack.c.b16 %v3433, %v3433
    %v3438 = vpack.c.b16 %v3434, %v3434
    %v3439 = vpack.c.b16 %v3435, %v3435
    %v3441 = vpack.i.b16 %v3436, %v3436
    %v3443 = vperm.slane %v3441, 0
    %v3445 = vpack.i.b16 %v3437, %v3437
    %v3447 = vperm.slane %v3445, 0
    %v3449 = vpack.i.b16 %v3438, %v3438
    %v3451 = vperm.slane %v3449, 0
    %v3453 = vpack.i.b16 %v3439, %v3439
    %v3455 = vperm.slane %v3453, 0
    %v3456 = vunpack.c.l.bf16 %v3418
    %v3457 = vunpack.c.l.bf16 %v3419
    %v3458 = vunpack.c.l.bf16 %v3420
    %v3459 = vunpack.c.l.bf16 %v3426
    %v3460 = vunpack.c.l.bf16 %v3443
    %v3461 = vunpack.c.l.bf16 %v3447
    %v3462 = vunpack.c.l.bf16 %v3451
    %v3463 = vunpack.c.l.bf16 %v3455
    %v3464 = vmul.f32 %v3456, %v3460
    %v3465 = vmul.f32 %v3457, %v3461
    %v3466 = vmul.f32 %v3458, %v3462
    %v3467 = vmul.f32 %v3459, %v3463
    %v3468 = vpack.c.bf16 %v3465, %v3464
    %v3469 = vpack.c.bf16 %v3467, %v3466
    %3470 = vrot.lane.b32.xlu0 %v2163, 119
    %v3471 = vpop.permute.xlu0 %3470
    %3472 = vrot.lane.b32.xlu0 %v2164, 119
    %v3473 = vpop.permute.xlu0 %3472
    %3474 = vrot.lane.b32.xlu0 %v2165, 119
    %v3475 = vpop.permute.xlu0 %3474
    %3476 = vrot.lane.b32.xlu0 %v2156, 119
    %v3477 = vpop.permute.xlu0 %3476
    %v3478 = vsel %vm1471, %v3471, %v3473
    %v3479 = vsel %vm1471, %v3473, %v3475
    %v3480 = vsel %vm1471, %v3475, %v3477
    %v3486 = vsel %vm1478, %v3477, %v3471
    %v3488 = vshrl.u32 %v3436, 16
    %v3489 = vpack.i.b16 %v3488, %v3488
    %v3491 = vperm.slane %v3489, 0
    %v3492 = vshrl.u32 %v3437, 16
    %v3493 = vpack.i.b16 %v3492, %v3492
    %v3495 = vperm.slane %v3493, 0
    %v3496 = vshrl.u32 %v3438, 16
    %v3497 = vpack.i.b16 %v3496, %v3496
    %v3499 = vperm.slane %v3497, 0
    %v3500 = vshrl.u32 %v3439, 16
    %v3501 = vpack.i.b16 %v3500, %v3500
    %v3503 = vperm.slane %v3501, 0
    %v3504 = vunpack.c.l.bf16 %v3478
    %v3505 = vunpack.c.l.bf16 %v3479
    %v3506 = vunpack.c.l.bf16 %v3480
    %v3507 = vunpack.c.l.bf16 %v3486
    %v3508 = vunpack.c.l.bf16 %v3491
    %v3509 = vunpack.c.l.bf16 %v3495
    %v3510 = vunpack.c.l.bf16 %v3499
    %v3511 = vunpack.c.l.bf16 %v3503
    %v3512 = vmul.f32 %v3504, %v3508
    %v3513 = vmul.f32 %v3505, %v3509
    %v3514 = vmul.f32 %v3506, %v3510
    %v3515 = vmul.f32 %v3507, %v3511
    %v3516 = vpack.c.bf16 %v3513, %v3512
    %v3517 = vpack.c.bf16 %v3515, %v3514
    %v3518 = vld [vmem:[#allocation6 + $0x20] sm:$0x22]
    %v3519 = vld [vmem:[#allocation6 + $0x28] sm:$0x22]
    %v3522 = vunpack.c.l.b16 %v3518
    %v3523 = vunpack.c.h.b16 %v3518
    %v3524 = vunpack.c.l.b16 %v3519
    %v3525 = vunpack.c.h.b16 %v3519
    %v3526 = vpack.c.b16 %v3522, %v3522
    %v3527 = vpack.c.b16 %v3523, %v3523
    %v3528 = vpack.c.b16 %v3524, %v3524
    %v3529 = vpack.c.b16 %v3525, %v3525
    %v3531 = vpack.i.b16 %v3526, %v3526
    %v3533 = vperm.slane %v3531, 1
    %v3535 = vpack.i.b16 %v3527, %v3527
    %v3537 = vperm.slane %v3535, 1
    %v3539 = vpack.i.b16 %v3528, %v3528
    %v3541 = vperm.slane %v3539, 1
    %v3543 = vpack.i.b16 %v3529, %v3529
    %v3545 = vperm.slane %v3543, 1
    %v3546 = vunpack.c.l.bf16 %v3533
    %v3547 = vunpack.c.l.bf16 %v3537
    %v3548 = vunpack.c.l.bf16 %v3541
    %v3549 = vunpack.c.l.bf16 %v3545
    %v3550 = vmul.f32 %v2211, %v3546
    %v3551 = vmul.f32 %v2212, %v3547
    %v3552 = vmul.f32 %v2213, %v3548
    %v3553 = vmul.f32 %v2210, %v3549
    %v3554 = vpack.c.bf16 %v3551, %v3550
    %v3555 = vpack.c.bf16 %v3553, %v3552
    %v3556 = vshrl.u32 %v3526, 16
    %v3557 = vpack.i.b16 %v3556, %v3556
    %v3559 = vperm.slane %v3557, 1
    %v3560 = vshrl.u32 %v3527, 16
    %v3561 = vpack.i.b16 %v3560, %v3560
    %v3563 = vperm.slane %v3561, 1
    %v3564 = vshrl.u32 %v3528, 16
    %v3565 = vpack.i.b16 %v3564, %v3564
    %v3567 = vperm.slane %v3565, 1
    %v3568 = vshrl.u32 %v3529, 16
    %v3569 = vpack.i.b16 %v3568, %v3568
    %v3571 = vperm.slane %v3569, 1
    %v3572 = vunpack.c.l.bf16 %v3559
    %v3573 = vunpack.c.l.bf16 %v3563
    %v3574 = vunpack.c.l.bf16 %v3567
    %v3575 = vunpack.c.l.bf16 %v3571
    %v3576 = vmul.f32 %v2259, %v3572
    %v3577 = vmul.f32 %v2260, %v3573
    %v3578 = vmul.f32 %v2261, %v3574
    %v3579 = vmul.f32 %v2258, %v3575
    %v3580 = vpack.c.bf16 %v3577, %v3576
    %v3581 = vpack.c.bf16 %v3579, %v3578
    %v3584 = vunpack.c.l.b16 %v3468
    %v3585 = vunpack.c.h.b16 %v3468
    %v3586 = vunpack.c.l.b16 %v3469
    %v3587 = vunpack.c.h.b16 %v3469
    %v3588 = vpack.c.b16 %v3584, %v3584
    %v3589 = vpack.c.b16 %v3585, %v3585
    %v3590 = vpack.c.b16 %v3586, %v3586
    %v3591 = vpack.c.b16 %v3587, %v3587
    %v3592 = vrot.slane %v3588, 2
    %v3593 = vrot.slane %v3589, 2
    %v3594 = vrot.slane %v3590, 2
    %v3595 = vrot.slane %v3591, 2
    %v3598 = vunpack.c.l.b16 %v3516
    %v3599 = vunpack.c.h.b16 %v3516
    %v3600 = vunpack.c.l.b16 %v3517
    %v3601 = vunpack.c.h.b16 %v3517
    %v3602 = vpack.c.b16 %v3598, %v3598
    %v3603 = vpack.c.b16 %v3599, %v3599
    %v3604 = vpack.c.b16 %v3600, %v3600
    %v3605 = vpack.c.b16 %v3601, %v3601
    %v3608 = vunpack.c.l.b16 %v3554
    %v3609 = vunpack.c.h.b16 %v3554
    %v3610 = vunpack.c.l.b16 %v3555
    %v3611 = vunpack.c.h.b16 %v3555
    %v3612 = vpack.c.b16 %v3608, %v3608
    %v3613 = vpack.c.b16 %v3609, %v3609
    %v3614 = vpack.c.b16 %v3610, %v3610
    %v3615 = vpack.c.b16 %v3611, %v3611
    %v3616 = vrot.slane %v3612, 6
    %v3617 = vrot.slane %v3613, 6
    %v3618 = vrot.slane %v3614, 6
    %v3619 = vrot.slane %v3615, 6
    %v3622 = vunpack.c.l.b16 %v3580
    %v3623 = vunpack.c.h.b16 %v3580
    %v3624 = vunpack.c.l.b16 %v3581
    %v3625 = vunpack.c.h.b16 %v3581
    %v3626 = vpack.c.b16 %v3622, %v3622
    %v3627 = vpack.c.b16 %v3623, %v3623
    %v3628 = vpack.c.b16 %v3624, %v3624
    %v3629 = vpack.c.b16 %v3625, %v3625
    %v3632 = vsel %vm395, %v3592, %v3602
    %v3635 = vsel %vm395, %v3593, %v3603
    %v3638 = vsel %vm395, %v3594, %v3604
    %v3641 = vsel %vm395, %v3595, %v3605
    %v3643 = vsel %vm53, %v3632, %v3616
    %v3645 = vsel %vm53, %v3635, %v3617
    %v3647 = vsel %vm53, %v3638, %v3618
    %v3649 = vsel %vm53, %v3641, %v3619
    %v3651 = vsel %vm416, %v3643, %v3626
    %v3653 = vsel %vm416, %v3645, %v3627
    %v3655 = vsel %vm416, %v3647, %v3628
    %v3657 = vsel %vm416, %v3649, %v3629
    %v3662 = vunpack.c.l.b16 %v3651
    %v3663 = vunpack.c.l.b16 %v3653
    %v3664 = vunpack.c.l.b16 %v3655
    %v3665 = vunpack.c.l.b16 %v3657
    %v3666 = vunpack.c.h.b16 %v3651
    %v3667 = vunpack.c.h.b16 %v3653
    %v3668 = vunpack.c.h.b16 %v3655
    %v3669 = vunpack.c.h.b16 %v3657
    %v3670 = vpack.c.b16 %v3663, %v3662
    %v3671 = vpack.c.b16 %v3665, %v3664
    %v3672 = vpack.c.b16 %v3667, %v3666
    %v3673 = vpack.c.b16 %v3669, %v3668
    %3678 = vst [vmem:[#allocation2 + $0x110] sm:$0xff] %v3670
    %3679 = vst [vmem:[#allocation2 + $0x118] sm:$0xff] %v3671
    %3680 = vst [vmem:[#allocation2 + $0x130] sm:$0xff] %v3672
    %3681 = vst [vmem:[#allocation2 + $0x138] sm:$0xff] %v3673
    %v3682 = vld [vmem:[#allocation6 + $0x20] sm:$0x44]
    %v3683 = vld [vmem:[#allocation6 + $0x28] sm:$0x44]
    %v3686 = vunpack.c.l.b16 %v3682
    %v3687 = vunpack.c.h.b16 %v3682
    %v3688 = vunpack.c.l.b16 %v3683
    %v3689 = vunpack.c.h.b16 %v3683
    %v3690 = vpack.c.b16 %v3686, %v3686
    %v3691 = vpack.c.b16 %v3687, %v3687
    %v3692 = vpack.c.b16 %v3688, %v3688
    %v3693 = vpack.c.b16 %v3689, %v3689
    %v3695 = vpack.i.b16 %v3690, %v3690
    %v3697 = vperm.slane %v3695, 2
    %v3699 = vpack.i.b16 %v3691, %v3691
    %v3701 = vperm.slane %v3699, 2
    %v3703 = vpack.i.b16 %v3692, %v3692
    %v3705 = vperm.slane %v3703, 2
    %v3707 = vpack.i.b16 %v3693, %v3693
    %v3709 = vperm.slane %v3707, 2
    %v3710 = vunpack.c.l.bf16 %v3697
    %v3711 = vunpack.c.l.bf16 %v3701
    %v3712 = vunpack.c.l.bf16 %v3705
    %v3713 = vunpack.c.l.bf16 %v3709
    %v3714 = vmul.f32 %v2319, %v3710
    %v3715 = vmul.f32 %v2320, %v3711
    %v3716 = vmul.f32 %v2321, %v3712
    %v3717 = vmul.f32 %v2318, %v3713
    %v3718 = vpack.c.bf16 %v3715, %v3714
    %v3719 = vpack.c.bf16 %v3717, %v3716
    %v3720 = vshrl.u32 %v3690, 16
    %v3721 = vpack.i.b16 %v3720, %v3720
    %v3723 = vperm.slane %v3721, 2
    %v3724 = vshrl.u32 %v3691, 16
    %v3725 = vpack.i.b16 %v3724, %v3724
    %v3727 = vperm.slane %v3725, 2
    %v3728 = vshrl.u32 %v3692, 16
    %v3729 = vpack.i.b16 %v3728, %v3728
    %v3731 = vperm.slane %v3729, 2
    %v3732 = vshrl.u32 %v3693, 16
    %v3733 = vpack.i.b16 %v3732, %v3732
    %v3735 = vperm.slane %v3733, 2
    %v3736 = vunpack.c.l.bf16 %v3723
    %v3737 = vunpack.c.l.bf16 %v3727
    %v3738 = vunpack.c.l.bf16 %v3731
    %v3739 = vunpack.c.l.bf16 %v3735
    %v3740 = vmul.f32 %v2367, %v3736
    %v3741 = vmul.f32 %v2368, %v3737
    %v3742 = vmul.f32 %v2369, %v3738
    %v3743 = vmul.f32 %v2366, %v3739
    %v3744 = vpack.c.bf16 %v3741, %v3740
    %v3745 = vpack.c.bf16 %v3743, %v3742
    %v3746 = vld [vmem:[#allocation6 + $0x20] sm:$0x88]
    %v3747 = vld [vmem:[#allocation6 + $0x28] sm:$0x88]
    %v3750 = vunpack.c.l.b16 %v3746
    %v3751 = vunpack.c.h.b16 %v3746
    %v3752 = vunpack.c.l.b16 %v3747
    %v3753 = vunpack.c.h.b16 %v3747
    %v3754 = vpack.c.b16 %v3750, %v3750
    %v3755 = vpack.c.b16 %v3751, %v3751
    %v3756 = vpack.c.b16 %v3752, %v3752
    %v3757 = vpack.c.b16 %v3753, %v3753
    %v3759 = vpack.i.b16 %v3754, %v3754
    %v3761 = vperm.slane %v3759, 3
    %v3763 = vpack.i.b16 %v3755, %v3755
    %v3765 = vperm.slane %v3763, 3
    %v3767 = vpack.i.b16 %v3756, %v3756
    %v3769 = vperm.slane %v3767, 3
    %v3771 = vpack.i.b16 %v3757, %v3757
    %v3773 = vperm.slane %v3771, 3
    %v3774 = vunpack.c.l.bf16 %v3761
    %v3775 = vunpack.c.l.bf16 %v3765
    %v3776 = vunpack.c.l.bf16 %v3769
    %v3777 = vunpack.c.l.bf16 %v3773
    %v3778 = vmul.f32 %v2527, %v3774
    %v3779 = vmul.f32 %v2528, %v3775
    %v3780 = vmul.f32 %v2529, %v3776
    %v3781 = vmul.f32 %v2526, %v3777
    %v3782 = vpack.c.bf16 %v3779, %v3778
    %v3783 = vpack.c.bf16 %v3781, %v3780
    %v3784 = vshrl.u32 %v3754, 16
    %v3785 = vpack.i.b16 %v3784, %v3784
    %v3787 = vperm.slane %v3785, 3
    %v3788 = vshrl.u32 %v3755, 16
    %v3789 = vpack.i.b16 %v3788, %v3788
    %v3791 = vperm.slane %v3789, 3
    %v3792 = vshrl.u32 %v3756, 16
    %v3793 = vpack.i.b16 %v3792, %v3792
    %v3795 = vperm.slane %v3793, 3
    %v3796 = vshrl.u32 %v3757, 16
    %v3797 = vpack.i.b16 %v3796, %v3796
    %v3799 = vperm.slane %v3797, 3
    %v3800 = vunpack.c.l.bf16 %v3787
    %v3801 = vunpack.c.l.bf16 %v3791
    %v3802 = vunpack.c.l.bf16 %v3795
    %v3803 = vunpack.c.l.bf16 %v3799
    %v3804 = vmul.f32 %v2575, %v3800
    %v3805 = vmul.f32 %v2576, %v3801
    %v3806 = vmul.f32 %v2577, %v3802
    %v3807 = vmul.f32 %v2574, %v3803
    %v3808 = vpack.c.bf16 %v3805, %v3804
    %v3809 = vpack.c.bf16 %v3807, %v3806
    %v3812 = vunpack.c.l.b16 %v3718
    %v3813 = vunpack.c.h.b16 %v3718
    %v3814 = vunpack.c.l.b16 %v3719
    %v3815 = vunpack.c.h.b16 %v3719
    %v3816 = vpack.c.b16 %v3812, %v3812
    %v3817 = vpack.c.b16 %v3813, %v3813
    %v3818 = vpack.c.b16 %v3814, %v3814
    %v3819 = vpack.c.b16 %v3815, %v3815
    %v3820 = vrot.slane %v3816, 2
    %v3821 = vrot.slane %v3817, 2
    %v3822 = vrot.slane %v3818, 2
    %v3823 = vrot.slane %v3819, 2
    %v3826 = vunpack.c.l.b16 %v3744
    %v3827 = vunpack.c.h.b16 %v3744
    %v3828 = vunpack.c.l.b16 %v3745
    %v3829 = vunpack.c.h.b16 %v3745
    %v3830 = vpack.c.b16 %v3826, %v3826
    %v3831 = vpack.c.b16 %v3827, %v3827
    %v3832 = vpack.c.b16 %v3828, %v3828
    %v3833 = vpack.c.b16 %v3829, %v3829
    %v3836 = vunpack.c.l.b16 %v3782
    %v3837 = vunpack.c.h.b16 %v3782
    %v3838 = vunpack.c.l.b16 %v3783
    %v3839 = vunpack.c.h.b16 %v3783
    %v3840 = vpack.c.b16 %v3836, %v3836
    %v3841 = vpack.c.b16 %v3837, %v3837
    %v3842 = vpack.c.b16 %v3838, %v3838
    %v3843 = vpack.c.b16 %v3839, %v3839
    %v3844 = vrot.slane %v3840, 6
    %v3845 = vrot.slane %v3841, 6
    %v3846 = vrot.slane %v3842, 6
    %v3847 = vrot.slane %v3843, 6
    %v3850 = vunpack.c.l.b16 %v3808
    %v3851 = vunpack.c.h.b16 %v3808
    %v3852 = vunpack.c.l.b16 %v3809
    %v3853 = vunpack.c.h.b16 %v3809
    %v3854 = vpack.c.b16 %v3850, %v3850
    %v3855 = vpack.c.b16 %v3851, %v3851
    %v3856 = vpack.c.b16 %v3852, %v3852
    %v3857 = vpack.c.b16 %v3853, %v3853
    %v3860 = vsel %vm395, %v3820, %v3830
    %v3863 = vsel %vm395, %v3821, %v3831
    %v3866 = vsel %vm395, %v3822, %v3832
    %v3869 = vsel %vm395, %v3823, %v3833
    %v3871 = vsel %vm53, %v3860, %v3844
    %v3873 = vsel %vm53, %v3863, %v3845
    %v3875 = vsel %vm53, %v3866, %v3846
    %v3877 = vsel %vm53, %v3869, %v3847
    %v3879 = vsel %vm416, %v3871, %v3854
    %v3881 = vsel %vm416, %v3873, %v3855
    %v3883 = vsel %vm416, %v3875, %v3856
    %v3885 = vsel %vm416, %v3877, %v3857
    %v3890 = vunpack.c.l.b16 %v3879
    %v3891 = vunpack.c.l.b16 %v3881
    %v3892 = vunpack.c.l.b16 %v3883
    %v3893 = vunpack.c.l.b16 %v3885
    %v3894 = vunpack.c.h.b16 %v3879
    %v3895 = vunpack.c.h.b16 %v3881
    %v3896 = vunpack.c.h.b16 %v3883
    %v3897 = vunpack.c.h.b16 %v3885
    %v3898 = vpack.c.b16 %v3891, %v3890
    %v3899 = vpack.c.b16 %v3893, %v3892
    %v3900 = vpack.c.b16 %v3895, %v3894
    %v3901 = vpack.c.b16 %v3897, %v3896
    %3906 = vst [vmem:[#allocation2 + $0x150] sm:$0xff] %v3898
    %3907 = vst [vmem:[#allocation2 + $0x158] sm:$0xff] %v3899
    %3908 = vst [vmem:[#allocation2 + $0x170] sm:$0xff] %v3900
    %3909 = vst [vmem:[#allocation2 + $0x178] sm:$0xff] %v3901
    %v3910 = vld [vmem:[#allocation6 + $0x30] sm:$0x11]
    %v3911 = vld [vmem:[#allocation6 + $0x38] sm:$0x11]
    %v3914 = vunpack.c.l.b16 %v3910
    %v3915 = vunpack.c.h.b16 %v3910
    %v3916 = vunpack.c.l.b16 %v3911
    %v3917 = vunpack.c.h.b16 %v3911
    %v3918 = vpack.c.b16 %v3914, %v3914
    %v3919 = vpack.c.b16 %v3915, %v3915
    %v3920 = vpack.c.b16 %v3916, %v3916
    %v3921 = vpack.c.b16 %v3917, %v3917
    %v3923 = vpack.i.b16 %v3918, %v3918
    %v3925 = vperm.slane %v3923, 0
    %v3927 = vpack.i.b16 %v3919, %v3919
    %v3929 = vperm.slane %v3927, 0
    %v3931 = vpack.i.b16 %v3920, %v3920
    %v3933 = vperm.slane %v3931, 0
    %v3935 = vpack.i.b16 %v3921, %v3921
    %v3937 = vperm.slane %v3935, 0
    %v3938 = vunpack.c.l.bf16 %v3925
    %v3939 = vunpack.c.l.bf16 %v3929
    %v3940 = vunpack.c.l.bf16 %v3933
    %v3941 = vunpack.c.l.bf16 %v3937
    %v3942 = vmul.f32 %v2635, %v3938
    %v3943 = vmul.f32 %v2636, %v3939
    %v3944 = vmul.f32 %v2637, %v3940
    %v3945 = vmul.f32 %v2634, %v3941
    %v3946 = vpack.c.bf16 %v3943, %v3942
    %v3947 = vpack.c.bf16 %v3945, %v3944
    %v3948 = vshrl.u32 %v3918, 16
    %v3949 = vpack.i.b16 %v3948, %v3948
    %v3951 = vperm.slane %v3949, 0
    %v3952 = vshrl.u32 %v3919, 16
    %v3953 = vpack.i.b16 %v3952, %v3952
    %v3955 = vperm.slane %v3953, 0
    %v3956 = vshrl.u32 %v3920, 16
    %v3957 = vpack.i.b16 %v3956, %v3956
    %v3959 = vperm.slane %v3957, 0
    %v3960 = vshrl.u32 %v3921, 16
    %v3961 = vpack.i.b16 %v3960, %v3960
    %v3963 = vperm.slane %v3961, 0
    %v3964 = vunpack.c.l.bf16 %v3951
    %v3965 = vunpack.c.l.bf16 %v3955
    %v3966 = vunpack.c.l.bf16 %v3959
    %v3967 = vunpack.c.l.bf16 %v3963
    %v3968 = vmul.f32 %v2683, %v3964
    %v3969 = vmul.f32 %v2684, %v3965
    %v3970 = vmul.f32 %v2685, %v3966
    %v3971 = vmul.f32 %v2682, %v3967
    %v3972 = vpack.c.bf16 %v3969, %v3968
    %v3973 = vpack.c.bf16 %v3971, %v3970
    %v3974 = vld [vmem:[#allocation6 + $0x30] sm:$0x22]
    %v3975 = vld [vmem:[#allocation6 + $0x38] sm:$0x22]
    %v3978 = vunpack.c.l.b16 %v3974
    %v3979 = vunpack.c.h.b16 %v3974
    %v3980 = vunpack.c.l.b16 %v3975
    %v3981 = vunpack.c.h.b16 %v3975
    %v3982 = vpack.c.b16 %v3978, %v3978
    %v3983 = vpack.c.b16 %v3979, %v3979
    %v3984 = vpack.c.b16 %v3980, %v3980
    %v3985 = vpack.c.b16 %v3981, %v3981
    %v3987 = vpack.i.b16 %v3982, %v3982
    %v3989 = vperm.slane %v3987, 1
    %v3991 = vpack.i.b16 %v3983, %v3983
    %v3993 = vperm.slane %v3991, 1
    %v3995 = vpack.i.b16 %v3984, %v3984
    %v3997 = vperm.slane %v3995, 1
    %v3999 = vpack.i.b16 %v3985, %v3985
    %v4001 = vperm.slane %v3999, 1
    %v4002 = vunpack.c.l.bf16 %v3989
    %v4003 = vunpack.c.l.bf16 %v3993
    %v4004 = vunpack.c.l.bf16 %v3997
    %v4005 = vunpack.c.l.bf16 %v4001
    %v4006 = vmul.f32 %v2843, %v4002
    %v4007 = vmul.f32 %v2844, %v4003
    %v4008 = vmul.f32 %v2845, %v4004
    %v4009 = vmul.f32 %v2842, %v4005
    %v4010 = vpack.c.bf16 %v4007, %v4006
    %v4011 = vpack.c.bf16 %v4009, %v4008
    %v4014 = vunpack.c.l.b16 %v3946
    %v4015 = vunpack.c.h.b16 %v3946
    %v4016 = vunpack.c.l.b16 %v3947
    %v4017 = vunpack.c.h.b16 %v3947
    %v4018 = vpack.c.b16 %v4014, %v4014
    %v4019 = vpack.c.b16 %v4015, %v4015
    %v4020 = vpack.c.b16 %v4016, %v4016
    %v4021 = vpack.c.b16 %v4017, %v4017
    %v4022 = vrot.slane %v4018, 2
    %v4023 = vrot.slane %v4019, 2
    %v4024 = vrot.slane %v4020, 2
    %v4025 = vrot.slane %v4021, 2
    %v4028 = vunpack.c.l.b16 %v3972
    %v4029 = vunpack.c.h.b16 %v3972
    %v4030 = vunpack.c.l.b16 %v3973
    %v4031 = vunpack.c.h.b16 %v3973
    %v4032 = vpack.c.b16 %v4028, %v4028
    %v4033 = vpack.c.b16 %v4029, %v4029
    %v4034 = vpack.c.b16 %v4030, %v4030
    %v4035 = vpack.c.b16 %v4031, %v4031
    %v4038 = vunpack.c.l.b16 %v4010
    %v4039 = vunpack.c.h.b16 %v4010
    %v4040 = vunpack.c.l.b16 %v4011
    %v4041 = vunpack.c.h.b16 %v4011
    %v4042 = vpack.c.b16 %v4038, %v4038
    %v4043 = vpack.c.b16 %v4039, %v4039
    %v4044 = vpack.c.b16 %v4040, %v4040
    %v4045 = vpack.c.b16 %v4041, %v4041
    %v4046 = vrot.slane %v4042, 6
    %v4047 = vrot.slane %v4043, 6
    %v4048 = vrot.slane %v4044, 6
    %v4049 = vrot.slane %v4045, 6
    %v4052 = vsel %vm395, %v4022, %v4032
    %v4055 = vsel %vm395, %v4023, %v4033
    %v4058 = vsel %vm395, %v4024, %v4034
    %v4061 = vsel %vm395, %v4025, %v4035
    %v4063 = vsel %vm53, %v4052, %v4046
    %v4065 = vsel %vm53, %v4055, %v4047
    %v4067 = vsel %vm53, %v4058, %v4048
    %v4069 = vsel %vm53, %v4061, %v4049
    %v4070 = vsel %vm416, %v4063, 0
    %v4071 = vsel %vm416, %v4065, 0
    %v4072 = vsel %vm416, %v4067, 0
    %v4073 = vsel %vm416, %v4069, 0
    %v4078 = vunpack.c.l.b16 %v4070
    %v4079 = vunpack.c.l.b16 %v4071
    %v4080 = vunpack.c.l.b16 %v4072
    %v4081 = vunpack.c.l.b16 %v4073
    %v4082 = vunpack.c.h.b16 %v4070
    %v4083 = vunpack.c.h.b16 %v4071
    %v4084 = vunpack.c.h.b16 %v4072
    %v4085 = vunpack.c.h.b16 %v4073
    %v4086 = vpack.c.b16 %v4079, %v4078
    %v4087 = vpack.c.b16 %v4081, %v4080
    %v4088 = vpack.c.b16 %v4083, %v4082
    %v4089 = vpack.c.b16 %v4085, %v4084
    %4094 = vst [vmem:[#allocation2 + $0x190] sm:$0xff] %v4086
    %4095 = vst [vmem:[#allocation2 + $0x198] sm:$0xff] %v4087
    %4096 = vst [vmem:[#allocation2 + $0x1b0] sm:$0xff] %v4088
    %4097 = vst [vmem:[#allocation2 + $0x1b8] sm:$0xff] %v4089
    %v4098 = vld [vmem:[%s1] sm:$0x3]
    %v4099 = vld [vmem:[#allocation2] sm:$0xff]
    %v4100 = vld [vmem:[#allocation2 + $0x8] sm:$0xff]
    %v4101 = vld [vmem:[#allocation2 + $0x10] sm:$0xff]
    %v4102 = vld [vmem:[#allocation2 + $0x18] sm:$0xff]
    %v4103 = vld [vmem:[#allocation2 + $0x20] sm:$0xff]
    %v4104 = vld [vmem:[#allocation2 + $0x28] sm:$0xff]
    %v4105 = vld [vmem:[#allocation2 + $0x30] sm:$0xff]
    %v4106 = vld [vmem:[#allocation2 + $0x38] sm:$0xff]
    %v4107 = vld [vmem:[#allocation2 + $0x40] sm:$0xff]
    %v4108 = vld [vmem:[#allocation2 + $0x48] sm:$0xff]
    %v4109 = vld [vmem:[#allocation2 + $0x50] sm:$0xff]
    %v4110 = vld [vmem:[#allocation2 + $0x58] sm:$0xff]
    %v4111 = vld [vmem:[#allocation2 + $0x60] sm:$0xff]
    %v4112 = vld [vmem:[#allocation2 + $0x68] sm:$0xff]
    %v4113 = vld [vmem:[#allocation2 + $0x70] sm:$0xff]
    %v4114 = vld [vmem:[#allocation2 + $0x78] sm:$0xff]
    %v4115 = vld [vmem:[#allocation2 + $0x80] sm:$0xff]
    %v4116 = vld [vmem:[#allocation2 + $0x88] sm:$0xff]
    %v4117 = vld [vmem:[#allocation2 + $0x90] sm:$0xff]
    %v4118 = vld [vmem:[#allocation2 + $0x98] sm:$0xff]
    %v4119 = vld [vmem:[#allocation2 + $0xa0] sm:$0xff]
    %v4120 = vld [vmem:[#allocation2 + $0xa8] sm:$0xff]
    %v4121 = vld [vmem:[#allocation2 + $0xb0] sm:$0xff]
    %v4122 = vld [vmem:[#allocation2 + $0xb8] sm:$0xff]
    %v4123 = vld [vmem:[#allocation2 + $0xc0] sm:$0xff]
    %v4124 = vld [vmem:[#allocation2 + $0xc8] sm:$0xff]
    %v4125 = vld [vmem:[#allocation2 + $0xd0] sm:$0xff]
    %v4126 = vld [vmem:[#allocation2 + $0xd8] sm:$0xff]
    %v4127 = vld [vmem:[#allocation2 + $0xe0] sm:$0xff]
    %v4128 = vld [vmem:[#allocation2 + $0xe8] sm:$0xff]
    %v4129 = vld [vmem:[#allocation2 + $0xf0] sm:$0xff]
    %v4130 = vld [vmem:[#allocation2 + $0xf8] sm:$0xff]
    %v4131 = vld [vmem:[#allocation2 + $0x100] sm:$0xff]
    %v4132 = vld [vmem:[#allocation2 + $0x108] sm:$0xff]
    %v4133 = vld [vmem:[#allocation2 + $0x110] sm:$0xff]
    %v4134 = vld [vmem:[#allocation2 + $0x118] sm:$0xff]
    %v4135 = vld [vmem:[#allocation2 + $0x120] sm:$0xff]
    %v4136 = vld [vmem:[#allocation2 + $0x128] sm:$0xff]
    %v4137 = vld [vmem:[#allocation2 + $0x130] sm:$0xff]
    %v4138 = vld [vmem:[#allocation2 + $0x138] sm:$0xff]
    %v4139 = vld [vmem:[#allocation2 + $0x140] sm:$0xff]
    %v4140 = vld [vmem:[#allocation2 + $0x148] sm:$0xff]
    %v4141 = vld [vmem:[#allocation2 + $0x150] sm:$0xff]
    %v4142 = vld [vmem:[#allocation2 + $0x158] sm:$0xff]
    %v4143 = vld [vmem:[#allocation2 + $0x160] sm:$0xff]
    %v4144 = vld [vmem:[#allocation2 + $0x168] sm:$0xff]
    %v4145 = vld [vmem:[#allocation2 + $0x170] sm:$0xff]
    %v4146 = vld [vmem:[#allocation2 + $0x178] sm:$0xff]
    %v4147 = vld [vmem:[#allocation2 + $0x180] sm:$0xff]
    %v4148 = vld [vmem:[#allocation2 + $0x188] sm:$0xff]
    %v4149 = vld [vmem:[#allocation2 + $0x190] sm:$0xff]
    %v4150 = vld [vmem:[#allocation2 + $0x198] sm:$0xff]
    %v4151 = vld [vmem:[#allocation2 + $0x1a0] sm:$0xff]
    %v4152 = vld [vmem:[#allocation2 + $0x1a8] sm:$0xff]
    %v4153 = vld [vmem:[#allocation2 + $0x1b0] sm:$0xff]
    %v4154 = vld [vmem:[#allocation2 + $0x1b8] sm:$0xff]
    %v4211 = vunpack.c.l.b16 %v4099
    %v4212 = vunpack.c.h.b16 %v4099
    %v4213 = vunpack.c.l.b16 %v4100
    %v4214 = vunpack.c.h.b16 %v4100
    %v4215 = vunpack.c.l.b16 %v4101
    %v4216 = vunpack.c.h.b16 %v4101
    %v4217 = vunpack.c.l.b16 %v4102
    %v4218 = vunpack.c.h.b16 %v4102
    %v4219 = vunpack.c.l.b16 %v4103
    %v4220 = vunpack.c.h.b16 %v4103
    %v4221 = vunpack.c.l.b16 %v4104
    %v4222 = vunpack.c.h.b16 %v4104
    %v4223 = vunpack.c.l.b16 %v4105
    %v4224 = vunpack.c.h.b16 %v4105
    %v4225 = vunpack.c.l.b16 %v4106
    %v4226 = vunpack.c.h.b16 %v4106
    %v4227 = vunpack.c.l.b16 %v4107
    %v4228 = vunpack.c.h.b16 %v4107
    %v4229 = vunpack.c.l.b16 %v4108
    %v4230 = vunpack.c.h.b16 %v4108
    %v4231 = vunpack.c.l.b16 %v4109
    %v4232 = vunpack.c.h.b16 %v4109
    %v4233 = vunpack.c.l.b16 %v4110
    %v4234 = vunpack.c.h.b16 %v4110
    %v4235 = vunpack.c.l.b16 %v4111
    %v4236 = vunpack.c.h.b16 %v4111
    %v4237 = vunpack.c.l.b16 %v4112
    %v4238 = vunpack.c.h.b16 %v4112
    %v4239 = vunpack.c.l.b16 %v4113
    %v4240 = vunpack.c.h.b16 %v4113
    %v4241 = vunpack.c.l.b16 %v4114
    %v4242 = vunpack.c.h.b16 %v4114
    %v4243 = vunpack.c.l.b16 %v4115
    %v4244 = vunpack.c.h.b16 %v4115
    %v4245 = vunpack.c.l.b16 %v4116
    %v4246 = vunpack.c.h.b16 %v4116
    %v4247 = vunpack.c.l.b16 %v4117
    %v4248 = vunpack.c.h.b16 %v4117
    %v4249 = vunpack.c.l.b16 %v4118
    %v4250 = vunpack.c.h.b16 %v4118
    %v4251 = vunpack.c.l.b16 %v4119
    %v4252 = vunpack.c.h.b16 %v4119
    %v4253 = vunpack.c.l.b16 %v4120
    %v4254 = vunpack.c.h.b16 %v4120
    %v4255 = vunpack.c.l.b16 %v4121
    %v4256 = vunpack.c.h.b16 %v4121
    %v4257 = vunpack.c.l.b16 %v4122
    %v4258 = vunpack.c.h.b16 %v4122
    %v4259 = vunpack.c.l.b16 %v4123
    %v4260 = vunpack.c.h.b16 %v4123
    %v4261 = vunpack.c.l.b16 %v4124
    %v4262 = vunpack.c.h.b16 %v4124
    %v4263 = vunpack.c.l.b16 %v4125
    %v4264 = vunpack.c.h.b16 %v4125
    %v4265 = vunpack.c.l.b16 %v4126
    %v4266 = vunpack.c.h.b16 %v4126
    %v4267 = vunpack.c.l.b16 %v4127
    %v4268 = vunpack.c.h.b16 %v4127
    %v4269 = vunpack.c.l.b16 %v4128
    %v4270 = vunpack.c.h.b16 %v4128
    %v4271 = vunpack.c.l.b16 %v4129
    %v4272 = vunpack.c.h.b16 %v4129
    %v4273 = vunpack.c.l.b16 %v4130
    %v4274 = vunpack.c.h.b16 %v4130
    %v4275 = vunpack.c.l.b16 %v4131
    %v4276 = vunpack.c.h.b16 %v4131
    %v4277 = vunpack.c.l.b16 %v4132
    %v4278 = vunpack.c.h.b16 %v4132
    %v4279 = vunpack.c.l.b16 %v4133
    %v4280 = vunpack.c.h.b16 %v4133
    %v4281 = vunpack.c.l.b16 %v4134
    %v4282 = vunpack.c.h.b16 %v4134
    %v4283 = vunpack.c.l.b16 %v4135
    %v4284 = vunpack.c.h.b16 %v4135
    %v4285 = vunpack.c.l.b16 %v4136
    %v4286 = vunpack.c.h.b16 %v4136
    %v4287 = vunpack.c.l.b16 %v4137
    %v4288 = vunpack.c.h.b16 %v4137
    %v4289 = vunpack.c.l.b16 %v4138
    %v4290 = vunpack.c.h.b16 %v4138
    %v4291 = vunpack.c.l.b16 %v4139
    %v4292 = vunpack.c.h.b16 %v4139
    %v4293 = vunpack.c.l.b16 %v4140
    %v4294 = vunpack.c.h.b16 %v4140
    %v4295 = vunpack.c.l.b16 %v4141
    %v4296 = vunpack.c.h.b16 %v4141
    %v4297 = vunpack.c.l.b16 %v4142
    %v4298 = vunpack.c.h.b16 %v4142
    %v4299 = vunpack.c.l.b16 %v4143
    %v4300 = vunpack.c.h.b16 %v4143
    %v4301 = vunpack.c.l.b16 %v4144
    %v4302 = vunpack.c.h.b16 %v4144
    %v4303 = vunpack.c.l.b16 %v4145
    %v4304 = vunpack.c.h.b16 %v4145
    %v4305 = vunpack.c.l.b16 %v4146
    %v4306 = vunpack.c.h.b16 %v4146
    %v4307 = vunpack.c.l.b16 %v4147
    %v4308 = vunpack.c.h.b16 %v4147
    %v4309 = vunpack.c.l.b16 %v4148
    %v4310 = vunpack.c.h.b16 %v4148
    %v4311 = vunpack.c.l.b16 %v4149
    %v4312 = vunpack.c.h.b16 %v4149
    %v4313 = vunpack.c.l.b16 %v4150
    %v4314 = vunpack.c.h.b16 %v4150
    %v4315 = vunpack.c.l.b16 %v4151
    %v4316 = vunpack.c.h.b16 %v4151
    %v4317 = vunpack.c.l.b16 %v4152
    %v4318 = vunpack.c.h.b16 %v4152
    %v4319 = vunpack.c.l.b16 %v4153
    %v4320 = vunpack.c.h.b16 %v4153
    %v4321 = vunpack.c.l.b16 %v4154
    %v4322 = vunpack.c.h.b16 %v4154
    %v4323 = vpack.c.b16 %v4219, %v4211
    %v4324 = vpack.c.b16 %v4220, %v4212
    %v4325 = vpack.c.b16 %v4221, %v4213
    %v4326 = vpack.c.b16 %v4222, %v4214
    %v4327 = vpack.c.b16 %v4223, %v4215
    %v4328 = vpack.c.b16 %v4224, %v4216
    %v4329 = vpack.c.b16 %v4225, %v4217
    %v4330 = vpack.c.b16 %v4226, %v4218
    %v4331 = vpack.c.b16 %v4235, %v4227
    %v4332 = vpack.c.b16 %v4236, %v4228
    %v4333 = vpack.c.b16 %v4237, %v4229
    %v4334 = vpack.c.b16 %v4238, %v4230
    %v4335 = vpack.c.b16 %v4239, %v4231
    %v4336 = vpack.c.b16 %v4240, %v4232
    %v4337 = vpack.c.b16 %v4241, %v4233
    %v4338 = vpack.c.b16 %v4242, %v4234
    %v4339 = vpack.c.b16 %v4251, %v4243
    %v4340 = vpack.c.b16 %v4252, %v4244
    %v4341 = vpack.c.b16 %v4253, %v4245
    %v4342 = vpack.c.b16 %v4254, %v4246
    %v4343 = vpack.c.b16 %v4255, %v4247
    %v4344 = vpack.c.b16 %v4256, %v4248
    %v4345 = vpack.c.b16 %v4257, %v4249
    %v4346 = vpack.c.b16 %v4258, %v4250
    %v4347 = vpack.c.b16 %v4267, %v4259
    %v4348 = vpack.c.b16 %v4268, %v4260
    %v4349 = vpack.c.b16 %v4269, %v4261
    %v4350 = vpack.c.b16 %v4270, %v4262
    %v4351 = vpack.c.b16 %v4271, %v4263
    %v4352 = vpack.c.b16 %v4272, %v4264
    %v4353 = vpack.c.b16 %v4273, %v4265
    %v4354 = vpack.c.b16 %v4274, %v4266
    %v4355 = vpack.c.b16 %v4283, %v4275
    %v4356 = vpack.c.b16 %v4284, %v4276
    %v4357 = vpack.c.b16 %v4285, %v4277
    %v4358 = vpack.c.b16 %v4286, %v4278
    %v4359 = vpack.c.b16 %v4287, %v4279
    %v4360 = vpack.c.b16 %v4288, %v4280
    %v4361 = vpack.c.b16 %v4289, %v4281
    %v4362 = vpack.c.b16 %v4290, %v4282
    %v4363 = vpack.c.b16 %v4299, %v4291
    %v4364 = vpack.c.b16 %v4300, %v4292
    %v4365 = vpack.c.b16 %v4301, %v4293
    %v4366 = vpack.c.b16 %v4302, %v4294
    %v4367 = vpack.c.b16 %v4303, %v4295
    %v4368 = vpack.c.b16 %v4304, %v4296
    %v4369 = vpack.c.b16 %v4305, %v4297
    %v4370 = vpack.c.b16 %v4306, %v4298
    %v4371 = vpack.c.b16 %v4315, %v4307
    %v4372 = vpack.c.b16 %v4316, %v4308
    %v4373 = vpack.c.b16 %v4317, %v4309
    %v4374 = vpack.c.b16 %v4318, %v4310
    %v4375 = vpack.c.b16 %v4319, %v4311
    %v4376 = vpack.c.b16 %v4320, %v4312
    %v4377 = vpack.c.b16 %v4321, %v4313
    %v4378 = vpack.c.b16 %v4322, %v4314
    %vm4435 = vcmask 916480
    %v4437 = vsel %vm4435, %v4098, 0
    %4439 = vmatpush.bf16.msra.mxu0 0
    %4440 = vmatpush.bf16.msra.mxu0 %v4371
    %4441 = vmatpush.bf16.msra.mxu0 %v4363
    %4442 = vmatpush.bf16.msra.mxu0 %v4355
    %4443 = vmatpush.bf16.msra.mxu0 %v4347
    %4444 = vmatpush.bf16.msra.mxu0 %v4339
    %4445 = vmatpush.bf16.msra.mxu0 %v4331
    %4446 = vmatpush.bf16.msra.mxu0 %v4323
    %4447 = vmatmul.bf16.gmra.mxu0 %v4437
    %v4448 = vpop.f32.mrf.mxu0
    %v4449 = vadd.f32 0.0, %v4448
    %v4450 = vpop.f32.mrf.mxu0
    %4451 = vdwg.mxu0
    %4452 = vmatpush.bf16.msra.mxu0 0
    %4453 = vmatpush.bf16.msra.mxu0 %v4372
    %4454 = vmatpush.bf16.msra.mxu0 %v4364
    %4455 = vmatpush.bf16.msra.mxu0 %v4356
    %4456 = vmatpush.bf16.msra.mxu0 %v4348
    %4457 = vmatpush.bf16.msra.mxu0 %v4340
    %4458 = vmatpush.bf16.msra.mxu0 %v4332
    %4459 = vmatpush.bf16.msra.mxu0 %v4324
    %4460 = vmatmul.bf16.gmra.mxu0 %v4437
    %v4461 = vpop.f32.mrf.mxu0
    %v4462 = vadd.f32 0.0, %v4461
    %v4463 = vpop.f32.mrf.mxu0
    %4464 = vdwg.mxu0
    %4465 = vmatpush.bf16.msra.mxu0 0
    %4466 = vmatpush.bf16.msra.mxu0 %v4373
    %4467 = vmatpush.bf16.msra.mxu0 %v4365
    %4468 = vmatpush.bf16.msra.mxu0 %v4357
    %4469 = vmatpush.bf16.msra.mxu0 %v4349
    %4470 = vmatpush.bf16.msra.mxu0 %v4341
    %4471 = vmatpush.bf16.msra.mxu0 %v4333
    %4472 = vmatpush.bf16.msra.mxu0 %v4325
    %4473 = vmatmul.bf16.gmra.mxu0 %v4437
    %v4474 = vpop.f32.mrf.mxu0
    %v4475 = vadd.f32 0.0, %v4474
    %v4476 = vpop.f32.mrf.mxu0
    %4477 = vdwg.mxu0
    %4478 = vmatpush.bf16.msra.mxu0 0
    %4479 = vmatpush.bf16.msra.mxu0 %v4374
    %4480 = vmatpush.bf16.msra.mxu0 %v4366
    %4481 = vmatpush.bf16.msra.mxu0 %v4358
    %4482 = vmatpush.bf16.msra.mxu0 %v4350
    %4483 = vmatpush.bf16.msra.mxu0 %v4342
    %4484 = vmatpush.bf16.msra.mxu0 %v4334
    %4485 = vmatpush.bf16.msra.mxu0 %v4326
    %4486 = vmatmul.bf16.gmra.mxu0 %v4437
    %v4487 = vpop.f32.mrf.mxu0
    %v4488 = vadd.f32 0.0, %v4487
    %v4489 = vpop.f32.mrf.mxu0
    %4490 = vdwg.mxu0
    %4491 = vmatpush.bf16.msra.mxu0 0
    %4492 = vmatpush.bf16.msra.mxu0 %v4375
    %4493 = vmatpush.bf16.msra.mxu0 %v4367
    %4494 = vmatpush.bf16.msra.mxu0 %v4359
    %4495 = vmatpush.bf16.msra.mxu0 %v4351
    %4496 = vmatpush.bf16.msra.mxu0 %v4343
    %4497 = vmatpush.bf16.msra.mxu0 %v4335
    %4498 = vmatpush.bf16.msra.mxu0 %v4327
    %4499 = vmatmul.bf16.gmra.mxu0 %v4437
    %v4500 = vpop.f32.mrf.mxu0
    %v4501 = vadd.f32 0.0, %v4500
    %v4502 = vpop.f32.mrf.mxu0
    %4503 = vdwg.mxu0
    %4504 = vmatpush.bf16.msra.mxu0 0
    %4505 = vmatpush.bf16.msra.mxu0 %v4376
    %4506 = vmatpush.bf16.msra.mxu0 %v4368
    %4507 = vmatpush.bf16.msra.mxu0 %v4360
    %4508 = vmatpush.bf16.msra.mxu0 %v4352
    %4509 = vmatpush.bf16.msra.mxu0 %v4344
    %4510 = vmatpush.bf16.msra.mxu0 %v4336
    %4511 = vmatpush.bf16.msra.mxu0 %v4328
    %4512 = vmatmul.bf16.gmra.mxu0 %v4437
    %v4513 = vpop.f32.mrf.mxu0
    %v4514 = vadd.f32 0.0, %v4513
    %v4515 = vpop.f32.mrf.mxu0
    %4516 = vdwg.mxu0
    %4517 = vmatpush.bf16.msra.mxu0 0
    %4518 = vmatpush.bf16.msra.mxu0 %v4377
    %4519 = vmatpush.bf16.msra.mxu0 %v4369
    %4520 = vmatpush.bf16.msra.mxu0 %v4361
    %4521 = vmatpush.bf16.msra.mxu0 %v4353
    %4522 = vmatpush.bf16.msra.mxu0 %v4345
    %4523 = vmatpush.bf16.msra.mxu0 %v4337
    %4524 = vmatpush.bf16.msra.mxu0 %v4329
    %4525 = vmatmul.bf16.gmra.mxu0 %v4437
    %v4526 = vpop.f32.mrf.mxu0
    %v4527 = vadd.f32 0.0, %v4526
    %v4528 = vpop.f32.mrf.mxu0
    %4529 = vdwg.mxu0
    %4530 = vmatpush.bf16.msra.mxu0 0
    %4531 = vmatpush.bf16.msra.mxu0 %v4378
    %4532 = vmatpush.bf16.msra.mxu0 %v4370
    %4533 = vmatpush.bf16.msra.mxu0 %v4362
    %4534 = vmatpush.bf16.msra.mxu0 %v4354
    %4535 = vmatpush.bf16.msra.mxu0 %v4346
    %4536 = vmatpush.bf16.msra.mxu0 %v4338
    %4537 = vmatpush.bf16.msra.mxu0 %v4330
    %4538 = vmatmul.bf16.gmra.mxu0 %v4437
    %v4539 = vpop.f32.mrf.mxu0
    %v4540 = vadd.f32 0.0, %v4539
    %v4541 = vpop.f32.mrf.mxu0
    %4542 = vdwg.mxu0
    %v4543 = vld [vmem:[#allocation3] sm:$0xf]
    %v4544 = vld [vmem:[#allocation3 + $0x8] sm:$0xf]
    %v4545 = vld [vmem:[#allocation3 + $0x10] sm:$0xf]
    %v4546 = vld [vmem:[#allocation3 + $0x18] sm:$0xf]
    %v4547 = vld [vmem:[%s2] sm:$0xf]
    %4549 = vset.pattern.permute.xlu0 0
    %4550 = vperm.xlu0 %4549, %v4547
    %v4551 = vpop.permute.xlu0 %4550
    %v4553 = vadd.f32 %v4449, %v4551
    %v4554 = vadd.f32 %v4462, %v4551
    %v4555 = vadd.f32 %v4475, %v4551
    %v4556 = vadd.f32 %v4488, %v4551
    %v4557 = vadd.f32 %v4553, %v4543
    %v4558 = vadd.f32 %v4554, %v4544
    %v4559 = vadd.f32 %v4555, %v4545
    %v4560 = vadd.f32 %v4556, %v4546
    %v4561 = vsel %vm53, %v4557, 0.0
    %v4562 = vsel %vm53, %v4558, 0.0
    %v4563 = vadd.f32 %v4561, %v4562
    %v4564 = vsel %vm53, %v4559, 0.0
    %v4565 = vadd.f32 %v4563, %v4564
    %v4566 = vsel %vm53, %v4560, 0.0
    %v4567 = vadd.f32 %v4565, %v4566
    %4568 = vadd.xlane.f32.xlu0 %v4567
    %v4569 = vpop.xlane.xlu0 %4568
    %v4570 = vmul.f32 %v4569, 0.001953125
    %v4571 = vmul.f32 %v4557, %v4557
    %v4572 = vmul.f32 %v4558, %v4558
    %v4573 = vmul.f32 %v4559, %v4559
    %v4574 = vmul.f32 %v4560, %v4560
    %v4575 = vsel %vm53, %v4571, 0.0
    %v4576 = vsel %vm53, %v4572, 0.0
    %v4577 = vadd.f32 %v4575, %v4576
    %v4578 = vsel %vm53, %v4573, 0.0
    %v4579 = vadd.f32 %v4577, %v4578
    %v4580 = vsel %vm53, %v4574, 0.0
    %v4581 = vadd.f32 %v4579, %v4580
    %4582 = vadd.xlane.f32.xlu0 %v4581
    %v4583 = vpop.xlane.xlu0 %4582
    %v4584 = vmul.f32 %v4583, 0.001953125
    %v4585 = vsub.f32 %v4557, %v4570
    %v4586 = vsub.f32 %v4558, %v4570
    %v4587 = vsub.f32 %v4559, %v4570
    %v4588 = vsub.f32 %v4560, %v4570
    %v4589 = vmul.f32 %v4570, %v4570
    %v4590 = vsub.f32 %v4584, %v4589
    %v4591 = vadd.f32 %v4590, 1e-05
    %v4592 = vrsqrt.pop %v4591
    %v4593 = vmul.f32 %v4592, %v4591
    %v4594 = vmul.f32 %v4593, %v4592
    %v4595 = vmul.f32 0.5, %v4594
    %v4596 = vsub.f32 1.5, %v4595
    %v4597 = vmul.f32 %v4592, %v4596
    %vm4598 = vweird.f32 %v4591
    %vm4599 = vweird.f32 %v4592
    %vm4600 = vmor %vm4598, %vm4599
    %v4601 = vsel %vm4600, %v4592, %v4597
    %v4602 = vmul.f32 %v4585, %v4601
    %v4603 = vmul.f32 %v4586, %v4601
    %v4604 = vmul.f32 %v4587, %v4601
    %v4605 = vmul.f32 %v4588, %v4601
    %vm4606 = vcmp.ge.f32.partialorder %v4602, 0.0
    %vm4607 = vcmp.ge.f32.partialorder %v4603, 0.0
    %vm4608 = vcmp.ge.f32.partialorder %v4604, 0.0
    %vm4609 = vcmp.ge.f32.partialorder %v4605, 0.0
    %v4610 = vmul.f32 %v4602, 0.1
    %v4611 = vmul.f32 %v4603, 0.1
    %v4612 = vmul.f32 %v4604, 0.1
    %v4613 = vmul.f32 %v4605, 0.1
    %v4614 = vsel %vm4606, %v4602, %v4610
    %v4615 = vsel %vm4607, %v4603, %v4611
    %v4616 = vsel %vm4608, %v4604, %v4612
    %v4617 = vsel %vm4609, %v4605, %v4613
    %4618 = vst [vmem:[#allocation8] sm:$0xf] %v4614
    %4619 = vst [vmem:[#allocation8 + $0x8] sm:$0xf] %v4615
    %4620 = vst [vmem:[#allocation8 + $0x10] sm:$0xf] %v4616
    %4621 = vst [vmem:[#allocation8 + $0x18] sm:$0xf] %v4617
    %v4622 = vld [vmem:[#allocation3] sm:$0xf0]
    %v4623 = vld [vmem:[#allocation3 + $0x8] sm:$0xf0]
    %v4624 = vld [vmem:[#allocation3 + $0x10] sm:$0xf0]
    %v4625 = vld [vmem:[#allocation3 + $0x18] sm:$0xf0]
    %v4626 = vld [vmem:[%s2] sm:$0xf]
    %4628 = vset.pattern.permute.xlu0 0
    %4629 = vperm.xlu0 %4628, %v4626
    %v4630 = vpop.permute.xlu0 %4629
    %v4632 = vadd.f32 %v4501, %v4630
    %v4633 = vadd.f32 %v4514, %v4630
    %v4634 = vadd.f32 %v4527, %v4630
    %v4635 = vadd.f32 %v4540, %v4630
    %v4640 = vrot.slane %v4622, 4
    %v4641 = vrot.slane %v4623, 4
    %v4642 = vrot.slane %v4624, 4
    %v4643 = vrot.slane %v4625, 4
    %v4648 = vadd.f32 %v4632, %v4640
    %v4649 = vadd.f32 %v4633, %v4641
    %v4650 = vadd.f32 %v4634, %v4642
    %v4651 = vadd.f32 %v4635, %v4643
    %v4652 = vsel %vm53, %v4648, 0.0
    %v4653 = vsel %vm53, %v4649, 0.0
    %v4654 = vadd.f32 %v4652, %v4653
    %v4655 = vsel %vm53, %v4650, 0.0
    %v4656 = vadd.f32 %v4654, %v4655
    %v4657 = vsel %vm53, %v4651, 0.0
    %v4658 = vadd.f32 %v4656, %v4657
    %4659 = vadd.xlane.f32.xlu0 %v4658
    %v4660 = vpop.xlane.xlu0 %4659
    %v4661 = vmul.f32 %v4660, 0.001953125
    %v4662 = vmul.f32 %v4648, %v4648
    %v4663 = vmul.f32 %v4649, %v4649
    %v4664 = vmul.f32 %v4650, %v4650
    %v4665 = vmul.f32 %v4651, %v4651
    %v4666 = vsel %vm53, %v4662, 0.0
    %v4667 = vsel %vm53, %v4663, 0.0
    %v4668 = vadd.f32 %v4666, %v4667
    %v4669 = vsel %vm53, %v4664, 0.0
    %v4670 = vadd.f32 %v4668, %v4669
    %v4671 = vsel %vm53, %v4665, 0.0
    %v4672 = vadd.f32 %v4670, %v4671
    %4673 = vadd.xlane.f32.xlu0 %v4672
    %v4674 = vpop.xlane.xlu0 %4673
    %v4675 = vmul.f32 %v4674, 0.001953125
    %v4676 = vsub.f32 %v4648, %v4661
    %v4677 = vsub.f32 %v4649, %v4661
    %v4678 = vsub.f32 %v4650, %v4661
    %v4679 = vsub.f32 %v4651, %v4661
    %v4680 = vmul.f32 %v4661, %v4661
    %v4681 = vsub.f32 %v4675, %v4680
    %v4682 = vadd.f32 %v4681, 1e-05
    %v4683 = vrsqrt.pop %v4682
    %v4684 = vmul.f32 %v4683, %v4682
    %v4685 = vmul.f32 %v4684, %v4683
    %v4686 = vmul.f32 0.5, %v4685
    %v4687 = vsub.f32 1.5, %v4686
    %v4688 = vmul.f32 %v4683, %v4687
    %vm4689 = vweird.f32 %v4682
    %vm4690 = vweird.f32 %v4683
    %vm4691 = vmor %vm4689, %vm4690
    %v4692 = vsel %vm4691, %v4683, %v4688
    %v4693 = vmul.f32 %v4676, %v4692
    %v4694 = vmul.f32 %v4677, %v4692
    %v4695 = vmul.f32 %v4678, %v4692
    %v4696 = vmul.f32 %v4679, %v4692
    %vm4697 = vcmp.ge.f32.partialorder %v4693, 0.0
    %vm4698 = vcmp.ge.f32.partialorder %v4694, 0.0
    %vm4699 = vcmp.ge.f32.partialorder %v4695, 0.0
    %vm4700 = vcmp.ge.f32.partialorder %v4696, 0.0
    %v4701 = vmul.f32 %v4693, 0.1
    %v4702 = vmul.f32 %v4694, 0.1
    %v4703 = vmul.f32 %v4695, 0.1
    %v4704 = vmul.f32 %v4696, 0.1
    %v4705 = vsel %vm4697, %v4693, %v4701
    %v4706 = vsel %vm4698, %v4694, %v4702
    %v4707 = vsel %vm4699, %v4695, %v4703
    %v4708 = vsel %vm4700, %v4696, %v4704
    %v4713 = vrot.slane %v4705, 4
    %v4714 = vrot.slane %v4706, 4
    %v4715 = vrot.slane %v4707, 4
    %v4716 = vrot.slane %v4708, 4
    %4721 = vst [vmem:[#allocation8] sm:$0xf0] %v4713
    %4722 = vst [vmem:[#allocation8 + $0x8] sm:$0xf0] %v4714
    %4723 = vst [vmem:[#allocation8 + $0x10] sm:$0xf0] %v4715
    %4724 = vst [vmem:[#allocation8 + $0x18] sm:$0xf0] %v4716
    // Predicated region
    $region26: #{tpu_custom_call.1} parent=1 // pred_check
      _
    $region27: #{tpu_custom_call.1} parent=1 // pred_check_branch
      %4726 = sbr.rel (0) target = $region29
    $region28: #{tpu_custom_call.1} parent=1 // pred_region
      %4728 = vsyncadd [#allocation5], 0
      %s4730 = sshll.u32 [#allocation8], 4
      %s4731 = int_to_ptr.vmem [resolvable:$true] %s4730
      %s4732 = sshll.u32 %s4, 4
      %s4733 = int_to_ptr.hbm [resolvable:$true] %s4732
      %4735 = dma.vmem_to_hbm [thread:$0]  %s4731, 512, %s4733, [#allocation5]
    $region29: #{tpu_custom_call.1} parent=1 // pred_fallthru
      _
    // Predicated region
    $region30: #{tpu_custom_call.1} parent=1 // pred_check
      _
    $region31: #{tpu_custom_call.1} parent=1 // pred_check_branch
      %4737 = sbr.rel (0) target = $region33
    $region32: #{tpu_custom_call.1} parent=1 // pred_region
      %4739 = dma.done [#allocation5], 512
    $region33: #{tpu_custom_call.1} parent=1 // pred_fallthru
      _
    %4740 = vsyncpa [#allocation4], 1
    %4741 = vsyncpa [#allocation7], 1
    %4742 = vsyncpa [#allocation5], 1

// kernel: tpu_custom_call.1
$region0: #{tpu_custom_call.1}
  #allocation0 [shape = 'u32[]', space=smem, size = 0x4, offset = 0x4, fixed_abs, tag = 'smem constant byte address 0x4 - core index']
  #allocation1 [shape = 'u32[72,128]{1,0:T(1,128)}', space=vmem, size = 0x9000, scoped, tag = 'internal scratch']
  #allocation2 [shape = 'bf16[108,1024]{1,0:T(8,128)(2,1)}', space=vmem, size = 0x38000, scoped, tag = 'scratch operand']
  %s0 = inlined_call_operand.hbm [shape: f32[8,512], index: 0, kind: input, shape index: {}]
  %s1 = inlined_call_operand.vmem [shape: bf16[4,108], index: 1, kind: input, shape index: {}]
  %s2 = inlined_call_operand.vmem [shape: f32[4,1], index: 2, kind: input, shape index: {}]
  %s3 = inlined_call_operand.hbm [shape: bf16[28,512], index: 3, kind: input, shape index: {}]
  %s4 = inlined_call_operand.hbm [shape: f32[8,512], index: 4, kind: output, shape index: {}]
  %s5 = sld [smem:[#allocation0]]
  $region34: #{tpu_custom_call.1} parent=0
    _
  %s7 = ssub.s32 1, %s5
  %s8 = scalar_select 0, %s7, %s5
  $region1: #{tpu_custom_call.1} parent=0
    #allocation3 [shape = 'u8[16384]{0}', space=vmem, size = 0x4000, scoped, tag = 'input window, operand 0, single buffered']
    #allocation4 [shape = 's32[1]{0}', space=sflag, size = 0x4, scoped, tag = 'scoped memory for tpu_custom_call.1']
    #allocation5 [shape = 's32[1]{0}', space=sflag, size = 0x4, scoped, tag = 'scoped memory for tpu_custom_call.1']
    #allocation6 [shape = 'u8[32768]{0}', space=vmem, size = 0x8000, scoped, tag = 'input window, operand 3, single buffered']
    #allocation7 [shape = 's32[1]{0}', space=sflag, size = 0x4, scoped, tag = 'scoped memory for tpu_custom_call.1']
    #allocation8 [shape = 'u8[16384]{0}', space=vmem, size = 0x4000, scoped, tag = 'output window, operand 0, single buffered']
    %9 = vsyncpa [#allocation4], 0
    %10 = vsyncpa [#allocation7], 0
    %11 = vsyncpa [#allocation5], 0
    // Predicated region
    $region2: #{tpu_custom_call.1} parent=1 // pred_check
      _
    $region3: #{tpu_custom_call.1} parent=1 // pred_check_branch
      %13 = sbr.rel (0) target = $region5
    $region4: #{tpu_custom_call.1} parent=1 // pred_region
      %15 = vsyncadd [#allocation4], 0
      %s17 = sshll.u32 %s0, 4
      %s18 = int_to_ptr.hbm [resolvable:$true] %s17
      %s19 = sshll.u32 [#allocation3], 4
      %s20 = int_to_ptr.vmem [resolvable:$true] %s19
      %22 = dma.hbm_to_vmem [thread:$0]  %s18, 512, %s20, [#allocation4]
    $region5: #{tpu_custom_call.1} parent=1 // pred_fallthru
      _
    // Predicated region
    $region6: #{tpu_custom_call.1} parent=1 // pred_check
      _
    $region7: #{tpu_custom_call.1} parent=1 // pred_check_branch
      %24 = sbr.rel (0) target = $region9
    $region8: #{tpu_custom_call.1} parent=1 // pred_region
      _
    $region9: #{tpu_custom_call.1} parent=1 // pred_fallthru
      _
    // Predicated region
    $region10: #{tpu_custom_call.1} parent=1 // pred_check
      _
    $region11: #{tpu_custom_call.1} parent=1 // pred_check_branch
      %26 = sbr.rel (0) target = $region13
    $region12: #{tpu_custom_call.1} parent=1 // pred_region
      _
    $region13: #{tpu_custom_call.1} parent=1 // pred_fallthru
      _
    // Predicated region
    $region14: #{tpu_custom_call.1} parent=1 // pred_check
      _
    $region15: #{tpu_custom_call.1} parent=1 // pred_check_branch
      %28 = sbr.rel (0) target = $region17
    $region16: #{tpu_custom_call.1} parent=1 // pred_region
      %30 = vsyncadd [#allocation7], 0
      %s31 = sshll.u32 %s3, 4
      %s32 = int_to_ptr.hbm [resolvable:$true] %s31
      %s33 = sshll.u32 [#allocation6], 4
      %s34 = int_to_ptr.vmem [resolvable:$true] %s33
      %39 = dma.hbm_to_vmem [thread:$0]  %s32, 1024, %s34, [#allocation7], 256, 256, 16
    $region17: #{tpu_custom_call.1} parent=1 // pred_fallthru
      _
    // Predicated region
    $region18: #{tpu_custom_call.1} parent=1 // pred_check
      _
    $region19: #{tpu_custom_call.1} parent=1 // pred_check_branch
      %41 = sbr.rel (0) target = $region21
    $region20: #{tpu_custom_call.1} parent=1 // pred_region
      %43 = dma.done [#allocation4], 512
    $region21: #{tpu_custom_call.1} parent=1 // pred_fallthru
      _
    // Predicated region
    $region22: #{tpu_custom_call.1} parent=1 // pred_check
      _
    $region23: #{tpu_custom_call.1} parent=1 // pred_check_branch
      %45 = sbr.rel (0) target = $region25
    $region24: #{tpu_custom_call.1} parent=1 // pred_region
      %47 = dma.done [#allocation7], 1024
    $region25: #{tpu_custom_call.1} parent=1 // pred_fallthru
      _
    %v49 = vld [vmem:[#allocation3] sm:$0xf]
    %v50 = vld [vmem:[#allocation3 + $0x8] sm:$0xf]
    %v51 = vld [vmem:[#allocation3 + $0x10] sm:$0xf]
    %v52 = vld [vmem:[#allocation3 + $0x18] sm:$0xf]
    %vm53 = vcmask 1043456
    %v54 = vsel %vm53, %v49, 0.0
    %v55 = vsel %vm53, %v50, 0.0
    %v56 = vadd.f32 %v54, %v55
    %v57 = vsel %vm53, %v51, 0.0
    %v58 = vadd.f32 %v56, %v57
    %v59 = vsel %vm53, %v52, 0.0
    %v60 = vadd.f32 %v58, %v59
    %61 = vadd.xlane.f32.xlu0 %v60
    %v62 = vpop.xlane.xlu0 %61
    %v63 = vmul.f32 %v62, 0.001953125
    %v64 = vmul.f32 %v49, %v49
    %v65 = vmul.f32 %v50, %v50
    %v66 = vmul.f32 %v51, %v51
    %v67 = vmul.f32 %v52, %v52
    %v68 = vsel %vm53, %v64, 0.0
    %v69 = vsel %vm53, %v65, 0.0
    %v70 = vadd.f32 %v68, %v69
    %v71 = vsel %vm53, %v66, 0.0
    %v72 = vadd.f32 %v70, %v71
    %v73 = vsel %vm53, %v67, 0.0
    %v74 = vadd.f32 %v72, %v73
    %75 = vadd.xlane.f32.xlu0 %v74
    %v76 = vpop.xlane.xlu0 %75
    %v77 = vmul.f32 %v76, 0.001953125
    %v78 = vsub.f32 %v49, %v63
    %v79 = vsub.f32 %v50, %v63
    %v80 = vsub.f32 %v51, %v63
    %v81 = vsub.f32 %v52, %v63
    %v82 = vmul.f32 %v63, %v63
    %v83 = vsub.f32 %v77, %v82
    %v84 = vadd.f32 %v83, 1e-05
    %v85 = vrsqrt.pop %v84
    %v86 = vmul.f32 %v85, %v84
    %v87 = vmul.f32 %v86, %v85
    %v88 = vmul.f32 0.5, %v87
    %v89 = vsub.f32 1.5, %v88
    %v90 = vmul.f32 %v85, %v89
    %vm91 = vweird.f32 %v84
    %vm92 = vweird.f32 %v85
    %vm93 = vmor %vm91, %vm92
    %v94 = vsel %vm93, %v85, %v90
    %v95 = vmul.f32 %v78, %v94
    %v96 = vmul.f32 %v79, %v94
    %v97 = vmul.f32 %v80, %v94
    %v98 = vmul.f32 %v81, %v94
    %vm99 = vcmp.ge.f32.partialorder %v95, 0.0
    %vm100 = vcmp.ge.f32.partialorder %v96, 0.0
    %vm101 = vcmp.ge.f32.partialorder %v97, 0.0
    %vm102 = vcmp.ge.f32.partialorder %v98, 0.0
    %v103 = vmul.f32 %v95, 0.1
    %v104 = vmul.f32 %v96, 0.1
    %v105 = vmul.f32 %v97, 0.1
    %v106 = vmul.f32 %v98, 0.1
    %v107 = vsel %vm99, %v95, %v103
    %v108 = vsel %vm100, %v96, %v104
    %v109 = vsel %vm101, %v97, %v105
    %v110 = vsel %vm102, %v98, %v106
    %v111 = vpack.c.bf16 %v108, %v107
    %v112 = vpack.c.bf16 %v110, %v109
    %v114 = vunpack.c.h.b16 %v112
    %v115 = vpack.c.b16 %v114, %v114
    %116 = vrot.lane.b32.xlu0 %v115, 73
    %v117 = vpop.permute.xlu0 %116
    %v119 = vunpack.c.l.b16 %v111
    %v120 = vunpack.c.h.b16 %v111
    %v121 = vunpack.c.l.b16 %v112
    %v122 = vpack.c.b16 %v119, %v119
    %v123 = vpack.c.b16 %v120, %v120
    %v124 = vpack.c.b16 %v121, %v121
    %125 = vrot.lane.b32.xlu0 %v122, 73
    %v126 = vpop.permute.xlu0 %125
    %127 = vrot.lane.b32.xlu0 %v123, 73
    %v128 = vpop.permute.xlu0 %127
    %129 = vrot.lane.b32.xlu0 %v124, 73
    %v130 = vpop.permute.xlu0 %129
    %vm131 = vcmask 596992
    %v132 = vsel %vm131, %v126, %v128
    %v133 = vsel %vm131, %v128, %v130
    %v134 = vsel %vm131, %v130, %v117
    %vm138 = vcmask 596992
    %v141 = vsel %vm138, %v117, %v126
    %v143 = vld [vmem:[#allocation6] sm:$0x11]
    %v144 = vld [vmem:[#allocation6 + $0x8] sm:$0x11]
    %v147 = vunpack.c.l.b16 %v143
    %v148 = vunpack.c.h.b16 %v143
    %v149 = vunpack.c.l.b16 %v144
    %v150 = vunpack.c.h.b16 %v144
    %v151 = vpack.c.b16 %v147, %v147
    %v152 = vpack.c.b16 %v148, %v148
    %v153 = vpack.c.b16 %v149, %v149
    %v154 = vpack.c.b16 %v150, %v150
    %v156 = vpack.i.b16 %v151, %v151
    %v158 = vperm.slane %v156, 0
    %v160 = vpack.i.b16 %v152, %v152
    %v162 = vperm.slane %v160, 0
    %v164 = vpack.i.b16 %v153, %v153
    %v166 = vperm.slane %v164, 0
    %v168 = vpack.i.b16 %v154, %v154
    %v170 = vperm.slane %v168, 0
    %v171 = vunpack.c.l.bf16 %v141
    %v172 = vunpack.c.l.bf16 %v132
    %v173 = vunpack.c.l.bf16 %v133
    %v174 = vunpack.c.l.bf16 %v134
    %v175 = vunpack.c.l.bf16 %v158
    %v176 = vunpack.c.l.bf16 %v162
    %v177 = vunpack.c.l.bf16 %v166
    %v178 = vunpack.c.l.bf16 %v170
    %v179 = vmul.f32 %v171, %v175
    %v180 = vmul.f32 %v172, %v176
    %v181 = vmul.f32 %v173, %v177
    %v182 = vmul.f32 %v174, %v178
    %v183 = vpack.c.bf16 %v180, %v179
    %v184 = vpack.c.bf16 %v182, %v181
    %185 = vst [vmem:[#allocation2] sm:$0x33] %v183
    %186 = vst [vmem:[#allocation2 + $0x8] sm:$0x33] %v184
    %187 = vrot.lane.b32.xlu0 %v115, 72
    %v188 = vpop.permute.xlu0 %187
    %189 = vrot.lane.b32.xlu0 %v122, 72
    %v190 = vpop.permute.xlu0 %189
    %191 = vrot.lane.b32.xlu0 %v123, 72
    %v192 = vpop.permute.xlu0 %191
    %193 = vrot.lane.b32.xlu0 %v124, 72
    %v194 = vpop.permute.xlu0 %193
    %vm195 = vcmask 588800
    %v196 = vsel %vm195, %v190, %v192
    %v197 = vsel %vm195, %v192, %v194
    %v198 = vsel %vm195, %v194, %v188
    %vm202 = vcmask 588800
    %v205 = vsel %vm202, %v188, %v190
    %v207 = vld [vmem:[#allocation6] sm:$0x11]
    %v208 = vld [vmem:[#allocation6 + $0x8] sm:$0x11]
    %v211 = vunpack.c.l.b16 %v207
    %v212 = vunpack.c.h.b16 %v207
    %v213 = vunpack.c.l.b16 %v208
    %v214 = vunpack.c.h.b16 %v208
    %v215 = vpack.c.b16 %v211, %v211
    %v216 = vpack.c.b16 %v212, %v212
    %v217 = vpack.c.b16 %v213, %v213
    %v218 = vpack.c.b16 %v214, %v214
    %v220 = vshrl.u32 %v215, 16
    %v221 = vpack.i.b16 %v220, %v220
    %v223 = vperm.slane %v221, 0
    %v225 = vshrl.u32 %v216, 16
    %v226 = vpack.i.b16 %v225, %v225
    %v228 = vperm.slane %v226, 0
    %v230 = vshrl.u32 %v217, 16
    %v231 = vpack.i.b16 %v230, %v230
    %v233 = vperm.slane %v231, 0
    %v235 = vshrl.u32 %v218, 16
    %v236 = vpack.i.b16 %v235, %v235
    %v238 = vperm.slane %v236, 0
    %v239 = vunpack.c.l.bf16 %v205
    %v240 = vunpack.c.l.bf16 %v196
    %v241 = vunpack.c.l.bf16 %v197
    %v242 = vunpack.c.l.bf16 %v198
    %v243 = vunpack.c.l.bf16 %v223
    %v244 = vunpack.c.l.bf16 %v228
    %v245 = vunpack.c.l.bf16 %v233
    %v246 = vunpack.c.l.bf16 %v238
    %v247 = vmul.f32 %v239, %v243
    %v248 = vmul.f32 %v240, %v244
    %v249 = vmul.f32 %v241, %v245
    %v250 = vmul.f32 %v242, %v246
    %v251 = vpack.c.bf16 %v248, %v247
    %v252 = vpack.c.bf16 %v250, %v249
    %v255 = vrot.slane %v251, 6
    %v256 = vrot.slane %v252, 6
    %259 = vst [vmem:[#allocation2] sm:$0xcc] %v255
    %260 = vst [vmem:[#allocation2 + $0x8] sm:$0xcc] %v256
    %261 = vrot.lane.b32.xlu0 %v115, 71
    %v262 = vpop.permute.xlu0 %261
    %263 = vrot.lane.b32.xlu0 %v122, 71
    %v264 = vpop.permute.xlu0 %263
    %265 = vrot.lane.b32.xlu0 %v123, 71
    %v266 = vpop.permute.xlu0 %265
    %267 = vrot.lane.b32.xlu0 %v124, 71
    %v268 = vpop.permute.xlu0 %267
    %vm269 = vcmask 580608
    %v270 = vsel %vm269, %v264, %v266
    %v271 = vsel %vm269, %v266, %v268
    %v272 = vsel %vm269, %v268, %v262
    %vm276 = vcmask 580608
    %v279 = vsel %vm276, %v262, %v264
    %v281 = vld [vmem:[#allocation6] sm:$0x22]
    %v282 = vld [vmem:[#allocation6 + $0x8] sm:$0x22]
    %v285 = vunpack.c.l.b16 %v281
    %v286 = vunpack.c.h.b16 %v281
    %v287 = vunpack.c.l.b16 %v282
    %v288 = vunpack.c.h.b16 %v282
    %v289 = vpack.c.b16 %v285, %v285
    %v290 = vpack.c.b16 %v286, %v286
    %v291 = vpack.c.b16 %v287, %v287
    %v292 = vpack.c.b16 %v288, %v288
    %v294 = vpack.i.b16 %v289, %v289
    %v296 = vperm.slane %v294, 1
    %v298 = vpack.i.b16 %v290, %v290
    %v300 = vperm.slane %v298, 1
    %v302 = vpack.i.b16 %v291, %v291
    %v304 = vperm.slane %v302, 1
    %v306 = vpack.i.b16 %v292, %v292
    %v308 = vperm.slane %v306, 1
    %v309 = vunpack.c.l.bf16 %v279
    %v310 = vunpack.c.l.bf16 %v270
    %v311 = vunpack.c.l.bf16 %v271
    %v312 = vunpack.c.l.bf16 %v272
    %v313 = vunpack.c.l.bf16 %v296
    %v314 = vunpack.c.l.bf16 %v300
    %v315 = vunpack.c.l.bf16 %v304
    %v316 = vunpack.c.l.bf16 %v308
    %v317 = vmul.f32 %v309, %v313
    %v318 = vmul.f32 %v310, %v314
    %v319 = vmul.f32 %v311, %v315
    %v320 = vmul.f32 %v312, %v316
    %v321 = vpack.c.bf16 %v318, %v317
    %v322 = vpack.c.bf16 %v320, %v319
    %323 = vst [vmem:[#allocation2 + $0x20] sm:$0x33] %v321
    %324 = vst [vmem:[#allocation2 + $0x28] sm:$0x33] %v322
    %325 = vrot.lane.b32.xlu0 %v115, 65
    %v326 = vpop.permute.xlu0 %325
    %327 = vrot.lane.b32.xlu0 %v122, 65
    %v328 = vpop.permute.xlu0 %327
    %329 = vrot.lane.b32.xlu0 %v123, 65
    %v330 = vpop.permute.xlu0 %329
    %331 = vrot.lane.b32.xlu0 %v124, 65
    %v332 = vpop.permute.xlu0 %331
    %vm333 = vcmask 531456
    %v334 = vsel %vm333, %v328, %v330
    %v335 = vsel %vm333, %v330, %v332
    %v336 = vsel %vm333, %v332, %v326
    %vm340 = vcmask 531456
    %v343 = vsel %vm340, %v326, %v328
    %v345 = vld [vmem:[#allocation6] sm:$0x22]
    %v346 = vld [vmem:[#allocation6 + $0x8] sm:$0x22]
    %v349 = vunpack.c.l.b16 %v345
    %v350 = vunpack.c.h.b16 %v345
    %v351 = vunpack.c.l.b16 %v346
    %v352 = vunpack.c.h.b16 %v346
    %v353 = vpack.c.b16 %v349, %v349
    %v354 = vpack.c.b16 %v350, %v350
    %v355 = vpack.c.b16 %v351, %v351
    %v356 = vpack.c.b16 %v352, %v352
    %v358 = vshrl.u32 %v353, 16
    %v359 = vpack.i.b16 %v358, %v358
    %v361 = vperm.slane %v359, 1
    %v363 = vshrl.u32 %v354, 16
    %v364 = vpack.i.b16 %v363, %v363
    %v366 = vperm.slane %v364, 1
    %v368 = vshrl.u32 %v355, 16
    %v369 = vpack.i.b16 %v368, %v368
    %v371 = vperm.slane %v369, 1
    %v373 = vshrl.u32 %v356, 16
    %v374 = vpack.i.b16 %v373, %v373
    %v376 = vperm.slane %v374, 1
    %v377 = vunpack.c.l.bf16 %v343
    %v378 = vunpack.c.l.bf16 %v334
    %v379 = vunpack.c.l.bf16 %v335
    %v380 = vunpack.c.l.bf16 %v336
    %v381 = vunpack.c.l.bf16 %v361
    %v382 = vunpack.c.l.bf16 %v366
    %v383 = vunpack.c.l.bf16 %v371
    %v384 = vunpack.c.l.bf16 %v376
    %v385 = vmul.f32 %v377, %v381
    %v386 = vmul.f32 %v378, %v382
    %v387 = vmul.f32 %v379, %v383
    %v388 = vmul.f32 %v380, %v384
    %v389 = vpack.c.bf16 %v386, %v385
    %v390 = vpack.c.bf16 %v388, %v387
    %v393 = vrot.slane %v389, 6
    %v394 = vrot.slane %v390, 6
    %397 = vst [vmem:[#allocation2 + $0x20] sm:$0xcc] %v393
    %398 = vst [vmem:[#allocation2 + $0x28] sm:$0xcc] %v394
    %399 = vrot.lane.b32.xlu0 %v115, 64
    %v400 = vpop.permute.xlu0 %399
    %401 = vrot.lane.b32.xlu0 %v122, 64
    %v402 = vpop.permute.xlu0 %401
    %403 = vrot.lane.b32.xlu0 %v123, 64
    %v404 = vpop.permute.xlu0 %403
    %405 = vrot.lane.b32.xlu0 %v124, 64
    %v406 = vpop.permute.xlu0 %405
    %vm407 = vcmask 523264
    %v408 = vsel %vm407, %v402, %v404
    %v409 = vsel %vm407, %v404, %v406
    %v410 = vsel %vm407, %v406, %v400
    %vm414 = vcmask 523264
    %v417 = vsel %vm414, %v400, %v402
    %v419 = vld [vmem:[#allocation6] sm:$0x44]
    %v420 = vld [vmem:[#allocation6 + $0x8] sm:$0x44]
    %v423 = vunpack.c.l.b16 %v419
    %v424 = vunpack.c.h.b16 %v419
    %v425 = vunpack.c.l.b16 %v420
    %v426 = vunpack.c.h.b16 %v420
    %v427 = vpack.c.b16 %v423, %v423
    %v428 = vpack.c.b16 %v424, %v424
    %v429 = vpack.c.b16 %v425, %v425
    %v430 = vpack.c.b16 %v426, %v426
    %v432 = vpack.i.b16 %v427, %v427
    %v434 = vperm.slane %v432, 2
    %v436 = vpack.i.b16 %v428, %v428
    %v438 = vperm.slane %v436, 2
    %v440 = vpack.i.b16 %v429, %v429
    %v442 = vperm.slane %v440, 2
    %v444 = vpack.i.b16 %v430, %v430
    %v446 = vperm.slane %v444, 2
    %v447 = vunpack.c.l.bf16 %v417
    %v448 = vunpack.c.l.bf16 %v408
    %v449 = vunpack.c.l.bf16 %v409
    %v450 = vunpack.c.l.bf16 %v410
    %v451 = vunpack.c.l.bf16 %v434
    %v452 = vunpack.c.l.bf16 %v438
    %v453 = vunpack.c.l.bf16 %v442
    %v454 = vunpack.c.l.bf16 %v446
    %v455 = vmul.f32 %v447, %v451
    %v456 = vmul.f32 %v448, %v452
    %v457 = vmul.f32 %v449, %v453
    %v458 = vmul.f32 %v450, %v454
    %v459 = vpack.c.bf16 %v456, %v455
    %v460 = vpack.c.bf16 %v458, %v457
    %461 = vst [vmem:[#allocation2 + $0x40] sm:$0x33] %v459
    %462 = vst [vmem:[#allocation2 + $0x48] sm:$0x33] %v460
    %463 = vrot.lane.b32.xlu0 %v115, 63
    %v464 = vpop.permute.xlu0 %463
    %465 = vrot.lane.b32.xlu0 %v122, 63
    %v466 = vpop.permute.xlu0 %465
    %467 = vrot.lane.b32.xlu0 %v123, 63
    %v468 = vpop.permute.xlu0 %467
    %469 = vrot.lane.b32.xlu0 %v124, 63
    %v470 = vpop.permute.xlu0 %469
    %vm471 = vcmask 515072
    %v472 = vsel %vm471, %v466, %v468
    %v473 = vsel %vm471, %v468, %v470
    %v474 = vsel %vm471, %v470, %v464
    %vm478 = vcmask 515072
    %v481 = vsel %vm478, %v464, %v466
    %v483 = vld [vmem:[#allocation6] sm:$0x44]
    %v484 = vld [vmem:[#allocation6 + $0x8] sm:$0x44]
    %v487 = vunpack.c.l.b16 %v483
    %v488 = vunpack.c.h.b16 %v483
    %v489 = vunpack.c.l.b16 %v484
    %v490 = vunpack.c.h.b16 %v484
    %v491 = vpack.c.b16 %v487, %v487
    %v492 = vpack.c.b16 %v488, %v488
    %v493 = vpack.c.b16 %v489, %v489
    %v494 = vpack.c.b16 %v490, %v490
    %v496 = vshrl.u32 %v491, 16
    %v497 = vpack.i.b16 %v496, %v496
    %v499 = vperm.slane %v497, 2
    %v501 = vshrl.u32 %v492, 16
    %v502 = vpack.i.b16 %v501, %v501
    %v504 = vperm.slane %v502, 2
    %v506 = vshrl.u32 %v493, 16
    %v507 = vpack.i.b16 %v506, %v506
    %v509 = vperm.slane %v507, 2
    %v511 = vshrl.u32 %v494, 16
    %v512 = vpack.i.b16 %v511, %v511
    %v514 = vperm.slane %v512, 2
    %v515 = vunpack.c.l.bf16 %v481
    %v516 = vunpack.c.l.bf16 %v472
    %v517 = vunpack.c.l.bf16 %v473
    %v518 = vunpack.c.l.bf16 %v474
    %v519 = vunpack.c.l.bf16 %v499
    %v520 = vunpack.c.l.bf16 %v504
    %v521 = vunpack.c.l.bf16 %v509
    %v522 = vunpack.c.l.bf16 %v514
    %v523 = vmul.f32 %v515, %v519
    %v524 = vmul.f32 %v516, %v520
    %v525 = vmul.f32 %v517, %v521
    %v526 = vmul.f32 %v518, %v522
    %v527 = vpack.c.bf16 %v524, %v523
    %v528 = vpack.c.bf16 %v526, %v525
    %v531 = vrot.slane %v527, 6
    %v532 = vrot.slane %v528, 6
    %535 = vst [vmem:[#allocation2 + $0x40] sm:$0xcc] %v531
    %536 = vst [vmem:[#allocation2 + $0x48] sm:$0xcc] %v532
    %537 = vrot.lane.b32.xlu0 %v115, 57
    %v538 = vpop.permute.xlu0 %537
    %539 = vrot.lane.b32.xlu0 %v122, 57
    %v540 = vpop.permute.xlu0 %539
    %541 = vrot.lane.b32.xlu0 %v123, 57
    %v542 = vpop.permute.xlu0 %541
    %543 = vrot.lane.b32.xlu0 %v124, 57
    %v544 = vpop.permute.xlu0 %543
    %vm545 = vcmask 465920
    %v546 = vsel %vm545, %v540, %v542
    %v547 = vsel %vm545, %v542, %v544
    %v548 = vsel %vm545, %v544, %v538
    %vm552 = vcmask 465920
    %v555 = vsel %vm552, %v538, %v540
    %v557 = vld [vmem:[#allocation6] sm:$0x88]
    %v558 = vld [vmem:[#allocation6 + $0x8] sm:$0x88]
    %v561 = vunpack.c.l.b16 %v557
    %v562 = vunpack.c.h.b16 %v557
    %v563 = vunpack.c.l.b16 %v558
    %v564 = vunpack.c.h.b16 %v558
    %v565 = vpack.c.b16 %v561, %v561
    %v566 = vpack.c.b16 %v562, %v562
    %v567 = vpack.c.b16 %v563, %v563
    %v568 = vpack.c.b16 %v564, %v564
    %v570 = vpack.i.b16 %v565, %v565
    %v572 = vperm.slane %v570, 3
    %v574 = vpack.i.b16 %v566, %v566
    %v576 = vperm.slane %v574, 3
    %v578 = vpack.i.b16 %v567, %v567
    %v580 = vperm.slane %v578, 3
    %v582 = vpack.i.b16 %v568, %v568
    %v584 = vperm.slane %v582, 3
    %v585 = vunpack.c.l.bf16 %v555
    %v586 = vunpack.c.l.bf16 %v546
    %v587 = vunpack.c.l.bf16 %v547
    %v588 = vunpack.c.l.bf16 %v548
    %v589 = vunpack.c.l.bf16 %v572
    %v590 = vunpack.c.l.bf16 %v576
    %v591 = vunpack.c.l.bf16 %v580
    %v592 = vunpack.c.l.bf16 %v584
    %v593 = vmul.f32 %v585, %v589
    %v594 = vmul.f32 %v586, %v590
    %v595 = vmul.f32 %v587, %v591
    %v596 = vmul.f32 %v588, %v592
    %v597 = vpack.c.bf16 %v594, %v593
    %v598 = vpack.c.bf16 %v596, %v595
    %599 = vst [vmem:[#allocation2 + $0x60] sm:$0x33] %v597
    %600 = vst [vmem:[#allocation2 + $0x68] sm:$0x33] %v598
    %601 = vrot.lane.b32.xlu0 %v115, 56
    %v602 = vpop.permute.xlu0 %601
    %603 = vrot.lane.b32.xlu0 %v122, 56
    %v604 = vpop.permute.xlu0 %603
    %605 = vrot.lane.b32.xlu0 %v123, 56
    %v606 = vpop.permute.xlu0 %605
    %607 = vrot.lane.b32.xlu0 %v124, 56
    %v608 = vpop.permute.xlu0 %607
    %vm609 = vcmask 457728
    %v610 = vsel %vm609, %v604, %v606
    %v611 = vsel %vm609, %v606, %v608
    %v612 = vsel %vm609, %v608, %v602
    %vm616 = vcmask 457728
    %v619 = vsel %vm616, %v602, %v604
    %v621 = vld [vmem:[#allocation6] sm:$0x88]
    %v622 = vld [vmem:[#allocation6 + $0x8] sm:$0x88]
    %v625 = vunpack.c.l.b16 %v621
    %v626 = vunpack.c.h.b16 %v621
    %v627 = vunpack.c.l.b16 %v622
    %v628 = vunpack.c.h.b16 %v622
    %v629 = vpack.c.b16 %v625, %v625
    %v630 = vpack.c.b16 %v626, %v626
    %v631 = vpack.c.b16 %v627, %v627
    %v632 = vpack.c.b16 %v628, %v628
    %v634 = vshrl.u32 %v629, 16
    %v635 = vpack.i.b16 %v634, %v634
    %v637 = vperm.slane %v635, 3
    %v639 = vshrl.u32 %v630, 16
    %v640 = vpack.i.b16 %v639, %v639
    %v642 = vperm.slane %v640, 3
    %v644 = vshrl.u32 %v631, 16
    %v645 = vpack.i.b16 %v644, %v644
    %v647 = vperm.slane %v645, 3
    %v649 = vshrl.u32 %v632, 16
    %v650 = vpack.i.b16 %v649, %v649
    %v652 = vperm.slane %v650, 3
    %v653 = vunpack.c.l.bf16 %v619
    %v654 = vunpack.c.l.bf16 %v610
    %v655 = vunpack.c.l.bf16 %v611
    %v656 = vunpack.c.l.bf16 %v612
    %v657 = vunpack.c.l.bf16 %v637
    %v658 = vunpack.c.l.bf16 %v642
    %v659 = vunpack.c.l.bf16 %v647
    %v660 = vunpack.c.l.bf16 %v652
    %v661 = vmul.f32 %v653, %v657
    %v662 = vmul.f32 %v654, %v658
    %v663 = vmul.f32 %v655, %v659
    %v664 = vmul.f32 %v656, %v660
    %v665 = vpack.c.bf16 %v662, %v661
    %v666 = vpack.c.bf16 %v664, %v663
    %v669 = vrot.slane %v665, 6
    %v670 = vrot.slane %v666, 6
    %673 = vst [vmem:[#allocation2 + $0x60] sm:$0xcc] %v669
    %674 = vst [vmem:[#allocation2 + $0x68] sm:$0xcc] %v670
    %675 = vrot.lane.b32.xlu0 %v115, 55
    %v676 = vpop.permute.xlu0 %675
    %677 = vrot.lane.b32.xlu0 %v122, 55
    %v678 = vpop.permute.xlu0 %677
    %679 = vrot.lane.b32.xlu0 %v123, 55
    %v680 = vpop.permute.xlu0 %679
    %681 = vrot.lane.b32.xlu0 %v124, 55
    %v682 = vpop.permute.xlu0 %681
    %vm683 = vcmask 449536
    %v684 = vsel %vm683, %v678, %v680
    %v685 = vsel %vm683, %v680, %v682
    %v686 = vsel %vm683, %v682, %v676
    %vm690 = vcmask 449536
    %v693 = vsel %vm690, %v676, %v678
    %v695 = vld [vmem:[#allocation6 + $0x10] sm:$0x11]
    %v696 = vld [vmem:[#allocation6 + $0x18] sm:$0x11]
    %v699 = vunpack.c.l.b16 %v695
    %v700 = vunpack.c.h.b16 %v695
    %v701 = vunpack.c.l.b16 %v696
    %v702 = vunpack.c.h.b16 %v696
    %v703 = vpack.c.b16 %v699, %v699
    %v704 = vpack.c.b16 %v700, %v700
    %v705 = vpack.c.b16 %v701, %v701
    %v706 = vpack.c.b16 %v702, %v702
    %v708 = vpack.i.b16 %v703, %v703
    %v710 = vperm.slane %v708, 0
    %v712 = vpack.i.b16 %v704, %v704
    %v714 = vperm.slane %v712, 0
    %v716 = vpack.i.b16 %v705, %v705
    %v718 = vperm.slane %v716, 0
    %v720 = vpack.i.b16 %v706, %v706
    %v722 = vperm.slane %v720, 0
    %v723 = vunpack.c.l.bf16 %v693
    %v724 = vunpack.c.l.bf16 %v684
    %v725 = vunpack.c.l.bf16 %v685
    %v726 = vunpack.c.l.bf16 %v686
    %v727 = vunpack.c.l.bf16 %v710
    %v728 = vunpack.c.l.bf16 %v714
    %v729 = vunpack.c.l.bf16 %v718
    %v730 = vunpack.c.l.bf16 %v722
    %v731 = vmul.f32 %v723, %v727
    %v732 = vmul.f32 %v724, %v728
    %v733 = vmul.f32 %v725, %v729
    %v734 = vmul.f32 %v726, %v730
    %v735 = vpack.c.bf16 %v732, %v731
    %v736 = vpack.c.bf16 %v734, %v733
    %737 = vst [vmem:[#allocation2 + $0x80] sm:$0x33] %v735
    %738 = vst [vmem:[#allocation2 + $0x88] sm:$0x33] %v736
    %739 = vrot.lane.b32.xlu0 %v115, 9
    %v740 = vpop.permute.xlu0 %739
    %741 = vrot.lane.b32.xlu0 %v122, 9
    %v742 = vpop.permute.xlu0 %741
    %743 = vrot.lane.b32.xlu0 %v123, 9
    %v744 = vpop.permute.xlu0 %743
    %745 = vrot.lane.b32.xlu0 %v124, 9
    %v746 = vpop.permute.xlu0 %745
    %vm747 = vcmask 72704
    %v748 = vsel %vm747, %v742, %v744
    %v749 = vsel %vm747, %v744, %v746
    %v750 = vsel %vm747, %v746, %v740
    %vm754 = vcmask 72704
    %v757 = vsel %vm754, %v740, %v742
    %v759 = vld [vmem:[#allocation6 + $0x10] sm:$0x11]
    %v760 = vld [vmem:[#allocation6 + $0x18] sm:$0x11]
    %v763 = vunpack.c.l.b16 %v759
    %v764 = vunpack.c.h.b16 %v759
    %v765 = vunpack.c.l.b16 %v760
    %v766 = vunpack.c.h.b16 %v760
    %v767 = vpack.c.b16 %v763, %v763
    %v768 = vpack.c.b16 %v764, %v764
    %v769 = vpack.c.b16 %v765, %v765
    %v770 = vpack.c.b16 %v766, %v766
    %v772 = vshrl.u32 %v767, 16
    %v773 = vpack.i.b16 %v772, %v772
    %v775 = vperm.slane %v773, 0
    %v777 = vshrl.u32 %v768, 16
    %v778 = vpack.i.b16 %v777, %v777
    %v780 = vperm.slane %v778, 0
    %v782 = vshrl.u32 %v769, 16
    %v783 = vpack.i.b16 %v782, %v782
    %v785 = vperm.slane %v783, 0
    %v787 = vshrl.u32 %v770, 16
    %v788 = vpack.i.b16 %v787, %v787
    %v790 = vperm.slane %v788, 0
    %v791 = vunpack.c.l.bf16 %v757
    %v792 = vunpack.c.l.bf16 %v748
    %v793 = vunpack.c.l.bf16 %v749
    %v794 = vunpack.c.l.bf16 %v750
    %v795 = vunpack.c.l.bf16 %v775
    %v796 = vunpack.c.l.bf16 %v780
    %v797 = vunpack.c.l.bf16 %v785
    %v798 = vunpack.c.l.bf16 %v790
    %v799 = vmul.f32 %v791, %v795
    %v800 = vmul.f32 %v792, %v796
    %v801 = vmul.f32 %v793, %v797
    %v802 = vmul.f32 %v794, %v798
    %v803 = vpack.c.bf16 %v800, %v799
    %v804 = vpack.c.bf16 %v802, %v801
    %v807 = vrot.slane %v803, 6
    %v808 = vrot.slane %v804, 6
    %811 = vst [vmem:[#allocation2 + $0x80] sm:$0xcc] %v807
    %812 = vst [vmem:[#allocation2 + $0x88] sm:$0xcc] %v808
    %813 = vrot.lane.b32.xlu0 %v115, 8
    %v814 = vpop.permute.xlu0 %813
    %815 = vrot.lane.b32.xlu0 %v122, 8
    %v816 = vpop.permute.xlu0 %815
    %817 = vrot.lane.b32.xlu0 %v123, 8
    %v818 = vpop.permute.xlu0 %817
    %819 = vrot.lane.b32.xlu0 %v124, 8
    %v820 = vpop.permute.xlu0 %819
    %vm821 = vcmask 64512
    %v822 = vsel %vm821, %v816, %v818
    %v823 = vsel %vm821, %v818, %v820
    %v824 = vsel %vm821, %v820, %v814
    %vm828 = vcmask 64512
    %v831 = vsel %vm828, %v814, %v816
    %v833 = vld [vmem:[#allocation6 + $0x10] sm:$0x22]
    %v834 = vld [vmem:[#allocation6 + $0x18] sm:$0x22]
    %v837 = vunpack.c.l.b16 %v833
    %v838 = vunpack.c.h.b16 %v833
    %v839 = vunpack.c.l.b16 %v834
    %v840 = vunpack.c.h.b16 %v834
    %v841 = vpack.c.b16 %v837, %v837
    %v842 = vpack.c.b16 %v838, %v838
    %v843 = vpack.c.b16 %v839, %v839
    %v844 = vpack.c.b16 %v840, %v840
    %v846 = vpack.i.b16 %v841, %v841
    %v848 = vperm.slane %v846, 1
    %v850 = vpack.i.b16 %v842, %v842
    %v852 = vperm.slane %v850, 1
    %v854 = vpack.i.b16 %v843, %v843
    %v856 = vperm.slane %v854, 1
    %v858 = vpack.i.b16 %v844, %v844
    %v860 = vperm.slane %v858, 1
    %v861 = vunpack.c.l.bf16 %v831
    %v862 = vunpack.c.l.bf16 %v822
    %v863 = vunpack.c.l.bf16 %v823
    %v864 = vunpack.c.l.bf16 %v824
    %v865 = vunpack.c.l.bf16 %v848
    %v866 = vunpack.c.l.bf16 %v852
    %v867 = vunpack.c.l.bf16 %v856
    %v868 = vunpack.c.l.bf16 %v860
    %v869 = vmul.f32 %v861, %v865
    %v870 = vmul.f32 %v862, %v866
    %v871 = vmul.f32 %v863, %v867
    %v872 = vmul.f32 %v864, %v868
    %v873 = vpack.c.bf16 %v870, %v869
    %v874 = vpack.c.bf16 %v872, %v871
    %875 = vst [vmem:[#allocation2 + $0xa0] sm:$0x33] %v873
    %876 = vst [vmem:[#allocation2 + $0xa8] sm:$0x33] %v874
    %877 = vrot.lane.b32.xlu0 %v115, 7
    %v878 = vpop.permute.xlu0 %877
    %879 = vrot.lane.b32.xlu0 %v122, 7
    %v880 = vpop.permute.xlu0 %879
    %881 = vrot.lane.b32.xlu0 %v123, 7
    %v882 = vpop.permute.xlu0 %881
    %883 = vrot.lane.b32.xlu0 %v124, 7
    %v884 = vpop.permute.xlu0 %883
    %vm885 = vcmask 56320
    %v886 = vsel %vm885, %v880, %v882
    %v887 = vsel %vm885, %v882, %v884
    %v888 = vsel %vm885, %v884, %v878
    %vm892 = vcmask 56320
    %v895 = vsel %vm892, %v878, %v880
    %v897 = vld [vmem:[#allocation6 + $0x10] sm:$0x22]
    %v898 = vld [vmem:[#allocation6 + $0x18] sm:$0x22]
    %v901 = vunpack.c.l.b16 %v897
    %v902 = vunpack.c.h.b16 %v897
    %v903 = vunpack.c.l.b16 %v898
    %v904 = vunpack.c.h.b16 %v898
    %v905 = vpack.c.b16 %v901, %v901
    %v906 = vpack.c.b16 %v902, %v902
    %v907 = vpack.c.b16 %v903, %v903
    %v908 = vpack.c.b16 %v904, %v904
    %v910 = vshrl.u32 %v905, 16
    %v911 = vpack.i.b16 %v910, %v910
    %v913 = vperm.slane %v911, 1
    %v915 = vshrl.u32 %v906, 16
    %v916 = vpack.i.b16 %v915, %v915
    %v918 = vperm.slane %v916, 1
    %v920 = vshrl.u32 %v907, 16
    %v921 = vpack.i.b16 %v920, %v920
    %v923 = vperm.slane %v921, 1
    %v925 = vshrl.u32 %v908, 16
    %v926 = vpack.i.b16 %v925, %v925
    %v928 = vperm.slane %v926, 1
    %v929 = vunpack.c.l.bf16 %v895
    %v930 = vunpack.c.l.bf16 %v886
    %v931 = vunpack.c.l.bf16 %v887
    %v932 = vunpack.c.l.bf16 %v888
    %v933 = vunpack.c.l.bf16 %v913
    %v934 = vunpack.c.l.bf16 %v918
    %v935 = vunpack.c.l.bf16 %v923
    %v936 = vunpack.c.l.bf16 %v928
    %v937 = vmul.f32 %v929, %v933
    %v938 = vmul.f32 %v930, %v934
    %v939 = vmul.f32 %v931, %v935
    %v940 = vmul.f32 %v932, %v936
    %v941 = vpack.c.bf16 %v938, %v937
    %v942 = vpack.c.bf16 %v940, %v939
    %v945 = vrot.slane %v941, 6
    %v946 = vrot.slane %v942, 6
    %949 = vst [vmem:[#allocation2 + $0xa0] sm:$0xcc] %v945
    %950 = vst [vmem:[#allocation2 + $0xa8] sm:$0xcc] %v946
    %951 = vrot.lane.b32.xlu0 %v115, 1
    %v952 = vpop.permute.xlu0 %951
    %953 = vrot.lane.b32.xlu0 %v122, 1
    %v954 = vpop.permute.xlu0 %953
    %955 = vrot.lane.b32.xlu0 %v123, 1
    %v956 = vpop.permute.xlu0 %955
    %957 = vrot.lane.b32.xlu0 %v124, 1
    %v958 = vpop.permute.xlu0 %957
    %vm959 = vcmask 7168
    %v960 = vsel %vm959, %v954, %v956
    %v961 = vsel %vm959, %v956, %v958
    %v962 = vsel %vm959, %v958, %v952
    %vm966 = vcmask 7168
    %v969 = vsel %vm966, %v952, %v954
    %v971 = vld [vmem:[#allocation6 + $0x10] sm:$0x44]
    %v972 = vld [vmem:[#allocation6 + $0x18] sm:$0x44]
    %v975 = vunpack.c.l.b16 %v971
    %v976 = vunpack.c.h.b16 %v971
    %v977 = vunpack.c.l.b16 %v972
    %v978 = vunpack.c.h.b16 %v972
    %v979 = vpack.c.b16 %v975, %v975
    %v980 = vpack.c.b16 %v976, %v976
    %v981 = vpack.c.b16 %v977, %v977
    %v982 = vpack.c.b16 %v978, %v978
    %v984 = vpack.i.b16 %v979, %v979
    %v986 = vperm.slane %v984, 2
    %v988 = vpack.i.b16 %v980, %v980
    %v990 = vperm.slane %v988, 2
    %v992 = vpack.i.b16 %v981, %v981
    %v994 = vperm.slane %v992, 2
    %v996 = vpack.i.b16 %v982, %v982
    %v998 = vperm.slane %v996, 2
    %v999 = vunpack.c.l.bf16 %v969
    %v1000 = vunpack.c.l.bf16 %v960
    %v1001 = vunpack.c.l.bf16 %v961
    %v1002 = vunpack.c.l.bf16 %v962
    %v1003 = vunpack.c.l.bf16 %v986
    %v1004 = vunpack.c.l.bf16 %v990
    %v1005 = vunpack.c.l.bf16 %v994
    %v1006 = vunpack.c.l.bf16 %v998
    %v1007 = vmul.f32 %v999, %v1003
    %v1008 = vmul.f32 %v1000, %v1004
    %v1009 = vmul.f32 %v1001, %v1005
    %v1010 = vmul.f32 %v1002, %v1006
    %v1011 = vpack.c.bf16 %v1008, %v1007
    %v1012 = vpack.c.bf16 %v1010, %v1009
    %1013 = vst [vmem:[#allocation2 + $0xc0] sm:$0x33] %v1011
    %1014 = vst [vmem:[#allocation2 + $0xc8] sm:$0x33] %v1012
    %v1015 = vld [vmem:[#allocation6 + $0x10] sm:$0x44]
    %v1016 = vld [vmem:[#allocation6 + $0x18] sm:$0x44]
    %v1019 = vunpack.c.l.b16 %v1015
    %v1020 = vunpack.c.h.b16 %v1015
    %v1021 = vunpack.c.l.b16 %v1016
    %v1022 = vunpack.c.h.b16 %v1016
    %v1023 = vpack.c.b16 %v1019, %v1019
    %v1024 = vpack.c.b16 %v1020, %v1020
    %v1025 = vpack.c.b16 %v1021, %v1021
    %v1026 = vpack.c.b16 %v1022, %v1022
    %v1028 = vshrl.u32 %v1023, 16
    %v1029 = vpack.i.b16 %v1028, %v1028
    %v1031 = vperm.slane %v1029, 2
    %v1033 = vshrl.u32 %v1024, 16
    %v1034 = vpack.i.b16 %v1033, %v1033
    %v1036 = vperm.slane %v1034, 2
    %v1038 = vshrl.u32 %v1025, 16
    %v1039 = vpack.i.b16 %v1038, %v1038
    %v1041 = vperm.slane %v1039, 2
    %v1043 = vshrl.u32 %v1026, 16
    %v1044 = vpack.i.b16 %v1043, %v1043
    %v1046 = vperm.slane %v1044, 2
    %v1047 = vunpack.c.l.bf16 %v111
    %v1048 = vunpack.c.h.bf16 %v111
    %v1049 = vunpack.c.l.bf16 %v112
    %v1050 = vunpack.c.h.bf16 %v112
    %v1051 = vunpack.c.l.bf16 %v1031
    %v1052 = vunpack.c.l.bf16 %v1036
    %v1053 = vunpack.c.l.bf16 %v1041
    %v1054 = vunpack.c.l.bf16 %v1046
    %v1055 = vmul.f32 %v1047, %v1051
    %v1056 = vmul.f32 %v1048, %v1052
    %v1057 = vmul.f32 %v1049, %v1053
    %v1058 = vmul.f32 %v1050, %v1054
    %v1059 = vpack.c.bf16 %v1056, %v1055
    %v1060 = vpack.c.bf16 %v1058, %v1057
    %v1063 = vrot.slane %v1059, 6
    %v1064 = vrot.slane %v1060, 6
    %1067 = vst [vmem:[#allocation2 + $0xc0] sm:$0xcc] %v1063
    %1068 = vst [vmem:[#allocation2 + $0xc8] sm:$0xcc] %v1064
    %1069 = vrot.lane.b32.xlu0 %v122, 127
    %v1070 = vpop.permute.xlu0 %1069
    %1071 = vrot.lane.b32.xlu0 %v123, 127
    %v1072 = vpop.permute.xlu0 %1071
    %1073 = vrot.lane.b32.xlu0 %v124, 127
    %v1074 = vpop.permute.xlu0 %1073
    %1075 = vrot.lane.b32.xlu0 %v115, 127
    %v1076 = vpop.permute.xlu0 %1075
    %vm1077 = vcmask 1039360
    %v1078 = vsel %vm1077, %v1070, %v1072
    %v1079 = vsel %vm1077, %v1072, %v1074
    %v1080 = vsel %vm1077, %v1074, %v1076
    %vm1084 = vcmask 1039360
    %v1087 = vsel %vm1084, %v1076, %v1070
    %v1089 = vld [vmem:[#allocation6 + $0x10] sm:$0x88]
    %v1090 = vld [vmem:[#allocation6 + $0x18] sm:$0x88]
    %v1093 = vunpack.c.l.b16 %v1089
    %v1094 = vunpack.c.h.b16 %v1089
    %v1095 = vunpack.c.l.b16 %v1090
    %v1096 = vunpack.c.h.b16 %v1090
    %v1097 = vpack.c.b16 %v1093, %v1093
    %v1098 = vpack.c.b16 %v1094, %v1094
    %v1099 = vpack.c.b16 %v1095, %v1095
    %v1100 = vpack.c.b16 %v1096, %v1096
    %v1102 = vpack.i.b16 %v1097, %v1097
    %v1104 = vperm.slane %v1102, 3
    %v1106 = vpack.i.b16 %v1098, %v1098
    %v1108 = vperm.slane %v1106, 3
    %v1110 = vpack.i.b16 %v1099, %v1099
    %v1112 = vperm.slane %v1110, 3
    %v1114 = vpack.i.b16 %v1100, %v1100
    %v1116 = vperm.slane %v1114, 3
    %v1117 = vunpack.c.l.bf16 %v1078
    %v1118 = vunpack.c.l.bf16 %v1079
    %v1119 = vunpack.c.l.bf16 %v1080
    %v1120 = vunpack.c.l.bf16 %v1087
    %v1121 = vunpack.c.l.bf16 %v1104
    %v1122 = vunpack.c.l.bf16 %v1108
    %v1123 = vunpack.c.l.bf16 %v1112
    %v1124 = vunpack.c.l.bf16 %v1116
    %v1125 = vmul.f32 %v1117, %v1121
    %v1126 = vmul.f32 %v1118, %v1122
    %v1127 = vmul.f32 %v1119, %v1123
    %v1128 = vmul.f32 %v1120, %v1124
    %v1129 = vpack.c.bf16 %v1126, %v1125
    %v1130 = vpack.c.bf16 %v1128, %v1127
    %1131 = vst [vmem:[#allocation2 + $0xe0] sm:$0x33] %v1129
    %1132 = vst [vmem:[#allocation2 + $0xe8] sm:$0x33] %v1130
    %1133 = vrot.lane.b32.xlu0 %v122, 121
    %v1134 = vpop.permute.xlu0 %1133
    %1135 = vrot.lane.b32.xlu0 %v123, 121
    %v1136 = vpop.permute.xlu0 %1135
    %1137 = vrot.lane.b32.xlu0 %v124, 121
    %v1138 = vpop.permute.xlu0 %1137
    %1139 = vrot.lane.b32.xlu0 %v115, 121
    %v1140 = vpop.permute.xlu0 %1139
    %vm1141 = vcmask 990208
    %v1142 = vsel %vm1141, %v1134, %v1136
    %v1143 = vsel %vm1141, %v1136, %v1138
    %v1144 = vsel %vm1141, %v1138, %v1140
    %vm1148 = vcmask 990208
    %v1151 = vsel %vm1148, %v1140, %v1134
    %v1153 = vld [vmem:[#allocation6 + $0x10] sm:$0x88]
    %v1154 = vld [vmem:[#allocation6 + $0x18] sm:$0x88]
    %v1157 = vunpack.c.l.b16 %v1153
    %v1158 = vunpack.c.h.b16 %v1153
    %v1159 = vunpack.c.l.b16 %v1154
    %v1160 = vunpack.c.h.b16 %v1154
    %v1161 = vpack.c.b16 %v1157, %v1157
    %v1162 = vpack.c.b16 %v1158, %v1158
    %v1163 = vpack.c.b16 %v1159, %v1159
    %v1164 = vpack.c.b16 %v1160, %v1160
    %v1166 = vshrl.u32 %v1161, 16
    %v1167 = vpack.i.b16 %v1166, %v1166
    %v1169 = vperm.slane %v1167, 3
    %v1171 = vshrl.u32 %v1162, 16
    %v1172 = vpack.i.b16 %v1171, %v1171
    %v1174 = vperm.slane %v1172, 3
    %v1176 = vshrl.u32 %v1163, 16
    %v1177 = vpack.i.b16 %v1176, %v1176
    %v1179 = vperm.slane %v1177, 3
    %v1181 = vshrl.u32 %v1164, 16
    %v1182 = vpack.i.b16 %v1181, %v1181
    %v1184 = vperm.slane %v1182, 3
    %v1185 = vunpack.c.l.bf16 %v1142
    %v1186 = vunpack.c.l.bf16 %v1143
    %v1187 = vunpack.c.l.bf16 %v1144
    %v1188 = vunpack.c.l.bf16 %v1151
    %v1189 = vunpack.c.l.bf16 %v1169
    %v1190 = vunpack.c.l.bf16 %v1174
    %v1191 = vunpack.c.l.bf16 %v1179
    %v1192 = vunpack.c.l.bf16 %v1184
    %v1193 = vmul.f32 %v1185, %v1189
    %v1194 = vmul.f32 %v1186, %v1190
    %v1195 = vmul.f32 %v1187, %v1191
    %v1196 = vmul.f32 %v1188, %v1192
    %v1197 = vpack.c.bf16 %v1194, %v1193
    %v1198 = vpack.c.bf16 %v1196, %v1195
    %v1201 = vrot.slane %v1197, 6
    %v1202 = vrot.slane %v1198, 6
    %1205 = vst [vmem:[#allocation2 + $0xe0] sm:$0xcc] %v1201
    %1206 = vst [vmem:[#allocation2 + $0xe8] sm:$0xcc] %v1202
    %1207 = vrot.lane.b32.xlu0 %v122, 120
    %v1208 = vpop.permute.xlu0 %1207
    %1209 = vrot.lane.b32.xlu0 %v123, 120
    %v1210 = vpop.permute.xlu0 %1209
    %1211 = vrot.lane.b32.xlu0 %v124, 120
    %v1212 = vpop.permute.xlu0 %1211
    %1213 = vrot.lane.b32.xlu0 %v115, 120
    %v1214 = vpop.permute.xlu0 %1213
    %vm1215 = vcmask 982016
    %v1216 = vsel %vm1215, %v1208, %v1210
    %v1217 = vsel %vm1215, %v1210, %v1212
    %v1218 = vsel %vm1215, %v1212, %v1214
    %vm1222 = vcmask 982016
    %v1225 = vsel %vm1222, %v1214, %v1208
    %v1227 = vld [vmem:[#allocation6 + $0x20] sm:$0x11]
    %v1228 = vld [vmem:[#allocation6 + $0x28] sm:$0x11]
    %v1231 = vunpack.c.l.b16 %v1227
    %v1232 = vunpack.c.h.b16 %v1227
    %v1233 = vunpack.c.l.b16 %v1228
    %v1234 = vunpack.c.h.b16 %v1228
    %v1235 = vpack.c.b16 %v1231, %v1231
    %v1236 = vpack.c.b16 %v1232, %v1232
    %v1237 = vpack.c.b16 %v1233, %v1233
    %v1238 = vpack.c.b16 %v1234, %v1234
    %v1240 = vpack.i.b16 %v1235, %v1235
    %v1242 = vperm.slane %v1240, 0
    %v1244 = vpack.i.b16 %v1236, %v1236
    %v1246 = vperm.slane %v1244, 0
    %v1248 = vpack.i.b16 %v1237, %v1237
    %v1250 = vperm.slane %v1248, 0
    %v1252 = vpack.i.b16 %v1238, %v1238
    %v1254 = vperm.slane %v1252, 0
    %v1255 = vunpack.c.l.bf16 %v1216
    %v1256 = vunpack.c.l.bf16 %v1217
    %v1257 = vunpack.c.l.bf16 %v1218
    %v1258 = vunpack.c.l.bf16 %v1225
    %v1259 = vunpack.c.l.bf16 %v1242
    %v1260 = vunpack.c.l.bf16 %v1246
    %v1261 = vunpack.c.l.bf16 %v1250
    %v1262 = vunpack.c.l.bf16 %v1254
    %v1263 = vmul.f32 %v1255, %v1259
    %v1264 = vmul.f32 %v1256, %v1260
    %v1265 = vmul.f32 %v1257, %v1261
    %v1266 = vmul.f32 %v1258, %v1262
    %v1267 = vpack.c.bf16 %v1264, %v1263
    %v1268 = vpack.c.bf16 %v1266, %v1265
    %1269 = vst [vmem:[#allocation2 + $0x100] sm:$0x33] %v1267
    %1270 = vst [vmem:[#allocation2 + $0x108] sm:$0x33] %v1268
    %1271 = vrot.lane.b32.xlu0 %v122, 119
    %v1272 = vpop.permute.xlu0 %1271
    %1273 = vrot.lane.b32.xlu0 %v123, 119
    %v1274 = vpop.permute.xlu0 %1273
    %1275 = vrot.lane.b32.xlu0 %v124, 119
    %v1276 = vpop.permute.xlu0 %1275
    %1277 = vrot.lane.b32.xlu0 %v115, 119
    %v1278 = vpop.permute.xlu0 %1277
    %vm1279 = vcmask 973824
    %v1280 = vsel %vm1279, %v1272, %v1274
    %v1281 = vsel %vm1279, %v1274, %v1276
    %v1282 = vsel %vm1279, %v1276, %v1278
    %vm1286 = vcmask 973824
    %v1289 = vsel %vm1286, %v1278, %v1272
    %v1291 = vld [vmem:[#allocation6 + $0x20] sm:$0x11]
    %v1292 = vld [vmem:[#allocation6 + $0x28] sm:$0x11]
    %v1295 = vunpack.c.l.b16 %v1291
    %v1296 = vunpack.c.h.b16 %v1291
    %v1297 = vunpack.c.l.b16 %v1292
    %v1298 = vunpack.c.h.b16 %v1292
    %v1299 = vpack.c.b16 %v1295, %v1295
    %v1300 = vpack.c.b16 %v1296, %v1296
    %v1301 = vpack.c.b16 %v1297, %v1297
    %v1302 = vpack.c.b16 %v1298, %v1298
    %v1304 = vshrl.u32 %v1299, 16
    %v1305 = vpack.i.b16 %v1304, %v1304
    %v1307 = vperm.slane %v1305, 0
    %v1309 = vshrl.u32 %v1300, 16
    %v1310 = vpack.i.b16 %v1309, %v1309
    %v1312 = vperm.slane %v1310, 0
    %v1314 = vshrl.u32 %v1301, 16
    %v1315 = vpack.i.b16 %v1314, %v1314
    %v1317 = vperm.slane %v1315, 0
    %v1319 = vshrl.u32 %v1302, 16
    %v1320 = vpack.i.b16 %v1319, %v1319
    %v1322 = vperm.slane %v1320, 0
    %v1323 = vunpack.c.l.bf16 %v1280
    %v1324 = vunpack.c.l.bf16 %v1281
    %v1325 = vunpack.c.l.bf16 %v1282
    %v1326 = vunpack.c.l.bf16 %v1289
    %v1327 = vunpack.c.l.bf16 %v1307
    %v1328 = vunpack.c.l.bf16 %v1312
    %v1329 = vunpack.c.l.bf16 %v1317
    %v1330 = vunpack.c.l.bf16 %v1322
    %v1331 = vmul.f32 %v1323, %v1327
    %v1332 = vmul.f32 %v1324, %v1328
    %v1333 = vmul.f32 %v1325, %v1329
    %v1334 = vmul.f32 %v1326, %v1330
    %v1335 = vpack.c.bf16 %v1332, %v1331
    %v1336 = vpack.c.bf16 %v1334, %v1333
    %v1339 = vrot.slane %v1335, 6
    %v1340 = vrot.slane %v1336, 6
    %1343 = vst [vmem:[#allocation2 + $0x100] sm:$0xcc] %v1339
    %1344 = vst [vmem:[#allocation2 + $0x108] sm:$0xcc] %v1340
    %v1345 = vld [vmem:[#allocation6 + $0x20] sm:$0x22]
    %v1346 = vld [vmem:[#allocation6 + $0x28] sm:$0x22]
    %v1349 = vunpack.c.l.b16 %v1345
    %v1350 = vunpack.c.h.b16 %v1345
    %v1351 = vunpack.c.l.b16 %v1346
    %v1352 = vunpack.c.h.b16 %v1346
    %v1353 = vpack.c.b16 %v1349, %v1349
    %v1354 = vpack.c.b16 %v1350, %v1350
    %v1355 = vpack.c.b16 %v1351, %v1351
    %v1356 = vpack.c.b16 %v1352, %v1352
    %v1358 = vpack.i.b16 %v1353, %v1353
    %v1360 = vperm.slane %v1358, 1
    %v1362 = vpack.i.b16 %v1354, %v1354
    %v1364 = vperm.slane %v1362, 1
    %v1366 = vpack.i.b16 %v1355, %v1355
    %v1368 = vperm.slane %v1366, 1
    %v1370 = vpack.i.b16 %v1356, %v1356
    %v1372 = vperm.slane %v1370, 1
    %v1373 = vunpack.c.l.bf16 %v1360
    %v1374 = vunpack.c.l.bf16 %v1364
    %v1375 = vunpack.c.l.bf16 %v1368
    %v1376 = vunpack.c.l.bf16 %v1372
    %v1377 = vmul.f32 %v172, %v1373
    %v1378 = vmul.f32 %v173, %v1374
    %v1379 = vmul.f32 %v174, %v1375
    %v1380 = vmul.f32 %v171, %v1376
    %v1381 = vpack.c.bf16 %v1378, %v1377
    %v1382 = vpack.c.bf16 %v1380, %v1379
    %1383 = vst [vmem:[#allocation2 + $0x120] sm:$0x33] %v1381
    %1384 = vst [vmem:[#allocation2 + $0x128] sm:$0x33] %v1382
    %v1385 = vld [vmem:[#allocation6 + $0x20] sm:$0x22]
    %v1386 = vld [vmem:[#allocation6 + $0x28] sm:$0x22]
    %v1389 = vunpack.c.l.b16 %v1385
    %v1390 = vunpack.c.h.b16 %v1385
    %v1391 = vunpack.c.l.b16 %v1386
    %v1392 = vunpack.c.h.b16 %v1386
    %v1393 = vpack.c.b16 %v1389, %v1389
    %v1394 = vpack.c.b16 %v1390, %v1390
    %v1395 = vpack.c.b16 %v1391, %v1391
    %v1396 = vpack.c.b16 %v1392, %v1392
    %v1398 = vshrl.u32 %v1393, 16
    %v1399 = vpack.i.b16 %v1398, %v1398
    %v1401 = vperm.slane %v1399, 1
    %v1403 = vshrl.u32 %v1394, 16
    %v1404 = vpack.i.b16 %v1403, %v1403
    %v1406 = vperm.slane %v1404, 1
    %v1408 = vshrl.u32 %v1395, 16
    %v1409 = vpack.i.b16 %v1408, %v1408
    %v1411 = vperm.slane %v1409, 1
    %v1413 = vshrl.u32 %v1396, 16
    %v1414 = vpack.i.b16 %v1413, %v1413
    %v1416 = vperm.slane %v1414, 1
    %v1417 = vunpack.c.l.bf16 %v1401
    %v1418 = vunpack.c.l.bf16 %v1406
    %v1419 = vunpack.c.l.bf16 %v1411
    %v1420 = vunpack.c.l.bf16 %v1416
    %v1421 = vmul.f32 %v240, %v1417
    %v1422 = vmul.f32 %v241, %v1418
    %v1423 = vmul.f32 %v242, %v1419
    %v1424 = vmul.f32 %v239, %v1420
    %v1425 = vpack.c.bf16 %v1422, %v1421
    %v1426 = vpack.c.bf16 %v1424, %v1423
    %v1429 = vrot.slane %v1425, 6
    %v1430 = vrot.slane %v1426, 6
    %1433 = vst [vmem:[#allocation2 + $0x120] sm:$0xcc] %v1429
    %1434 = vst [vmem:[#allocation2 + $0x128] sm:$0xcc] %v1430
    %v1435 = vld [vmem:[#allocation6 + $0x20] sm:$0x44]
    %v1436 = vld [vmem:[#allocation6 + $0x28] sm:$0x44]
    %v1439 = vunpack.c.l.b16 %v1435
    %v1440 = vunpack.c.h.b16 %v1435
    %v1441 = vunpack.c.l.b16 %v1436
    %v1442 = vunpack.c.h.b16 %v1436
    %v1443 = vpack.c.b16 %v1439, %v1439
    %v1444 = vpack.c.b16 %v1440, %v1440
    %v1445 = vpack.c.b16 %v1441, %v1441
    %v1446 = vpack.c.b16 %v1442, %v1442
    %v1448 = vpack.i.b16 %v1443, %v1443
    %v1450 = vperm.slane %v1448, 2
    %v1452 = vpack.i.b16 %v1444, %v1444
    %v1454 = vperm.slane %v1452, 2
    %v1456 = vpack.i.b16 %v1445, %v1445
    %v1458 = vperm.slane %v1456, 2
    %v1460 = vpack.i.b16 %v1446, %v1446
    %v1462 = vperm.slane %v1460, 2
    %v1463 = vunpack.c.l.bf16 %v1450
    %v1464 = vunpack.c.l.bf16 %v1454
    %v1465 = vunpack.c.l.bf16 %v1458
    %v1466 = vunpack.c.l.bf16 %v1462
    %v1467 = vmul.f32 %v310, %v1463
    %v1468 = vmul.f32 %v311, %v1464
    %v1469 = vmul.f32 %v312, %v1465
    %v1470 = vmul.f32 %v309, %v1466
    %v1471 = vpack.c.bf16 %v1468, %v1467
    %v1472 = vpack.c.bf16 %v1470, %v1469
    %1473 = vst [vmem:[#allocation2 + $0x140] sm:$0x33] %v1471
    %1474 = vst [vmem:[#allocation2 + $0x148] sm:$0x33] %v1472
    %v1475 = vld [vmem:[#allocation6 + $0x20] sm:$0x44]
    %v1476 = vld [vmem:[#allocation6 + $0x28] sm:$0x44]
    %v1479 = vunpack.c.l.b16 %v1475
    %v1480 = vunpack.c.h.b16 %v1475
    %v1481 = vunpack.c.l.b16 %v1476
    %v1482 = vunpack.c.h.b16 %v1476
    %v1483 = vpack.c.b16 %v1479, %v1479
    %v1484 = vpack.c.b16 %v1480, %v1480
    %v1485 = vpack.c.b16 %v1481, %v1481
    %v1486 = vpack.c.b16 %v1482, %v1482
    %v1488 = vshrl.u32 %v1483, 16
    %v1489 = vpack.i.b16 %v1488, %v1488
    %v1491 = vperm.slane %v1489, 2
    %v1493 = vshrl.u32 %v1484, 16
    %v1494 = vpack.i.b16 %v1493, %v1493
    %v1496 = vperm.slane %v1494, 2
    %v1498 = vshrl.u32 %v1485, 16
    %v1499 = vpack.i.b16 %v1498, %v1498
    %v1501 = vperm.slane %v1499, 2
    %v1503 = vshrl.u32 %v1486, 16
    %v1504 = vpack.i.b16 %v1503, %v1503
    %v1506 = vperm.slane %v1504, 2
    %v1507 = vunpack.c.l.bf16 %v1491
    %v1508 = vunpack.c.l.bf16 %v1496
    %v1509 = vunpack.c.l.bf16 %v1501
    %v1510 = vunpack.c.l.bf16 %v1506
    %v1511 = vmul.f32 %v378, %v1507
    %v1512 = vmul.f32 %v379, %v1508
    %v1513 = vmul.f32 %v380, %v1509
    %v1514 = vmul.f32 %v377, %v1510
    %v1515 = vpack.c.bf16 %v1512, %v1511
    %v1516 = vpack.c.bf16 %v1514, %v1513
    %v1519 = vrot.slane %v1515, 6
    %v1520 = vrot.slane %v1516, 6
    %1523 = vst [vmem:[#allocation2 + $0x140] sm:$0xcc] %v1519
    %1524 = vst [vmem:[#allocation2 + $0x148] sm:$0xcc] %v1520
    %v1525 = vld [vmem:[#allocation6 + $0x20] sm:$0x88]
    %v1526 = vld [vmem:[#allocation6 + $0x28] sm:$0x88]
    %v1529 = vunpack.c.l.b16 %v1525
    %v1530 = vunpack.c.h.b16 %v1525
    %v1531 = vunpack.c.l.b16 %v1526
    %v1532 = vunpack.c.h.b16 %v1526
    %v1533 = vpack.c.b16 %v1529, %v1529
    %v1534 = vpack.c.b16 %v1530, %v1530
    %v1535 = vpack.c.b16 %v1531, %v1531
    %v1536 = vpack.c.b16 %v1532, %v1532
    %v1538 = vpack.i.b16 %v1533, %v1533
    %v1540 = vperm.slane %v1538, 3
    %v1542 = vpack.i.b16 %v1534, %v1534
    %v1544 = vperm.slane %v1542, 3
    %v1546 = vpack.i.b16 %v1535, %v1535
    %v1548 = vperm.slane %v1546, 3
    %v1550 = vpack.i.b16 %v1536, %v1536
    %v1552 = vperm.slane %v1550, 3
    %v1553 = vunpack.c.l.bf16 %v1540
    %v1554 = vunpack.c.l.bf16 %v1544
    %v1555 = vunpack.c.l.bf16 %v1548
    %v1556 = vunpack.c.l.bf16 %v1552
    %v1557 = vmul.f32 %v448, %v1553
    %v1558 = vmul.f32 %v449, %v1554
    %v1559 = vmul.f32 %v450, %v1555
    %v1560 = vmul.f32 %v447, %v1556
    %v1561 = vpack.c.bf16 %v1558, %v1557
    %v1562 = vpack.c.bf16 %v1560, %v1559
    %1563 = vst [vmem:[#allocation2 + $0x160] sm:$0x33] %v1561
    %1564 = vst [vmem:[#allocation2 + $0x168] sm:$0x33] %v1562
    %v1565 = vld [vmem:[#allocation6 + $0x20] sm:$0x88]
    %v1566 = vld [vmem:[#allocation6 + $0x28] sm:$0x88]
    %v1569 = vunpack.c.l.b16 %v1565
    %v1570 = vunpack.c.h.b16 %v1565
    %v1571 = vunpack.c.l.b16 %v1566
    %v1572 = vunpack.c.h.b16 %v1566
    %v1573 = vpack.c.b16 %v1569, %v1569
    %v1574 = vpack.c.b16 %v1570, %v1570
    %v1575 = vpack.c.b16 %v1571, %v1571
    %v1576 = vpack.c.b16 %v1572, %v1572
    %v1578 = vshrl.u32 %v1573, 16
    %v1579 = vpack.i.b16 %v1578, %v1578
    %v1581 = vperm.slane %v1579, 3
    %v1583 = vshrl.u32 %v1574, 16
    %v1584 = vpack.i.b16 %v1583, %v1583
    %v1586 = vperm.slane %v1584, 3
    %v1588 = vshrl.u32 %v1575, 16
    %v1589 = vpack.i.b16 %v1588, %v1588
    %v1591 = vperm.slane %v1589, 3
    %v1593 = vshrl.u32 %v1576, 16
    %v1594 = vpack.i.b16 %v1593, %v1593
    %v1596 = vperm.slane %v1594, 3
    %v1597 = vunpack.c.l.bf16 %v1581
    %v1598 = vunpack.c.l.bf16 %v1586
    %v1599 = vunpack.c.l.bf16 %v1591
    %v1600 = vunpack.c.l.bf16 %v1596
    %v1601 = vmul.f32 %v516, %v1597
    %v1602 = vmul.f32 %v517, %v1598
    %v1603 = vmul.f32 %v518, %v1599
    %v1604 = vmul.f32 %v515, %v1600
    %v1605 = vpack.c.bf16 %v1602, %v1601
    %v1606 = vpack.c.bf16 %v1604, %v1603
    %v1609 = vrot.slane %v1605, 6
    %v1610 = vrot.slane %v1606, 6
    %1613 = vst [vmem:[#allocation2 + $0x160] sm:$0xcc] %v1609
    %1614 = vst [vmem:[#allocation2 + $0x168] sm:$0xcc] %v1610
    %v1615 = vld [vmem:[#allocation6 + $0x30] sm:$0x11]
    %v1616 = vld [vmem:[#allocation6 + $0x38] sm:$0x11]
    %v1619 = vunpack.c.l.b16 %v1615
    %v1620 = vunpack.c.h.b16 %v1615
    %v1621 = vunpack.c.l.b16 %v1616
    %v1622 = vunpack.c.h.b16 %v1616
    %v1623 = vpack.c.b16 %v1619, %v1619
    %v1624 = vpack.c.b16 %v1620, %v1620
    %v1625 = vpack.c.b16 %v1621, %v1621
    %v1626 = vpack.c.b16 %v1622, %v1622
    %v1628 = vpack.i.b16 %v1623, %v1623
    %v1630 = vperm.slane %v1628, 0
    %v1632 = vpack.i.b16 %v1624, %v1624
    %v1634 = vperm.slane %v1632, 0
    %v1636 = vpack.i.b16 %v1625, %v1625
    %v1638 = vperm.slane %v1636, 0
    %v1640 = vpack.i.b16 %v1626, %v1626
    %v1642 = vperm.slane %v1640, 0
    %v1643 = vunpack.c.l.bf16 %v1630
    %v1644 = vunpack.c.l.bf16 %v1634
    %v1645 = vunpack.c.l.bf16 %v1638
    %v1646 = vunpack.c.l.bf16 %v1642
    %v1647 = vmul.f32 %v586, %v1643
    %v1648 = vmul.f32 %v587, %v1644
    %v1649 = vmul.f32 %v588, %v1645
    %v1650 = vmul.f32 %v585, %v1646
    %v1651 = vpack.c.bf16 %v1648, %v1647
    %v1652 = vpack.c.bf16 %v1650, %v1649
    %1653 = vst [vmem:[#allocation2 + $0x180] sm:$0x33] %v1651
    %1654 = vst [vmem:[#allocation2 + $0x188] sm:$0x33] %v1652
    %v1655 = vld [vmem:[#allocation6 + $0x30] sm:$0x11]
    %v1656 = vld [vmem:[#allocation6 + $0x38] sm:$0x11]
    %v1659 = vunpack.c.l.b16 %v1655
    %v1660 = vunpack.c.h.b16 %v1655
    %v1661 = vunpack.c.l.b16 %v1656
    %v1662 = vunpack.c.h.b16 %v1656
    %v1663 = vpack.c.b16 %v1659, %v1659
    %v1664 = vpack.c.b16 %v1660, %v1660
    %v1665 = vpack.c.b16 %v1661, %v1661
    %v1666 = vpack.c.b16 %v1662, %v1662
    %v1668 = vshrl.u32 %v1663, 16
    %v1669 = vpack.i.b16 %v1668, %v1668
    %v1671 = vperm.slane %v1669, 0
    %v1673 = vshrl.u32 %v1664, 16
    %v1674 = vpack.i.b16 %v1673, %v1673
    %v1676 = vperm.slane %v1674, 0
    %v1678 = vshrl.u32 %v1665, 16
    %v1679 = vpack.i.b16 %v1678, %v1678
    %v1681 = vperm.slane %v1679, 0
    %v1683 = vshrl.u32 %v1666, 16
    %v1684 = vpack.i.b16 %v1683, %v1683
    %v1686 = vperm.slane %v1684, 0
    %v1687 = vunpack.c.l.bf16 %v1671
    %v1688 = vunpack.c.l.bf16 %v1676
    %v1689 = vunpack.c.l.bf16 %v1681
    %v1690 = vunpack.c.l.bf16 %v1686
    %v1691 = vmul.f32 %v654, %v1687
    %v1692 = vmul.f32 %v655, %v1688
    %v1693 = vmul.f32 %v656, %v1689
    %v1694 = vmul.f32 %v653, %v1690
    %v1695 = vpack.c.bf16 %v1692, %v1691
    %v1696 = vpack.c.bf16 %v1694, %v1693
    %v1699 = vrot.slane %v1695, 6
    %v1700 = vrot.slane %v1696, 6
    %1703 = vst [vmem:[#allocation2 + $0x180] sm:$0xcc] %v1699
    %1704 = vst [vmem:[#allocation2 + $0x188] sm:$0xcc] %v1700
    %v1705 = vld [vmem:[#allocation6 + $0x30] sm:$0x22]
    %v1706 = vld [vmem:[#allocation6 + $0x38] sm:$0x22]
    %v1709 = vunpack.c.l.b16 %v1705
    %v1710 = vunpack.c.h.b16 %v1705
    %v1711 = vunpack.c.l.b16 %v1706
    %v1712 = vunpack.c.h.b16 %v1706
    %v1713 = vpack.c.b16 %v1709, %v1709
    %v1714 = vpack.c.b16 %v1710, %v1710
    %v1715 = vpack.c.b16 %v1711, %v1711
    %v1716 = vpack.c.b16 %v1712, %v1712
    %v1718 = vpack.i.b16 %v1713, %v1713
    %v1720 = vperm.slane %v1718, 1
    %v1722 = vpack.i.b16 %v1714, %v1714
    %v1724 = vperm.slane %v1722, 1
    %v1726 = vpack.i.b16 %v1715, %v1715
    %v1728 = vperm.slane %v1726, 1
    %v1730 = vpack.i.b16 %v1716, %v1716
    %v1732 = vperm.slane %v1730, 1
    %v1733 = vunpack.c.l.bf16 %v1720
    %v1734 = vunpack.c.l.bf16 %v1724
    %v1735 = vunpack.c.l.bf16 %v1728
    %v1736 = vunpack.c.l.bf16 %v1732
    %v1737 = vmul.f32 %v724, %v1733
    %v1738 = vmul.f32 %v725, %v1734
    %v1739 = vmul.f32 %v726, %v1735
    %v1740 = vmul.f32 %v723, %v1736
    %v1741 = vpack.c.bf16 %v1738, %v1737
    %v1742 = vpack.c.bf16 %v1740, %v1739
    %1743 = vst [vmem:[#allocation2 + $0x1a0] sm:$0x33] %v1741
    %1744 = vst [vmem:[#allocation2 + $0x1a8] sm:$0x33] %v1742
    %v1745 = vld [vmem:[#allocation3] sm:$0xf0]
    %v1746 = vld [vmem:[#allocation3 + $0x8] sm:$0xf0]
    %v1747 = vld [vmem:[#allocation3 + $0x10] sm:$0xf0]
    %v1748 = vld [vmem:[#allocation3 + $0x18] sm:$0xf0]
    %vm1749 = vcmask 1047556
    %v1750 = vsel %vm1749, %v1745, 0.0
    %v1751 = vsel %vm1749, %v1746, 0.0
    %v1752 = vadd.f32 %v1750, %v1751
    %v1753 = vsel %vm1749, %v1747, 0.0
    %v1754 = vadd.f32 %v1752, %v1753
    %v1755 = vsel %vm1749, %v1748, 0.0
    %v1756 = vadd.f32 %v1754, %v1755
    %1757 = vadd.xlane.f32.xlu0 %v1756
    %v1758 = vpop.xlane.xlu0 %1757
    %v1759 = vmul.f32 %v1758, 0.001953125
    %v1760 = vmul.f32 %v1745, %v1745
    %v1761 = vmul.f32 %v1746, %v1746
    %v1762 = vmul.f32 %v1747, %v1747
    %v1763 = vmul.f32 %v1748, %v1748
    %v1764 = vsel %vm1749, %v1760, 0.0
    %v1765 = vsel %vm1749, %v1761, 0.0
    %v1766 = vadd.f32 %v1764, %v1765
    %v1767 = vsel %vm1749, %v1762, 0.0
    %v1768 = vadd.f32 %v1766, %v1767
    %v1769 = vsel %vm1749, %v1763, 0.0
    %v1770 = vadd.f32 %v1768, %v1769
    %1771 = vadd.xlane.f32.xlu0 %v1770
    %v1772 = vpop.xlane.xlu0 %1771
    %v1773 = vmul.f32 %v1772, 0.001953125
    %v1774 = vsub.f32 %v1745, %v1759
    %v1775 = vsub.f32 %v1746, %v1759
    %v1776 = vsub.f32 %v1747, %v1759
    %v1777 = vsub.f32 %v1748, %v1759
    %v1778 = vmul.f32 %v1759, %v1759
    %v1779 = vsub.f32 %v1773, %v1778
    %v1780 = vadd.f32 %v1779, 1e-05
    %v1781 = vrsqrt.pop %v1780
    %v1782 = vmul.f32 %v1781, %v1780
    %v1783 = vmul.f32 %v1782, %v1781
    %v1784 = vmul.f32 0.5, %v1783
    %v1785 = vsub.f32 1.5, %v1784
    %v1786 = vmul.f32 %v1781, %v1785
    %vm1787 = vweird.f32 %v1780
    %vm1788 = vweird.f32 %v1781
    %vm1789 = vmor %vm1787, %vm1788
    %v1790 = vsel %vm1789, %v1781, %v1786
    %v1791 = vmul.f32 %v1774, %v1790
    %v1792 = vmul.f32 %v1775, %v1790
    %v1793 = vmul.f32 %v1776, %v1790
    %v1794 = vmul.f32 %v1777, %v1790
    %vm1795 = vcmp.ge.f32.partialorder %v1791, 0.0
    %vm1796 = vcmp.ge.f32.partialorder %v1792, 0.0
    %vm1797 = vcmp.ge.f32.partialorder %v1793, 0.0
    %vm1798 = vcmp.ge.f32.partialorder %v1794, 0.0
    %v1799 = vmul.f32 %v1791, 0.1
    %v1800 = vmul.f32 %v1792, 0.1
    %v1801 = vmul.f32 %v1793, 0.1
    %v1802 = vmul.f32 %v1794, 0.1
    %v1803 = vsel %vm1795, %v1791, %v1799
    %v1804 = vsel %vm1796, %v1792, %v1800
    %v1805 = vsel %vm1797, %v1793, %v1801
    %v1806 = vsel %vm1798, %v1794, %v1802
    %v1807 = vpack.c.bf16 %v1804, %v1803
    %v1808 = vpack.c.bf16 %v1806, %v1805
    %v1810 = vunpack.c.h.b16 %v1808
    %v1811 = vpack.c.b16 %v1810, %v1810
    %1812 = vrot.lane.b32.xlu0 %v1811, 73
    %v1813 = vpop.permute.xlu0 %1812
    %v1815 = vunpack.c.l.b16 %v1807
    %v1816 = vunpack.c.h.b16 %v1807
    %v1817 = vunpack.c.l.b16 %v1808
    %v1818 = vpack.c.b16 %v1815, %v1815
    %v1819 = vpack.c.b16 %v1816, %v1816
    %v1820 = vpack.c.b16 %v1817, %v1817
    %1821 = vrot.lane.b32.xlu0 %v1818, 73
    %v1822 = vpop.permute.xlu0 %1821
    %1823 = vrot.lane.b32.xlu0 %v1819, 73
    %v1824 = vpop.permute.xlu0 %1823
    %1825 = vrot.lane.b32.xlu0 %v1820, 73
    %v1826 = vpop.permute.xlu0 %1825
    %v1827 = vsel %vm131, %v1822, %v1824
    %v1828 = vsel %vm131, %v1824, %v1826
    %v1829 = vsel %vm131, %v1826, %v1813
    %v1835 = vsel %vm138, %v1813, %v1822
    %v1837 = vld [vmem:[#allocation6] sm:$0x11]
    %v1838 = vld [vmem:[#allocation6 + $0x8] sm:$0x11]
    %v1841 = vunpack.c.l.b16 %v1837
    %v1842 = vunpack.c.h.b16 %v1837
    %v1843 = vunpack.c.l.b16 %v1838
    %v1844 = vunpack.c.h.b16 %v1838
    %v1845 = vpack.c.b16 %v1841, %v1841
    %v1846 = vpack.c.b16 %v1842, %v1842
    %v1847 = vpack.c.b16 %v1843, %v1843
    %v1848 = vpack.c.b16 %v1844, %v1844
    %v1850 = vpack.i.b16 %v1845, %v1845
    %v1852 = vperm.slane %v1850, 0
    %v1854 = vpack.i.b16 %v1846, %v1846
    %v1856 = vperm.slane %v1854, 0
    %v1858 = vpack.i.b16 %v1847, %v1847
    %v1860 = vperm.slane %v1858, 0
    %v1862 = vpack.i.b16 %v1848, %v1848
    %v1864 = vperm.slane %v1862, 0
    %v1865 = vunpack.c.l.bf16 %v1835
    %v1866 = vunpack.c.l.bf16 %v1827
    %v1867 = vunpack.c.l.bf16 %v1828
    %v1868 = vunpack.c.l.bf16 %v1829
    %v1869 = vunpack.c.l.bf16 %v1852
    %v1870 = vunpack.c.l.bf16 %v1856
    %v1871 = vunpack.c.l.bf16 %v1860
    %v1872 = vunpack.c.l.bf16 %v1864
    %v1873 = vmul.f32 %v1865, %v1869
    %v1874 = vmul.f32 %v1866, %v1870
    %v1875 = vmul.f32 %v1867, %v1871
    %v1876 = vmul.f32 %v1868, %v1872
    %v1877 = vpack.c.bf16 %v1874, %v1873
    %v1878 = vpack.c.bf16 %v1876, %v1875
    %v1881 = vrot.slane %v1877, 6
    %v1882 = vrot.slane %v1881, 4
    %v1883 = vrot.slane %v1878, 6
    %v1884 = vrot.slane %v1883, 4
    %1887 = vst [vmem:[#allocation2 + $0x10] sm:$0x33] %v1882
    %1888 = vst [vmem:[#allocation2 + $0x18] sm:$0x33] %v1884
    %1889 = vrot.lane.b32.xlu0 %v1811, 72
    %v1890 = vpop.permute.xlu0 %1889
    %1891 = vrot.lane.b32.xlu0 %v1818, 72
    %v1892 = vpop.permute.xlu0 %1891
    %1893 = vrot.lane.b32.xlu0 %v1819, 72
    %v1894 = vpop.permute.xlu0 %1893
    %1895 = vrot.lane.b32.xlu0 %v1820, 72
    %v1896 = vpop.permute.xlu0 %1895
    %v1897 = vsel %vm195, %v1892, %v1894
    %v1898 = vsel %vm195, %v1894, %v1896
    %v1899 = vsel %vm195, %v1896, %v1890
    %v1905 = vsel %vm202, %v1890, %v1892
    %v1907 = vld [vmem:[#allocation6] sm:$0x11]
    %v1908 = vld [vmem:[#allocation6 + $0x8] sm:$0x11]
    %v1911 = vunpack.c.l.b16 %v1907
    %v1912 = vunpack.c.h.b16 %v1907
    %v1913 = vunpack.c.l.b16 %v1908
    %v1914 = vunpack.c.h.b16 %v1908
    %v1915 = vpack.c.b16 %v1911, %v1911
    %v1916 = vpack.c.b16 %v1912, %v1912
    %v1917 = vpack.c.b16 %v1913, %v1913
    %v1918 = vpack.c.b16 %v1914, %v1914
    %v1920 = vshrl.u32 %v1915, 16
    %v1921 = vpack.i.b16 %v1920, %v1920
    %v1923 = vperm.slane %v1921, 0
    %v1925 = vshrl.u32 %v1916, 16
    %v1926 = vpack.i.b16 %v1925, %v1925
    %v1928 = vperm.slane %v1926, 0
    %v1930 = vshrl.u32 %v1917, 16
    %v1931 = vpack.i.b16 %v1930, %v1930
    %v1933 = vperm.slane %v1931, 0
    %v1935 = vshrl.u32 %v1918, 16
    %v1936 = vpack.i.b16 %v1935, %v1935
    %v1938 = vperm.slane %v1936, 0
    %v1939 = vunpack.c.l.bf16 %v1905
    %v1940 = vunpack.c.l.bf16 %v1897
    %v1941 = vunpack.c.l.bf16 %v1898
    %v1942 = vunpack.c.l.bf16 %v1899
    %v1943 = vunpack.c.l.bf16 %v1923
    %v1944 = vunpack.c.l.bf16 %v1928
    %v1945 = vunpack.c.l.bf16 %v1933
    %v1946 = vunpack.c.l.bf16 %v1938
    %v1947 = vmul.f32 %v1939, %v1943
    %v1948 = vmul.f32 %v1940, %v1944
    %v1949 = vmul.f32 %v1941, %v1945
    %v1950 = vmul.f32 %v1942, %v1946
    %v1951 = vpack.c.bf16 %v1948, %v1947
    %v1952 = vpack.c.bf16 %v1950, %v1949
    %1953 = vst [vmem:[#allocation2 + $0x10] sm:$0xcc] %v1951
    %1954 = vst [vmem:[#allocation2 + $0x18] sm:$0xcc] %v1952
    %1955 = vrot.lane.b32.xlu0 %v1811, 71
    %v1956 = vpop.permute.xlu0 %1955
    %1957 = vrot.lane.b32.xlu0 %v1818, 71
    %v1958 = vpop.permute.xlu0 %1957
    %1959 = vrot.lane.b32.xlu0 %v1819, 71
    %v1960 = vpop.permute.xlu0 %1959
    %1961 = vrot.lane.b32.xlu0 %v1820, 71
    %v1962 = vpop.permute.xlu0 %1961
    %v1963 = vsel %vm269, %v1958, %v1960
    %v1964 = vsel %vm269, %v1960, %v1962
    %v1965 = vsel %vm269, %v1962, %v1956
    %v1971 = vsel %vm276, %v1956, %v1958
    %v1973 = vld [vmem:[#allocation6] sm:$0x22]
    %v1974 = vld [vmem:[#allocation6 + $0x8] sm:$0x22]
    %v1977 = vunpack.c.l.b16 %v1973
    %v1978 = vunpack.c.h.b16 %v1973
    %v1979 = vunpack.c.l.b16 %v1974
    %v1980 = vunpack.c.h.b16 %v1974
    %v1981 = vpack.c.b16 %v1977, %v1977
    %v1982 = vpack.c.b16 %v1978, %v1978
    %v1983 = vpack.c.b16 %v1979, %v1979
    %v1984 = vpack.c.b16 %v1980, %v1980
    %v1986 = vpack.i.b16 %v1981, %v1981
    %v1988 = vperm.slane %v1986, 1
    %v1990 = vpack.i.b16 %v1982, %v1982
    %v1992 = vperm.slane %v1990, 1
    %v1994 = vpack.i.b16 %v1983, %v1983
    %v1996 = vperm.slane %v1994, 1
    %v1998 = vpack.i.b16 %v1984, %v1984
    %v2000 = vperm.slane %v1998, 1
    %v2001 = vunpack.c.l.bf16 %v1971
    %v2002 = vunpack.c.l.bf16 %v1963
    %v2003 = vunpack.c.l.bf16 %v1964
    %v2004 = vunpack.c.l.bf16 %v1965
    %v2005 = vunpack.c.l.bf16 %v1988
    %v2006 = vunpack.c.l.bf16 %v1992
    %v2007 = vunpack.c.l.bf16 %v1996
    %v2008 = vunpack.c.l.bf16 %v2000
    %v2009 = vmul.f32 %v2001, %v2005
    %v2010 = vmul.f32 %v2002, %v2006
    %v2011 = vmul.f32 %v2003, %v2007
    %v2012 = vmul.f32 %v2004, %v2008
    %v2013 = vpack.c.bf16 %v2010, %v2009
    %v2014 = vpack.c.bf16 %v2012, %v2011
    %v2017 = vrot.slane %v2013, 6
    %v2018 = vrot.slane %v2017, 4
    %v2019 = vrot.slane %v2014, 6
    %v2020 = vrot.slane %v2019, 4
    %2023 = vst [vmem:[#allocation2 + $0x30] sm:$0x33] %v2018
    %2024 = vst [vmem:[#allocation2 + $0x38] sm:$0x33] %v2020
    %2025 = vrot.lane.b32.xlu0 %v1811, 65
    %v2026 = vpop.permute.xlu0 %2025
    %2027 = vrot.lane.b32.xlu0 %v1818, 65
    %v2028 = vpop.permute.xlu0 %2027
    %2029 = vrot.lane.b32.xlu0 %v1819, 65
    %v2030 = vpop.permute.xlu0 %2029
    %2031 = vrot.lane.b32.xlu0 %v1820, 65
    %v2032 = vpop.permute.xlu0 %2031
    %v2033 = vsel %vm333, %v2028, %v2030
    %v2034 = vsel %vm333, %v2030, %v2032
    %v2035 = vsel %vm333, %v2032, %v2026
    %v2041 = vsel %vm340, %v2026, %v2028
    %v2043 = vld [vmem:[#allocation6] sm:$0x22]
    %v2044 = vld [vmem:[#allocation6 + $0x8] sm:$0x22]
    %v2047 = vunpack.c.l.b16 %v2043
    %v2048 = vunpack.c.h.b16 %v2043
    %v2049 = vunpack.c.l.b16 %v2044
    %v2050 = vunpack.c.h.b16 %v2044
    %v2051 = vpack.c.b16 %v2047, %v2047
    %v2052 = vpack.c.b16 %v2048, %v2048
    %v2053 = vpack.c.b16 %v2049, %v2049
    %v2054 = vpack.c.b16 %v2050, %v2050
    %v2056 = vshrl.u32 %v2051, 16
    %v2057 = vpack.i.b16 %v2056, %v2056
    %v2059 = vperm.slane %v2057, 1
    %v2061 = vshrl.u32 %v2052, 16
    %v2062 = vpack.i.b16 %v2061, %v2061
    %v2064 = vperm.slane %v2062, 1
    %v2066 = vshrl.u32 %v2053, 16
    %v2067 = vpack.i.b16 %v2066, %v2066
    %v2069 = vperm.slane %v2067, 1
    %v2071 = vshrl.u32 %v2054, 16
    %v2072 = vpack.i.b16 %v2071, %v2071
    %v2074 = vperm.slane %v2072, 1
    %v2075 = vunpack.c.l.bf16 %v2041
    %v2076 = vunpack.c.l.bf16 %v2033
    %v2077 = vunpack.c.l.bf16 %v2034
    %v2078 = vunpack.c.l.bf16 %v2035
    %v2079 = vunpack.c.l.bf16 %v2059
    %v2080 = vunpack.c.l.bf16 %v2064
    %v2081 = vunpack.c.l.bf16 %v2069
    %v2082 = vunpack.c.l.bf16 %v2074
    %v2083 = vmul.f32 %v2075, %v2079
    %v2084 = vmul.f32 %v2076, %v2080
    %v2085 = vmul.f32 %v2077, %v2081
    %v2086 = vmul.f32 %v2078, %v2082
    %v2087 = vpack.c.bf16 %v2084, %v2083
    %v2088 = vpack.c.bf16 %v2086, %v2085
    %2089 = vst [vmem:[#allocation2 + $0x30] sm:$0xcc] %v2087
    %2090 = vst [vmem:[#allocation2 + $0x38] sm:$0xcc] %v2088
    %2091 = vrot.lane.b32.xlu0 %v1811, 64
    %v2092 = vpop.permute.xlu0 %2091
    %2093 = vrot.lane.b32.xlu0 %v1818, 64
    %v2094 = vpop.permute.xlu0 %2093
    %2095 = vrot.lane.b32.xlu0 %v1819, 64
    %v2096 = vpop.permute.xlu0 %2095
    %2097 = vrot.lane.b32.xlu0 %v1820, 64
    %v2098 = vpop.permute.xlu0 %2097
    %v2099 = vsel %vm407, %v2094, %v2096
    %v2100 = vsel %vm407, %v2096, %v2098
    %v2101 = vsel %vm407, %v2098, %v2092
    %v2107 = vsel %vm414, %v2092, %v2094
    %v2109 = vld [vmem:[#allocation6] sm:$0x44]
    %v2110 = vld [vmem:[#allocation6 + $0x8] sm:$0x44]
    %v2113 = vunpack.c.l.b16 %v2109
    %v2114 = vunpack.c.h.b16 %v2109
    %v2115 = vunpack.c.l.b16 %v2110
    %v2116 = vunpack.c.h.b16 %v2110
    %v2117 = vpack.c.b16 %v2113, %v2113
    %v2118 = vpack.c.b16 %v2114, %v2114
    %v2119 = vpack.c.b16 %v2115, %v2115
    %v2120 = vpack.c.b16 %v2116, %v2116
    %v2122 = vpack.i.b16 %v2117, %v2117
    %v2124 = vperm.slane %v2122, 2
    %v2126 = vpack.i.b16 %v2118, %v2118
    %v2128 = vperm.slane %v2126, 2
    %v2130 = vpack.i.b16 %v2119, %v2119
    %v2132 = vperm.slane %v2130, 2
    %v2134 = vpack.i.b16 %v2120, %v2120
    %v2136 = vperm.slane %v2134, 2
    %v2137 = vunpack.c.l.bf16 %v2107
    %v2138 = vunpack.c.l.bf16 %v2099
    %v2139 = vunpack.c.l.bf16 %v2100
    %v2140 = vunpack.c.l.bf16 %v2101
    %v2141 = vunpack.c.l.bf16 %v2124
    %v2142 = vunpack.c.l.bf16 %v2128
    %v2143 = vunpack.c.l.bf16 %v2132
    %v2144 = vunpack.c.l.bf16 %v2136
    %v2145 = vmul.f32 %v2137, %v2141
    %v2146 = vmul.f32 %v2138, %v2142
    %v2147 = vmul.f32 %v2139, %v2143
    %v2148 = vmul.f32 %v2140, %v2144
    %v2149 = vpack.c.bf16 %v2146, %v2145
    %v2150 = vpack.c.bf16 %v2148, %v2147
    %v2153 = vrot.slane %v2149, 6
    %v2154 = vrot.slane %v2153, 4
    %v2155 = vrot.slane %v2150, 6
    %v2156 = vrot.slane %v2155, 4
    %2159 = vst [vmem:[#allocation2 + $0x50] sm:$0x33] %v2154
    %2160 = vst [vmem:[#allocation2 + $0x58] sm:$0x33] %v2156
    %2161 = vrot.lane.b32.xlu0 %v1811, 63
    %v2162 = vpop.permute.xlu0 %2161
    %2163 = vrot.lane.b32.xlu0 %v1818, 63
    %v2164 = vpop.permute.xlu0 %2163
    %2165 = vrot.lane.b32.xlu0 %v1819, 63
    %v2166 = vpop.permute.xlu0 %2165
    %2167 = vrot.lane.b32.xlu0 %v1820, 63
    %v2168 = vpop.permute.xlu0 %2167
    %v2169 = vsel %vm471, %v2164, %v2166
    %v2170 = vsel %vm471, %v2166, %v2168
    %v2171 = vsel %vm471, %v2168, %v2162
    %v2177 = vsel %vm478, %v2162, %v2164
    %v2179 = vld [vmem:[#allocation6] sm:$0x44]
    %v2180 = vld [vmem:[#allocation6 + $0x8] sm:$0x44]
    %v2183 = vunpack.c.l.b16 %v2179
    %v2184 = vunpack.c.h.b16 %v2179
    %v2185 = vunpack.c.l.b16 %v2180
    %v2186 = vunpack.c.h.b16 %v2180
    %v2187 = vpack.c.b16 %v2183, %v2183
    %v2188 = vpack.c.b16 %v2184, %v2184
    %v2189 = vpack.c.b16 %v2185, %v2185
    %v2190 = vpack.c.b16 %v2186, %v2186
    %v2192 = vshrl.u32 %v2187, 16
    %v2193 = vpack.i.b16 %v2192, %v2192
    %v2195 = vperm.slane %v2193, 2
    %v2197 = vshrl.u32 %v2188, 16
    %v2198 = vpack.i.b16 %v2197, %v2197
    %v2200 = vperm.slane %v2198, 2
    %v2202 = vshrl.u32 %v2189, 16
    %v2203 = vpack.i.b16 %v2202, %v2202
    %v2205 = vperm.slane %v2203, 2
    %v2207 = vshrl.u32 %v2190, 16
    %v2208 = vpack.i.b16 %v2207, %v2207
    %v2210 = vperm.slane %v2208, 2
    %v2211 = vunpack.c.l.bf16 %v2177
    %v2212 = vunpack.c.l.bf16 %v2169
    %v2213 = vunpack.c.l.bf16 %v2170
    %v2214 = vunpack.c.l.bf16 %v2171
    %v2215 = vunpack.c.l.bf16 %v2195
    %v2216 = vunpack.c.l.bf16 %v2200
    %v2217 = vunpack.c.l.bf16 %v2205
    %v2218 = vunpack.c.l.bf16 %v2210
    %v2219 = vmul.f32 %v2211, %v2215
    %v2220 = vmul.f32 %v2212, %v2216
    %v2221 = vmul.f32 %v2213, %v2217
    %v2222 = vmul.f32 %v2214, %v2218
    %v2223 = vpack.c.bf16 %v2220, %v2219
    %v2224 = vpack.c.bf16 %v2222, %v2221
    %2225 = vst [vmem:[#allocation2 + $0x50] sm:$0xcc] %v2223
    %2226 = vst [vmem:[#allocation2 + $0x58] sm:$0xcc] %v2224
    %2227 = vrot.lane.b32.xlu0 %v1811, 57
    %v2228 = vpop.permute.xlu0 %2227
    %2229 = vrot.lane.b32.xlu0 %v1818, 57
    %v2230 = vpop.permute.xlu0 %2229
    %2231 = vrot.lane.b32.xlu0 %v1819, 57
    %v2232 = vpop.permute.xlu0 %2231
    %2233 = vrot.lane.b32.xlu0 %v1820, 57
    %v2234 = vpop.permute.xlu0 %2233
    %v2235 = vsel %vm545, %v2230, %v2232
    %v2236 = vsel %vm545, %v2232, %v2234
    %v2237 = vsel %vm545, %v2234, %v2228
    %v2243 = vsel %vm552, %v2228, %v2230
    %v2245 = vld [vmem:[#allocation6] sm:$0x88]
    %v2246 = vld [vmem:[#allocation6 + $0x8] sm:$0x88]
    %v2249 = vunpack.c.l.b16 %v2245
    %v2250 = vunpack.c.h.b16 %v2245
    %v2251 = vunpack.c.l.b16 %v2246
    %v2252 = vunpack.c.h.b16 %v2246
    %v2253 = vpack.c.b16 %v2249, %v2249
    %v2254 = vpack.c.b16 %v2250, %v2250
    %v2255 = vpack.c.b16 %v2251, %v2251
    %v2256 = vpack.c.b16 %v2252, %v2252
    %v2258 = vpack.i.b16 %v2253, %v2253
    %v2260 = vperm.slane %v2258, 3
    %v2262 = vpack.i.b16 %v2254, %v2254
    %v2264 = vperm.slane %v2262, 3
    %v2266 = vpack.i.b16 %v2255, %v2255
    %v2268 = vperm.slane %v2266, 3
    %v2270 = vpack.i.b16 %v2256, %v2256
    %v2272 = vperm.slane %v2270, 3
    %v2273 = vunpack.c.l.bf16 %v2243
    %v2274 = vunpack.c.l.bf16 %v2235
    %v2275 = vunpack.c.l.bf16 %v2236
    %v2276 = vunpack.c.l.bf16 %v2237
    %v2277 = vunpack.c.l.bf16 %v2260
    %v2278 = vunpack.c.l.bf16 %v2264
    %v2279 = vunpack.c.l.bf16 %v2268
    %v2280 = vunpack.c.l.bf16 %v2272
    %v2281 = vmul.f32 %v2273, %v2277
    %v2282 = vmul.f32 %v2274, %v2278
    %v2283 = vmul.f32 %v2275, %v2279
    %v2284 = vmul.f32 %v2276, %v2280
    %v2285 = vpack.c.bf16 %v2282, %v2281
    %v2286 = vpack.c.bf16 %v2284, %v2283
    %v2289 = vrot.slane %v2285, 6
    %v2290 = vrot.slane %v2289, 4
    %v2291 = vrot.slane %v2286, 6
    %v2292 = vrot.slane %v2291, 4
    %2295 = vst [vmem:[#allocation2 + $0x70] sm:$0x33] %v2290
    %2296 = vst [vmem:[#allocation2 + $0x78] sm:$0x33] %v2292
    %2297 = vrot.lane.b32.xlu0 %v1811, 56
    %v2298 = vpop.permute.xlu0 %2297
    %2299 = vrot.lane.b32.xlu0 %v1818, 56
    %v2300 = vpop.permute.xlu0 %2299
    %2301 = vrot.lane.b32.xlu0 %v1819, 56
    %v2302 = vpop.permute.xlu0 %2301
    %2303 = vrot.lane.b32.xlu0 %v1820, 56
    %v2304 = vpop.permute.xlu0 %2303
    %v2305 = vsel %vm609, %v2300, %v2302
    %v2306 = vsel %vm609, %v2302, %v2304
    %v2307 = vsel %vm609, %v2304, %v2298
    %v2313 = vsel %vm616, %v2298, %v2300
    %v2315 = vld [vmem:[#allocation6] sm:$0x88]
    %v2316 = vld [vmem:[#allocation6 + $0x8] sm:$0x88]
    %v2319 = vunpack.c.l.b16 %v2315
    %v2320 = vunpack.c.h.b16 %v2315
    %v2321 = vunpack.c.l.b16 %v2316
    %v2322 = vunpack.c.h.b16 %v2316
    %v2323 = vpack.c.b16 %v2319, %v2319
    %v2324 = vpack.c.b16 %v2320, %v2320
    %v2325 = vpack.c.b16 %v2321, %v2321
    %v2326 = vpack.c.b16 %v2322, %v2322
    %v2328 = vshrl.u32 %v2323, 16
    %v2329 = vpack.i.b16 %v2328, %v2328
    %v2331 = vperm.slane %v2329, 3
    %v2333 = vshrl.u32 %v2324, 16
    %v2334 = vpack.i.b16 %v2333, %v2333
    %v2336 = vperm.slane %v2334, 3
    %v2338 = vshrl.u32 %v2325, 16
    %v2339 = vpack.i.b16 %v2338, %v2338
    %v2341 = vperm.slane %v2339, 3
    %v2343 = vshrl.u32 %v2326, 16
    %v2344 = vpack.i.b16 %v2343, %v2343
    %v2346 = vperm.slane %v2344, 3
    %v2347 = vunpack.c.l.bf16 %v2313
    %v2348 = vunpack.c.l.bf16 %v2305
    %v2349 = vunpack.c.l.bf16 %v2306
    %v2350 = vunpack.c.l.bf16 %v2307
    %v2351 = vunpack.c.l.bf16 %v2331
    %v2352 = vunpack.c.l.bf16 %v2336
    %v2353 = vunpack.c.l.bf16 %v2341
    %v2354 = vunpack.c.l.bf16 %v2346
    %v2355 = vmul.f32 %v2347, %v2351
    %v2356 = vmul.f32 %v2348, %v2352
    %v2357 = vmul.f32 %v2349, %v2353
    %v2358 = vmul.f32 %v2350, %v2354
    %v2359 = vpack.c.bf16 %v2356, %v2355
    %v2360 = vpack.c.bf16 %v2358, %v2357
    %2361 = vst [vmem:[#allocation2 + $0x70] sm:$0xcc] %v2359
    %2362 = vst [vmem:[#allocation2 + $0x78] sm:$0xcc] %v2360
    %2363 = vrot.lane.b32.xlu0 %v1811, 55
    %v2364 = vpop.permute.xlu0 %2363
    %2365 = vrot.lane.b32.xlu0 %v1818, 55
    %v2366 = vpop.permute.xlu0 %2365
    %2367 = vrot.lane.b32.xlu0 %v1819, 55
    %v2368 = vpop.permute.xlu0 %2367
    %2369 = vrot.lane.b32.xlu0 %v1820, 55
    %v2370 = vpop.permute.xlu0 %2369
    %v2371 = vsel %vm683, %v2366, %v2368
    %v2372 = vsel %vm683, %v2368, %v2370
    %v2373 = vsel %vm683, %v2370, %v2364
    %v2379 = vsel %vm690, %v2364, %v2366
    %v2381 = vld [vmem:[#allocation6 + $0x10] sm:$0x11]
    %v2382 = vld [vmem:[#allocation6 + $0x18] sm:$0x11]
    %v2385 = vunpack.c.l.b16 %v2381
    %v2386 = vunpack.c.h.b16 %v2381
    %v2387 = vunpack.c.l.b16 %v2382
    %v2388 = vunpack.c.h.b16 %v2382
    %v2389 = vpack.c.b16 %v2385, %v2385
    %v2390 = vpack.c.b16 %v2386, %v2386
    %v2391 = vpack.c.b16 %v2387, %v2387
    %v2392 = vpack.c.b16 %v2388, %v2388
    %v2394 = vpack.i.b16 %v2389, %v2389
    %v2396 = vperm.slane %v2394, 0
    %v2398 = vpack.i.b16 %v2390, %v2390
    %v2400 = vperm.slane %v2398, 0
    %v2402 = vpack.i.b16 %v2391, %v2391
    %v2404 = vperm.slane %v2402, 0
    %v2406 = vpack.i.b16 %v2392, %v2392
    %v2408 = vperm.slane %v2406, 0
    %v2409 = vunpack.c.l.bf16 %v2379
    %v2410 = vunpack.c.l.bf16 %v2371
    %v2411 = vunpack.c.l.bf16 %v2372
    %v2412 = vunpack.c.l.bf16 %v2373
    %v2413 = vunpack.c.l.bf16 %v2396
    %v2414 = vunpack.c.l.bf16 %v2400
    %v2415 = vunpack.c.l.bf16 %v2404
    %v2416 = vunpack.c.l.bf16 %v2408
    %v2417 = vmul.f32 %v2409, %v2413
    %v2418 = vmul.f32 %v2410, %v2414
    %v2419 = vmul.f32 %v2411, %v2415
    %v2420 = vmul.f32 %v2412, %v2416
    %v2421 = vpack.c.bf16 %v2418, %v2417
    %v2422 = vpack.c.bf16 %v2420, %v2419
    %v2425 = vrot.slane %v2421, 6
    %v2426 = vrot.slane %v2425, 4
    %v2427 = vrot.slane %v2422, 6
    %v2428 = vrot.slane %v2427, 4
    %2431 = vst [vmem:[#allocation2 + $0x90] sm:$0x33] %v2426
    %2432 = vst [vmem:[#allocation2 + $0x98] sm:$0x33] %v2428
    %2433 = vrot.lane.b32.xlu0 %v1811, 9
    %v2434 = vpop.permute.xlu0 %2433
    %2435 = vrot.lane.b32.xlu0 %v1818, 9
    %v2436 = vpop.permute.xlu0 %2435
    %2437 = vrot.lane.b32.xlu0 %v1819, 9
    %v2438 = vpop.permute.xlu0 %2437
    %2439 = vrot.lane.b32.xlu0 %v1820, 9
    %v2440 = vpop.permute.xlu0 %2439
    %v2441 = vsel %vm747, %v2436, %v2438
    %v2442 = vsel %vm747, %v2438, %v2440
    %v2443 = vsel %vm747, %v2440, %v2434
    %v2449 = vsel %vm754, %v2434, %v2436
    %v2451 = vld [vmem:[#allocation6 + $0x10] sm:$0x11]
    %v2452 = vld [vmem:[#allocation6 + $0x18] sm:$0x11]
    %v2455 = vunpack.c.l.b16 %v2451
    %v2456 = vunpack.c.h.b16 %v2451
    %v2457 = vunpack.c.l.b16 %v2452
    %v2458 = vunpack.c.h.b16 %v2452
    %v2459 = vpack.c.b16 %v2455, %v2455
    %v2460 = vpack.c.b16 %v2456, %v2456
    %v2461 = vpack.c.b16 %v2457, %v2457
    %v2462 = vpack.c.b16 %v2458, %v2458
    %v2464 = vshrl.u32 %v2459, 16
    %v2465 = vpack.i.b16 %v2464, %v2464
    %v2467 = vperm.slane %v2465, 0
    %v2469 = vshrl.u32 %v2460, 16
    %v2470 = vpack.i.b16 %v2469, %v2469
    %v2472 = vperm.slane %v2470, 0
    %v2474 = vshrl.u32 %v2461, 16
    %v2475 = vpack.i.b16 %v2474, %v2474
    %v2477 = vperm.slane %v2475, 0
    %v2479 = vshrl.u32 %v2462, 16
    %v2480 = vpack.i.b16 %v2479, %v2479
    %v2482 = vperm.slane %v2480, 0
    %v2483 = vunpack.c.l.bf16 %v2449
    %v2484 = vunpack.c.l.bf16 %v2441
    %v2485 = vunpack.c.l.bf16 %v2442
    %v2486 = vunpack.c.l.bf16 %v2443
    %v2487 = vunpack.c.l.bf16 %v2467
    %v2488 = vunpack.c.l.bf16 %v2472
    %v2489 = vunpack.c.l.bf16 %v2477
    %v2490 = vunpack.c.l.bf16 %v2482
    %v2491 = vmul.f32 %v2483, %v2487
    %v2492 = vmul.f32 %v2484, %v2488
    %v2493 = vmul.f32 %v2485, %v2489
    %v2494 = vmul.f32 %v2486, %v2490
    %v2495 = vpack.c.bf16 %v2492, %v2491
    %v2496 = vpack.c.bf16 %v2494, %v2493
    %2497 = vst [vmem:[#allocation2 + $0x90] sm:$0xcc] %v2495
    %2498 = vst [vmem:[#allocation2 + $0x98] sm:$0xcc] %v2496
    %2499 = vrot.lane.b32.xlu0 %v1811, 8
    %v2500 = vpop.permute.xlu0 %2499
    %2501 = vrot.lane.b32.xlu0 %v1818, 8
    %v2502 = vpop.permute.xlu0 %2501
    %2503 = vrot.lane.b32.xlu0 %v1819, 8
    %v2504 = vpop.permute.xlu0 %2503
    %2505 = vrot.lane.b32.xlu0 %v1820, 8
    %v2506 = vpop.permute.xlu0 %2505
    %v2507 = vsel %vm821, %v2502, %v2504
    %v2508 = vsel %vm821, %v2504, %v2506
    %v2509 = vsel %vm821, %v2506, %v2500
    %v2515 = vsel %vm828, %v2500, %v2502
    %v2517 = vld [vmem:[#allocation6 + $0x10] sm:$0x22]
    %v2518 = vld [vmem:[#allocation6 + $0x18] sm:$0x22]
    %v2521 = vunpack.c.l.b16 %v2517
    %v2522 = vunpack.c.h.b16 %v2517
    %v2523 = vunpack.c.l.b16 %v2518
    %v2524 = vunpack.c.h.b16 %v2518
    %v2525 = vpack.c.b16 %v2521, %v2521
    %v2526 = vpack.c.b16 %v2522, %v2522
    %v2527 = vpack.c.b16 %v2523, %v2523
    %v2528 = vpack.c.b16 %v2524, %v2524
    %v2530 = vpack.i.b16 %v2525, %v2525
    %v2532 = vperm.slane %v2530, 1
    %v2534 = vpack.i.b16 %v2526, %v2526
    %v2536 = vperm.slane %v2534, 1
    %v2538 = vpack.i.b16 %v2527, %v2527
    %v2540 = vperm.slane %v2538, 1
    %v2542 = vpack.i.b16 %v2528, %v2528
    %v2544 = vperm.slane %v2542, 1
    %v2545 = vunpack.c.l.bf16 %v2515
    %v2546 = vunpack.c.l.bf16 %v2507
    %v2547 = vunpack.c.l.bf16 %v2508
    %v2548 = vunpack.c.l.bf16 %v2509
    %v2549 = vunpack.c.l.bf16 %v2532
    %v2550 = vunpack.c.l.bf16 %v2536
    %v2551 = vunpack.c.l.bf16 %v2540
    %v2552 = vunpack.c.l.bf16 %v2544
    %v2553 = vmul.f32 %v2545, %v2549
    %v2554 = vmul.f32 %v2546, %v2550
    %v2555 = vmul.f32 %v2547, %v2551
    %v2556 = vmul.f32 %v2548, %v2552
    %v2557 = vpack.c.bf16 %v2554, %v2553
    %v2558 = vpack.c.bf16 %v2556, %v2555
    %v2561 = vrot.slane %v2557, 6
    %v2562 = vrot.slane %v2561, 4
    %v2563 = vrot.slane %v2558, 6
    %v2564 = vrot.slane %v2563, 4
    %2567 = vst [vmem:[#allocation2 + $0xb0] sm:$0x33] %v2562
    %2568 = vst [vmem:[#allocation2 + $0xb8] sm:$0x33] %v2564
    %2569 = vrot.lane.b32.xlu0 %v1811, 7
    %v2570 = vpop.permute.xlu0 %2569
    %2571 = vrot.lane.b32.xlu0 %v1818, 7
    %v2572 = vpop.permute.xlu0 %2571
    %2573 = vrot.lane.b32.xlu0 %v1819, 7
    %v2574 = vpop.permute.xlu0 %2573
    %2575 = vrot.lane.b32.xlu0 %v1820, 7
    %v2576 = vpop.permute.xlu0 %2575
    %v2577 = vsel %vm885, %v2572, %v2574
    %v2578 = vsel %vm885, %v2574, %v2576
    %v2579 = vsel %vm885, %v2576, %v2570
    %v2585 = vsel %vm892, %v2570, %v2572
    %v2587 = vld [vmem:[#allocation6 + $0x10] sm:$0x22]
    %v2588 = vld [vmem:[#allocation6 + $0x18] sm:$0x22]
    %v2591 = vunpack.c.l.b16 %v2587
    %v2592 = vunpack.c.h.b16 %v2587
    %v2593 = vunpack.c.l.b16 %v2588
    %v2594 = vunpack.c.h.b16 %v2588
    %v2595 = vpack.c.b16 %v2591, %v2591
    %v2596 = vpack.c.b16 %v2592, %v2592
    %v2597 = vpack.c.b16 %v2593, %v2593
    %v2598 = vpack.c.b16 %v2594, %v2594
    %v2600 = vshrl.u32 %v2595, 16
    %v2601 = vpack.i.b16 %v2600, %v2600
    %v2603 = vperm.slane %v2601, 1
    %v2605 = vshrl.u32 %v2596, 16
    %v2606 = vpack.i.b16 %v2605, %v2605
    %v2608 = vperm.slane %v2606, 1
    %v2610 = vshrl.u32 %v2597, 16
    %v2611 = vpack.i.b16 %v2610, %v2610
    %v2613 = vperm.slane %v2611, 1
    %v2615 = vshrl.u32 %v2598, 16
    %v2616 = vpack.i.b16 %v2615, %v2615
    %v2618 = vperm.slane %v2616, 1
    %v2619 = vunpack.c.l.bf16 %v2585
    %v2620 = vunpack.c.l.bf16 %v2577
    %v2621 = vunpack.c.l.bf16 %v2578
    %v2622 = vunpack.c.l.bf16 %v2579
    %v2623 = vunpack.c.l.bf16 %v2603
    %v2624 = vunpack.c.l.bf16 %v2608
    %v2625 = vunpack.c.l.bf16 %v2613
    %v2626 = vunpack.c.l.bf16 %v2618
    %v2627 = vmul.f32 %v2619, %v2623
    %v2628 = vmul.f32 %v2620, %v2624
    %v2629 = vmul.f32 %v2621, %v2625
    %v2630 = vmul.f32 %v2622, %v2626
    %v2631 = vpack.c.bf16 %v2628, %v2627
    %v2632 = vpack.c.bf16 %v2630, %v2629
    %2633 = vst [vmem:[#allocation2 + $0xb0] sm:$0xcc] %v2631
    %2634 = vst [vmem:[#allocation2 + $0xb8] sm:$0xcc] %v2632
    %2635 = vrot.lane.b32.xlu0 %v1811, 1
    %v2636 = vpop.permute.xlu0 %2635
    %2637 = vrot.lane.b32.xlu0 %v1818, 1
    %v2638 = vpop.permute.xlu0 %2637
    %2639 = vrot.lane.b32.xlu0 %v1819, 1
    %v2640 = vpop.permute.xlu0 %2639
    %2641 = vrot.lane.b32.xlu0 %v1820, 1
    %v2642 = vpop.permute.xlu0 %2641
    %v2643 = vsel %vm959, %v2638, %v2640
    %v2644 = vsel %vm959, %v2640, %v2642
    %v2645 = vsel %vm959, %v2642, %v2636
    %v2651 = vsel %vm966, %v2636, %v2638
    %v2653 = vld [vmem:[#allocation6 + $0x10] sm:$0x44]
    %v2654 = vld [vmem:[#allocation6 + $0x18] sm:$0x44]
    %v2657 = vunpack.c.l.b16 %v2653
    %v2658 = vunpack.c.h.b16 %v2653
    %v2659 = vunpack.c.l.b16 %v2654
    %v2660 = vunpack.c.h.b16 %v2654
    %v2661 = vpack.c.b16 %v2657, %v2657
    %v2662 = vpack.c.b16 %v2658, %v2658
    %v2663 = vpack.c.b16 %v2659, %v2659
    %v2664 = vpack.c.b16 %v2660, %v2660
    %v2666 = vpack.i.b16 %v2661, %v2661
    %v2668 = vperm.slane %v2666, 2
    %v2670 = vpack.i.b16 %v2662, %v2662
    %v2672 = vperm.slane %v2670, 2
    %v2674 = vpack.i.b16 %v2663, %v2663
    %v2676 = vperm.slane %v2674, 2
    %v2678 = vpack.i.b16 %v2664, %v2664
    %v2680 = vperm.slane %v2678, 2
    %v2681 = vunpack.c.l.bf16 %v2651
    %v2682 = vunpack.c.l.bf16 %v2643
    %v2683 = vunpack.c.l.bf16 %v2644
    %v2684 = vunpack.c.l.bf16 %v2645
    %v2685 = vunpack.c.l.bf16 %v2668
    %v2686 = vunpack.c.l.bf16 %v2672
    %v2687 = vunpack.c.l.bf16 %v2676
    %v2688 = vunpack.c.l.bf16 %v2680
    %v2689 = vmul.f32 %v2681, %v2685
    %v2690 = vmul.f32 %v2682, %v2686
    %v2691 = vmul.f32 %v2683, %v2687
    %v2692 = vmul.f32 %v2684, %v2688
    %v2693 = vpack.c.bf16 %v2690, %v2689
    %v2694 = vpack.c.bf16 %v2692, %v2691
    %v2697 = vrot.slane %v2693, 6
    %v2698 = vrot.slane %v2697, 4
    %v2699 = vrot.slane %v2694, 6
    %v2700 = vrot.slane %v2699, 4
    %2703 = vst [vmem:[#allocation2 + $0xd0] sm:$0x33] %v2698
    %2704 = vst [vmem:[#allocation2 + $0xd8] sm:$0x33] %v2700
    %v2705 = vld [vmem:[#allocation6 + $0x10] sm:$0x44]
    %v2706 = vld [vmem:[#allocation6 + $0x18] sm:$0x44]
    %v2709 = vunpack.c.l.b16 %v2705
    %v2710 = vunpack.c.h.b16 %v2705
    %v2711 = vunpack.c.l.b16 %v2706
    %v2712 = vunpack.c.h.b16 %v2706
    %v2713 = vpack.c.b16 %v2709, %v2709
    %v2714 = vpack.c.b16 %v2710, %v2710
    %v2715 = vpack.c.b16 %v2711, %v2711
    %v2716 = vpack.c.b16 %v2712, %v2712
    %v2718 = vshrl.u32 %v2713, 16
    %v2719 = vpack.i.b16 %v2718, %v2718
    %v2721 = vperm.slane %v2719, 2
    %v2723 = vshrl.u32 %v2714, 16
    %v2724 = vpack.i.b16 %v2723, %v2723
    %v2726 = vperm.slane %v2724, 2
    %v2728 = vshrl.u32 %v2715, 16
    %v2729 = vpack.i.b16 %v2728, %v2728
    %v2731 = vperm.slane %v2729, 2
    %v2733 = vshrl.u32 %v2716, 16
    %v2734 = vpack.i.b16 %v2733, %v2733
    %v2736 = vperm.slane %v2734, 2
    %v2737 = vunpack.c.l.bf16 %v1807
    %v2738 = vunpack.c.h.bf16 %v1807
    %v2739 = vunpack.c.l.bf16 %v1808
    %v2740 = vunpack.c.h.bf16 %v1808
    %v2741 = vunpack.c.l.bf16 %v2721
    %v2742 = vunpack.c.l.bf16 %v2726
    %v2743 = vunpack.c.l.bf16 %v2731
    %v2744 = vunpack.c.l.bf16 %v2736
    %v2745 = vmul.f32 %v2737, %v2741
    %v2746 = vmul.f32 %v2738, %v2742
    %v2747 = vmul.f32 %v2739, %v2743
    %v2748 = vmul.f32 %v2740, %v2744
    %v2749 = vpack.c.bf16 %v2746, %v2745
    %v2750 = vpack.c.bf16 %v2748, %v2747
    %2751 = vst [vmem:[#allocation2 + $0xd0] sm:$0xcc] %v2749
    %2752 = vst [vmem:[#allocation2 + $0xd8] sm:$0xcc] %v2750
    %2753 = vrot.lane.b32.xlu0 %v1818, 127
    %v2754 = vpop.permute.xlu0 %2753
    %2755 = vrot.lane.b32.xlu0 %v1819, 127
    %v2756 = vpop.permute.xlu0 %2755
    %2757 = vrot.lane.b32.xlu0 %v1820, 127
    %v2758 = vpop.permute.xlu0 %2757
    %2759 = vrot.lane.b32.xlu0 %v1811, 127
    %v2760 = vpop.permute.xlu0 %2759
    %v2761 = vsel %vm1077, %v2754, %v2756
    %v2762 = vsel %vm1077, %v2756, %v2758
    %v2763 = vsel %vm1077, %v2758, %v2760
    %v2769 = vsel %vm1084, %v2760, %v2754
    %v2771 = vld [vmem:[#allocation6 + $0x10] sm:$0x88]
    %v2772 = vld [vmem:[#allocation6 + $0x18] sm:$0x88]
    %v2775 = vunpack.c.l.b16 %v2771
    %v2776 = vunpack.c.h.b16 %v2771
    %v2777 = vunpack.c.l.b16 %v2772
    %v2778 = vunpack.c.h.b16 %v2772
    %v2779 = vpack.c.b16 %v2775, %v2775
    %v2780 = vpack.c.b16 %v2776, %v2776
    %v2781 = vpack.c.b16 %v2777, %v2777
    %v2782 = vpack.c.b16 %v2778, %v2778
    %v2784 = vpack.i.b16 %v2779, %v2779
    %v2786 = vperm.slane %v2784, 3
    %v2788 = vpack.i.b16 %v2780, %v2780
    %v2790 = vperm.slane %v2788, 3
    %v2792 = vpack.i.b16 %v2781, %v2781
    %v2794 = vperm.slane %v2792, 3
    %v2796 = vpack.i.b16 %v2782, %v2782
    %v2798 = vperm.slane %v2796, 3
    %v2799 = vunpack.c.l.bf16 %v2761
    %v2800 = vunpack.c.l.bf16 %v2762
    %v2801 = vunpack.c.l.bf16 %v2763
    %v2802 = vunpack.c.l.bf16 %v2769
    %v2803 = vunpack.c.l.bf16 %v2786
    %v2804 = vunpack.c.l.bf16 %v2790
    %v2805 = vunpack.c.l.bf16 %v2794
    %v2806 = vunpack.c.l.bf16 %v2798
    %v2807 = vmul.f32 %v2799, %v2803
    %v2808 = vmul.f32 %v2800, %v2804
    %v2809 = vmul.f32 %v2801, %v2805
    %v2810 = vmul.f32 %v2802, %v2806
    %v2811 = vpack.c.bf16 %v2808, %v2807
    %v2812 = vpack.c.bf16 %v2810, %v2809
    %v2815 = vrot.slane %v2811, 6
    %v2816 = vrot.slane %v2815, 4
    %v2817 = vrot.slane %v2812, 6
    %v2818 = vrot.slane %v2817, 4
    %2821 = vst [vmem:[#allocation2 + $0xf0] sm:$0x33] %v2816
    %2822 = vst [vmem:[#allocation2 + $0xf8] sm:$0x33] %v2818
    %2823 = vrot.lane.b32.xlu0 %v1818, 121
    %v2824 = vpop.permute.xlu0 %2823
    %2825 = vrot.lane.b32.xlu0 %v1819, 121
    %v2826 = vpop.permute.xlu0 %2825
    %2827 = vrot.lane.b32.xlu0 %v1820, 121
    %v2828 = vpop.permute.xlu0 %2827
    %2829 = vrot.lane.b32.xlu0 %v1811, 121
    %v2830 = vpop.permute.xlu0 %2829
    %v2831 = vsel %vm1141, %v2824, %v2826
    %v2832 = vsel %vm1141, %v2826, %v2828
    %v2833 = vsel %vm1141, %v2828, %v2830
    %v2839 = vsel %vm1148, %v2830, %v2824
    %v2841 = vld [vmem:[#allocation6 + $0x10] sm:$0x88]
    %v2842 = vld [vmem:[#allocation6 + $0x18] sm:$0x88]
    %v2845 = vunpack.c.l.b16 %v2841
    %v2846 = vunpack.c.h.b16 %v2841
    %v2847 = vunpack.c.l.b16 %v2842
    %v2848 = vunpack.c.h.b16 %v2842
    %v2849 = vpack.c.b16 %v2845, %v2845
    %v2850 = vpack.c.b16 %v2846, %v2846
    %v2851 = vpack.c.b16 %v2847, %v2847
    %v2852 = vpack.c.b16 %v2848, %v2848
    %v2854 = vshrl.u32 %v2849, 16
    %v2855 = vpack.i.b16 %v2854, %v2854
    %v2857 = vperm.slane %v2855, 3
    %v2859 = vshrl.u32 %v2850, 16
    %v2860 = vpack.i.b16 %v2859, %v2859
    %v2862 = vperm.slane %v2860, 3
    %v2864 = vshrl.u32 %v2851, 16
    %v2865 = vpack.i.b16 %v2864, %v2864
    %v2867 = vperm.slane %v2865, 3
    %v2869 = vshrl.u32 %v2852, 16
    %v2870 = vpack.i.b16 %v2869, %v2869
    %v2872 = vperm.slane %v2870, 3
    %v2873 = vunpack.c.l.bf16 %v2831
    %v2874 = vunpack.c.l.bf16 %v2832
    %v2875 = vunpack.c.l.bf16 %v2833
    %v2876 = vunpack.c.l.bf16 %v2839
    %v2877 = vunpack.c.l.bf16 %v2857
    %v2878 = vunpack.c.l.bf16 %v2862
    %v2879 = vunpack.c.l.bf16 %v2867
    %v2880 = vunpack.c.l.bf16 %v2872
    %v2881 = vmul.f32 %v2873, %v2877
    %v2882 = vmul.f32 %v2874, %v2878
    %v2883 = vmul.f32 %v2875, %v2879
    %v2884 = vmul.f32 %v2876, %v2880
    %v2885 = vpack.c.bf16 %v2882, %v2881
    %v2886 = vpack.c.bf16 %v2884, %v2883
    %2887 = vst [vmem:[#allocation2 + $0xf0] sm:$0xcc] %v2885
    %2888 = vst [vmem:[#allocation2 + $0xf8] sm:$0xcc] %v2886
    %2889 = vrot.lane.b32.xlu0 %v1818, 120
    %v2890 = vpop.permute.xlu0 %2889
    %2891 = vrot.lane.b32.xlu0 %v1819, 120
    %v2892 = vpop.permute.xlu0 %2891
    %2893 = vrot.lane.b32.xlu0 %v1820, 120
    %v2894 = vpop.permute.xlu0 %2893
    %2895 = vrot.lane.b32.xlu0 %v1811, 120
    %v2896 = vpop.permute.xlu0 %2895
    %v2897 = vsel %vm1215, %v2890, %v2892
    %v2898 = vsel %vm1215, %v2892, %v2894
    %v2899 = vsel %vm1215, %v2894, %v2896
    %v2905 = vsel %vm1222, %v2896, %v2890
    %v2907 = vld [vmem:[#allocation6 + $0x20] sm:$0x11]
    %v2908 = vld [vmem:[#allocation6 + $0x28] sm:$0x11]
    %v2911 = vunpack.c.l.b16 %v2907
    %v2912 = vunpack.c.h.b16 %v2907
    %v2913 = vunpack.c.l.b16 %v2908
    %v2914 = vunpack.c.h.b16 %v2908
    %v2915 = vpack.c.b16 %v2911, %v2911
    %v2916 = vpack.c.b16 %v2912, %v2912
    %v2917 = vpack.c.b16 %v2913, %v2913
    %v2918 = vpack.c.b16 %v2914, %v2914
    %v2920 = vpack.i.b16 %v2915, %v2915
    %v2922 = vperm.slane %v2920, 0
    %v2924 = vpack.i.b16 %v2916, %v2916
    %v2926 = vperm.slane %v2924, 0
    %v2928 = vpack.i.b16 %v2917, %v2917
    %v2930 = vperm.slane %v2928, 0
    %v2932 = vpack.i.b16 %v2918, %v2918
    %v2934 = vperm.slane %v2932, 0
    %v2935 = vunpack.c.l.bf16 %v2897
    %v2936 = vunpack.c.l.bf16 %v2898
    %v2937 = vunpack.c.l.bf16 %v2899
    %v2938 = vunpack.c.l.bf16 %v2905
    %v2939 = vunpack.c.l.bf16 %v2922
    %v2940 = vunpack.c.l.bf16 %v2926
    %v2941 = vunpack.c.l.bf16 %v2930
    %v2942 = vunpack.c.l.bf16 %v2934
    %v2943 = vmul.f32 %v2935, %v2939
    %v2944 = vmul.f32 %v2936, %v2940
    %v2945 = vmul.f32 %v2937, %v2941
    %v2946 = vmul.f32 %v2938, %v2942
    %v2947 = vpack.c.bf16 %v2944, %v2943
    %v2948 = vpack.c.bf16 %v2946, %v2945
    %v2951 = vrot.slane %v2947, 6
    %v2952 = vrot.slane %v2951, 4
    %v2953 = vrot.slane %v2948, 6
    %v2954 = vrot.slane %v2953, 4
    %2957 = vst [vmem:[#allocation2 + $0x110] sm:$0x33] %v2952
    %2958 = vst [vmem:[#allocation2 + $0x118] sm:$0x33] %v2954
    %2959 = vrot.lane.b32.xlu0 %v1818, 119
    %v2960 = vpop.permute.xlu0 %2959
    %2961 = vrot.lane.b32.xlu0 %v1819, 119
    %v2962 = vpop.permute.xlu0 %2961
    %2963 = vrot.lane.b32.xlu0 %v1820, 119
    %v2964 = vpop.permute.xlu0 %2963
    %2965 = vrot.lane.b32.xlu0 %v1811, 119
    %v2966 = vpop.permute.xlu0 %2965
    %v2967 = vsel %vm1279, %v2960, %v2962
    %v2968 = vsel %vm1279, %v2962, %v2964
    %v2969 = vsel %vm1279, %v2964, %v2966
    %v2975 = vsel %vm1286, %v2966, %v2960
    %v2977 = vld [vmem:[#allocation6 + $0x20] sm:$0x11]
    %v2978 = vld [vmem:[#allocation6 + $0x28] sm:$0x11]
    %v2981 = vunpack.c.l.b16 %v2977
    %v2982 = vunpack.c.h.b16 %v2977
    %v2983 = vunpack.c.l.b16 %v2978
    %v2984 = vunpack.c.h.b16 %v2978
    %v2985 = vpack.c.b16 %v2981, %v2981
    %v2986 = vpack.c.b16 %v2982, %v2982
    %v2987 = vpack.c.b16 %v2983, %v2983
    %v2988 = vpack.c.b16 %v2984, %v2984
    %v2990 = vshrl.u32 %v2985, 16
    %v2991 = vpack.i.b16 %v2990, %v2990
    %v2993 = vperm.slane %v2991, 0
    %v2995 = vshrl.u32 %v2986, 16
    %v2996 = vpack.i.b16 %v2995, %v2995
    %v2998 = vperm.slane %v2996, 0
    %v3000 = vshrl.u32 %v2987, 16
    %v3001 = vpack.i.b16 %v3000, %v3000
    %v3003 = vperm.slane %v3001, 0
    %v3005 = vshrl.u32 %v2988, 16
    %v3006 = vpack.i.b16 %v3005, %v3005
    %v3008 = vperm.slane %v3006, 0
    %v3009 = vunpack.c.l.bf16 %v2967
    %v3010 = vunpack.c.l.bf16 %v2968
    %v3011 = vunpack.c.l.bf16 %v2969
    %v3012 = vunpack.c.l.bf16 %v2975
    %v3013 = vunpack.c.l.bf16 %v2993
    %v3014 = vunpack.c.l.bf16 %v2998
    %v3015 = vunpack.c.l.bf16 %v3003
    %v3016 = vunpack.c.l.bf16 %v3008
    %v3017 = vmul.f32 %v3009, %v3013
    %v3018 = vmul.f32 %v3010, %v3014
    %v3019 = vmul.f32 %v3011, %v3015
    %v3020 = vmul.f32 %v3012, %v3016
    %v3021 = vpack.c.bf16 %v3018, %v3017
    %v3022 = vpack.c.bf16 %v3020, %v3019
    %3023 = vst [vmem:[#allocation2 + $0x110] sm:$0xcc] %v3021
    %3024 = vst [vmem:[#allocation2 + $0x118] sm:$0xcc] %v3022
    %v3025 = vld [vmem:[#allocation6 + $0x20] sm:$0x22]
    %v3026 = vld [vmem:[#allocation6 + $0x28] sm:$0x22]
    %v3029 = vunpack.c.l.b16 %v3025
    %v3030 = vunpack.c.h.b16 %v3025
    %v3031 = vunpack.c.l.b16 %v3026
    %v3032 = vunpack.c.h.b16 %v3026
    %v3033 = vpack.c.b16 %v3029, %v3029
    %v3034 = vpack.c.b16 %v3030, %v3030
    %v3035 = vpack.c.b16 %v3031, %v3031
    %v3036 = vpack.c.b16 %v3032, %v3032
    %v3038 = vpack.i.b16 %v3033, %v3033
    %v3040 = vperm.slane %v3038, 1
    %v3042 = vpack.i.b16 %v3034, %v3034
    %v3044 = vperm.slane %v3042, 1
    %v3046 = vpack.i.b16 %v3035, %v3035
    %v3048 = vperm.slane %v3046, 1
    %v3050 = vpack.i.b16 %v3036, %v3036
    %v3052 = vperm.slane %v3050, 1
    %v3053 = vunpack.c.l.bf16 %v3040
    %v3054 = vunpack.c.l.bf16 %v3044
    %v3055 = vunpack.c.l.bf16 %v3048
    %v3056 = vunpack.c.l.bf16 %v3052
    %v3057 = vmul.f32 %v1866, %v3053
    %v3058 = vmul.f32 %v1867, %v3054
    %v3059 = vmul.f32 %v1868, %v3055
    %v3060 = vmul.f32 %v1865, %v3056
    %v3061 = vpack.c.bf16 %v3058, %v3057
    %v3062 = vpack.c.bf16 %v3060, %v3059
    %v3065 = vrot.slane %v3061, 6
    %v3066 = vrot.slane %v3065, 4
    %v3067 = vrot.slane %v3062, 6
    %v3068 = vrot.slane %v3067, 4
    %3071 = vst [vmem:[#allocation2 + $0x130] sm:$0x33] %v3066
    %3072 = vst [vmem:[#allocation2 + $0x138] sm:$0x33] %v3068
    %v3073 = vld [vmem:[#allocation6 + $0x20] sm:$0x22]
    %v3074 = vld [vmem:[#allocation6 + $0x28] sm:$0x22]
    %v3077 = vunpack.c.l.b16 %v3073
    %v3078 = vunpack.c.h.b16 %v3073
    %v3079 = vunpack.c.l.b16 %v3074
    %v3080 = vunpack.c.h.b16 %v3074
    %v3081 = vpack.c.b16 %v3077, %v3077
    %v3082 = vpack.c.b16 %v3078, %v3078
    %v3083 = vpack.c.b16 %v3079, %v3079
    %v3084 = vpack.c.b16 %v3080, %v3080
    %v3086 = vshrl.u32 %v3081, 16
    %v3087 = vpack.i.b16 %v3086, %v3086
    %v3089 = vperm.slane %v3087, 1
    %v3091 = vshrl.u32 %v3082, 16
    %v3092 = vpack.i.b16 %v3091, %v3091
    %v3094 = vperm.slane %v3092, 1
    %v3096 = vshrl.u32 %v3083, 16
    %v3097 = vpack.i.b16 %v3096, %v3096
    %v3099 = vperm.slane %v3097, 1
    %v3101 = vshrl.u32 %v3084, 16
    %v3102 = vpack.i.b16 %v3101, %v3101
    %v3104 = vperm.slane %v3102, 1
    %v3105 = vunpack.c.l.bf16 %v3089
    %v3106 = vunpack.c.l.bf16 %v3094
    %v3107 = vunpack.c.l.bf16 %v3099
    %v3108 = vunpack.c.l.bf16 %v3104
    %v3109 = vmul.f32 %v1940, %v3105
    %v3110 = vmul.f32 %v1941, %v3106
    %v3111 = vmul.f32 %v1942, %v3107
    %v3112 = vmul.f32 %v1939, %v3108
    %v3113 = vpack.c.bf16 %v3110, %v3109
    %v3114 = vpack.c.bf16 %v3112, %v3111
    %3115 = vst [vmem:[#allocation2 + $0x130] sm:$0xcc] %v3113
    %3116 = vst [vmem:[#allocation2 + $0x138] sm:$0xcc] %v3114
    %v3117 = vld [vmem:[#allocation6 + $0x20] sm:$0x44]
    %v3118 = vld [vmem:[#allocation6 + $0x28] sm:$0x44]
    %v3121 = vunpack.c.l.b16 %v3117
    %v3122 = vunpack.c.h.b16 %v3117
    %v3123 = vunpack.c.l.b16 %v3118
    %v3124 = vunpack.c.h.b16 %v3118
    %v3125 = vpack.c.b16 %v3121, %v3121
    %v3126 = vpack.c.b16 %v3122, %v3122
    %v3127 = vpack.c.b16 %v3123, %v3123
    %v3128 = vpack.c.b16 %v3124, %v3124
    %v3130 = vpack.i.b16 %v3125, %v3125
    %v3132 = vperm.slane %v3130, 2
    %v3134 = vpack.i.b16 %v3126, %v3126
    %v3136 = vperm.slane %v3134, 2
    %v3138 = vpack.i.b16 %v3127, %v3127
    %v3140 = vperm.slane %v3138, 2
    %v3142 = vpack.i.b16 %v3128, %v3128
    %v3144 = vperm.slane %v3142, 2
    %v3145 = vunpack.c.l.bf16 %v3132
    %v3146 = vunpack.c.l.bf16 %v3136
    %v3147 = vunpack.c.l.bf16 %v3140
    %v3148 = vunpack.c.l.bf16 %v3144
    %v3149 = vmul.f32 %v2002, %v3145
    %v3150 = vmul.f32 %v2003, %v3146
    %v3151 = vmul.f32 %v2004, %v3147
    %v3152 = vmul.f32 %v2001, %v3148
    %v3153 = vpack.c.bf16 %v3150, %v3149
    %v3154 = vpack.c.bf16 %v3152, %v3151
    %v3157 = vrot.slane %v3153, 6
    %v3158 = vrot.slane %v3157, 4
    %v3159 = vrot.slane %v3154, 6
    %v3160 = vrot.slane %v3159, 4
    %3163 = vst [vmem:[#allocation2 + $0x150] sm:$0x33] %v3158
    %3164 = vst [vmem:[#allocation2 + $0x158] sm:$0x33] %v3160
    %v3165 = vld [vmem:[#allocation6 + $0x20] sm:$0x44]
    %v3166 = vld [vmem:[#allocation6 + $0x28] sm:$0x44]
    %v3169 = vunpack.c.l.b16 %v3165
    %v3170 = vunpack.c.h.b16 %v3165
    %v3171 = vunpack.c.l.b16 %v3166
    %v3172 = vunpack.c.h.b16 %v3166
    %v3173 = vpack.c.b16 %v3169, %v3169
    %v3174 = vpack.c.b16 %v3170, %v3170
    %v3175 = vpack.c.b16 %v3171, %v3171
    %v3176 = vpack.c.b16 %v3172, %v3172
    %v3178 = vshrl.u32 %v3173, 16
    %v3179 = vpack.i.b16 %v3178, %v3178
    %v3181 = vperm.slane %v3179, 2
    %v3183 = vshrl.u32 %v3174, 16
    %v3184 = vpack.i.b16 %v3183, %v3183
    %v3186 = vperm.slane %v3184, 2
    %v3188 = vshrl.u32 %v3175, 16
    %v3189 = vpack.i.b16 %v3188, %v3188
    %v3191 = vperm.slane %v3189, 2
    %v3193 = vshrl.u32 %v3176, 16
    %v3194 = vpack.i.b16 %v3193, %v3193
    %v3196 = vperm.slane %v3194, 2
    %v3197 = vunpack.c.l.bf16 %v3181
    %v3198 = vunpack.c.l.bf16 %v3186
    %v3199 = vunpack.c.l.bf16 %v3191
    %v3200 = vunpack.c.l.bf16 %v3196
    %v3201 = vmul.f32 %v2076, %v3197
    %v3202 = vmul.f32 %v2077, %v3198
    %v3203 = vmul.f32 %v2078, %v3199
    %v3204 = vmul.f32 %v2075, %v3200
    %v3205 = vpack.c.bf16 %v3202, %v3201
    %v3206 = vpack.c.bf16 %v3204, %v3203
    %3207 = vst [vmem:[#allocation2 + $0x150] sm:$0xcc] %v3205
    %3208 = vst [vmem:[#allocation2 + $0x158] sm:$0xcc] %v3206
    %v3209 = vld [vmem:[#allocation6 + $0x20] sm:$0x88]
    %v3210 = vld [vmem:[#allocation6 + $0x28] sm:$0x88]
    %v3213 = vunpack.c.l.b16 %v3209
    %v3214 = vunpack.c.h.b16 %v3209
    %v3215 = vunpack.c.l.b16 %v3210
    %v3216 = vunpack.c.h.b16 %v3210
    %v3217 = vpack.c.b16 %v3213, %v3213
    %v3218 = vpack.c.b16 %v3214, %v3214
    %v3219 = vpack.c.b16 %v3215, %v3215
    %v3220 = vpack.c.b16 %v3216, %v3216
    %v3222 = vpack.i.b16 %v3217, %v3217
    %v3224 = vperm.slane %v3222, 3
    %v3226 = vpack.i.b16 %v3218, %v3218
    %v3228 = vperm.slane %v3226, 3
    %v3230 = vpack.i.b16 %v3219, %v3219
    %v3232 = vperm.slane %v3230, 3
    %v3234 = vpack.i.b16 %v3220, %v3220
    %v3236 = vperm.slane %v3234, 3
    %v3237 = vunpack.c.l.bf16 %v3224
    %v3238 = vunpack.c.l.bf16 %v3228
    %v3239 = vunpack.c.l.bf16 %v3232
    %v3240 = vunpack.c.l.bf16 %v3236
    %v3241 = vmul.f32 %v2138, %v3237
    %v3242 = vmul.f32 %v2139, %v3238
    %v3243 = vmul.f32 %v2140, %v3239
    %v3244 = vmul.f32 %v2137, %v3240
    %v3245 = vpack.c.bf16 %v3242, %v3241
    %v3246 = vpack.c.bf16 %v3244, %v3243
    %v3249 = vrot.slane %v3245, 6
    %v3250 = vrot.slane %v3249, 4
    %v3251 = vrot.slane %v3246, 6
    %v3252 = vrot.slane %v3251, 4
    %3255 = vst [vmem:[#allocation2 + $0x170] sm:$0x33] %v3250
    %3256 = vst [vmem:[#allocation2 + $0x178] sm:$0x33] %v3252
    %v3257 = vld [vmem:[#allocation6 + $0x20] sm:$0x88]
    %v3258 = vld [vmem:[#allocation6 + $0x28] sm:$0x88]
    %v3261 = vunpack.c.l.b16 %v3257
    %v3262 = vunpack.c.h.b16 %v3257
    %v3263 = vunpack.c.l.b16 %v3258
    %v3264 = vunpack.c.h.b16 %v3258
    %v3265 = vpack.c.b16 %v3261, %v3261
    %v3266 = vpack.c.b16 %v3262, %v3262
    %v3267 = vpack.c.b16 %v3263, %v3263
    %v3268 = vpack.c.b16 %v3264, %v3264
    %v3270 = vshrl.u32 %v3265, 16
    %v3271 = vpack.i.b16 %v3270, %v3270
    %v3273 = vperm.slane %v3271, 3
    %v3275 = vshrl.u32 %v3266, 16
    %v3276 = vpack.i.b16 %v3275, %v3275
    %v3278 = vperm.slane %v3276, 3
    %v3280 = vshrl.u32 %v3267, 16
    %v3281 = vpack.i.b16 %v3280, %v3280
    %v3283 = vperm.slane %v3281, 3
    %v3285 = vshrl.u32 %v3268, 16
    %v3286 = vpack.i.b16 %v3285, %v3285
    %v3288 = vperm.slane %v3286, 3
    %v3289 = vunpack.c.l.bf16 %v3273
    %v3290 = vunpack.c.l.bf16 %v3278
    %v3291 = vunpack.c.l.bf16 %v3283
    %v3292 = vunpack.c.l.bf16 %v3288
    %v3293 = vmul.f32 %v2212, %v3289
    %v3294 = vmul.f32 %v2213, %v3290
    %v3295 = vmul.f32 %v2214, %v3291
    %v3296 = vmul.f32 %v2211, %v3292
    %v3297 = vpack.c.bf16 %v3294, %v3293
    %v3298 = vpack.c.bf16 %v3296, %v3295
    %3299 = vst [vmem:[#allocation2 + $0x170] sm:$0xcc] %v3297
    %3300 = vst [vmem:[#allocation2 + $0x178] sm:$0xcc] %v3298
    %v3301 = vld [vmem:[#allocation6 + $0x30] sm:$0x11]
    %v3302 = vld [vmem:[#allocation6 + $0x38] sm:$0x11]
    %v3305 = vunpack.c.l.b16 %v3301
    %v3306 = vunpack.c.h.b16 %v3301
    %v3307 = vunpack.c.l.b16 %v3302
    %v3308 = vunpack.c.h.b16 %v3302
    %v3309 = vpack.c.b16 %v3305, %v3305
    %v3310 = vpack.c.b16 %v3306, %v3306
    %v3311 = vpack.c.b16 %v3307, %v3307
    %v3312 = vpack.c.b16 %v3308, %v3308
    %v3314 = vpack.i.b16 %v3309, %v3309
    %v3316 = vperm.slane %v3314, 0
    %v3318 = vpack.i.b16 %v3310, %v3310
    %v3320 = vperm.slane %v3318, 0
    %v3322 = vpack.i.b16 %v3311, %v3311
    %v3324 = vperm.slane %v3322, 0
    %v3326 = vpack.i.b16 %v3312, %v3312
    %v3328 = vperm.slane %v3326, 0
    %v3329 = vunpack.c.l.bf16 %v3316
    %v3330 = vunpack.c.l.bf16 %v3320
    %v3331 = vunpack.c.l.bf16 %v3324
    %v3332 = vunpack.c.l.bf16 %v3328
    %v3333 = vmul.f32 %v2274, %v3329
    %v3334 = vmul.f32 %v2275, %v3330
    %v3335 = vmul.f32 %v2276, %v3331
    %v3336 = vmul.f32 %v2273, %v3332
    %v3337 = vpack.c.bf16 %v3334, %v3333
    %v3338 = vpack.c.bf16 %v3336, %v3335
    %v3341 = vrot.slane %v3337, 6
    %v3342 = vrot.slane %v3341, 4
    %v3343 = vrot.slane %v3338, 6
    %v3344 = vrot.slane %v3343, 4
    %3347 = vst [vmem:[#allocation2 + $0x190] sm:$0x33] %v3342
    %3348 = vst [vmem:[#allocation2 + $0x198] sm:$0x33] %v3344
    %v3349 = vld [vmem:[#allocation6 + $0x30] sm:$0x11]
    %v3350 = vld [vmem:[#allocation6 + $0x38] sm:$0x11]
    %v3353 = vunpack.c.l.b16 %v3349
    %v3354 = vunpack.c.h.b16 %v3349
    %v3355 = vunpack.c.l.b16 %v3350
    %v3356 = vunpack.c.h.b16 %v3350
    %v3357 = vpack.c.b16 %v3353, %v3353
    %v3358 = vpack.c.b16 %v3354, %v3354
    %v3359 = vpack.c.b16 %v3355, %v3355
    %v3360 = vpack.c.b16 %v3356, %v3356
    %v3362 = vshrl.u32 %v3357, 16
    %v3363 = vpack.i.b16 %v3362, %v3362
    %v3365 = vperm.slane %v3363, 0
    %v3367 = vshrl.u32 %v3358, 16
    %v3368 = vpack.i.b16 %v3367, %v3367
    %v3370 = vperm.slane %v3368, 0
    %v3372 = vshrl.u32 %v3359, 16
    %v3373 = vpack.i.b16 %v3372, %v3372
    %v3375 = vperm.slane %v3373, 0
    %v3377 = vshrl.u32 %v3360, 16
    %v3378 = vpack.i.b16 %v3377, %v3377
    %v3380 = vperm.slane %v3378, 0
    %v3381 = vunpack.c.l.bf16 %v3365
    %v3382 = vunpack.c.l.bf16 %v3370
    %v3383 = vunpack.c.l.bf16 %v3375
    %v3384 = vunpack.c.l.bf16 %v3380
    %v3385 = vmul.f32 %v2348, %v3381
    %v3386 = vmul.f32 %v2349, %v3382
    %v3387 = vmul.f32 %v2350, %v3383
    %v3388 = vmul.f32 %v2347, %v3384
    %v3389 = vpack.c.bf16 %v3386, %v3385
    %v3390 = vpack.c.bf16 %v3388, %v3387
    %3391 = vst [vmem:[#allocation2 + $0x190] sm:$0xcc] %v3389
    %3392 = vst [vmem:[#allocation2 + $0x198] sm:$0xcc] %v3390
    %v3393 = vld [vmem:[#allocation6 + $0x30] sm:$0x22]
    %v3394 = vld [vmem:[#allocation6 + $0x38] sm:$0x22]
    %v3397 = vunpack.c.l.b16 %v3393
    %v3398 = vunpack.c.h.b16 %v3393
    %v3399 = vunpack.c.l.b16 %v3394
    %v3400 = vunpack.c.h.b16 %v3394
    %v3401 = vpack.c.b16 %v3397, %v3397
    %v3402 = vpack.c.b16 %v3398, %v3398
    %v3403 = vpack.c.b16 %v3399, %v3399
    %v3404 = vpack.c.b16 %v3400, %v3400
    %v3406 = vpack.i.b16 %v3401, %v3401
    %v3408 = vperm.slane %v3406, 1
    %v3410 = vpack.i.b16 %v3402, %v3402
    %v3412 = vperm.slane %v3410, 1
    %v3414 = vpack.i.b16 %v3403, %v3403
    %v3416 = vperm.slane %v3414, 1
    %v3418 = vpack.i.b16 %v3404, %v3404
    %v3420 = vperm.slane %v3418, 1
    %v3421 = vunpack.c.l.bf16 %v3408
    %v3422 = vunpack.c.l.bf16 %v3412
    %v3423 = vunpack.c.l.bf16 %v3416
    %v3424 = vunpack.c.l.bf16 %v3420
    %v3425 = vmul.f32 %v2410, %v3421
    %v3426 = vmul.f32 %v2411, %v3422
    %v3427 = vmul.f32 %v2412, %v3423
    %v3428 = vmul.f32 %v2409, %v3424
    %v3429 = vpack.c.bf16 %v3426, %v3425
    %v3430 = vpack.c.bf16 %v3428, %v3427
    %v3433 = vrot.slane %v3429, 6
    %v3434 = vrot.slane %v3433, 4
    %v3435 = vrot.slane %v3430, 6
    %v3436 = vrot.slane %v3435, 4
    %3439 = vst [vmem:[#allocation2 + $0x1b0] sm:$0x33] %v3434
    %3440 = vst [vmem:[#allocation2 + $0x1b8] sm:$0x33] %v3436
    %v3441 = vld [vmem:[%s1] sm:$0x3]
    %v3442 = vld [vmem:[#allocation2] sm:$0xff]
    %v3443 = vld [vmem:[#allocation2 + $0x8] sm:$0xff]
    %v3444 = vld [vmem:[#allocation2 + $0x10] sm:$0xff]
    %v3445 = vld [vmem:[#allocation2 + $0x18] sm:$0xff]
    %v3446 = vld [vmem:[#allocation2 + $0x20] sm:$0xff]
    %v3447 = vld [vmem:[#allocation2 + $0x28] sm:$0xff]
    %v3448 = vld [vmem:[#allocation2 + $0x30] sm:$0xff]
    %v3449 = vld [vmem:[#allocation2 + $0x38] sm:$0xff]
    %v3450 = vld [vmem:[#allocation2 + $0x40] sm:$0xff]
    %v3451 = vld [vmem:[#allocation2 + $0x48] sm:$0xff]
    %v3452 = vld [vmem:[#allocation2 + $0x50] sm:$0xff]
    %v3453 = vld [vmem:[#allocation2 + $0x58] sm:$0xff]
    %v3454 = vld [vmem:[#allocation2 + $0x60] sm:$0xff]
    %v3455 = vld [vmem:[#allocation2 + $0x68] sm:$0xff]
    %v3456 = vld [vmem:[#allocation2 + $0x70] sm:$0xff]
    %v3457 = vld [vmem:[#allocation2 + $0x78] sm:$0xff]
    %v3458 = vld [vmem:[#allocation2 + $0x80] sm:$0xff]
    %v3459 = vld [vmem:[#allocation2 + $0x88] sm:$0xff]
    %v3460 = vld [vmem:[#allocation2 + $0x90] sm:$0xff]
    %v3461 = vld [vmem:[#allocation2 + $0x98] sm:$0xff]
    %v3462 = vld [vmem:[#allocation2 + $0xa0] sm:$0xff]
    %v3463 = vld [vmem:[#allocation2 + $0xa8] sm:$0xff]
    %v3464 = vld [vmem:[#allocation2 + $0xb0] sm:$0xff]
    %v3465 = vld [vmem:[#allocation2 + $0xb8] sm:$0xff]
    %v3466 = vld [vmem:[#allocation2 + $0xc0] sm:$0xff]
    %v3467 = vld [vmem:[#allocation2 + $0xc8] sm:$0xff]
    %v3468 = vld [vmem:[#allocation2 + $0xd0] sm:$0xff]
    %v3469 = vld [vmem:[#allocation2 + $0xd8] sm:$0xff]
    %v3470 = vld [vmem:[#allocation2 + $0xe0] sm:$0xff]
    %v3471 = vld [vmem:[#allocation2 + $0xe8] sm:$0xff]
    %v3472 = vld [vmem:[#allocation2 + $0xf0] sm:$0xff]
    %v3473 = vld [vmem:[#allocation2 + $0xf8] sm:$0xff]
    %v3474 = vld [vmem:[#allocation2 + $0x100] sm:$0xff]
    %v3475 = vld [vmem:[#allocation2 + $0x108] sm:$0xff]
    %v3476 = vld [vmem:[#allocation2 + $0x110] sm:$0xff]
    %v3477 = vld [vmem:[#allocation2 + $0x118] sm:$0xff]
    %v3478 = vld [vmem:[#allocation2 + $0x120] sm:$0xff]
    %v3479 = vld [vmem:[#allocation2 + $0x128] sm:$0xff]
    %v3480 = vld [vmem:[#allocation2 + $0x130] sm:$0xff]
    %v3481 = vld [vmem:[#allocation2 + $0x138] sm:$0xff]
    %v3482 = vld [vmem:[#allocation2 + $0x140] sm:$0xff]
    %v3483 = vld [vmem:[#allocation2 + $0x148] sm:$0xff]
    %v3484 = vld [vmem:[#allocation2 + $0x150] sm:$0xff]
    %v3485 = vld [vmem:[#allocation2 + $0x158] sm:$0xff]
    %v3486 = vld [vmem:[#allocation2 + $0x160] sm:$0xff]
    %v3487 = vld [vmem:[#allocation2 + $0x168] sm:$0xff]
    %v3488 = vld [vmem:[#allocation2 + $0x170] sm:$0xff]
    %v3489 = vld [vmem:[#allocation2 + $0x178] sm:$0xff]
    %v3490 = vld [vmem:[#allocation2 + $0x180] sm:$0xff]
    %v3491 = vld [vmem:[#allocation2 + $0x188] sm:$0xff]
    %v3492 = vld [vmem:[#allocation2 + $0x190] sm:$0xff]
    %v3493 = vld [vmem:[#allocation2 + $0x198] sm:$0xff]
    %v3494 = vld [vmem:[#allocation2 + $0x1a0] sm:$0x33]
    %v3495 = vld [vmem:[#allocation2 + $0x1a8] sm:$0x33]
    %v3496 = vld [vmem:[#allocation2 + $0x1b0] sm:$0x33]
    %v3497 = vld [vmem:[#allocation2 + $0x1b8] sm:$0x33]
    %v3554 = vunpack.c.l.b16 %v3442
    %v3555 = vunpack.c.h.b16 %v3442
    %v3556 = vunpack.c.l.b16 %v3443
    %v3557 = vunpack.c.h.b16 %v3443
    %v3558 = vunpack.c.l.b16 %v3444
    %v3559 = vunpack.c.h.b16 %v3444
    %v3560 = vunpack.c.l.b16 %v3445
    %v3561 = vunpack.c.h.b16 %v3445
    %v3562 = vunpack.c.l.b16 %v3446
    %v3563 = vunpack.c.h.b16 %v3446
    %v3564 = vunpack.c.l.b16 %v3447
    %v3565 = vunpack.c.h.b16 %v3447
    %v3566 = vunpack.c.l.b16 %v3448
    %v3567 = vunpack.c.h.b16 %v3448
    %v3568 = vunpack.c.l.b16 %v3449
    %v3569 = vunpack.c.h.b16 %v3449
    %v3570 = vunpack.c.l.b16 %v3450
    %v3571 = vunpack.c.h.b16 %v3450
    %v3572 = vunpack.c.l.b16 %v3451
    %v3573 = vunpack.c.h.b16 %v3451
    %v3574 = vunpack.c.l.b16 %v3452
    %v3575 = vunpack.c.h.b16 %v3452
    %v3576 = vunpack.c.l.b16 %v3453
    %v3577 = vunpack.c.h.b16 %v3453
    %v3578 = vunpack.c.l.b16 %v3454
    %v3579 = vunpack.c.h.b16 %v3454
    %v3580 = vunpack.c.l.b16 %v3455
    %v3581 = vunpack.c.h.b16 %v3455
    %v3582 = vunpack.c.l.b16 %v3456
    %v3583 = vunpack.c.h.b16 %v3456
    %v3584 = vunpack.c.l.b16 %v3457
    %v3585 = vunpack.c.h.b16 %v3457
    %v3586 = vunpack.c.l.b16 %v3458
    %v3587 = vunpack.c.h.b16 %v3458
    %v3588 = vunpack.c.l.b16 %v3459
    %v3589 = vunpack.c.h.b16 %v3459
    %v3590 = vunpack.c.l.b16 %v3460
    %v3591 = vunpack.c.h.b16 %v3460
    %v3592 = vunpack.c.l.b16 %v3461
    %v3593 = vunpack.c.h.b16 %v3461
    %v3594 = vunpack.c.l.b16 %v3462
    %v3595 = vunpack.c.h.b16 %v3462
    %v3596 = vunpack.c.l.b16 %v3463
    %v3597 = vunpack.c.h.b16 %v3463
    %v3598 = vunpack.c.l.b16 %v3464
    %v3599 = vunpack.c.h.b16 %v3464
    %v3600 = vunpack.c.l.b16 %v3465
    %v3601 = vunpack.c.h.b16 %v3465
    %v3602 = vunpack.c.l.b16 %v3466
    %v3603 = vunpack.c.h.b16 %v3466
    %v3604 = vunpack.c.l.b16 %v3467
    %v3605 = vunpack.c.h.b16 %v3467
    %v3606 = vunpack.c.l.b16 %v3468
    %v3607 = vunpack.c.h.b16 %v3468
    %v3608 = vunpack.c.l.b16 %v3469
    %v3609 = vunpack.c.h.b16 %v3469
    %v3610 = vunpack.c.l.b16 %v3470
    %v3611 = vunpack.c.h.b16 %v3470
    %v3612 = vunpack.c.l.b16 %v3471
    %v3613 = vunpack.c.h.b16 %v3471
    %v3614 = vunpack.c.l.b16 %v3472
    %v3615 = vunpack.c.h.b16 %v3472
    %v3616 = vunpack.c.l.b16 %v3473
    %v3617 = vunpack.c.h.b16 %v3473
    %v3618 = vunpack.c.l.b16 %v3474
    %v3619 = vunpack.c.h.b16 %v3474
    %v3620 = vunpack.c.l.b16 %v3475
    %v3621 = vunpack.c.h.b16 %v3475
    %v3622 = vunpack.c.l.b16 %v3476
    %v3623 = vunpack.c.h.b16 %v3476
    %v3624 = vunpack.c.l.b16 %v3477
    %v3625 = vunpack.c.h.b16 %v3477
    %v3626 = vunpack.c.l.b16 %v3478
    %v3627 = vunpack.c.h.b16 %v3478
    %v3628 = vunpack.c.l.b16 %v3479
    %v3629 = vunpack.c.h.b16 %v3479
    %v3630 = vunpack.c.l.b16 %v3480
    %v3631 = vunpack.c.h.b16 %v3480
    %v3632 = vunpack.c.l.b16 %v3481
    %v3633 = vunpack.c.h.b16 %v3481
    %v3634 = vunpack.c.l.b16 %v3482
    %v3635 = vunpack.c.h.b16 %v3482
    %v3636 = vunpack.c.l.b16 %v3483
    %v3637 = vunpack.c.h.b16 %v3483
    %v3638 = vunpack.c.l.b16 %v3484
    %v3639 = vunpack.c.h.b16 %v3484
    %v3640 = vunpack.c.l.b16 %v3485
    %v3641 = vunpack.c.h.b16 %v3485
    %v3642 = vunpack.c.l.b16 %v3486
    %v3643 = vunpack.c.h.b16 %v3486
    %v3644 = vunpack.c.l.b16 %v3487
    %v3645 = vunpack.c.h.b16 %v3487
    %v3646 = vunpack.c.l.b16 %v3488
    %v3647 = vunpack.c.h.b16 %v3488
    %v3648 = vunpack.c.l.b16 %v3489
    %v3649 = vunpack.c.h.b16 %v3489
    %v3650 = vunpack.c.l.b16 %v3490
    %v3651 = vunpack.c.h.b16 %v3490
    %v3652 = vunpack.c.l.b16 %v3491
    %v3653 = vunpack.c.h.b16 %v3491
    %v3654 = vunpack.c.l.b16 %v3492
    %v3655 = vunpack.c.h.b16 %v3492
    %v3656 = vunpack.c.l.b16 %v3493
    %v3657 = vunpack.c.h.b16 %v3493
    %v3658 = vunpack.c.l.b16 %v3494
    %v3659 = vunpack.c.h.b16 %v3494
    %v3660 = vunpack.c.l.b16 %v3495
    %v3661 = vunpack.c.h.b16 %v3495
    %v3662 = vunpack.c.l.b16 %v3496
    %v3663 = vunpack.c.h.b16 %v3496
    %v3664 = vunpack.c.l.b16 %v3497
    %v3665 = vunpack.c.h.b16 %v3497
    %v3666 = vpack.c.b16 %v3562, %v3554
    %v3667 = vpack.c.b16 %v3563, %v3555
    %v3668 = vpack.c.b16 %v3564, %v3556
    %v3669 = vpack.c.b16 %v3565, %v3557
    %v3670 = vpack.c.b16 %v3566, %v3558
    %v3671 = vpack.c.b16 %v3567, %v3559
    %v3672 = vpack.c.b16 %v3568, %v3560
    %v3673 = vpack.c.b16 %v3569, %v3561
    %v3674 = vpack.c.b16 %v3578, %v3570
    %v3675 = vpack.c.b16 %v3579, %v3571
    %v3676 = vpack.c.b16 %v3580, %v3572
    %v3677 = vpack.c.b16 %v3581, %v3573
    %v3678 = vpack.c.b16 %v3582, %v3574
    %v3679 = vpack.c.b16 %v3583, %v3575
    %v3680 = vpack.c.b16 %v3584, %v3576
    %v3681 = vpack.c.b16 %v3585, %v3577
    %v3682 = vpack.c.b16 %v3594, %v3586
    %v3683 = vpack.c.b16 %v3595, %v3587
    %v3684 = vpack.c.b16 %v3596, %v3588
    %v3685 = vpack.c.b16 %v3597, %v3589
    %v3686 = vpack.c.b16 %v3598, %v3590
    %v3687 = vpack.c.b16 %v3599, %v3591
    %v3688 = vpack.c.b16 %v3600, %v3592
    %v3689 = vpack.c.b16 %v3601, %v3593
    %v3690 = vpack.c.b16 %v3610, %v3602
    %v3691 = vpack.c.b16 %v3611, %v3603
    %v3692 = vpack.c.b16 %v3612, %v3604
    %v3693 = vpack.c.b16 %v3613, %v3605
    %v3694 = vpack.c.b16 %v3614, %v3606
    %v3695 = vpack.c.b16 %v3615, %v3607
    %v3696 = vpack.c.b16 %v3616, %v3608
    %v3697 = vpack.c.b16 %v3617, %v3609
    %v3698 = vpack.c.b16 %v3626, %v3618
    %v3699 = vpack.c.b16 %v3627, %v3619
    %v3700 = vpack.c.b16 %v3628, %v3620
    %v3701 = vpack.c.b16 %v3629, %v3621
    %v3702 = vpack.c.b16 %v3630, %v3622
    %v3703 = vpack.c.b16 %v3631, %v3623
    %v3704 = vpack.c.b16 %v3632, %v3624
    %v3705 = vpack.c.b16 %v3633, %v3625
    %v3706 = vpack.c.b16 %v3642, %v3634
    %v3707 = vpack.c.b16 %v3643, %v3635
    %v3708 = vpack.c.b16 %v3644, %v3636
    %v3709 = vpack.c.b16 %v3645, %v3637
    %v3710 = vpack.c.b16 %v3646, %v3638
    %v3711 = vpack.c.b16 %v3647, %v3639
    %v3712 = vpack.c.b16 %v3648, %v3640
    %v3713 = vpack.c.b16 %v3649, %v3641
    %v3714 = vpack.c.b16 %v3658, %v3650
    %v3715 = vpack.c.b16 %v3659, %v3651
    %v3716 = vpack.c.b16 %v3660, %v3652
    %v3717 = vpack.c.b16 %v3661, %v3653
    %v3718 = vpack.c.b16 %v3662, %v3654
    %v3719 = vpack.c.b16 %v3663, %v3655
    %v3720 = vpack.c.b16 %v3664, %v3656
    %v3721 = vpack.c.b16 %v3665, %v3657
    %vm3770 = vcmask 883712
    %v3772 = vsel %vm3770, %v3441, 0
    %vm3774 = vcmask 1045504
    %v3776 = vsel %vm3774, %v3714, 0
    %v3779 = vsel %vm3774, %v3715, 0
    %v3782 = vsel %vm3774, %v3716, 0
    %v3785 = vsel %vm3774, %v3717, 0
    %v3788 = vsel %vm3774, %v3718, 0
    %v3791 = vsel %vm3774, %v3719, 0
    %v3794 = vsel %vm3774, %v3720, 0
    %v3797 = vsel %vm3774, %v3721, 0
    %3799 = vmatpush.bf16.msra.mxu0 0
    %3800 = vmatpush.bf16.msra.mxu0 %v3776
    %3801 = vmatpush.bf16.msra.mxu0 %v3706
    %3802 = vmatpush.bf16.msra.mxu0 %v3698
    %3803 = vmatpush.bf16.msra.mxu0 %v3690
    %3804 = vmatpush.bf16.msra.mxu0 %v3682
    %3805 = vmatpush.bf16.msra.mxu0 %v3674
    %3806 = vmatpush.bf16.msra.mxu0 %v3666
    %3807 = vmatmul.bf16.gmra.mxu0 %v3772
    %v3808 = vpop.f32.mrf.mxu0
    %v3809 = vadd.f32 0.0, %v3808
    %v3810 = vpop.f32.mrf.mxu0
    %3811 = vdwg.mxu0
    %3812 = vmatpush.bf16.msra.mxu0 0
    %3813 = vmatpush.bf16.msra.mxu0 %v3779
    %3814 = vmatpush.bf16.msra.mxu0 %v3707
    %3815 = vmatpush.bf16.msra.mxu0 %v3699
    %3816 = vmatpush.bf16.msra.mxu0 %v3691
    %3817 = vmatpush.bf16.msra.mxu0 %v3683
    %3818 = vmatpush.bf16.msra.mxu0 %v3675
    %3819 = vmatpush.bf16.msra.mxu0 %v3667
    %3820 = vmatmul.bf16.gmra.mxu0 %v3772
    %v3821 = vpop.f32.mrf.mxu0
    %v3822 = vadd.f32 0.0, %v3821
    %v3823 = vpop.f32.mrf.mxu0
    %3824 = vdwg.mxu0
    %3825 = vmatpush.bf16.msra.mxu0 0
    %3826 = vmatpush.bf16.msra.mxu0 %v3782
    %3827 = vmatpush.bf16.msra.mxu0 %v3708
    %3828 = vmatpush.bf16.msra.mxu0 %v3700
    %3829 = vmatpush.bf16.msra.mxu0 %v3692
    %3830 = vmatpush.bf16.msra.mxu0 %v3684
    %3831 = vmatpush.bf16.msra.mxu0 %v3676
    %3832 = vmatpush.bf16.msra.mxu0 %v3668
    %3833 = vmatmul.bf16.gmra.mxu0 %v3772
    %v3834 = vpop.f32.mrf.mxu0
    %v3835 = vadd.f32 0.0, %v3834
    %v3836 = vpop.f32.mrf.mxu0
    %3837 = vdwg.mxu0
    %3838 = vmatpush.bf16.msra.mxu0 0
    %3839 = vmatpush.bf16.msra.mxu0 %v3785
    %3840 = vmatpush.bf16.msra.mxu0 %v3709
    %3841 = vmatpush.bf16.msra.mxu0 %v3701
    %3842 = vmatpush.bf16.msra.mxu0 %v3693
    %3843 = vmatpush.bf16.msra.mxu0 %v3685
    %3844 = vmatpush.bf16.msra.mxu0 %v3677
    %3845 = vmatpush.bf16.msra.mxu0 %v3669
    %3846 = vmatmul.bf16.gmra.mxu0 %v3772
    %v3847 = vpop.f32.mrf.mxu0
    %v3848 = vadd.f32 0.0, %v3847
    %v3849 = vpop.f32.mrf.mxu0
    %3850 = vdwg.mxu0
    %3851 = vmatpush.bf16.msra.mxu0 0
    %3852 = vmatpush.bf16.msra.mxu0 %v3788
    %3853 = vmatpush.bf16.msra.mxu0 %v3710
    %3854 = vmatpush.bf16.msra.mxu0 %v3702
    %3855 = vmatpush.bf16.msra.mxu0 %v3694
    %3856 = vmatpush.bf16.msra.mxu0 %v3686
    %3857 = vmatpush.bf16.msra.mxu0 %v3678
    %3858 = vmatpush.bf16.msra.mxu0 %v3670
    %3859 = vmatmul.bf16.gmra.mxu0 %v3772
    %v3860 = vpop.f32.mrf.mxu0
    %v3861 = vadd.f32 0.0, %v3860
    %v3862 = vpop.f32.mrf.mxu0
    %3863 = vdwg.mxu0
    %3864 = vmatpush.bf16.msra.mxu0 0
    %3865 = vmatpush.bf16.msra.mxu0 %v3791
    %3866 = vmatpush.bf16.msra.mxu0 %v3711
    %3867 = vmatpush.bf16.msra.mxu0 %v3703
    %3868 = vmatpush.bf16.msra.mxu0 %v3695
    %3869 = vmatpush.bf16.msra.mxu0 %v3687
    %3870 = vmatpush.bf16.msra.mxu0 %v3679
    %3871 = vmatpush.bf16.msra.mxu0 %v3671
    %3872 = vmatmul.bf16.gmra.mxu0 %v3772
    %v3873 = vpop.f32.mrf.mxu0
    %v3874 = vadd.f32 0.0, %v3873
    %v3875 = vpop.f32.mrf.mxu0
    %3876 = vdwg.mxu0
    %3877 = vmatpush.bf16.msra.mxu0 0
    %3878 = vmatpush.bf16.msra.mxu0 %v3794
    %3879 = vmatpush.bf16.msra.mxu0 %v3712
    %3880 = vmatpush.bf16.msra.mxu0 %v3704
    %3881 = vmatpush.bf16.msra.mxu0 %v3696
    %3882 = vmatpush.bf16.msra.mxu0 %v3688
    %3883 = vmatpush.bf16.msra.mxu0 %v3680
    %3884 = vmatpush.bf16.msra.mxu0 %v3672
    %3885 = vmatmul.bf16.gmra.mxu0 %v3772
    %v3886 = vpop.f32.mrf.mxu0
    %v3887 = vadd.f32 0.0, %v3886
    %v3888 = vpop.f32.mrf.mxu0
    %3889 = vdwg.mxu0
    %3890 = vmatpush.bf16.msra.mxu0 0
    %3891 = vmatpush.bf16.msra.mxu0 %v3797
    %3892 = vmatpush.bf16.msra.mxu0 %v3713
    %3893 = vmatpush.bf16.msra.mxu0 %v3705
    %3894 = vmatpush.bf16.msra.mxu0 %v3697
    %3895 = vmatpush.bf16.msra.mxu0 %v3689
    %3896 = vmatpush.bf16.msra.mxu0 %v3681
    %3897 = vmatpush.bf16.msra.mxu0 %v3673
    %3898 = vmatmul.bf16.gmra.mxu0 %v3772
    %v3899 = vpop.f32.mrf.mxu0
    %v3900 = vadd.f32 0.0, %v3899
    %v3901 = vpop.f32.mrf.mxu0
    %3902 = vdwg.mxu0
    %v3903 = vld [vmem:[#allocation3] sm:$0xf]
    %v3904 = vld [vmem:[#allocation3 + $0x8] sm:$0xf]
    %v3905 = vld [vmem:[#allocation3 + $0x10] sm:$0xf]
    %v3906 = vld [vmem:[#allocation3 + $0x18] sm:$0xf]
    %v3907 = vld [vmem:[%s2] sm:$0xf]
    %3909 = vset.pattern.permute.xlu0 0
    %3910 = vperm.xlu0 %3909, %v3907
    %v3911 = vpop.permute.xlu0 %3910
    %v3913 = vadd.f32 %v3809, %v3911
    %v3914 = vadd.f32 %v3822, %v3911
    %v3915 = vadd.f32 %v3835, %v3911
    %v3916 = vadd.f32 %v3848, %v3911
    %v3917 = vadd.f32 %v3913, %v3903
    %v3918 = vadd.f32 %v3914, %v3904
    %v3919 = vadd.f32 %v3915, %v3905
    %v3920 = vadd.f32 %v3916, %v3906
    %v3921 = vsel %vm53, %v3917, 0.0
    %v3922 = vsel %vm53, %v3918, 0.0
    %v3923 = vadd.f32 %v3921, %v3922
    %v3924 = vsel %vm53, %v3919, 0.0
    %v3925 = vadd.f32 %v3923, %v3924
    %v3926 = vsel %vm53, %v3920, 0.0
    %v3927 = vadd.f32 %v3925, %v3926
    %3928 = vadd.xlane.f32.xlu0 %v3927
    %v3929 = vpop.xlane.xlu0 %3928
    %v3930 = vmul.f32 %v3929, 0.001953125
    %v3931 = vmul.f32 %v3917, %v3917
    %v3932 = vmul.f32 %v3918, %v3918
    %v3933 = vmul.f32 %v3919, %v3919
    %v3934 = vmul.f32 %v3920, %v3920
    %v3935 = vsel %vm53, %v3931, 0.0
    %v3936 = vsel %vm53, %v3932, 0.0
    %v3937 = vadd.f32 %v3935, %v3936
    %v3938 = vsel %vm53, %v3933, 0.0
    %v3939 = vadd.f32 %v3937, %v3938
    %v3940 = vsel %vm53, %v3934, 0.0
    %v3941 = vadd.f32 %v3939, %v3940
    %3942 = vadd.xlane.f32.xlu0 %v3941
    %v3943 = vpop.xlane.xlu0 %3942
    %v3944 = vmul.f32 %v3943, 0.001953125
    %v3945 = vsub.f32 %v3917, %v3930
    %v3946 = vsub.f32 %v3918, %v3930
    %v3947 = vsub.f32 %v3919, %v3930
    %v3948 = vsub.f32 %v3920, %v3930
    %v3949 = vmul.f32 %v3930, %v3930
    %v3950 = vsub.f32 %v3944, %v3949
    %v3951 = vadd.f32 %v3950, 1e-05
    %v3952 = vrsqrt.pop %v3951
    %v3953 = vmul.f32 %v3952, %v3951
    %v3954 = vmul.f32 %v3953, %v3952
    %v3955 = vmul.f32 0.5, %v3954
    %v3956 = vsub.f32 1.5, %v3955
    %v3957 = vmul.f32 %v3952, %v3956
    %vm3958 = vweird.f32 %v3951
    %vm3959 = vweird.f32 %v3952
    %vm3960 = vmor %vm3958, %vm3959
    %v3961 = vsel %vm3960, %v3952, %v3957
    %v3962 = vmul.f32 %v3945, %v3961
    %v3963 = vmul.f32 %v3946, %v3961
    %v3964 = vmul.f32 %v3947, %v3961
    %v3965 = vmul.f32 %v3948, %v3961
    %vm3966 = vcmp.ge.f32.partialorder %v3962, 0.0
    %vm3967 = vcmp.ge.f32.partialorder %v3963, 0.0
    %vm3968 = vcmp.ge.f32.partialorder %v3964, 0.0
    %vm3969 = vcmp.ge.f32.partialorder %v3965, 0.0
    %v3970 = vmul.f32 %v3962, 0.1
    %v3971 = vmul.f32 %v3963, 0.1
    %v3972 = vmul.f32 %v3964, 0.1
    %v3973 = vmul.f32 %v3965, 0.1
    %v3974 = vsel %vm3966, %v3962, %v3970
    %v3975 = vsel %vm3967, %v3963, %v3971
    %v3976 = vsel %vm3968, %v3964, %v3972
    %v3977 = vsel %vm3969, %v3965, %v3973
    %3978 = vst [vmem:[#allocation8] sm:$0xf] %v3974
    %3979 = vst [vmem:[#allocation8 + $0x8] sm:$0xf] %v3975
    %3980 = vst [vmem:[#allocation8 + $0x10] sm:$0xf] %v3976
    %3981 = vst [vmem:[#allocation8 + $0x18] sm:$0xf] %v3977
    %v3982 = vld [vmem:[#allocation3] sm:$0xf0]
    %v3983 = vld [vmem:[#allocation3 + $0x8] sm:$0xf0]
    %v3984 = vld [vmem:[#allocation3 + $0x10] sm:$0xf0]
    %v3985 = vld [vmem:[#allocation3 + $0x18] sm:$0xf0]
    %v3986 = vld [vmem:[%s2] sm:$0xf]
    %3988 = vset.pattern.permute.xlu0 0
    %3989 = vperm.xlu0 %3988, %v3986
    %v3990 = vpop.permute.xlu0 %3989
    %v3992 = vadd.f32 %v3861, %v3990
    %v3993 = vadd.f32 %v3874, %v3990
    %v3994 = vadd.f32 %v3887, %v3990
    %v3995 = vadd.f32 %v3900, %v3990
    %v4000 = vrot.slane %v3982, 4
    %v4001 = vrot.slane %v3983, 4
    %v4002 = vrot.slane %v3984, 4
    %v4003 = vrot.slane %v3985, 4
    %v4008 = vadd.f32 %v3992, %v4000
    %v4009 = vadd.f32 %v3993, %v4001
    %v4010 = vadd.f32 %v3994, %v4002
    %v4011 = vadd.f32 %v3995, %v4003
    %v4012 = vsel %vm53, %v4008, 0.0
    %v4013 = vsel %vm53, %v4009, 0.0
    %v4014 = vadd.f32 %v4012, %v4013
    %v4015 = vsel %vm53, %v4010, 0.0
    %v4016 = vadd.f32 %v4014, %v4015
    %v4017 = vsel %vm53, %v4011, 0.0
    %v4018 = vadd.f32 %v4016, %v4017
    %4019 = vadd.xlane.f32.xlu0 %v4018
    %v4020 = vpop.xlane.xlu0 %4019
    %v4021 = vmul.f32 %v4020, 0.001953125
    %v4022 = vmul.f32 %v4008, %v4008
    %v4023 = vmul.f32 %v4009, %v4009
    %v4024 = vmul.f32 %v4010, %v4010
    %v4025 = vmul.f32 %v4011, %v4011
    %v4026 = vsel %vm53, %v4022, 0.0
    %v4027 = vsel %vm53, %v4023, 0.0
    %v4028 = vadd.f32 %v4026, %v4027
    %v4029 = vsel %vm53, %v4024, 0.0
    %v4030 = vadd.f32 %v4028, %v4029
    %v4031 = vsel %vm53, %v4025, 0.0
    %v4032 = vadd.f32 %v4030, %v4031
    %4033 = vadd.xlane.f32.xlu0 %v4032
    %v4034 = vpop.xlane.xlu0 %4033
    %v4035 = vmul.f32 %v4034, 0.001953125
    %v4036 = vsub.f32 %v4008, %v4021
    %v4037 = vsub.f32 %v4009, %v4021
    %v4038 = vsub.f32 %v4010, %v4021
    %v4039 = vsub.f32 %v4011, %v4021
    %v4040 = vmul.f32 %v4021, %v4021
    %v4041 = vsub.f32 %v4035, %v4040
    %v4042 = vadd.f32 %v4041, 1e-05
    %v4043 = vrsqrt.pop %v4042
    %v4044 = vmul.f32 %v4043, %v4042
    %v4045 = vmul.f32 %v4044, %v4043
    %v4046 = vmul.f32 0.5, %v4045
    %v4047 = vsub.f32 1.5, %v4046
    %v4048 = vmul.f32 %v4043, %v4047
    %vm4049 = vweird.f32 %v4042
    %vm4050 = vweird.f32 %v4043
    %vm4051 = vmor %vm4049, %vm4050
    %v4052 = vsel %vm4051, %v4043, %v4048
    %v4053 = vmul.f32 %v4036, %v4052
    %v4054 = vmul.f32 %v4037, %v4052
    %v4055 = vmul.f32 %v4038, %v4052
    %v4056 = vmul.f32 %v4039, %v4052
    %vm4057 = vcmp.ge.f32.partialorder %v4053, 0.0
    %vm4058 = vcmp.ge.f32.partialorder %v4054, 0.0
    %vm4059 = vcmp.ge.f32.partialorder %v4055, 0.0
    %vm4060 = vcmp.ge.f32.partialorder %v4056, 0.0
    %v4061 = vmul.f32 %v4053, 0.1
    %v4062 = vmul.f32 %v4054, 0.1
    %v4063 = vmul.f32 %v4055, 0.1
    %v4064 = vmul.f32 %v4056, 0.1
    %v4065 = vsel %vm4057, %v4053, %v4061
    %v4066 = vsel %vm4058, %v4054, %v4062
    %v4067 = vsel %vm4059, %v4055, %v4063
    %v4068 = vsel %vm4060, %v4056, %v4064
    %v4073 = vrot.slane %v4065, 4
    %v4074 = vrot.slane %v4066, 4
    %v4075 = vrot.slane %v4067, 4
    %v4076 = vrot.slane %v4068, 4
    %4081 = vst [vmem:[#allocation8] sm:$0xf0] %v4073
    %4082 = vst [vmem:[#allocation8 + $0x8] sm:$0xf0] %v4074
    %4083 = vst [vmem:[#allocation8 + $0x10] sm:$0xf0] %v4075
    %4084 = vst [vmem:[#allocation8 + $0x18] sm:$0xf0] %v4076
    // Predicated region
    $region26: #{tpu_custom_call.1} parent=1 // pred_check
      _
    $region27: #{tpu_custom_call.1} parent=1 // pred_check_branch
      %4086 = sbr.rel (0) target = $region29
    $region28: #{tpu_custom_call.1} parent=1 // pred_region
      %4088 = vsyncadd [#allocation5], 0
      %s4090 = sshll.u32 [#allocation8], 4
      %s4091 = int_to_ptr.vmem [resolvable:$true] %s4090
      %s4092 = sshll.u32 %s4, 4
      %s4093 = int_to_ptr.hbm [resolvable:$true] %s4092
      %4095 = dma.vmem_to_hbm [thread:$0]  %s4091, 512, %s4093, [#allocation5]
    $region29: #{tpu_custom_call.1} parent=1 // pred_fallthru
      _
    // Predicated region
    $region30: #{tpu_custom_call.1} parent=1 // pred_check
      _
    $region31: #{tpu_custom_call.1} parent=1 // pred_check_branch
      %4097 = sbr.rel (0) target = $region33
    $region32: #{tpu_custom_call.1} parent=1 // pred_region
      %4099 = dma.done [#allocation5], 512
    $region33: #{tpu_custom_call.1} parent=1 // pred_fallthru
      _
    %4100 = vsyncpa [#allocation4], 1
    %4101 = vsyncpa [#allocation7], 1
    %4102 = vsyncpa [#allocation5], 1

</llo_original>
